<compile_context>
chip_gen: v7x
topology: tpu7x:2x2x1
jax: 0.10.0
libtpu: 0.0.40
codegen_flags: <defaults>
</compile_context>

<pallas_src>
import functools

import jax
import jax.numpy as jnp
from jax import lax
from jax.experimental import pallas as pl
from jax.experimental.pallas import tpu as pltpu


# ----------------------------------------------------------------------------
# Fused kernel: conv 7x7/s2/p3 (bf16 matmul on in-VMEM patches) + BN + ReLU +
# maxpool 3x3/s2/p1, for B images per grid step.
# ----------------------------------------------------------------------------
def _stem_fused_kernel(xs_ref, w_ref, bias_ref, o_ref, patches_ref, *, B, OH, PW):
    """xs_ref:      (B, OH+3, PW+2, 32) bf16 space-to-depth'd zero-padded input:
                    xs[b, i, m, s*16 + ph*8 + pw*4 + c] = x_pad[b, 2i+ph, 4m+2s+pw, c]
                    (c == 3 is zero padding of the 3 input channels).
       w_ref:       (256, 128) bf16 conv weight, BN scale folded in, row layout
                    k = (a*4+b)*16 + ph*8 + pw*4 + c with kh=2a+ph, kw=2b+pw
                    (rows with kh==7, kw==7 or c==3 are zero), Cout padded 64->128.
       bias_ref:    (1, 128) f32 BN bias (beta - mean*scale), zero-padded to 128.
       o_ref:       (B, OH//2, PW, 128) f32 pooled output (PW == OW//2).
       patches_ref: (B*2, OH, PW, 256) bf16 im2col scratch (q=0: even conv cols,
                    q=1: odd conv cols)."""

    # ---- in-kernel im2col: static unit-stride copies of xs into the scratch.
    # For q=0 the four (b, s) phases pair into full 32-lane slabs; for q=1 the
    # middle pair is a 32-lane slab plus two 16-lane edges.
    for img in range(B):
        for a in range(4):
            # q = 0 (conv columns ow = 2j): b=2t -> s=0, b=2t+1 -> s=1.
            for t in range(2):
                patches_ref[img * 2, :, :, a * 64 + t * 32:a * 64 + (t + 1) * 32] = (
                    xs_ref[img, a:a + OH, t:t + PW, :])
            # q = 1 (conv columns ow = 2j+1).
            patches_ref[img * 2 + 1, :, :, a * 64:a * 64 + 16] = (
                xs_ref[img, a:a + OH, 0:PW, 16:32])
            patches_ref[img * 2 + 1, :, :, a * 64 + 16:a * 64 + 48] = (
                xs_ref[img, a:a + OH, 1:1 + PW, :])
            patches_ref[img * 2 + 1, :, :, a * 64 + 48:a * 64 + 64] = (
                xs_ref[img, a:a + OH, 2:2 + PW, 0:16])

    # ---- one bf16 matmul for both column parities of all B images, single
    # bias broadcast + ReLU in f32.
    m_rows = B * 2 * OH * PW
    patches = patches_ref[...].reshape(m_rows, 256)
    acc = jnp.dot(patches, w_ref[...], preferred_element_type=jnp.float32)
    y = jnp.maximum(acc + bias_ref[...], 0.0).reshape(B * 2, OH, PW, 128)

    # ---- 3x3 / stride-2 / pad-1 max pool.  Post-ReLU values are >= 0, so a
    # zero fill at the left/top edge is equivalent to the -inf border.
    PH = OH // 2
    for img in range(B):
        ye, yo = y[img * 2], y[img * 2 + 1]               # even / odd conv cols
        # W direction: colpool[:, pw] = max(yo[:, pw-1], ye[:, pw], yo[:, pw])
        yo_prev = jnp.concatenate(
            [jnp.zeros_like(yo[:, :1]), yo[:, :-1]], axis=1)
        colpool = jnp.maximum(jnp.maximum(ye, yo), yo_prev)   # (OH, PW, 128)
        # H direction: out[p] = max(colpool[2p-1], colpool[2p], colpool[2p+1])
        cp = colpool.reshape(PH, 2, PW, 128)
        ce, co = cp[:, 0], cp[:, 1]
        co_prev = jnp.concatenate(
            [jnp.zeros_like(co[:1]), co[:-1]], axis=0)
        o_ref[img] = jnp.maximum(jnp.maximum(ce, co), co_prev).astype(o_ref.dtype)


def _pick_images_per_block(N, H2, W4, OH, PW, PH):
    """Pack several small images per grid step (bigger matmul M, amortized
    per-step overhead) within a conservative VMEM budget."""
    per_img = (2 * H2 * W4 * 128 * 2        # xs block (double-buffered, lane-padded)
               + 2 * OH * PW * 256 * 2      # bf16 im2col scratch
               + 8 * OH * PW * 128 * 4      # f32 matmul acc / ReLU / pool temps
               + 2 * PH * PW * 128 * 4)     # f32 output block (double-buffered)
    budget = 24 * 1024 * 1024
    best = 1
    for cand in range(1, N + 1):
        if N % cand:
            continue
        if cand * per_img > budget:
            break
        best = cand
        if cand * 2 * OH * PW >= 512:       # enough matmul rows; stop growing
            break
    return best


# ----------------------------------------------------------------------------
# Wrapper: BN fold, cheap (1x data) space-to-depth, pallas_call, unpad.
# ----------------------------------------------------------------------------
def thermal_module_forward(x_nchw, params):
    """conv1 -> bn1 -> relu -> maxpool (ResNet stem), NCHW in / NCHW out."""
    x = jnp.transpose(x_nchw, (0, 2, 3, 1)).astype(jnp.float32)    # NHWC
    N, H, W, Cin = x.shape
    assert Cin == 3
    # TODO(synk): general (odd) H/W needs ragged-edge handling, and
    # ImageNet-sized activations need an OH-strip grid axis (1-row colpool halo
    # per strip) so one block does not outgrow VMEM (esp. v7x's 64 MiB).
    assert H % 4 == 0 and W % 4 == 0 and H >= 8 and W >= 8

    OH, OW = H // 2, W // 2          # conv output size (k=7, s=2, p=3)
    PH, PW = OH // 2, OW // 2        # pool output size (k=3, s=2, p=1)
    H2, W4 = OH + 3, PW + 2          # space-to-depth extents the kernel reads

    # ---- fold BatchNorm into the conv weight and a bias ----------------------
    scale = params["gamma"] / jnp.sqrt(params["var"] + params["eps"])   # (64,)
    bias = params["beta"] - params["mean"] * scale                      # (64,)

    # conv1_w (64,3,7,7) OIHW -> (256,128) bf16, rows ordered
    # k = (a*4+b)*16 + ph*8 + pw*4 + c with kh=2a+ph, kw=2b+pw; rows with
    # kh==7, kw==7 or c==3 are zero.  Cout zero-padded 64 -> 128 (lane-dense).
    wpad = jnp.pad(params["conv1_w"], ((0, 0), (0, 1), (0, 1), (0, 1)))  # (64,4,8,8)
    wr = wpad.reshape(64, 4, 4, 2, 4, 2)                   # (co, c, a, ph, b, pw)
    wr = jnp.transpose(wr, (2, 4, 3, 5, 1, 0)).reshape(256, 64)
    w2 = jnp.pad(wr * scale[None, :], ((0, 0), (0, 64))).astype(jnp.bfloat16)
    b2 = jnp.pad(bias, (0, 64)).reshape(1, 128).astype(jnp.float32)

    # ---- cheap (1x data) space-to-depth of the zero-padded input, bf16 -------
    # xs[n, i, m, s*16 + ph*8 + pw*4 + c] = x_pad[n, 2i+ph, 4m+2s+pw, c]
    xp = jnp.pad(x, ((0, 0), (3, 3), (3, 5), (0, 1)))       # (N, 2*H2, 4*W4, 4)
    xs = xp.reshape(N, H2, 2, W4, 2, 2, 4)                  # (n, i, ph, m, s, pw, c)
    xs = jnp.transpose(xs, (0, 1, 3, 4, 2, 5, 6)).reshape(N, H2, W4, 32)
    xs = xs.astype(jnp.bfloat16)

    B = _pick_images_per_block(N, H2, W4, OH, PW, PH)

    out = pl.pallas_call(
        functools.partial(_stem_fused_kernel, B=B, OH=OH, PW=PW),
        out_shape=jax.ShapeDtypeStruct((N, PH, PW, 128), jnp.float32),
        grid_spec=pltpu.PrefetchScalarGridSpec(
            num_scalar_prefetch=0,
            grid=(N // B,),
            in_specs=[
                pl.BlockSpec((B, H2, W4, 32), lambda n: (n, 0, 0, 0)),
                pl.BlockSpec((256, 128), lambda n: (0, 0)),
                pl.BlockSpec((1, 128), lambda n: (0, 0)),
            ],
            out_specs=pl.BlockSpec((B, PH, PW, 128), lambda n: (n, 0, 0, 0)),
            scratch_shapes=[pltpu.VMEM((B * 2, OH, PW, 256), jnp.bfloat16)],
        ),
        compiler_params=pltpu.CompilerParams(
            dimension_semantics=("parallel",),
            vmem_limit_bytes=64 * 1024 * 1024),
    )(xs, w2, b2)

    # Drop the channel padding + NCHW; slice + transpose fuse to one XLA copy.
    out = out[:, :, :, :64]
    return jnp.transpose(out, (0, 3, 1, 2))


# ----------------------------------------------------------------------------
# Parameters + pure-JAX reference for verification
# ----------------------------------------------------------------------------
def init_params(key):
    k_w, k_g, k_b, k_m, k_v = jax.random.split(key, 5)
    conv1_w = 0.05 * jax.random.normal(k_w, (64, 3, 7, 7), jnp.float32)   # OIHW
    gamma = 1.0 + 0.1 * jax.random.normal(k_g, (64,), jnp.float32)
    beta = 0.1 * jax.random.normal(k_b, (64,), jnp.float32)
    running_mean = 0.1 * jax.random.normal(k_m, (64,), jnp.float32)
    running_var = jnp.abs(1.0 + 0.1 * jax.random.normal(k_v, (64,), jnp.float32))
    return dict(conv1_w=conv1_w, gamma=gamma, beta=beta,
                mean=running_mean, var=running_var, eps=1e-5)


def _reference_forward(x_nchw, params, matmul_dtype=jnp.float32):
    """f32 reference.  With matmul_dtype=bfloat16 the conv inputs are rounded
    the same way the kernel's MXU inputs are (accumulation stays f32)."""
    x = jnp.transpose(x_nchw, (0, 2, 3, 1)).astype(jnp.float32)
    scale = params["gamma"] / jnp.sqrt(params["var"] + params["eps"])
    bias = params["beta"] - params["mean"] * scale
    w_hwio = jnp.transpose(params["conv1_w"], (2, 3, 1, 0)) * scale   # scale folded
    x = x.astype(matmul_dtype).astype(jnp.float32)
    w_hwio = w_hwio.astype(matmul_dtype).astype(jnp.float32)
    y = lax.conv_general_dilated(
        x, w_hwio, window_strides=(2, 2), padding=[(3, 3), (3, 3)],
        dimension_numbers=("NHWC", "HWIO", "NHWC"))
    y = jnp.maximum(y + bias, 0.0)
    y = lax.reduce_window(
        y, -jnp.inf, lax.max,
        window_dimensions=(1, 3, 3, 1), window_strides=(1, 2, 2, 1),
        padding=[(0, 0), (1, 1), (1, 1), (0, 0)])
    return jnp.transpose(y, (0, 3, 1, 2))


if __name__ == "__main__":
    key = jax.random.PRNGKey(0)
    k_x, k_p = jax.random.split(key)
    x = jax.random.normal(k_x, (2, 3, 32, 32), jnp.float32)   # NCHW, like PyTorch
    params = init_params(k_p)

    fwd = jax.jit(thermal_module_forward)
    out = jax.block_until_ready(fwd(x, params))
    assert out.shape == (2, 64, 8, 8), out.shape

    # Tight check vs a reference whose matmul inputs are bf16-rounded the same
    # way the kernel's are (validates im2col indexing / BN fold / pool exactly).
    ref_q = _reference_forward(x, params, matmul_dtype=jnp.bfloat16)
    err_q = float(jnp.max(jnp.abs(out - ref_q)))
    assert err_q < 1e-3, err_q

    # Loose check vs the original full-f32 module semantics (bf16 MXU inputs).
    ref_f32 = _reference_forward(x, params)
    err_f32 = float(jnp.max(jnp.abs(out - ref_f32)))
    assert err_f32 < 0.1, err_f32

    print("KERNEL_OK")
</pallas_src>

<mosaic_0001>
module attributes {stable_mosaic.version = 11 : i64} {
  func.func @_stem_fused_kernel(%arg0: i32, %arg1: memref<2x19x10x32xbf16, #tpu.memory_space<vmem>>, %arg2: memref<256x128xbf16, #tpu.memory_space<vmem>>, %arg3: memref<1x128xf32, #tpu.memory_space<vmem>>, %arg4: memref<2x8x8x128xf32, #tpu.memory_space<vmem>>, %arg5: memref<4x16x8x256xbf16, #tpu.memory_space<vmem>>) attributes {dimension_semantics = [#tpu.dimension_semantics<parallel>], iteration_bounds = array<i64: 1>, scalar_prefetch = 0 : i64, scratch_operands = 1 : i64, tpu.core_type = #tpu.core_type<tc>, window_params = [{transform_indices = @transform_0, window_bounds = array<i64: 2, 19, 10, 32>}, {pipeline_mode = #tpu.pipeline_mode<synchronous>, transform_indices = @transform_1, window_bounds = array<i64: 256, 128>}, {pipeline_mode = #tpu.pipeline_mode<synchronous>, transform_indices = @transform_2, window_bounds = array<i64: 1, 128>}, {transform_indices = @transform_3, window_bounds = array<i64: 2, 8, 8, 128>}]} {
    %c0 = arith.constant 0 : index
    %c0_0 = arith.constant 0 : index
    %c0_1 = arith.constant 0 : index
    %c0_2 = arith.constant 0 : index
    %0 = vector.load %arg1[%c0, %c0_0, %c0_1, %c0_2] : memref<2x19x10x32xbf16, #tpu.memory_space<vmem>>, vector<1x16x8x32xbf16>
    %1 = vector.shape_cast %0 : vector<1x16x8x32xbf16> to vector<16x8x32xbf16>
    %c0_3 = arith.constant 0 : index
    %c0_4 = arith.constant 0 : index
    %c0_5 = arith.constant 0 : index
    %c0_6 = arith.constant 0 : index
    %2 = vector.load %arg5[%c0_3, %c0_4, %c0_5, %c0_6] : memref<4x16x8x256xbf16, #tpu.memory_space<vmem>>, vector<1x16x8x32xbf16>
    %3 = vector.shape_cast %2 : vector<1x16x8x32xbf16> to vector<16x8x32xbf16>
    %4 = vector.shape_cast %1 : vector<16x8x32xbf16> to vector<1x16x8x32xbf16>
    tpu.vector_store %arg5[%c0_3, %c0_4, %c0_5, %c0_6], %4 {strides = array<i32>} : memref<4x16x8x256xbf16, #tpu.memory_space<vmem>>, vector<1x16x8x32xbf16>,
    %c0_7 = arith.constant 0 : index
    %c0_8 = arith.constant 0 : index
    %c1 = arith.constant 1 : index
    %c0_9 = arith.constant 0 : index
    %5 = vector.load %arg1[%c0_7, %c0_8, %c1, %c0_9] : memref<2x19x10x32xbf16, #tpu.memory_space<vmem>>, vector<1x16x8x32xbf16>
    %6 = vector.shape_cast %5 : vector<1x16x8x32xbf16> to vector<16x8x32xbf16>
    %c0_10 = arith.constant 0 : index
    %c0_11 = arith.constant 0 : index
    %c0_12 = arith.constant 0 : index
    %c32 = arith.constant 32 : index
    %7 = vector.load %arg5[%c0_10, %c0_11, %c0_12, %c32] : memref<4x16x8x256xbf16, #tpu.memory_space<vmem>>, vector<1x16x8x32xbf16>
    %8 = vector.shape_cast %7 : vector<1x16x8x32xbf16> to vector<16x8x32xbf16>
    %9 = vector.shape_cast %6 : vector<16x8x32xbf16> to vector<1x16x8x32xbf16>
    tpu.vector_store %arg5[%c0_10, %c0_11, %c0_12, %c32], %9 {strides = array<i32>} : memref<4x16x8x256xbf16, #tpu.memory_space<vmem>>, vector<1x16x8x32xbf16>,
    %c0_13 = arith.constant 0 : index
    %c0_14 = arith.constant 0 : index
    %c0_15 = arith.constant 0 : index
    %c16 = arith.constant 16 : index
    %10 = vector.load %arg1[%c0_13, %c0_14, %c0_15, %c16] : memref<2x19x10x32xbf16, #tpu.memory_space<vmem>>, vector<1x16x8x16xbf16>
    %11 = vector.shape_cast %10 : vector<1x16x8x16xbf16> to vector<16x8x16xbf16>
    %c1_16 = arith.constant 1 : index
    %c0_17 = arith.constant 0 : index
    %c0_18 = arith.constant 0 : index
    %c0_19 = arith.constant 0 : index
    %12 = vector.load %arg5[%c1_16, %c0_17, %c0_18, %c0_19] : memref<4x16x8x256xbf16, #tpu.memory_space<vmem>>, vector<1x16x8x16xbf16>
    %13 = vector.shape_cast %12 : vector<1x16x8x16xbf16> to vector<16x8x16xbf16>
    %14 = vector.shape_cast %11 : vector<16x8x16xbf16> to vector<1x16x8x16xbf16>
    tpu.vector_store %arg5[%c1_16, %c0_17, %c0_18, %c0_19], %14 {strides = array<i32>} : memref<4x16x8x256xbf16, #tpu.memory_space<vmem>>, vector<1x16x8x16xbf16>,
    %c0_20 = arith.constant 0 : index
    %c0_21 = arith.constant 0 : index
    %c1_22 = arith.constant 1 : index
    %c0_23 = arith.constant 0 : index
    %15 = vector.load %arg1[%c0_20, %c0_21, %c1_22, %c0_23] : memref<2x19x10x32xbf16, #tpu.memory_space<vmem>>, vector<1x16x8x32xbf16>
    %16 = vector.shape_cast %15 : vector<1x16x8x32xbf16> to vector<16x8x32xbf16>
    %c1_24 = arith.constant 1 : index
    %c0_25 = arith.constant 0 : index
    %c0_26 = arith.constant 0 : index
    %c16_27 = arith.constant 16 : index
    %17 = vector.load %arg5[%c1_24, %c0_25, %c0_26, %c16_27] : memref<4x16x8x256xbf16, #tpu.memory_space<vmem>>, vector<1x16x8x32xbf16>
    %18 = vector.shape_cast %17 : vector<1x16x8x32xbf16> to vector<16x8x32xbf16>
    %19 = vector.shape_cast %16 : vector<16x8x32xbf16> to vector<1x16x8x32xbf16>
    tpu.vector_store %arg5[%c1_24, %c0_25, %c0_26, %c16_27], %19 {strides = array<i32>} : memref<4x16x8x256xbf16, #tpu.memory_space<vmem>>, vector<1x16x8x32xbf16>,
    %c0_28 = arith.constant 0 : index
    %c0_29 = arith.constant 0 : index
    %c2 = arith.constant 2 : index
    %c0_30 = arith.constant 0 : index
    %20 = vector.load %arg1[%c0_28, %c0_29, %c2, %c0_30] : memref<2x19x10x32xbf16, #tpu.memory_space<vmem>>, vector<1x16x8x16xbf16>
    %21 = vector.shape_cast %20 : vector<1x16x8x16xbf16> to vector<16x8x16xbf16>
    %c1_31 = arith.constant 1 : index
    %c0_32 = arith.constant 0 : index
    %c0_33 = arith.constant 0 : index
    %c48 = arith.constant 48 : index
    %22 = vector.load %arg5[%c1_31, %c0_32, %c0_33, %c48] : memref<4x16x8x256xbf16, #tpu.memory_space<vmem>>, vector<1x16x8x16xbf16>
    %23 = vector.shape_cast %22 : vector<1x16x8x16xbf16> to vector<16x8x16xbf16>
    %24 = vector.shape_cast %21 : vector<16x8x16xbf16> to vector<1x16x8x16xbf16>
    tpu.vector_store %arg5[%c1_31, %c0_32, %c0_33, %c48], %24 {strides = array<i32>} : memref<4x16x8x256xbf16, #tpu.memory_space<vmem>>, vector<1x16x8x16xbf16>,
    %c0_34 = arith.constant 0 : index
    %c1_35 = arith.constant 1 : index
    %c0_36 = arith.constant 0 : index
    %c0_37 = arith.constant 0 : index
    %25 = vector.load %arg1[%c0_34, %c1_35, %c0_36, %c0_37] : memref<2x19x10x32xbf16, #tpu.memory_space<vmem>>, vector<1x16x8x32xbf16>
    %26 = vector.shape_cast %25 : vector<1x16x8x32xbf16> to vector<16x8x32xbf16>
    %c0_38 = arith.constant 0 : index
    %c0_39 = arith.constant 0 : index
    %c0_40 = arith.constant 0 : index
    %c64 = arith.constant 64 : index
    %27 = vector.load %arg5[%c0_38, %c0_39, %c0_40, %c64] : memref<4x16x8x256xbf16, #tpu.memory_space<vmem>>, vector<1x16x8x32xbf16>
    %28 = vector.shape_cast %27 : vector<1x16x8x32xbf16> to vector<16x8x32xbf16>
    %29 = vector.shape_cast %26 : vector<16x8x32xbf16> to vector<1x16x8x32xbf16>
    tpu.vector_store %arg5[%c0_38, %c0_39, %c0_40, %c64], %29 {strides = array<i32>} : memref<4x16x8x256xbf16, #tpu.memory_space<vmem>>, vector<1x16x8x32xbf16>,
    %c0_41 = arith.constant 0 : index
    %c1_42 = arith.constant 1 : index
    %c1_43 = arith.constant 1 : index
    %c0_44 = arith.constant 0 : index
    %30 = vector.load %arg1[%c0_41, %c1_42, %c1_43, %c0_44] : memref<2x19x10x32xbf16, #tpu.memory_space<vmem>>, vector<1x16x8x32xbf16>
    %31 = vector.shape_cast %30 : vector<1x16x8x32xbf16> to vector<16x8x32xbf16>
    %c0_45 = arith.constant 0 : index
    %c0_46 = arith.constant 0 : index
    %c0_47 = arith.constant 0 : index
    %c96 = arith.constant 96 : index
    %32 = vector.load %arg5[%c0_45, %c0_46, %c0_47, %c96] : memref<4x16x8x256xbf16, #tpu.memory_space<vmem>>, vector<1x16x8x32xbf16>
    %33 = vector.shape_cast %32 : vector<1x16x8x32xbf16> to vector<16x8x32xbf16>
    %34 = vector.shape_cast %31 : vector<16x8x32xbf16> to vector<1x16x8x32xbf16>
    tpu.vector_store %arg5[%c0_45, %c0_46, %c0_47, %c96], %34 {strides = array<i32>} : memref<4x16x8x256xbf16, #tpu.memory_space<vmem>>, vector<1x16x8x32xbf16>,
    %c0_48 = arith.constant 0 : index
    %c1_49 = arith.constant 1 : index
    %c0_50 = arith.constant 0 : index
    %c16_51 = arith.constant 16 : index
    %35 = vector.load %arg1[%c0_48, %c1_49, %c0_50, %c16_51] : memref<2x19x10x32xbf16, #tpu.memory_space<vmem>>, vector<1x16x8x16xbf16>
    %36 = vector.shape_cast %35 : vector<1x16x8x16xbf16> to vector<16x8x16xbf16>
    %c1_52 = arith.constant 1 : index
    %c0_53 = arith.constant 0 : index
    %c0_54 = arith.constant 0 : index
    %c64_55 = arith.constant 64 : index
    %37 = vector.load %arg5[%c1_52, %c0_53, %c0_54, %c64_55] : memref<4x16x8x256xbf16, #tpu.memory_space<vmem>>, vector<1x16x8x16xbf16>
    %38 = vector.shape_cast %37 : vector<1x16x8x16xbf16> to vector<16x8x16xbf16>
    %39 = vector.shape_cast %36 : vector<16x8x16xbf16> to vector<1x16x8x16xbf16>
    tpu.vector_store %arg5[%c1_52, %c0_53, %c0_54, %c64_55], %39 {strides = array<i32>} : memref<4x16x8x256xbf16, #tpu.memory_space<vmem>>, vector<1x16x8x16xbf16>,
    %c0_56 = arith.constant 0 : index
    %c1_57 = arith.constant 1 : index
    %c1_58 = arith.constant 1 : index
    %c0_59 = arith.constant 0 : index
    %40 = vector.load %arg1[%c0_56, %c1_57, %c1_58, %c0_59] : memref<2x19x10x32xbf16, #tpu.memory_space<vmem>>, vector<1x16x8x32xbf16>
    %41 = vector.shape_cast %40 : vector<1x16x8x32xbf16> to vector<16x8x32xbf16>
    %c1_60 = arith.constant 1 : index
    %c0_61 = arith.constant 0 : index
    %c0_62 = arith.constant 0 : index
    %c80 = arith.constant 80 : index
    %42 = vector.load %arg5[%c1_60, %c0_61, %c0_62, %c80] : memref<4x16x8x256xbf16, #tpu.memory_space<vmem>>, vector<1x16x8x32xbf16>
    %43 = vector.shape_cast %42 : vector<1x16x8x32xbf16> to vector<16x8x32xbf16>
    %44 = vector.shape_cast %41 : vector<16x8x32xbf16> to vector<1x16x8x32xbf16>
    tpu.vector_store %arg5[%c1_60, %c0_61, %c0_62, %c80], %44 {strides = array<i32>} : memref<4x16x8x256xbf16, #tpu.memory_space<vmem>>, vector<1x16x8x32xbf16>,
    %c0_63 = arith.constant 0 : index
    %c1_64 = arith.constant 1 : index
    %c2_65 = arith.constant 2 : index
    %c0_66 = arith.constant 0 : index
    %45 = vector.load %arg1[%c0_63, %c1_64, %c2_65, %c0_66] : memref<2x19x10x32xbf16, #tpu.memory_space<vmem>>, vector<1x16x8x16xbf16>
    %46 = vector.shape_cast %45 : vector<1x16x8x16xbf16> to vector<16x8x16xbf16>
    %c1_67 = arith.constant 1 : index
    %c0_68 = arith.constant 0 : index
    %c0_69 = arith.constant 0 : index
    %c112 = arith.constant 112 : index
    %47 = vector.load %arg5[%c1_67, %c0_68, %c0_69, %c112] : memref<4x16x8x256xbf16, #tpu.memory_space<vmem>>, vector<1x16x8x16xbf16>
    %48 = vector.shape_cast %47 : vector<1x16x8x16xbf16> to vector<16x8x16xbf16>
    %49 = vector.shape_cast %46 : vector<16x8x16xbf16> to vector<1x16x8x16xbf16>
    tpu.vector_store %arg5[%c1_67, %c0_68, %c0_69, %c112], %49 {strides = array<i32>} : memref<4x16x8x256xbf16, #tpu.memory_space<vmem>>, vector<1x16x8x16xbf16>,
    %c0_70 = arith.constant 0 : index
    %c2_71 = arith.constant 2 : index
    %c0_72 = arith.constant 0 : index
    %c0_73 = arith.constant 0 : index
    %50 = vector.load %arg1[%c0_70, %c2_71, %c0_72, %c0_73] : memref<2x19x10x32xbf16, #tpu.memory_space<vmem>>, vector<1x16x8x32xbf16>
    %51 = vector.shape_cast %50 : vector<1x16x8x32xbf16> to vector<16x8x32xbf16>
    %c0_74 = arith.constant 0 : index
    %c0_75 = arith.constant 0 : index
    %c0_76 = arith.constant 0 : index
    %c128 = arith.constant 128 : index
    %52 = vector.load %arg5[%c0_74, %c0_75, %c0_76, %c128] : memref<4x16x8x256xbf16, #tpu.memory_space<vmem>>, vector<1x16x8x32xbf16>
    %53 = vector.shape_cast %52 : vector<1x16x8x32xbf16> to vector<16x8x32xbf16>
    %54 = vector.shape_cast %51 : vector<16x8x32xbf16> to vector<1x16x8x32xbf16>
    tpu.vector_store %arg5[%c0_74, %c0_75, %c0_76, %c128], %54 {strides = array<i32>} : memref<4x16x8x256xbf16, #tpu.memory_space<vmem>>, vector<1x16x8x32xbf16>,
    %c0_77 = arith.constant 0 : index
    %c2_78 = arith.constant 2 : index
    %c1_79 = arith.constant 1 : index
    %c0_80 = arith.constant 0 : index
    %55 = vector.load %arg1[%c0_77, %c2_78, %c1_79, %c0_80] : memref<2x19x10x32xbf16, #tpu.memory_space<vmem>>, vector<1x16x8x32xbf16>
    %56 = vector.shape_cast %55 : vector<1x16x8x32xbf16> to vector<16x8x32xbf16>
    %c0_81 = arith.constant 0 : index
    %c0_82 = arith.constant 0 : index
    %c0_83 = arith.constant 0 : index
    %c160 = arith.constant 160 : index
    %57 = vector.load %arg5[%c0_81, %c0_82, %c0_83, %c160] : memref<4x16x8x256xbf16, #tpu.memory_space<vmem>>, vector<1x16x8x32xbf16>
    %58 = vector.shape_cast %57 : vector<1x16x8x32xbf16> to vector<16x8x32xbf16>
    %59 = vector.shape_cast %56 : vector<16x8x32xbf16> to vector<1x16x8x32xbf16>
    tpu.vector_store %arg5[%c0_81, %c0_82, %c0_83, %c160], %59 {strides = array<i32>} : memref<4x16x8x256xbf16, #tpu.memory_space<vmem>>, vector<1x16x8x32xbf16>,
    %c0_84 = arith.constant 0 : index
    %c2_85 = arith.constant 2 : index
    %c0_86 = arith.constant 0 : index
    %c16_87 = arith.constant 16 : index
    %60 = vector.load %arg1[%c0_84, %c2_85, %c0_86, %c16_87] : memref<2x19x10x32xbf16, #tpu.memory_space<vmem>>, vector<1x16x8x16xbf16>
    %61 = vector.shape_cast %60 : vector<1x16x8x16xbf16> to vector<16x8x16xbf16>
    %c1_88 = arith.constant 1 : index
    %c0_89 = arith.constant 0 : index
    %c0_90 = arith.constant 0 : index
    %c128_91 = arith.constant 128 : index
    %62 = vector.load %arg5[%c1_88, %c0_89, %c0_90, %c128_91] : memref<4x16x8x256xbf16, #tpu.memory_space<vmem>>, vector<1x16x8x16xbf16>
    %63 = vector.shape_cast %62 : vector<1x16x8x16xbf16> to vector<16x8x16xbf16>
    %64 = vector.shape_cast %61 : vector<16x8x16xbf16> to vector<1x16x8x16xbf16>
    tpu.vector_store %arg5[%c1_88, %c0_89, %c0_90, %c128_91], %64 {strides = array<i32>} : memref<4x16x8x256xbf16, #tpu.memory_space<vmem>>, vector<1x16x8x16xbf16>,
    %c0_92 = arith.constant 0 : index
    %c2_93 = arith.constant 2 : index
    %c1_94 = arith.constant 1 : index
    %c0_95 = arith.constant 0 : index
    %65 = vector.load %arg1[%c0_92, %c2_93, %c1_94, %c0_95] : memref<2x19x10x32xbf16, #tpu.memory_space<vmem>>, vector<1x16x8x32xbf16>
    %66 = vector.shape_cast %65 : vector<1x16x8x32xbf16> to vector<16x8x32xbf16>
    %c1_96 = arith.constant 1 : index
    %c0_97 = arith.constant 0 : index
    %c0_98 = arith.constant 0 : index
    %c144 = arith.constant 144 : index
    %67 = vector.load %arg5[%c1_96, %c0_97, %c0_98, %c144] : memref<4x16x8x256xbf16, #tpu.memory_space<vmem>>, vector<1x16x8x32xbf16>
    %68 = vector.shape_cast %67 : vector<1x16x8x32xbf16> to vector<16x8x32xbf16>
    %69 = vector.shape_cast %66 : vector<16x8x32xbf16> to vector<1x16x8x32xbf16>
    tpu.vector_store %arg5[%c1_96, %c0_97, %c0_98, %c144], %69 {strides = array<i32>} : memref<4x16x8x256xbf16, #tpu.memory_space<vmem>>, vector<1x16x8x32xbf16>,
    %c0_99 = arith.constant 0 : index
    %c2_100 = arith.constant 2 : index
    %c2_101 = arith.constant 2 : index
    %c0_102 = arith.constant 0 : index
    %70 = vector.load %arg1[%c0_99, %c2_100, %c2_101, %c0_102] : memref<2x19x10x32xbf16, #tpu.memory_space<vmem>>, vector<1x16x8x16xbf16>
    %71 = vector.shape_cast %70 : vector<1x16x8x16xbf16> to vector<16x8x16xbf16>
    %c1_103 = arith.constant 1 : index
    %c0_104 = arith.constant 0 : index
    %c0_105 = arith.constant 0 : index
    %c176 = arith.constant 176 : index
    %72 = vector.load %arg5[%c1_103, %c0_104, %c0_105, %c176] : memref<4x16x8x256xbf16, #tpu.memory_space<vmem>>, vector<1x16x8x16xbf16>
    %73 = vector.shape_cast %72 : vector<1x16x8x16xbf16> to vector<16x8x16xbf16>
    %74 = vector.shape_cast %71 : vector<16x8x16xbf16> to vector<1x16x8x16xbf16>
    tpu.vector_store %arg5[%c1_103, %c0_104, %c0_105, %c176], %74 {strides = array<i32>} : memref<4x16x8x256xbf16, #tpu.memory_space<vmem>>, vector<1x16x8x16xbf16>,
    %c0_106 = arith.constant 0 : index
    %c3 = arith.constant 3 : index
    %c0_107 = arith.constant 0 : index
    %c0_108 = arith.constant 0 : index
    %75 = vector.load %arg1[%c0_106, %c3, %c0_107, %c0_108] : memref<2x19x10x32xbf16, #tpu.memory_space<vmem>>, vector<1x16x8x32xbf16>
    %76 = vector.shape_cast %75 : vector<1x16x8x32xbf16> to vector<16x8x32xbf16>
    %c0_109 = arith.constant 0 : index
    %c0_110 = arith.constant 0 : index
    %c0_111 = arith.constant 0 : index
    %c192 = arith.constant 192 : index
    %77 = vector.load %arg5[%c0_109, %c0_110, %c0_111, %c192] : memref<4x16x8x256xbf16, #tpu.memory_space<vmem>>, vector<1x16x8x32xbf16>
    %78 = vector.shape_cast %77 : vector<1x16x8x32xbf16> to vector<16x8x32xbf16>
    %79 = vector.shape_cast %76 : vector<16x8x32xbf16> to vector<1x16x8x32xbf16>
    tpu.vector_store %arg5[%c0_109, %c0_110, %c0_111, %c192], %79 {strides = array<i32>} : memref<4x16x8x256xbf16, #tpu.memory_space<vmem>>, vector<1x16x8x32xbf16>,
    %c0_112 = arith.constant 0 : index
    %c3_113 = arith.constant 3 : index
    %c1_114 = arith.constant 1 : index
    %c0_115 = arith.constant 0 : index
    %80 = vector.load %arg1[%c0_112, %c3_113, %c1_114, %c0_115] : memref<2x19x10x32xbf16, #tpu.memory_space<vmem>>, vector<1x16x8x32xbf16>
    %81 = vector.shape_cast %80 : vector<1x16x8x32xbf16> to vector<16x8x32xbf16>
    %c0_116 = arith.constant 0 : index
    %c0_117 = arith.constant 0 : index
    %c0_118 = arith.constant 0 : index
    %c224 = arith.constant 224 : index
    %82 = vector.load %arg5[%c0_116, %c0_117, %c0_118, %c224] : memref<4x16x8x256xbf16, #tpu.memory_space<vmem>>, vector<1x16x8x32xbf16>
    %83 = vector.shape_cast %82 : vector<1x16x8x32xbf16> to vector<16x8x32xbf16>
    %84 = vector.shape_cast %81 : vector<16x8x32xbf16> to vector<1x16x8x32xbf16>
    tpu.vector_store %arg5[%c0_116, %c0_117, %c0_118, %c224], %84 {strides = array<i32>} : memref<4x16x8x256xbf16, #tpu.memory_space<vmem>>, vector<1x16x8x32xbf16>,
    %c0_119 = arith.constant 0 : index
    %c3_120 = arith.constant 3 : index
    %c0_121 = arith.constant 0 : index
    %c16_122 = arith.constant 16 : index
    %85 = vector.load %arg1[%c0_119, %c3_120, %c0_121, %c16_122] : memref<2x19x10x32xbf16, #tpu.memory_space<vmem>>, vector<1x16x8x16xbf16>
    %86 = vector.shape_cast %85 : vector<1x16x8x16xbf16> to vector<16x8x16xbf16>
    %c1_123 = arith.constant 1 : index
    %c0_124 = arith.constant 0 : index
    %c0_125 = arith.constant 0 : index
    %c192_126 = arith.constant 192 : index
    %87 = vector.load %arg5[%c1_123, %c0_124, %c0_125, %c192_126] : memref<4x16x8x256xbf16, #tpu.memory_space<vmem>>, vector<1x16x8x16xbf16>
    %88 = vector.shape_cast %87 : vector<1x16x8x16xbf16> to vector<16x8x16xbf16>
    %89 = vector.shape_cast %86 : vector<16x8x16xbf16> to vector<1x16x8x16xbf16>
    tpu.vector_store %arg5[%c1_123, %c0_124, %c0_125, %c192_126], %89 {strides = array<i32>} : memref<4x16x8x256xbf16, #tpu.memory_space<vmem>>, vector<1x16x8x16xbf16>,
    %c0_127 = arith.constant 0 : index
    %c3_128 = arith.constant 3 : index
    %c1_129 = arith.constant 1 : index
    %c0_130 = arith.constant 0 : index
    %90 = vector.load %arg1[%c0_127, %c3_128, %c1_129, %c0_130] : memref<2x19x10x32xbf16, #tpu.memory_space<vmem>>, vector<1x16x8x32xbf16>
    %91 = vector.shape_cast %90 : vector<1x16x8x32xbf16> to vector<16x8x32xbf16>
    %c1_131 = arith.constant 1 : index
    %c0_132 = arith.constant 0 : index
    %c0_133 = arith.constant 0 : index
    %c208 = arith.constant 208 : index
    %92 = vector.load %arg5[%c1_131, %c0_132, %c0_133, %c208] : memref<4x16x8x256xbf16, #tpu.memory_space<vmem>>, vector<1x16x8x32xbf16>
    %93 = vector.shape_cast %92 : vector<1x16x8x32xbf16> to vector<16x8x32xbf16>
    %94 = vector.shape_cast %91 : vector<16x8x32xbf16> to vector<1x16x8x32xbf16>
    tpu.vector_store %arg5[%c1_131, %c0_132, %c0_133, %c208], %94 {strides = array<i32>} : memref<4x16x8x256xbf16, #tpu.memory_space<vmem>>, vector<1x16x8x32xbf16>,
    %c0_134 = arith.constant 0 : index
    %c3_135 = arith.constant 3 : index
    %c2_136 = arith.constant 2 : index
    %c0_137 = arith.constant 0 : index
    %95 = vector.load %arg1[%c0_134, %c3_135, %c2_136, %c0_137] : memref<2x19x10x32xbf16, #tpu.memory_space<vmem>>, vector<1x16x8x16xbf16>
    %96 = vector.shape_cast %95 : vector<1x16x8x16xbf16> to vector<16x8x16xbf16>
    %c1_138 = arith.constant 1 : index
    %c0_139 = arith.constant 0 : index
    %c0_140 = arith.constant 0 : index
    %c240 = arith.constant 240 : index
    %97 = vector.load %arg5[%c1_138, %c0_139, %c0_140, %c240] : memref<4x16x8x256xbf16, #tpu.memory_space<vmem>>, vector<1x16x8x16xbf16>
    %98 = vector.shape_cast %97 : vector<1x16x8x16xbf16> to vector<16x8x16xbf16>
    %99 = vector.shape_cast %96 : vector<16x8x16xbf16> to vector<1x16x8x16xbf16>
    tpu.vector_store %arg5[%c1_138, %c0_139, %c0_140, %c240], %99 {strides = array<i32>} : memref<4x16x8x256xbf16, #tpu.memory_space<vmem>>, vector<1x16x8x16xbf16>,
    %c1_141 = arith.constant 1 : index
    %c0_142 = arith.constant 0 : index
    %c0_143 = arith.constant 0 : index
    %c0_144 = arith.constant 0 : index
    %100 = vector.load %arg1[%c1_141, %c0_142, %c0_143, %c0_144] : memref<2x19x10x32xbf16, #tpu.memory_space<vmem>>, vector<1x16x8x32xbf16>
    %101 = vector.shape_cast %100 : vector<1x16x8x32xbf16> to vector<16x8x32xbf16>
    %c2_145 = arith.constant 2 : index
    %c0_146 = arith.constant 0 : index
    %c0_147 = arith.constant 0 : index
    %c0_148 = arith.constant 0 : index
    %102 = vector.load %arg5[%c2_145, %c0_146, %c0_147, %c0_148] : memref<4x16x8x256xbf16, #tpu.memory_space<vmem>>, vector<1x16x8x32xbf16>
    %103 = vector.shape_cast %102 : vector<1x16x8x32xbf16> to vector<16x8x32xbf16>
    %104 = vector.shape_cast %101 : vector<16x8x32xbf16> to vector<1x16x8x32xbf16>
    tpu.vector_store %arg5[%c2_145, %c0_146, %c0_147, %c0_148], %104 {strides = array<i32>} : memref<4x16x8x256xbf16, #tpu.memory_space<vmem>>, vector<1x16x8x32xbf16>,
    %c1_149 = arith.constant 1 : index
    %c0_150 = arith.constant 0 : index
    %c1_151 = arith.constant 1 : index
    %c0_152 = arith.constant 0 : index
    %105 = vector.load %arg1[%c1_149, %c0_150, %c1_151, %c0_152] : memref<2x19x10x32xbf16, #tpu.memory_space<vmem>>, vector<1x16x8x32xbf16>
    %106 = vector.shape_cast %105 : vector<1x16x8x32xbf16> to vector<16x8x32xbf16>
    %c2_153 = arith.constant 2 : index
    %c0_154 = arith.constant 0 : index
    %c0_155 = arith.constant 0 : index
    %c32_156 = arith.constant 32 : index
    %107 = vector.load %arg5[%c2_153, %c0_154, %c0_155, %c32_156] : memref<4x16x8x256xbf16, #tpu.memory_space<vmem>>, vector<1x16x8x32xbf16>
    %108 = vector.shape_cast %107 : vector<1x16x8x32xbf16> to vector<16x8x32xbf16>
    %109 = vector.shape_cast %106 : vector<16x8x32xbf16> to vector<1x16x8x32xbf16>
    tpu.vector_store %arg5[%c2_153, %c0_154, %c0_155, %c32_156], %109 {strides = array<i32>} : memref<4x16x8x256xbf16, #tpu.memory_space<vmem>>, vector<1x16x8x32xbf16>,
    %c1_157 = arith.constant 1 : index
    %c0_158 = arith.constant 0 : index
    %c0_159 = arith.constant 0 : index
    %c16_160 = arith.constant 16 : index
    %110 = vector.load %arg1[%c1_157, %c0_158, %c0_159, %c16_160] : memref<2x19x10x32xbf16, #tpu.memory_space<vmem>>, vector<1x16x8x16xbf16>
    %111 = vector.shape_cast %110 : vector<1x16x8x16xbf16> to vector<16x8x16xbf16>
    %c3_161 = arith.constant 3 : index
    %c0_162 = arith.constant 0 : index
    %c0_163 = arith.constant 0 : index
    %c0_164 = arith.constant 0 : index
    %112 = vector.load %arg5[%c3_161, %c0_162, %c0_163, %c0_164] : memref<4x16x8x256xbf16, #tpu.memory_space<vmem>>, vector<1x16x8x16xbf16>
    %113 = vector.shape_cast %112 : vector<1x16x8x16xbf16> to vector<16x8x16xbf16>
    %114 = vector.shape_cast %111 : vector<16x8x16xbf16> to vector<1x16x8x16xbf16>
    tpu.vector_store %arg5[%c3_161, %c0_162, %c0_163, %c0_164], %114 {strides = array<i32>} : memref<4x16x8x256xbf16, #tpu.memory_space<vmem>>, vector<1x16x8x16xbf16>,
    %c1_165 = arith.constant 1 : index
    %c0_166 = arith.constant 0 : index
    %c1_167 = arith.constant 1 : index
    %c0_168 = arith.constant 0 : index
    %115 = vector.load %arg1[%c1_165, %c0_166, %c1_167, %c0_168] : memref<2x19x10x32xbf16, #tpu.memory_space<vmem>>, vector<1x16x8x32xbf16>
    %116 = vector.shape_cast %115 : vector<1x16x8x32xbf16> to vector<16x8x32xbf16>
    %c3_169 = arith.constant 3 : index
    %c0_170 = arith.constant 0 : index
    %c0_171 = arith.constant 0 : index
    %c16_172 = arith.constant 16 : index
    %117 = vector.load %arg5[%c3_169, %c0_170, %c0_171, %c16_172] : memref<4x16x8x256xbf16, #tpu.memory_space<vmem>>, vector<1x16x8x32xbf16>
    %118 = vector.shape_cast %117 : vector<1x16x8x32xbf16> to vector<16x8x32xbf16>
    %119 = vector.shape_cast %116 : vector<16x8x32xbf16> to vector<1x16x8x32xbf16>
    tpu.vector_store %arg5[%c3_169, %c0_170, %c0_171, %c16_172], %119 {strides = array<i32>} : memref<4x16x8x256xbf16, #tpu.memory_space<vmem>>, vector<1x16x8x32xbf16>,
    %c1_173 = arith.constant 1 : index
    %c0_174 = arith.constant 0 : index
    %c2_175 = arith.constant 2 : index
    %c0_176 = arith.constant 0 : index
    %120 = vector.load %arg1[%c1_173, %c0_174, %c2_175, %c0_176] : memref<2x19x10x32xbf16, #tpu.memory_space<vmem>>, vector<1x16x8x16xbf16>
    %121 = vector.shape_cast %120 : vector<1x16x8x16xbf16> to vector<16x8x16xbf16>
    %c3_177 = arith.constant 3 : index
    %c0_178 = arith.constant 0 : index
    %c0_179 = arith.constant 0 : index
    %c48_180 = arith.constant 48 : index
    %122 = vector.load %arg5[%c3_177, %c0_178, %c0_179, %c48_180] : memref<4x16x8x256xbf16, #tpu.memory_space<vmem>>, vector<1x16x8x16xbf16>
    %123 = vector.shape_cast %122 : vector<1x16x8x16xbf16> to vector<16x8x16xbf16>
    %124 = vector.shape_cast %121 : vector<16x8x16xbf16> to vector<1x16x8x16xbf16>
    tpu.vector_store %arg5[%c3_177, %c0_178, %c0_179, %c48_180], %124 {strides = array<i32>} : memref<4x16x8x256xbf16, #tpu.memory_space<vmem>>, vector<1x16x8x16xbf16>,
    %c1_181 = arith.constant 1 : index
    %c1_182 = arith.constant 1 : index
    %c0_183 = arith.constant 0 : index
    %c0_184 = arith.constant 0 : index
    %125 = vector.load %arg1[%c1_181, %c1_182, %c0_183, %c0_184] : memref<2x19x10x32xbf16, #tpu.memory_space<vmem>>, vector<1x16x8x32xbf16>
    %126 = vector.shape_cast %125 : vector<1x16x8x32xbf16> to vector<16x8x32xbf16>
    %c2_185 = arith.constant 2 : index
    %c0_186 = arith.constant 0 : index
    %c0_187 = arith.constant 0 : index
    %c64_188 = arith.constant 64 : index
    %127 = vector.load %arg5[%c2_185, %c0_186, %c0_187, %c64_188] : memref<4x16x8x256xbf16, #tpu.memory_space<vmem>>, vector<1x16x8x32xbf16>
    %128 = vector.shape_cast %127 : vector<1x16x8x32xbf16> to vector<16x8x32xbf16>
    %129 = vector.shape_cast %126 : vector<16x8x32xbf16> to vector<1x16x8x32xbf16>
    tpu.vector_store %arg5[%c2_185, %c0_186, %c0_187, %c64_188], %129 {strides = array<i32>} : memref<4x16x8x256xbf16, #tpu.memory_space<vmem>>, vector<1x16x8x32xbf16>,
    %c1_189 = arith.constant 1 : index
    %c1_190 = arith.constant 1 : index
    %c1_191 = arith.constant 1 : index
    %c0_192 = arith.constant 0 : index
    %130 = vector.load %arg1[%c1_189, %c1_190, %c1_191, %c0_192] : memref<2x19x10x32xbf16, #tpu.memory_space<vmem>>, vector<1x16x8x32xbf16>
    %131 = vector.shape_cast %130 : vector<1x16x8x32xbf16> to vector<16x8x32xbf16>
    %c2_193 = arith.constant 2 : index
    %c0_194 = arith.constant 0 : index
    %c0_195 = arith.constant 0 : index
    %c96_196 = arith.constant 96 : index
    %132 = vector.load %arg5[%c2_193, %c0_194, %c0_195, %c96_196] : memref<4x16x8x256xbf16, #tpu.memory_space<vmem>>, vector<1x16x8x32xbf16>
    %133 = vector.shape_cast %132 : vector<1x16x8x32xbf16> to vector<16x8x32xbf16>
    %134 = vector.shape_cast %131 : vector<16x8x32xbf16> to vector<1x16x8x32xbf16>
    tpu.vector_store %arg5[%c2_193, %c0_194, %c0_195, %c96_196], %134 {strides = array<i32>} : memref<4x16x8x256xbf16, #tpu.memory_space<vmem>>, vector<1x16x8x32xbf16>,
    %c1_197 = arith.constant 1 : index
    %c1_198 = arith.constant 1 : index
    %c0_199 = arith.constant 0 : index
    %c16_200 = arith.constant 16 : index
    %135 = vector.load %arg1[%c1_197, %c1_198, %c0_199, %c16_200] : memref<2x19x10x32xbf16, #tpu.memory_space<vmem>>, vector<1x16x8x16xbf16>
    %136 = vector.shape_cast %135 : vector<1x16x8x16xbf16> to vector<16x8x16xbf16>
    %c3_201 = arith.constant 3 : index
    %c0_202 = arith.constant 0 : index
    %c0_203 = arith.constant 0 : index
    %c64_204 = arith.constant 64 : index
    %137 = vector.load %arg5[%c3_201, %c0_202, %c0_203, %c64_204] : memref<4x16x8x256xbf16, #tpu.memory_space<vmem>>, vector<1x16x8x16xbf16>
    %138 = vector.shape_cast %137 : vector<1x16x8x16xbf16> to vector<16x8x16xbf16>
    %139 = vector.shape_cast %136 : vector<16x8x16xbf16> to vector<1x16x8x16xbf16>
    tpu.vector_store %arg5[%c3_201, %c0_202, %c0_203, %c64_204], %139 {strides = array<i32>} : memref<4x16x8x256xbf16, #tpu.memory_space<vmem>>, vector<1x16x8x16xbf16>,
    %c1_205 = arith.constant 1 : index
    %c1_206 = arith.constant 1 : index
    %c1_207 = arith.constant 1 : index
    %c0_208 = arith.constant 0 : index
    %140 = vector.load %arg1[%c1_205, %c1_206, %c1_207, %c0_208] : memref<2x19x10x32xbf16, #tpu.memory_space<vmem>>, vector<1x16x8x32xbf16>
    %141 = vector.shape_cast %140 : vector<1x16x8x32xbf16> to vector<16x8x32xbf16>
    %c3_209 = arith.constant 3 : index
    %c0_210 = arith.constant 0 : index
    %c0_211 = arith.constant 0 : index
    %c80_212 = arith.constant 80 : index
    %142 = vector.load %arg5[%c3_209, %c0_210, %c0_211, %c80_212] : memref<4x16x8x256xbf16, #tpu.memory_space<vmem>>, vector<1x16x8x32xbf16>
    %143 = vector.shape_cast %142 : vector<1x16x8x32xbf16> to vector<16x8x32xbf16>
    %144 = vector.shape_cast %141 : vector<16x8x32xbf16> to vector<1x16x8x32xbf16>
    tpu.vector_store %arg5[%c3_209, %c0_210, %c0_211, %c80_212], %144 {strides = array<i32>} : memref<4x16x8x256xbf16, #tpu.memory_space<vmem>>, vector<1x16x8x32xbf16>,
    %c1_213 = arith.constant 1 : index
    %c1_214 = arith.constant 1 : index
    %c2_215 = arith.constant 2 : index
    %c0_216 = arith.constant 0 : index
    %145 = vector.load %arg1[%c1_213, %c1_214, %c2_215, %c0_216] : memref<2x19x10x32xbf16, #tpu.memory_space<vmem>>, vector<1x16x8x16xbf16>
    %146 = vector.shape_cast %145 : vector<1x16x8x16xbf16> to vector<16x8x16xbf16>
    %c3_217 = arith.constant 3 : index
    %c0_218 = arith.constant 0 : index
    %c0_219 = arith.constant 0 : index
    %c112_220 = arith.constant 112 : index
    %147 = vector.load %arg5[%c3_217, %c0_218, %c0_219, %c112_220] : memref<4x16x8x256xbf16, #tpu.memory_space<vmem>>, vector<1x16x8x16xbf16>
    %148 = vector.shape_cast %147 : vector<1x16x8x16xbf16> to vector<16x8x16xbf16>
    %149 = vector.shape_cast %146 : vector<16x8x16xbf16> to vector<1x16x8x16xbf16>
    tpu.vector_store %arg5[%c3_217, %c0_218, %c0_219, %c112_220], %149 {strides = array<i32>} : memref<4x16x8x256xbf16, #tpu.memory_space<vmem>>, vector<1x16x8x16xbf16>,
    %c1_221 = arith.constant 1 : index
    %c2_222 = arith.constant 2 : index
    %c0_223 = arith.constant 0 : index
    %c0_224 = arith.constant 0 : index
    %150 = vector.load %arg1[%c1_221, %c2_222, %c0_223, %c0_224] : memref<2x19x10x32xbf16, #tpu.memory_space<vmem>>, vector<1x16x8x32xbf16>
    %151 = vector.shape_cast %150 : vector<1x16x8x32xbf16> to vector<16x8x32xbf16>
    %c2_225 = arith.constant 2 : index
    %c0_226 = arith.constant 0 : index
    %c0_227 = arith.constant 0 : index
    %c128_228 = arith.constant 128 : index
    %152 = vector.load %arg5[%c2_225, %c0_226, %c0_227, %c128_228] : memref<4x16x8x256xbf16, #tpu.memory_space<vmem>>, vector<1x16x8x32xbf16>
    %153 = vector.shape_cast %152 : vector<1x16x8x32xbf16> to vector<16x8x32xbf16>
    %154 = vector.shape_cast %151 : vector<16x8x32xbf16> to vector<1x16x8x32xbf16>
    tpu.vector_store %arg5[%c2_225, %c0_226, %c0_227, %c128_228], %154 {strides = array<i32>} : memref<4x16x8x256xbf16, #tpu.memory_space<vmem>>, vector<1x16x8x32xbf16>,
    %c1_229 = arith.constant 1 : index
    %c2_230 = arith.constant 2 : index
    %c1_231 = arith.constant 1 : index
    %c0_232 = arith.constant 0 : index
    %155 = vector.load %arg1[%c1_229, %c2_230, %c1_231, %c0_232] : memref<2x19x10x32xbf16, #tpu.memory_space<vmem>>, vector<1x16x8x32xbf16>
    %156 = vector.shape_cast %155 : vector<1x16x8x32xbf16> to vector<16x8x32xbf16>
    %c2_233 = arith.constant 2 : index
    %c0_234 = arith.constant 0 : index
    %c0_235 = arith.constant 0 : index
    %c160_236 = arith.constant 160 : index
    %157 = vector.load %arg5[%c2_233, %c0_234, %c0_235, %c160_236] : memref<4x16x8x256xbf16, #tpu.memory_space<vmem>>, vector<1x16x8x32xbf16>
    %158 = vector.shape_cast %157 : vector<1x16x8x32xbf16> to vector<16x8x32xbf16>
    %159 = vector.shape_cast %156 : vector<16x8x32xbf16> to vector<1x16x8x32xbf16>
    tpu.vector_store %arg5[%c2_233, %c0_234, %c0_235, %c160_236], %159 {strides = array<i32>} : memref<4x16x8x256xbf16, #tpu.memory_space<vmem>>, vector<1x16x8x32xbf16>,
    %c1_237 = arith.constant 1 : index
    %c2_238 = arith.constant 2 : index
    %c0_239 = arith.constant 0 : index
    %c16_240 = arith.constant 16 : index
    %160 = vector.load %arg1[%c1_237, %c2_238, %c0_239, %c16_240] : memref<2x19x10x32xbf16, #tpu.memory_space<vmem>>, vector<1x16x8x16xbf16>
    %161 = vector.shape_cast %160 : vector<1x16x8x16xbf16> to vector<16x8x16xbf16>
    %c3_241 = arith.constant 3 : index
    %c0_242 = arith.constant 0 : index
    %c0_243 = arith.constant 0 : index
    %c128_244 = arith.constant 128 : index
    %162 = vector.load %arg5[%c3_241, %c0_242, %c0_243, %c128_244] : memref<4x16x8x256xbf16, #tpu.memory_space<vmem>>, vector<1x16x8x16xbf16>
    %163 = vector.shape_cast %162 : vector<1x16x8x16xbf16> to vector<16x8x16xbf16>
    %164 = vector.shape_cast %161 : vector<16x8x16xbf16> to vector<1x16x8x16xbf16>
    tpu.vector_store %arg5[%c3_241, %c0_242, %c0_243, %c128_244], %164 {strides = array<i32>} : memref<4x16x8x256xbf16, #tpu.memory_space<vmem>>, vector<1x16x8x16xbf16>,
    %c1_245 = arith.constant 1 : index
    %c2_246 = arith.constant 2 : index
    %c1_247 = arith.constant 1 : index
    %c0_248 = arith.constant 0 : index
    %165 = vector.load %arg1[%c1_245, %c2_246, %c1_247, %c0_248] : memref<2x19x10x32xbf16, #tpu.memory_space<vmem>>, vector<1x16x8x32xbf16>
    %166 = vector.shape_cast %165 : vector<1x16x8x32xbf16> to vector<16x8x32xbf16>
    %c3_249 = arith.constant 3 : index
    %c0_250 = arith.constant 0 : index
    %c0_251 = arith.constant 0 : index
    %c144_252 = arith.constant 144 : index
    %167 = vector.load %arg5[%c3_249, %c0_250, %c0_251, %c144_252] : memref<4x16x8x256xbf16, #tpu.memory_space<vmem>>, vector<1x16x8x32xbf16>
    %168 = vector.shape_cast %167 : vector<1x16x8x32xbf16> to vector<16x8x32xbf16>
    %169 = vector.shape_cast %166 : vector<16x8x32xbf16> to vector<1x16x8x32xbf16>
    tpu.vector_store %arg5[%c3_249, %c0_250, %c0_251, %c144_252], %169 {strides = array<i32>} : memref<4x16x8x256xbf16, #tpu.memory_space<vmem>>, vector<1x16x8x32xbf16>,
    %c1_253 = arith.constant 1 : index
    %c2_254 = arith.constant 2 : index
    %c2_255 = arith.constant 2 : index
    %c0_256 = arith.constant 0 : index
    %170 = vector.load %arg1[%c1_253, %c2_254, %c2_255, %c0_256] : memref<2x19x10x32xbf16, #tpu.memory_space<vmem>>, vector<1x16x8x16xbf16>
    %171 = vector.shape_cast %170 : vector<1x16x8x16xbf16> to vector<16x8x16xbf16>
    %c3_257 = arith.constant 3 : index
    %c0_258 = arith.constant 0 : index
    %c0_259 = arith.constant 0 : index
    %c176_260 = arith.constant 176 : index
    %172 = vector.load %arg5[%c3_257, %c0_258, %c0_259, %c176_260] : memref<4x16x8x256xbf16, #tpu.memory_space<vmem>>, vector<1x16x8x16xbf16>
    %173 = vector.shape_cast %172 : vector<1x16x8x16xbf16> to vector<16x8x16xbf16>
    %174 = vector.shape_cast %171 : vector<16x8x16xbf16> to vector<1x16x8x16xbf16>
    tpu.vector_store %arg5[%c3_257, %c0_258, %c0_259, %c176_260], %174 {strides = array<i32>} : memref<4x16x8x256xbf16, #tpu.memory_space<vmem>>, vector<1x16x8x16xbf16>,
    %c1_261 = arith.constant 1 : index
    %c3_262 = arith.constant 3 : index
    %c0_263 = arith.constant 0 : index
    %c0_264 = arith.constant 0 : index
    %175 = vector.load %arg1[%c1_261, %c3_262, %c0_263, %c0_264] : memref<2x19x10x32xbf16, #tpu.memory_space<vmem>>, vector<1x16x8x32xbf16>
    %176 = vector.shape_cast %175 : vector<1x16x8x32xbf16> to vector<16x8x32xbf16>
    %c2_265 = arith.constant 2 : index
    %c0_266 = arith.constant 0 : index
    %c0_267 = arith.constant 0 : index
    %c192_268 = arith.constant 192 : index
    %177 = vector.load %arg5[%c2_265, %c0_266, %c0_267, %c192_268] : memref<4x16x8x256xbf16, #tpu.memory_space<vmem>>, vector<1x16x8x32xbf16>
    %178 = vector.shape_cast %177 : vector<1x16x8x32xbf16> to vector<16x8x32xbf16>
    %179 = vector.shape_cast %176 : vector<16x8x32xbf16> to vector<1x16x8x32xbf16>
    tpu.vector_store %arg5[%c2_265, %c0_266, %c0_267, %c192_268], %179 {strides = array<i32>} : memref<4x16x8x256xbf16, #tpu.memory_space<vmem>>, vector<1x16x8x32xbf16>,
    %c1_269 = arith.constant 1 : index
    %c3_270 = arith.constant 3 : index
    %c1_271 = arith.constant 1 : index
    %c0_272 = arith.constant 0 : index
    %180 = vector.load %arg1[%c1_269, %c3_270, %c1_271, %c0_272] : memref<2x19x10x32xbf16, #tpu.memory_space<vmem>>, vector<1x16x8x32xbf16>
    %181 = vector.shape_cast %180 : vector<1x16x8x32xbf16> to vector<16x8x32xbf16>
    %c2_273 = arith.constant 2 : index
    %c0_274 = arith.constant 0 : index
    %c0_275 = arith.constant 0 : index
    %c224_276 = arith.constant 224 : index
    %182 = vector.load %arg5[%c2_273, %c0_274, %c0_275, %c224_276] : memref<4x16x8x256xbf16, #tpu.memory_space<vmem>>, vector<1x16x8x32xbf16>
    %183 = vector.shape_cast %182 : vector<1x16x8x32xbf16> to vector<16x8x32xbf16>
    %184 = vector.shape_cast %181 : vector<16x8x32xbf16> to vector<1x16x8x32xbf16>
    tpu.vector_store %arg5[%c2_273, %c0_274, %c0_275, %c224_276], %184 {strides = array<i32>} : memref<4x16x8x256xbf16, #tpu.memory_space<vmem>>, vector<1x16x8x32xbf16>,
    %c1_277 = arith.constant 1 : index
    %c3_278 = arith.constant 3 : index
    %c0_279 = arith.constant 0 : index
    %c16_280 = arith.constant 16 : index
    %185 = vector.load %arg1[%c1_277, %c3_278, %c0_279, %c16_280] : memref<2x19x10x32xbf16, #tpu.memory_space<vmem>>, vector<1x16x8x16xbf16>
    %186 = vector.shape_cast %185 : vector<1x16x8x16xbf16> to vector<16x8x16xbf16>
    %c3_281 = arith.constant 3 : index
    %c0_282 = arith.constant 0 : index
    %c0_283 = arith.constant 0 : index
    %c192_284 = arith.constant 192 : index
    %187 = vector.load %arg5[%c3_281, %c0_282, %c0_283, %c192_284] : memref<4x16x8x256xbf16, #tpu.memory_space<vmem>>, vector<1x16x8x16xbf16>
    %188 = vector.shape_cast %187 : vector<1x16x8x16xbf16> to vector<16x8x16xbf16>
    %189 = vector.shape_cast %186 : vector<16x8x16xbf16> to vector<1x16x8x16xbf16>
    tpu.vector_store %arg5[%c3_281, %c0_282, %c0_283, %c192_284], %189 {strides = array<i32>} : memref<4x16x8x256xbf16, #tpu.memory_space<vmem>>, vector<1x16x8x16xbf16>,
    %c1_285 = arith.constant 1 : index
    %c3_286 = arith.constant 3 : index
    %c1_287 = arith.constant 1 : index
    %c0_288 = arith.constant 0 : index
    %190 = vector.load %arg1[%c1_285, %c3_286, %c1_287, %c0_288] : memref<2x19x10x32xbf16, #tpu.memory_space<vmem>>, vector<1x16x8x32xbf16>
    %191 = vector.shape_cast %190 : vector<1x16x8x32xbf16> to vector<16x8x32xbf16>
    %c3_289 = arith.constant 3 : index
    %c0_290 = arith.constant 0 : index
    %c0_291 = arith.constant 0 : index
    %c208_292 = arith.constant 208 : index
    %192 = vector.load %arg5[%c3_289, %c0_290, %c0_291, %c208_292] : memref<4x16x8x256xbf16, #tpu.memory_space<vmem>>, vector<1x16x8x32xbf16>
    %193 = vector.shape_cast %192 : vector<1x16x8x32xbf16> to vector<16x8x32xbf16>
    %194 = vector.shape_cast %191 : vector<16x8x32xbf16> to vector<1x16x8x32xbf16>
    tpu.vector_store %arg5[%c3_289, %c0_290, %c0_291, %c208_292], %194 {strides = array<i32>} : memref<4x16x8x256xbf16, #tpu.memory_space<vmem>>, vector<1x16x8x32xbf16>,
    %c1_293 = arith.constant 1 : index
    %c3_294 = arith.constant 3 : index
    %c2_295 = arith.constant 2 : index
    %c0_296 = arith.constant 0 : index
    %195 = vector.load %arg1[%c1_293, %c3_294, %c2_295, %c0_296] : memref<2x19x10x32xbf16, #tpu.memory_space<vmem>>, vector<1x16x8x16xbf16>
    %196 = vector.shape_cast %195 : vector<1x16x8x16xbf16> to vector<16x8x16xbf16>
    %c3_297 = arith.constant 3 : index
    %c0_298 = arith.constant 0 : index
    %c0_299 = arith.constant 0 : index
    %c240_300 = arith.constant 240 : index
    %197 = vector.load %arg5[%c3_297, %c0_298, %c0_299, %c240_300] : memref<4x16x8x256xbf16, #tpu.memory_space<vmem>>, vector<1x16x8x16xbf16>
    %198 = vector.shape_cast %197 : vector<1x16x8x16xbf16> to vector<16x8x16xbf16>
    %199 = vector.shape_cast %196 : vector<16x8x16xbf16> to vector<1x16x8x16xbf16>
    tpu.vector_store %arg5[%c3_297, %c0_298, %c0_299, %c240_300], %199 {strides = array<i32>} : memref<4x16x8x256xbf16, #tpu.memory_space<vmem>>, vector<1x16x8x16xbf16>,
    %c0_301 = arith.constant 0 : index
    %c0_302 = arith.constant 0 : index
    %c0_303 = arith.constant 0 : index
    %c0_304 = arith.constant 0 : index
    %200 = vector.load %arg5[%c0_301, %c0_302, %c0_303, %c0_304] : memref<4x16x8x256xbf16, #tpu.memory_space<vmem>>, vector<4x16x8x256xbf16>
    %201 = vector.shape_cast %200 : vector<4x16x8x256xbf16> to vector<512x256xbf16>
    %c0_305 = arith.constant 0 : index
    %c0_306 = arith.constant 0 : index
    %202 = vector.load %arg2[%c0_305, %c0_306] : memref<256x128xbf16, #tpu.memory_space<vmem>>, vector<256x128xbf16>
    %cst = arith.constant dense<0.000000e+00> : vector<512x128xf32>
    %203 = tpu.matmul %201, %202, %cst {dimension_numbers = #tpu.dot_dimension_numbers<[1], [0], [0], [1], [0, 0, 1, 1], [], []>} : vector<512x256xbf16>, vector<256x128xbf16>, vector<512x128xf32> -> vector<512x128xf32>
    %c0_307 = arith.constant 0 : index
    %c0_308 = arith.constant 0 : index
    %204 = vector.load %arg3[%c0_307, %c0_308] : memref<1x128xf32, #tpu.memory_space<vmem>>, vector<1x128xf32>
    %205 = vector.broadcast %204 : vector<1x128xf32> to vector<512x128xf32>
    %206 = arith.addf %203, %205 : vector<512x128xf32>
    %cst_309 = arith.constant 0.000000e+00 : f32
    %207 = vector.broadcast %cst_309 : f32 to vector<512x128xf32>
    %208 = arith.maximumf %206, %207 : vector<512x128xf32>
    %209 = vector.shape_cast %208 : vector<512x128xf32> to vector<4x16x8x128xf32>
    %210 = vector.extract_strided_slice %209 {offsets = [0, 0, 0, 0], sizes = [1, 16, 8, 128], strides = [1, 1, 1, 1]} : vector<4x16x8x128xf32> to vector<1x16x8x128xf32>
    %211 = vector.shape_cast %210 : vector<1x16x8x128xf32> to vector<16x8x128xf32>
    %212 = vector.extract_strided_slice %209 {offsets = [1, 0, 0, 0], sizes = [1, 16, 8, 128], strides = [1, 1, 1, 1]} : vector<4x16x8x128xf32> to vector<1x16x8x128xf32>
    %213 = vector.shape_cast %212 : vector<1x16x8x128xf32> to vector<16x8x128xf32>
    %cst_310 = arith.constant 0.000000e+00 : f32
    %214 = vector.broadcast %cst_310 : f32 to vector<16x1x128xf32>
    %215 = vector.extract_strided_slice %213 {offsets = [0, 0, 0], sizes = [16, 7, 128], strides = [1, 1, 1]} : vector<16x8x128xf32> to vector<16x7x128xf32>
    %216 = tpu.concatenate %214, %215 in 1 : vector<16x1x128xf32>, vector<16x7x128xf32> -> vector<16x8x128xf32>
    %217 = arith.maximumf %211, %213 : vector<16x8x128xf32>
    %218 = arith.maximumf %217, %216 : vector<16x8x128xf32>
    %219 = vector.shape_cast %218 : vector<16x8x128xf32> to vector<8x2x8x128xf32>
    %220 = vector.extract_strided_slice %219 {offsets = [0, 0, 0, 0], sizes = [8, 1, 8, 128], strides = [1, 1, 1, 1]} : vector<8x2x8x128xf32> to vector<8x1x8x128xf32>
    %221 = vector.shape_cast %220 : vector<8x1x8x128xf32> to vector<8x8x128xf32>
    %222 = vector.extract_strided_slice %219 {offsets = [0, 1, 0, 0], sizes = [8, 1, 8, 128], strides = [1, 1, 1, 1]} : vector<8x2x8x128xf32> to vector<8x1x8x128xf32>
    %223 = vector.shape_cast %222 : vector<8x1x8x128xf32> to vector<8x8x128xf32>
    %cst_311 = arith.constant 0.000000e+00 : f32
    %224 = vector.broadcast %cst_311 : f32 to vector<1x8x128xf32>
    %225 = vector.extract_strided_slice %223 {offsets = [0, 0, 0], sizes = [7, 8, 128], strides = [1, 1, 1]} : vector<8x8x128xf32> to vector<7x8x128xf32>
    %226 = tpu.concatenate %224, %225 in 0 : vector<1x8x128xf32>, vector<7x8x128xf32> -> vector<8x8x128xf32>
    %227 = arith.maximumf %221, %223 : vector<8x8x128xf32>
    %228 = arith.maximumf %227, %226 : vector<8x8x128xf32>
    %c0_312 = arith.constant 0 : index
    %c0_313 = arith.constant 0 : index
    %c0_314 = arith.constant 0 : index
    %c0_315 = arith.constant 0 : index
    %229 = vector.load %arg4[%c0_312, %c0_313, %c0_314, %c0_315] : memref<2x8x8x128xf32, #tpu.memory_space<vmem>>, vector<1x8x8x128xf32>
    %230 = vector.shape_cast %229 : vector<1x8x8x128xf32> to vector<8x8x128xf32>
    %231 = vector.shape_cast %228 : vector<8x8x128xf32> to vector<1x8x8x128xf32>
    tpu.vector_store %arg4[%c0_312, %c0_313, %c0_314, %c0_315], %231 {strides = array<i32>} : memref<2x8x8x128xf32, #tpu.memory_space<vmem>>, vector<1x8x8x128xf32>,
    %232 = vector.extract_strided_slice %209 {offsets = [2, 0, 0, 0], sizes = [1, 16, 8, 128], strides = [1, 1, 1, 1]} : vector<4x16x8x128xf32> to vector<1x16x8x128xf32>
    %233 = vector.shape_cast %232 : vector<1x16x8x128xf32> to vector<16x8x128xf32>
    %234 = vector.extract_strided_slice %209 {offsets = [3, 0, 0, 0], sizes = [1, 16, 8, 128], strides = [1, 1, 1, 1]} : vector<4x16x8x128xf32> to vector<1x16x8x128xf32>
    %235 = vector.shape_cast %234 : vector<1x16x8x128xf32> to vector<16x8x128xf32>
    %cst_316 = arith.constant 0.000000e+00 : f32
    %236 = vector.broadcast %cst_316 : f32 to vector<16x1x128xf32>
    %237 = vector.extract_strided_slice %235 {offsets = [0, 0, 0], sizes = [16, 7, 128], strides = [1, 1, 1]} : vector<16x8x128xf32> to vector<16x7x128xf32>
    %238 = tpu.concatenate %236, %237 in 1 : vector<16x1x128xf32>, vector<16x7x128xf32> -> vector<16x8x128xf32>
    %239 = arith.maximumf %233, %235 : vector<16x8x128xf32>
    %240 = arith.maximumf %239, %238 : vector<16x8x128xf32>
    %241 = vector.shape_cast %240 : vector<16x8x128xf32> to vector<8x2x8x128xf32>
    %242 = vector.extract_strided_slice %241 {offsets = [0, 0, 0, 0], sizes = [8, 1, 8, 128], strides = [1, 1, 1, 1]} : vector<8x2x8x128xf32> to vector<8x1x8x128xf32>
    %243 = vector.shape_cast %242 : vector<8x1x8x128xf32> to vector<8x8x128xf32>
    %244 = vector.extract_strided_slice %241 {offsets = [0, 1, 0, 0], sizes = [8, 1, 8, 128], strides = [1, 1, 1, 1]} : vector<8x2x8x128xf32> to vector<8x1x8x128xf32>
    %245 = vector.shape_cast %244 : vector<8x1x8x128xf32> to vector<8x8x128xf32>
    %cst_317 = arith.constant 0.000000e+00 : f32
    %246 = vector.broadcast %cst_317 : f32 to vector<1x8x128xf32>
    %247 = vector.extract_strided_slice %245 {offsets = [0, 0, 0], sizes = [7, 8, 128], strides = [1, 1, 1]} : vector<8x8x128xf32> to vector<7x8x128xf32>
    %248 = tpu.concatenate %246, %247 in 0 : vector<1x8x128xf32>, vector<7x8x128xf32> -> vector<8x8x128xf32>
    %249 = arith.maximumf %243, %245 : vector<8x8x128xf32>
    %250 = arith.maximumf %249, %248 : vector<8x8x128xf32>
    %c1_318 = arith.constant 1 : index
    %c0_319 = arith.constant 0 : index
    %c0_320 = arith.constant 0 : index
    %c0_321 = arith.constant 0 : index
    %251 = vector.load %arg4[%c1_318, %c0_319, %c0_320, %c0_321] : memref<2x8x8x128xf32, #tpu.memory_space<vmem>>, vector<1x8x8x128xf32>
    %252 = vector.shape_cast %251 : vector<1x8x8x128xf32> to vector<8x8x128xf32>
    %253 = vector.shape_cast %250 : vector<8x8x128xf32> to vector<1x8x8x128xf32>
    tpu.vector_store %arg4[%c1_318, %c0_319, %c0_320, %c0_321], %253 {strides = array<i32>} : memref<2x8x8x128xf32, #tpu.memory_space<vmem>>, vector<1x8x8x128xf32>,
    return
  }
  func.func @transform_0(%arg0: i32) -> (i32, i32, i32, i32) {
    %c0_i32 = arith.constant 0 : i32
    %c0_i32_0 = arith.constant 0 : i32
    %c0_i32_1 = arith.constant 0 : i32
    %c0_i32_2 = arith.constant 0 : i32
    return %arg0, %c0_i32, %c0_i32_0, %c0_i32_1 : i32, i32, i32, i32
  }
  func.func @transform_1(%arg0: i32) -> (i32, i32) {
    %c0_i32 = arith.constant 0 : i32
    %c0_i32_0 = arith.constant 0 : i32
    %c0_i32_1 = arith.constant 0 : i32
    return %c0_i32, %c0_i32_0 : i32, i32
  }
  func.func @transform_2(%arg0: i32) -> (i32, i32) {
    %c0_i32 = arith.constant 0 : i32
    %c0_i32_0 = arith.constant 0 : i32
    %c0_i32_1 = arith.constant 0 : i32
    return %c0_i32, %c0_i32_0 : i32, i32
  }
  func.func @transform_3(%arg0: i32) -> (i32, i32, i32, i32) {
    %c0_i32 = arith.constant 0 : i32
    %c0_i32_0 = arith.constant 0 : i32
    %c0_i32_1 = arith.constant 0 : i32
    %c0_i32_2 = arith.constant 0 : i32
    return %arg0, %c0_i32, %c0_i32_0, %c0_i32_1 : i32, i32, i32, i32
  }
}

</mosaic_0001>

<llo_original>
// kernel: thermal_module_forward.1
$region0: #{thermal_module_forward.1}
  #allocation0 [shape = 'u32[]', space=smem, size = 0x4, offset = 0x4, fixed_abs, tag = 'smem constant byte address 0x4 - core index']
  #allocation1 [shape = 'u32[144,128]{1,0:T(1,128)}', space=vmem, size = 0x12000, scoped, tag = 'internal scratch']
  #allocation2 [shape = 'bf16[4,16,8,256]{3,2,1,0:T(8,128)(2,1)}', space=vmem, size = 0x40000, scoped, tag = 'scratch operand']
  %s0 = inlined_call_operand.hbm [shape: bf16[2,19,10,32], index: 0, kind: input, shape index: {}]
  %s1 = inlined_call_operand.hbm [shape: bf16[256,128], index: 1, kind: input, shape index: {}]
  %s2 = inlined_call_operand.hbm [shape: f32[1,128], index: 2, kind: input, shape index: {}]
  %s3 = inlined_call_operand.hbm [shape: f32[2,8,8,128], index: 3, kind: output, shape index: {}]
  %s4 = sld [smem:[#allocation0]]
  $region34: #{thermal_module_forward.1} parent=0
    _
  %s6 = ssub.s32 1, %s4
  %s7 = scalar_select 0, %s6, %s4
  $region1: #{thermal_module_forward.1} parent=0
    #allocation3 [shape = 'u8[155648]{0}', space=vmem, size = 0x26000, scoped, tag = 'input window, operand 0, single buffered']
    #allocation4 [shape = 's32[1]{0}', space=sflag, size = 0x4, scoped, tag = 'scoped memory for thermal_module_forward.1']
    #allocation5 [shape = 's32[1]{0}', space=sflag, size = 0x4, scoped, tag = 'scoped memory for thermal_module_forward.1']
    #allocation6 [shape = 'u8[65536]{0}', space=vmem, size = 0x10000, scoped, tag = 'input window, operand 1, single buffered']
    #allocation7 [shape = 's32[1]{0}', space=sflag, size = 0x4, scoped, tag = 'scoped memory for thermal_module_forward.1']
    #allocation8 [shape = 'u8[512]{0}', space=vmem, size = 0x400, scoped, tag = 'input window, operand 2, single buffered']
    #allocation9 [shape = 'u8[65536]{0}', space=vmem, size = 0x10000, scoped, tag = 'output window, operand 0, single buffered']
    %8 = vsyncpa [#allocation4], 0
    %9 = vsyncpa [#allocation7], 0
    %10 = vsyncpa [#allocation5], 0
    // Predicated region
    $region2: #{thermal_module_forward.1} parent=1 // pred_check
      _
    $region3: #{thermal_module_forward.1} parent=1 // pred_check_branch
      %12 = sbr.rel (0) target = $region5
    $region4: #{thermal_module_forward.1} parent=1 // pred_region
      %s14 = ssub.s32 4864, 4864
      %15 = vsyncadd [#allocation4], %s14
      %s16 = sshll.u32 [#allocation3], 4
      %s17 = int_to_ptr.vmem [resolvable:$true] %s16
      %22 = dma.hbm_to_vmem [thread:$0]  %s0, 4864, %s17, [#allocation4], 64, 64, 4
    $region5: #{thermal_module_forward.1} parent=1 // pred_fallthru
      _
    // Predicated region
    $region6: #{thermal_module_forward.1} parent=1 // pred_check
      _
    $region7: #{thermal_module_forward.1} parent=1 // pred_check_branch
      %24 = sbr.rel (0) target = $region9
    $region8: #{thermal_module_forward.1} parent=1 // pred_region
      %s26 = ssub.s32 2048, 2048
      %27 = vsyncadd [#allocation7], %s26
      %s28 = sshll.u32 [#allocation6], 4
      %s29 = int_to_ptr.vmem [resolvable:$true] %s28
      %34 = dma.hbm_to_vmem [thread:$0]  %s1, 2048, %s29, [#allocation7], 64, 64, 4
    $region9: #{thermal_module_forward.1} parent=1 // pred_fallthru
      _
    // Predicated region
    $region10: #{thermal_module_forward.1} parent=1 // pred_check
      _
    $region11: #{thermal_module_forward.1} parent=1 // pred_check_branch
      %36 = sbr.rel (0) target = $region13
    $region12: #{thermal_module_forward.1} parent=1 // pred_region
      %s38 = ssub.s32 16, 16
      %39 = vsyncadd [#allocation7], %s38
      %s41 = sshll.u32 [#allocation8], 4
      %s42 = int_to_ptr.vmem [resolvable:$true] %s41
      %44 = dma.hbm_to_vmem [thread:$0]  %s2, 16, %s42, [#allocation7]
    $region13: #{thermal_module_forward.1} parent=1 // pred_fallthru
      _
    // Predicated region
    $region14: #{thermal_module_forward.1} parent=1 // pred_check
      _
    $region15: #{thermal_module_forward.1} parent=1 // pred_check_branch
      %46 = sbr.rel (0) target = $region17
    $region16: #{thermal_module_forward.1} parent=1 // pred_region
      %47 = dma.done [#allocation4], 4864
    $region17: #{thermal_module_forward.1} parent=1 // pred_fallthru
      _
    // Predicated region
    $region18: #{thermal_module_forward.1} parent=1 // pred_check
      _
    $region19: #{thermal_module_forward.1} parent=1 // pred_check_branch
      %49 = sbr.rel (0) target = $region21
    $region20: #{thermal_module_forward.1} parent=1 // pred_region
      %50 = dma.done [#allocation7], 2048
    $region21: #{thermal_module_forward.1} parent=1 // pred_fallthru
      _
    // Predicated region
    $region22: #{thermal_module_forward.1} parent=1 // pred_check
      _
    $region23: #{thermal_module_forward.1} parent=1 // pred_check_branch
      %52 = sbr.rel (0) target = $region25
    $region24: #{thermal_module_forward.1} parent=1 // pred_region
      %53 = dma.done [#allocation7], 16
    $region25: #{thermal_module_forward.1} parent=1 // pred_fallthru
      _
    %v55 = vld [vmem:[#allocation3] sm:$0xf]
    %v56 = vld [vmem:[#allocation3 + $0x8] sm:$0xf]
    %v57 = vld [vmem:[#allocation3 + $0x10] sm:$0xf]
    %v58 = vld [vmem:[#allocation3 + $0x18] sm:$0xf]
    %v59 = vld [vmem:[#allocation3 + $0x20] sm:$0xf]
    %v60 = vld [vmem:[#allocation3 + $0x28] sm:$0xf]
    %v61 = vld [vmem:[#allocation3 + $0x30] sm:$0xf]
    %v62 = vld [vmem:[#allocation3 + $0x38] sm:$0xf]
    %v63 = vld [vmem:[#allocation3 + $0x40] sm:$0xf]
    %v64 = vld [vmem:[#allocation3 + $0x48] sm:$0xf]
    %v65 = vld [vmem:[#allocation3 + $0x50] sm:$0xf]
    %v66 = vld [vmem:[#allocation3 + $0x58] sm:$0xf]
    %v67 = vld [vmem:[#allocation3 + $0x60] sm:$0xf]
    %v68 = vld [vmem:[#allocation3 + $0x68] sm:$0xf]
    %v69 = vld [vmem:[#allocation3 + $0x70] sm:$0xf]
    %v70 = vld [vmem:[#allocation3 + $0x78] sm:$0xf]
    %vm71 = vcmask 257024
    %72 = vst.msk [vmem:[#allocation2] sm:$0xf] %vm71, %v55
    %73 = vst.msk [vmem:[#allocation2 + $0x8] sm:$0xf] %vm71, %v56
    %74 = vst.msk [vmem:[#allocation2 + $0x10] sm:$0xf] %vm71, %v57
    %75 = vst.msk [vmem:[#allocation2 + $0x18] sm:$0xf] %vm71, %v58
    %76 = vst.msk [vmem:[#allocation2 + $0x20] sm:$0xf] %vm71, %v59
    %77 = vst.msk [vmem:[#allocation2 + $0x28] sm:$0xf] %vm71, %v60
    %78 = vst.msk [vmem:[#allocation2 + $0x30] sm:$0xf] %vm71, %v61
    %79 = vst.msk [vmem:[#allocation2 + $0x38] sm:$0xf] %vm71, %v62
    %80 = vst.msk [vmem:[#allocation2 + $0x40] sm:$0xf] %vm71, %v63
    %81 = vst.msk [vmem:[#allocation2 + $0x48] sm:$0xf] %vm71, %v64
    %82 = vst.msk [vmem:[#allocation2 + $0x50] sm:$0xf] %vm71, %v65
    %83 = vst.msk [vmem:[#allocation2 + $0x58] sm:$0xf] %vm71, %v66
    %84 = vst.msk [vmem:[#allocation2 + $0x60] sm:$0xf] %vm71, %v67
    %85 = vst.msk [vmem:[#allocation2 + $0x68] sm:$0xf] %vm71, %v68
    %86 = vst.msk [vmem:[#allocation2 + $0x70] sm:$0xf] %vm71, %v69
    %87 = vst.msk [vmem:[#allocation2 + $0x78] sm:$0xf] %vm71, %v70
    %v88 = vld [vmem:[#allocation3] sm:$0xf]
    %v89 = vld [vmem:[#allocation3 + $0x4] sm:$0x1]
    %v90 = vld [vmem:[#allocation3 + $0x8] sm:$0xf]
    %v91 = vld [vmem:[#allocation3 + $0xc] sm:$0x1]
    %v92 = vld [vmem:[#allocation3 + $0x10] sm:$0xf]
    %v93 = vld [vmem:[#allocation3 + $0x14] sm:$0x1]
    %v94 = vld [vmem:[#allocation3 + $0x18] sm:$0xf]
    %v95 = vld [vmem:[#allocation3 + $0x1c] sm:$0x1]
    %v96 = vld [vmem:[#allocation3 + $0x20] sm:$0xf]
    %v97 = vld [vmem:[#allocation3 + $0x24] sm:$0x1]
    %v98 = vld [vmem:[#allocation3 + $0x28] sm:$0xf]
    %v99 = vld [vmem:[#allocation3 + $0x2c] sm:$0x1]
    %v100 = vld [vmem:[#allocation3 + $0x30] sm:$0xf]
    %v101 = vld [vmem:[#allocation3 + $0x34] sm:$0x1]
    %v102 = vld [vmem:[#allocation3 + $0x38] sm:$0xf]
    %v103 = vld [vmem:[#allocation3 + $0x3c] sm:$0x1]
    %v104 = vld [vmem:[#allocation3 + $0x40] sm:$0xf]
    %v105 = vld [vmem:[#allocation3 + $0x44] sm:$0x1]
    %v106 = vld [vmem:[#allocation3 + $0x48] sm:$0xf]
    %v107 = vld [vmem:[#allocation3 + $0x4c] sm:$0x1]
    %v108 = vld [vmem:[#allocation3 + $0x50] sm:$0xf]
    %v109 = vld [vmem:[#allocation3 + $0x54] sm:$0x1]
    %v110 = vld [vmem:[#allocation3 + $0x58] sm:$0xf]
    %v111 = vld [vmem:[#allocation3 + $0x5c] sm:$0x1]
    %v112 = vld [vmem:[#allocation3 + $0x60] sm:$0xf]
    %v113 = vld [vmem:[#allocation3 + $0x64] sm:$0x1]
    %v114 = vld [vmem:[#allocation3 + $0x68] sm:$0xf]
    %v115 = vld [vmem:[#allocation3 + $0x6c] sm:$0x1]
    %v116 = vld [vmem:[#allocation3 + $0x70] sm:$0xf]
    %v117 = vld [vmem:[#allocation3 + $0x74] sm:$0x1]
    %v118 = vld [vmem:[#allocation3 + $0x78] sm:$0xf]
    %v119 = vld [vmem:[#allocation3 + $0x7c] sm:$0x1]
    %vm120 = vsmask.f32 3328
    %vm121 = vsmask.f32 7440
    %vm122 = vmor %vm120, %vm121
    %v124 = vshrl.u32 %v88, 16
    %v126 = vrot.slane %v124, 4
    %v127 = vshll.u32 %v88, 16
    %v129 = vrot.slane %v127, 5
    %v130 = vor.u32 %v126, %v129
    %v131 = vrot.slane %v130, 4
    %v133 = vshll.u32 %v89, 16
    %v135 = vrot.slane %v133, 5
    %v136 = vsel %vm122, %v131, %v135
    %v138 = vshrl.u32 %v90, 16
    %v140 = vrot.slane %v138, 4
    %v141 = vshll.u32 %v90, 16
    %v143 = vrot.slane %v141, 5
    %v144 = vor.u32 %v140, %v143
    %v145 = vrot.slane %v144, 4
    %v147 = vshll.u32 %v91, 16
    %v149 = vrot.slane %v147, 5
    %v150 = vsel %vm122, %v145, %v149
    %v152 = vshrl.u32 %v92, 16
    %v154 = vrot.slane %v152, 4
    %v155 = vshll.u32 %v92, 16
    %v157 = vrot.slane %v155, 5
    %v158 = vor.u32 %v154, %v157
    %v159 = vrot.slane %v158, 4
    %v161 = vshll.u32 %v93, 16
    %v163 = vrot.slane %v161, 5
    %v164 = vsel %vm122, %v159, %v163
    %v166 = vshrl.u32 %v94, 16
    %v168 = vrot.slane %v166, 4
    %v169 = vshll.u32 %v94, 16
    %v171 = vrot.slane %v169, 5
    %v172 = vor.u32 %v168, %v171
    %v173 = vrot.slane %v172, 4
    %v175 = vshll.u32 %v95, 16
    %v177 = vrot.slane %v175, 5
    %v178 = vsel %vm122, %v173, %v177
    %v180 = vshrl.u32 %v96, 16
    %v182 = vrot.slane %v180, 4
    %v183 = vshll.u32 %v96, 16
    %v185 = vrot.slane %v183, 5
    %v186 = vor.u32 %v182, %v185
    %v187 = vrot.slane %v186, 4
    %v189 = vshll.u32 %v97, 16
    %v191 = vrot.slane %v189, 5
    %v192 = vsel %vm122, %v187, %v191
    %v194 = vshrl.u32 %v98, 16
    %v196 = vrot.slane %v194, 4
    %v197 = vshll.u32 %v98, 16
    %v199 = vrot.slane %v197, 5
    %v200 = vor.u32 %v196, %v199
    %v201 = vrot.slane %v200, 4
    %v203 = vshll.u32 %v99, 16
    %v205 = vrot.slane %v203, 5
    %v206 = vsel %vm122, %v201, %v205
    %v208 = vshrl.u32 %v100, 16
    %v210 = vrot.slane %v208, 4
    %v211 = vshll.u32 %v100, 16
    %v213 = vrot.slane %v211, 5
    %v214 = vor.u32 %v210, %v213
    %v215 = vrot.slane %v214, 4
    %v217 = vshll.u32 %v101, 16
    %v219 = vrot.slane %v217, 5
    %v220 = vsel %vm122, %v215, %v219
    %v222 = vshrl.u32 %v102, 16
    %v224 = vrot.slane %v222, 4
    %v225 = vshll.u32 %v102, 16
    %v227 = vrot.slane %v225, 5
    %v228 = vor.u32 %v224, %v227
    %v229 = vrot.slane %v228, 4
    %v231 = vshll.u32 %v103, 16
    %v233 = vrot.slane %v231, 5
    %v234 = vsel %vm122, %v229, %v233
    %v236 = vshrl.u32 %v104, 16
    %v238 = vrot.slane %v236, 4
    %v239 = vshll.u32 %v104, 16
    %v241 = vrot.slane %v239, 5
    %v242 = vor.u32 %v238, %v241
    %v243 = vrot.slane %v242, 4
    %v245 = vshll.u32 %v105, 16
    %v247 = vrot.slane %v245, 5
    %v248 = vsel %vm122, %v243, %v247
    %v250 = vshrl.u32 %v106, 16
    %v252 = vrot.slane %v250, 4
    %v253 = vshll.u32 %v106, 16
    %v255 = vrot.slane %v253, 5
    %v256 = vor.u32 %v252, %v255
    %v257 = vrot.slane %v256, 4
    %v259 = vshll.u32 %v107, 16
    %v261 = vrot.slane %v259, 5
    %v262 = vsel %vm122, %v257, %v261
    %v264 = vshrl.u32 %v108, 16
    %v266 = vrot.slane %v264, 4
    %v267 = vshll.u32 %v108, 16
    %v269 = vrot.slane %v267, 5
    %v270 = vor.u32 %v266, %v269
    %v271 = vrot.slane %v270, 4
    %v273 = vshll.u32 %v109, 16
    %v275 = vrot.slane %v273, 5
    %v276 = vsel %vm122, %v271, %v275
    %v278 = vshrl.u32 %v110, 16
    %v280 = vrot.slane %v278, 4
    %v281 = vshll.u32 %v110, 16
    %v283 = vrot.slane %v281, 5
    %v284 = vor.u32 %v280, %v283
    %v285 = vrot.slane %v284, 4
    %v287 = vshll.u32 %v111, 16
    %v289 = vrot.slane %v287, 5
    %v290 = vsel %vm122, %v285, %v289
    %v292 = vshrl.u32 %v112, 16
    %v294 = vrot.slane %v292, 4
    %v295 = vshll.u32 %v112, 16
    %v297 = vrot.slane %v295, 5
    %v298 = vor.u32 %v294, %v297
    %v299 = vrot.slane %v298, 4
    %v301 = vshll.u32 %v113, 16
    %v303 = vrot.slane %v301, 5
    %v304 = vsel %vm122, %v299, %v303
    %v306 = vshrl.u32 %v114, 16
    %v308 = vrot.slane %v306, 4
    %v309 = vshll.u32 %v114, 16
    %v311 = vrot.slane %v309, 5
    %v312 = vor.u32 %v308, %v311
    %v313 = vrot.slane %v312, 4
    %v315 = vshll.u32 %v115, 16
    %v317 = vrot.slane %v315, 5
    %v318 = vsel %vm122, %v313, %v317
    %v320 = vshrl.u32 %v116, 16
    %v322 = vrot.slane %v320, 4
    %v323 = vshll.u32 %v116, 16
    %v325 = vrot.slane %v323, 5
    %v326 = vor.u32 %v322, %v325
    %v327 = vrot.slane %v326, 4
    %v329 = vshll.u32 %v117, 16
    %v331 = vrot.slane %v329, 5
    %v332 = vsel %vm122, %v327, %v331
    %v334 = vshrl.u32 %v118, 16
    %v336 = vrot.slane %v334, 4
    %v337 = vshll.u32 %v118, 16
    %v339 = vrot.slane %v337, 5
    %v340 = vor.u32 %v336, %v339
    %v341 = vrot.slane %v340, 4
    %v343 = vshll.u32 %v119, 16
    %v345 = vrot.slane %v343, 5
    %v346 = vsel %vm122, %v341, %v345
    %347 = vrot.lane.b32.xlu0 %v136, 32
    %v348 = vpop.permute.xlu0 %347
    %349 = vrot.lane.b32.xlu0 %v150, 32
    %v350 = vpop.permute.xlu0 %349
    %351 = vrot.lane.b32.xlu0 %v164, 32
    %v352 = vpop.permute.xlu0 %351
    %353 = vrot.lane.b32.xlu0 %v178, 32
    %v354 = vpop.permute.xlu0 %353
    %355 = vrot.lane.b32.xlu0 %v192, 32
    %v356 = vpop.permute.xlu0 %355
    %357 = vrot.lane.b32.xlu0 %v206, 32
    %v358 = vpop.permute.xlu0 %357
    %359 = vrot.lane.b32.xlu0 %v220, 32
    %v360 = vpop.permute.xlu0 %359
    %361 = vrot.lane.b32.xlu0 %v234, 32
    %v362 = vpop.permute.xlu0 %361
    %363 = vrot.lane.b32.xlu0 %v248, 32
    %v364 = vpop.permute.xlu0 %363
    %365 = vrot.lane.b32.xlu0 %v262, 32
    %v366 = vpop.permute.xlu0 %365
    %367 = vrot.lane.b32.xlu0 %v276, 32
    %v368 = vpop.permute.xlu0 %367
    %369 = vrot.lane.b32.xlu0 %v290, 32
    %v370 = vpop.permute.xlu0 %369
    %371 = vrot.lane.b32.xlu0 %v304, 32
    %v372 = vpop.permute.xlu0 %371
    %373 = vrot.lane.b32.xlu0 %v318, 32
    %v374 = vpop.permute.xlu0 %373
    %375 = vrot.lane.b32.xlu0 %v332, 32
    %v376 = vpop.permute.xlu0 %375
    %377 = vrot.lane.b32.xlu0 %v346, 32
    %v378 = vpop.permute.xlu0 %377
    %vm395 = vcmask 519424
    %396 = vst.msk [vmem:[#allocation2] sm:$0xf] %vm395, %v348
    %397 = vst.msk [vmem:[#allocation2 + $0x8] sm:$0xf] %vm395, %v350
    %398 = vst.msk [vmem:[#allocation2 + $0x10] sm:$0xf] %vm395, %v352
    %399 = vst.msk [vmem:[#allocation2 + $0x18] sm:$0xf] %vm395, %v354
    %400 = vst.msk [vmem:[#allocation2 + $0x20] sm:$0xf] %vm395, %v356
    %401 = vst.msk [vmem:[#allocation2 + $0x28] sm:$0xf] %vm395, %v358
    %402 = vst.msk [vmem:[#allocation2 + $0x30] sm:$0xf] %vm395, %v360
    %403 = vst.msk [vmem:[#allocation2 + $0x38] sm:$0xf] %vm395, %v362
    %404 = vst.msk [vmem:[#allocation2 + $0x40] sm:$0xf] %vm395, %v364
    %405 = vst.msk [vmem:[#allocation2 + $0x48] sm:$0xf] %vm395, %v366
    %406 = vst.msk [vmem:[#allocation2 + $0x50] sm:$0xf] %vm395, %v368
    %407 = vst.msk [vmem:[#allocation2 + $0x58] sm:$0xf] %vm395, %v370
    %408 = vst.msk [vmem:[#allocation2 + $0x60] sm:$0xf] %vm395, %v372
    %409 = vst.msk [vmem:[#allocation2 + $0x68] sm:$0xf] %vm395, %v374
    %410 = vst.msk [vmem:[#allocation2 + $0x70] sm:$0xf] %vm395, %v376
    %411 = vst.msk [vmem:[#allocation2 + $0x78] sm:$0xf] %vm395, %v378
    %v412 = vld [vmem:[#allocation3] sm:$0xf]
    %v413 = vld [vmem:[#allocation3 + $0x8] sm:$0xf]
    %v414 = vld [vmem:[#allocation3 + $0x10] sm:$0xf]
    %v415 = vld [vmem:[#allocation3 + $0x18] sm:$0xf]
    %v416 = vld [vmem:[#allocation3 + $0x20] sm:$0xf]
    %v417 = vld [vmem:[#allocation3 + $0x28] sm:$0xf]
    %v418 = vld [vmem:[#allocation3 + $0x30] sm:$0xf]
    %v419 = vld [vmem:[#allocation3 + $0x38] sm:$0xf]
    %v420 = vld [vmem:[#allocation3 + $0x40] sm:$0xf]
    %v421 = vld [vmem:[#allocation3 + $0x48] sm:$0xf]
    %v422 = vld [vmem:[#allocation3 + $0x50] sm:$0xf]
    %v423 = vld [vmem:[#allocation3 + $0x58] sm:$0xf]
    %v424 = vld [vmem:[#allocation3 + $0x60] sm:$0xf]
    %v425 = vld [vmem:[#allocation3 + $0x68] sm:$0xf]
    %v426 = vld [vmem:[#allocation3 + $0x70] sm:$0xf]
    %v427 = vld [vmem:[#allocation3 + $0x78] sm:$0xf]
    %444 = vrot.lane.b32.xlu0 %v412, 112
    %v445 = vpop.permute.xlu0 %444
    %446 = vrot.lane.b32.xlu0 %v413, 112
    %v447 = vpop.permute.xlu0 %446
    %448 = vrot.lane.b32.xlu0 %v414, 112
    %v449 = vpop.permute.xlu0 %448
    %450 = vrot.lane.b32.xlu0 %v415, 112
    %v451 = vpop.permute.xlu0 %450
    %452 = vrot.lane.b32.xlu0 %v416, 112
    %v453 = vpop.permute.xlu0 %452
    %454 = vrot.lane.b32.xlu0 %v417, 112
    %v455 = vpop.permute.xlu0 %454
    %456 = vrot.lane.b32.xlu0 %v418, 112
    %v457 = vpop.permute.xlu0 %456
    %458 = vrot.lane.b32.xlu0 %v419, 112
    %v459 = vpop.permute.xlu0 %458
    %460 = vrot.lane.b32.xlu0 %v420, 112
    %v461 = vpop.permute.xlu0 %460
    %462 = vrot.lane.b32.xlu0 %v421, 112
    %v463 = vpop.permute.xlu0 %462
    %464 = vrot.lane.b32.xlu0 %v422, 112
    %v465 = vpop.permute.xlu0 %464
    %466 = vrot.lane.b32.xlu0 %v423, 112
    %v467 = vpop.permute.xlu0 %466
    %468 = vrot.lane.b32.xlu0 %v424, 112
    %v469 = vpop.permute.xlu0 %468
    %470 = vrot.lane.b32.xlu0 %v425, 112
    %v471 = vpop.permute.xlu0 %470
    %472 = vrot.lane.b32.xlu0 %v426, 112
    %v473 = vpop.permute.xlu0 %472
    %474 = vrot.lane.b32.xlu0 %v427, 112
    %v475 = vpop.permute.xlu0 %474
    %s492 = scalar_lea.vmem [#allocation2], 128
    %vm493 = vcmask 125952
    %494 = vst.msk [vmem:[%s492] sm:$0xf] %vm493, %v445
    %495 = vst.msk [vmem:[%s492 + $0x8] sm:$0xf] %vm493, %v447
    %496 = vst.msk [vmem:[%s492 + $0x10] sm:$0xf] %vm493, %v449
    %497 = vst.msk [vmem:[%s492 + $0x18] sm:$0xf] %vm493, %v451
    %498 = vst.msk [vmem:[%s492 + $0x20] sm:$0xf] %vm493, %v453
    %499 = vst.msk [vmem:[%s492 + $0x28] sm:$0xf] %vm493, %v455
    %500 = vst.msk [vmem:[%s492 + $0x30] sm:$0xf] %vm493, %v457
    %501 = vst.msk [vmem:[%s492 + $0x38] sm:$0xf] %vm493, %v459
    %502 = vst.msk [vmem:[%s492 + $0x40] sm:$0xf] %vm493, %v461
    %503 = vst.msk [vmem:[%s492 + $0x48] sm:$0xf] %vm493, %v463
    %504 = vst.msk [vmem:[%s492 + $0x50] sm:$0xf] %vm493, %v465
    %505 = vst.msk [vmem:[%s492 + $0x58] sm:$0xf] %vm493, %v467
    %506 = vst.msk [vmem:[%s492 + $0x60] sm:$0xf] %vm493, %v469
    %507 = vst.msk [vmem:[%s492 + $0x68] sm:$0xf] %vm493, %v471
    %508 = vst.msk [vmem:[%s492 + $0x70] sm:$0xf] %vm493, %v473
    %509 = vst.msk [vmem:[%s492 + $0x78] sm:$0xf] %vm493, %v475
    %v510 = vld [vmem:[#allocation3] sm:$0xf]
    %v511 = vld [vmem:[#allocation3 + $0x4] sm:$0x1]
    %v512 = vld [vmem:[#allocation3 + $0x8] sm:$0xf]
    %v513 = vld [vmem:[#allocation3 + $0xc] sm:$0x1]
    %v514 = vld [vmem:[#allocation3 + $0x10] sm:$0xf]
    %v515 = vld [vmem:[#allocation3 + $0x14] sm:$0x1]
    %v516 = vld [vmem:[#allocation3 + $0x18] sm:$0xf]
    %v517 = vld [vmem:[#allocation3 + $0x1c] sm:$0x1]
    %v518 = vld [vmem:[#allocation3 + $0x20] sm:$0xf]
    %v519 = vld [vmem:[#allocation3 + $0x24] sm:$0x1]
    %v520 = vld [vmem:[#allocation3 + $0x28] sm:$0xf]
    %v521 = vld [vmem:[#allocation3 + $0x2c] sm:$0x1]
    %v522 = vld [vmem:[#allocation3 + $0x30] sm:$0xf]
    %v523 = vld [vmem:[#allocation3 + $0x34] sm:$0x1]
    %v524 = vld [vmem:[#allocation3 + $0x38] sm:$0xf]
    %v525 = vld [vmem:[#allocation3 + $0x3c] sm:$0x1]
    %v526 = vld [vmem:[#allocation3 + $0x40] sm:$0xf]
    %v527 = vld [vmem:[#allocation3 + $0x44] sm:$0x1]
    %v528 = vld [vmem:[#allocation3 + $0x48] sm:$0xf]
    %v529 = vld [vmem:[#allocation3 + $0x4c] sm:$0x1]
    %v530 = vld [vmem:[#allocation3 + $0x50] sm:$0xf]
    %v531 = vld [vmem:[#allocation3 + $0x54] sm:$0x1]
    %v532 = vld [vmem:[#allocation3 + $0x58] sm:$0xf]
    %v533 = vld [vmem:[#allocation3 + $0x5c] sm:$0x1]
    %v534 = vld [vmem:[#allocation3 + $0x60] sm:$0xf]
    %v535 = vld [vmem:[#allocation3 + $0x64] sm:$0x1]
    %v536 = vld [vmem:[#allocation3 + $0x68] sm:$0xf]
    %v537 = vld [vmem:[#allocation3 + $0x6c] sm:$0x1]
    %v538 = vld [vmem:[#allocation3 + $0x70] sm:$0xf]
    %v539 = vld [vmem:[#allocation3 + $0x74] sm:$0x1]
    %v540 = vld [vmem:[#allocation3 + $0x78] sm:$0xf]
    %v541 = vld [vmem:[#allocation3 + $0x7c] sm:$0x1]
    %v543 = vshrl.u32 %v510, 16
    %v545 = vrot.slane %v543, 4
    %v546 = vshll.u32 %v510, 16
    %v548 = vrot.slane %v546, 5
    %v549 = vor.u32 %v545, %v548
    %v550 = vrot.slane %v549, 4
    %v552 = vshll.u32 %v511, 16
    %v554 = vrot.slane %v552, 5
    %v555 = vsel %vm122, %v550, %v554
    %v557 = vshrl.u32 %v512, 16
    %v559 = vrot.slane %v557, 4
    %v560 = vshll.u32 %v512, 16
    %v562 = vrot.slane %v560, 5
    %v563 = vor.u32 %v559, %v562
    %v564 = vrot.slane %v563, 4
    %v566 = vshll.u32 %v513, 16
    %v568 = vrot.slane %v566, 5
    %v569 = vsel %vm122, %v564, %v568
    %v571 = vshrl.u32 %v514, 16
    %v573 = vrot.slane %v571, 4
    %v574 = vshll.u32 %v514, 16
    %v576 = vrot.slane %v574, 5
    %v577 = vor.u32 %v573, %v576
    %v578 = vrot.slane %v577, 4
    %v580 = vshll.u32 %v515, 16
    %v582 = vrot.slane %v580, 5
    %v583 = vsel %vm122, %v578, %v582
    %v585 = vshrl.u32 %v516, 16
    %v587 = vrot.slane %v585, 4
    %v588 = vshll.u32 %v516, 16
    %v590 = vrot.slane %v588, 5
    %v591 = vor.u32 %v587, %v590
    %v592 = vrot.slane %v591, 4
    %v594 = vshll.u32 %v517, 16
    %v596 = vrot.slane %v594, 5
    %v597 = vsel %vm122, %v592, %v596
    %v599 = vshrl.u32 %v518, 16
    %v601 = vrot.slane %v599, 4
    %v602 = vshll.u32 %v518, 16
    %v604 = vrot.slane %v602, 5
    %v605 = vor.u32 %v601, %v604
    %v606 = vrot.slane %v605, 4
    %v608 = vshll.u32 %v519, 16
    %v610 = vrot.slane %v608, 5
    %v611 = vsel %vm122, %v606, %v610
    %v613 = vshrl.u32 %v520, 16
    %v615 = vrot.slane %v613, 4
    %v616 = vshll.u32 %v520, 16
    %v618 = vrot.slane %v616, 5
    %v619 = vor.u32 %v615, %v618
    %v620 = vrot.slane %v619, 4
    %v622 = vshll.u32 %v521, 16
    %v624 = vrot.slane %v622, 5
    %v625 = vsel %vm122, %v620, %v624
    %v627 = vshrl.u32 %v522, 16
    %v629 = vrot.slane %v627, 4
    %v630 = vshll.u32 %v522, 16
    %v632 = vrot.slane %v630, 5
    %v633 = vor.u32 %v629, %v632
    %v634 = vrot.slane %v633, 4
    %v636 = vshll.u32 %v523, 16
    %v638 = vrot.slane %v636, 5
    %v639 = vsel %vm122, %v634, %v638
    %v641 = vshrl.u32 %v524, 16
    %v643 = vrot.slane %v641, 4
    %v644 = vshll.u32 %v524, 16
    %v646 = vrot.slane %v644, 5
    %v647 = vor.u32 %v643, %v646
    %v648 = vrot.slane %v647, 4
    %v650 = vshll.u32 %v525, 16
    %v652 = vrot.slane %v650, 5
    %v653 = vsel %vm122, %v648, %v652
    %v655 = vshrl.u32 %v526, 16
    %v657 = vrot.slane %v655, 4
    %v658 = vshll.u32 %v526, 16
    %v660 = vrot.slane %v658, 5
    %v661 = vor.u32 %v657, %v660
    %v662 = vrot.slane %v661, 4
    %v664 = vshll.u32 %v527, 16
    %v666 = vrot.slane %v664, 5
    %v667 = vsel %vm122, %v662, %v666
    %v669 = vshrl.u32 %v528, 16
    %v671 = vrot.slane %v669, 4
    %v672 = vshll.u32 %v528, 16
    %v674 = vrot.slane %v672, 5
    %v675 = vor.u32 %v671, %v674
    %v676 = vrot.slane %v675, 4
    %v678 = vshll.u32 %v529, 16
    %v680 = vrot.slane %v678, 5
    %v681 = vsel %vm122, %v676, %v680
    %v683 = vshrl.u32 %v530, 16
    %v685 = vrot.slane %v683, 4
    %v686 = vshll.u32 %v530, 16
    %v688 = vrot.slane %v686, 5
    %v689 = vor.u32 %v685, %v688
    %v690 = vrot.slane %v689, 4
    %v692 = vshll.u32 %v531, 16
    %v694 = vrot.slane %v692, 5
    %v695 = vsel %vm122, %v690, %v694
    %v697 = vshrl.u32 %v532, 16
    %v699 = vrot.slane %v697, 4
    %v700 = vshll.u32 %v532, 16
    %v702 = vrot.slane %v700, 5
    %v703 = vor.u32 %v699, %v702
    %v704 = vrot.slane %v703, 4
    %v706 = vshll.u32 %v533, 16
    %v708 = vrot.slane %v706, 5
    %v709 = vsel %vm122, %v704, %v708
    %v711 = vshrl.u32 %v534, 16
    %v713 = vrot.slane %v711, 4
    %v714 = vshll.u32 %v534, 16
    %v716 = vrot.slane %v714, 5
    %v717 = vor.u32 %v713, %v716
    %v718 = vrot.slane %v717, 4
    %v720 = vshll.u32 %v535, 16
    %v722 = vrot.slane %v720, 5
    %v723 = vsel %vm122, %v718, %v722
    %v725 = vshrl.u32 %v536, 16
    %v727 = vrot.slane %v725, 4
    %v728 = vshll.u32 %v536, 16
    %v730 = vrot.slane %v728, 5
    %v731 = vor.u32 %v727, %v730
    %v732 = vrot.slane %v731, 4
    %v734 = vshll.u32 %v537, 16
    %v736 = vrot.slane %v734, 5
    %v737 = vsel %vm122, %v732, %v736
    %v739 = vshrl.u32 %v538, 16
    %v741 = vrot.slane %v739, 4
    %v742 = vshll.u32 %v538, 16
    %v744 = vrot.slane %v742, 5
    %v745 = vor.u32 %v741, %v744
    %v746 = vrot.slane %v745, 4
    %v748 = vshll.u32 %v539, 16
    %v750 = vrot.slane %v748, 5
    %v751 = vsel %vm122, %v746, %v750
    %v753 = vshrl.u32 %v540, 16
    %v755 = vrot.slane %v753, 4
    %v756 = vshll.u32 %v540, 16
    %v758 = vrot.slane %v756, 5
    %v759 = vor.u32 %v755, %v758
    %v760 = vrot.slane %v759, 4
    %v762 = vshll.u32 %v541, 16
    %v764 = vrot.slane %v762, 5
    %v765 = vsel %vm122, %v760, %v764
    %766 = vrot.lane.b32.xlu0 %v555, 16
    %v767 = vpop.permute.xlu0 %766
    %768 = vrot.lane.b32.xlu0 %v569, 16
    %v769 = vpop.permute.xlu0 %768
    %770 = vrot.lane.b32.xlu0 %v583, 16
    %v771 = vpop.permute.xlu0 %770
    %772 = vrot.lane.b32.xlu0 %v597, 16
    %v773 = vpop.permute.xlu0 %772
    %774 = vrot.lane.b32.xlu0 %v611, 16
    %v775 = vpop.permute.xlu0 %774
    %776 = vrot.lane.b32.xlu0 %v625, 16
    %v777 = vpop.permute.xlu0 %776
    %778 = vrot.lane.b32.xlu0 %v639, 16
    %v779 = vpop.permute.xlu0 %778
    %780 = vrot.lane.b32.xlu0 %v653, 16
    %v781 = vpop.permute.xlu0 %780
    %782 = vrot.lane.b32.xlu0 %v667, 16
    %v783 = vpop.permute.xlu0 %782
    %784 = vrot.lane.b32.xlu0 %v681, 16
    %v785 = vpop.permute.xlu0 %784
    %786 = vrot.lane.b32.xlu0 %v695, 16
    %v787 = vpop.permute.xlu0 %786
    %788 = vrot.lane.b32.xlu0 %v709, 16
    %v789 = vpop.permute.xlu0 %788
    %790 = vrot.lane.b32.xlu0 %v723, 16
    %v791 = vpop.permute.xlu0 %790
    %792 = vrot.lane.b32.xlu0 %v737, 16
    %v793 = vpop.permute.xlu0 %792
    %794 = vrot.lane.b32.xlu0 %v751, 16
    %v795 = vpop.permute.xlu0 %794
    %796 = vrot.lane.b32.xlu0 %v765, 16
    %v797 = vpop.permute.xlu0 %796
    %vm814 = vcmask 388224
    %815 = vst.msk [vmem:[%s492] sm:$0xf] %vm814, %v767
    %816 = vst.msk [vmem:[%s492 + $0x8] sm:$0xf] %vm814, %v769
    %817 = vst.msk [vmem:[%s492 + $0x10] sm:$0xf] %vm814, %v771
    %818 = vst.msk [vmem:[%s492 + $0x18] sm:$0xf] %vm814, %v773
    %819 = vst.msk [vmem:[%s492 + $0x20] sm:$0xf] %vm814, %v775
    %820 = vst.msk [vmem:[%s492 + $0x28] sm:$0xf] %vm814, %v777
    %821 = vst.msk [vmem:[%s492 + $0x30] sm:$0xf] %vm814, %v779
    %822 = vst.msk [vmem:[%s492 + $0x38] sm:$0xf] %vm814, %v781
    %823 = vst.msk [vmem:[%s492 + $0x40] sm:$0xf] %vm814, %v783
    %824 = vst.msk [vmem:[%s492 + $0x48] sm:$0xf] %vm814, %v785
    %825 = vst.msk [vmem:[%s492 + $0x50] sm:$0xf] %vm814, %v787
    %826 = vst.msk [vmem:[%s492 + $0x58] sm:$0xf] %vm814, %v789
    %827 = vst.msk [vmem:[%s492 + $0x60] sm:$0xf] %vm814, %v791
    %828 = vst.msk [vmem:[%s492 + $0x68] sm:$0xf] %vm814, %v793
    %829 = vst.msk [vmem:[%s492 + $0x70] sm:$0xf] %vm814, %v795
    %830 = vst.msk [vmem:[%s492 + $0x78] sm:$0xf] %vm814, %v797
    %v831 = vld [vmem:[#allocation3] sm:$0xe]
    %v832 = vld [vmem:[#allocation3 + $0x4] sm:$0x1]
    %v833 = vld [vmem:[#allocation3 + $0x8] sm:$0xe]
    %v834 = vld [vmem:[#allocation3 + $0xc] sm:$0x1]
    %v835 = vld [vmem:[#allocation3 + $0x10] sm:$0xe]
    %v836 = vld [vmem:[#allocation3 + $0x14] sm:$0x1]
    %v837 = vld [vmem:[#allocation3 + $0x18] sm:$0xe]
    %v838 = vld [vmem:[#allocation3 + $0x1c] sm:$0x1]
    %v839 = vld [vmem:[#allocation3 + $0x20] sm:$0xe]
    %v840 = vld [vmem:[#allocation3 + $0x24] sm:$0x1]
    %v841 = vld [vmem:[#allocation3 + $0x28] sm:$0xe]
    %v842 = vld [vmem:[#allocation3 + $0x2c] sm:$0x1]
    %v843 = vld [vmem:[#allocation3 + $0x30] sm:$0xe]
    %v844 = vld [vmem:[#allocation3 + $0x34] sm:$0x1]
    %v845 = vld [vmem:[#allocation3 + $0x38] sm:$0xe]
    %v846 = vld [vmem:[#allocation3 + $0x3c] sm:$0x1]
    %v847 = vld [vmem:[#allocation3 + $0x40] sm:$0xe]
    %v848 = vld [vmem:[#allocation3 + $0x44] sm:$0x1]
    %v849 = vld [vmem:[#allocation3 + $0x48] sm:$0xe]
    %v850 = vld [vmem:[#allocation3 + $0x4c] sm:$0x1]
    %v851 = vld [vmem:[#allocation3 + $0x50] sm:$0xe]
    %v852 = vld [vmem:[#allocation3 + $0x54] sm:$0x1]
    %v853 = vld [vmem:[#allocation3 + $0x58] sm:$0xe]
    %v854 = vld [vmem:[#allocation3 + $0x5c] sm:$0x1]
    %v855 = vld [vmem:[#allocation3 + $0x60] sm:$0xe]
    %v856 = vld [vmem:[#allocation3 + $0x64] sm:$0x1]
    %v857 = vld [vmem:[#allocation3 + $0x68] sm:$0xe]
    %v858 = vld [vmem:[#allocation3 + $0x6c] sm:$0x1]
    %v859 = vld [vmem:[#allocation3 + $0x70] sm:$0xe]
    %v860 = vld [vmem:[#allocation3 + $0x74] sm:$0x1]
    %v861 = vld [vmem:[#allocation3 + $0x78] sm:$0xe]
    %v862 = vld [vmem:[#allocation3 + $0x7c] sm:$0x1]
    %vm895 = vcmask 1042432
    %vm896 = vcmask 1046532
    %vm897 = vmor %vm895, %vm896
    %v898 = vrot.slane %v831, 5
    %v899 = vrot.slane %v898, 4
    %v900 = vrot.slane %v832, 5
    %v901 = vsel %vm897, %v899, %v900
    %v902 = vrot.slane %v833, 5
    %v903 = vrot.slane %v902, 4
    %v904 = vrot.slane %v834, 5
    %v905 = vsel %vm897, %v903, %v904
    %v906 = vrot.slane %v835, 5
    %v907 = vrot.slane %v906, 4
    %v908 = vrot.slane %v836, 5
    %v909 = vsel %vm897, %v907, %v908
    %v910 = vrot.slane %v837, 5
    %v911 = vrot.slane %v910, 4
    %v912 = vrot.slane %v838, 5
    %v913 = vsel %vm897, %v911, %v912
    %v914 = vrot.slane %v839, 5
    %v915 = vrot.slane %v914, 4
    %v916 = vrot.slane %v840, 5
    %v917 = vsel %vm897, %v915, %v916
    %v918 = vrot.slane %v841, 5
    %v919 = vrot.slane %v918, 4
    %v920 = vrot.slane %v842, 5
    %v921 = vsel %vm897, %v919, %v920
    %v922 = vrot.slane %v843, 5
    %v923 = vrot.slane %v922, 4
    %v924 = vrot.slane %v844, 5
    %v925 = vsel %vm897, %v923, %v924
    %v926 = vrot.slane %v845, 5
    %v927 = vrot.slane %v926, 4
    %v928 = vrot.slane %v846, 5
    %v929 = vsel %vm897, %v927, %v928
    %v930 = vrot.slane %v847, 5
    %v931 = vrot.slane %v930, 4
    %v932 = vrot.slane %v848, 5
    %v933 = vsel %vm897, %v931, %v932
    %v934 = vrot.slane %v849, 5
    %v935 = vrot.slane %v934, 4
    %v936 = vrot.slane %v850, 5
    %v937 = vsel %vm897, %v935, %v936
    %v938 = vrot.slane %v851, 5
    %v939 = vrot.slane %v938, 4
    %v940 = vrot.slane %v852, 5
    %v941 = vsel %vm897, %v939, %v940
    %v942 = vrot.slane %v853, 5
    %v943 = vrot.slane %v942, 4
    %v944 = vrot.slane %v854, 5
    %v945 = vsel %vm897, %v943, %v944
    %v946 = vrot.slane %v855, 5
    %v947 = vrot.slane %v946, 4
    %v948 = vrot.slane %v856, 5
    %v949 = vsel %vm897, %v947, %v948
    %v950 = vrot.slane %v857, 5
    %v951 = vrot.slane %v950, 4
    %v952 = vrot.slane %v858, 5
    %v953 = vsel %vm897, %v951, %v952
    %v954 = vrot.slane %v859, 5
    %v955 = vrot.slane %v954, 4
    %v956 = vrot.slane %v860, 5
    %v957 = vsel %vm897, %v955, %v956
    %v958 = vrot.slane %v861, 5
    %v959 = vrot.slane %v958, 4
    %v960 = vrot.slane %v862, 5
    %v961 = vsel %vm897, %v959, %v960
    %962 = vrot.lane.b32.xlu0 %v901, 48
    %v963 = vpop.permute.xlu0 %962
    %964 = vrot.lane.b32.xlu0 %v905, 48
    %v965 = vpop.permute.xlu0 %964
    %966 = vrot.lane.b32.xlu0 %v909, 48
    %v967 = vpop.permute.xlu0 %966
    %968 = vrot.lane.b32.xlu0 %v913, 48
    %v969 = vpop.permute.xlu0 %968
    %970 = vrot.lane.b32.xlu0 %v917, 48
    %v971 = vpop.permute.xlu0 %970
    %972 = vrot.lane.b32.xlu0 %v921, 48
    %v973 = vpop.permute.xlu0 %972
    %974 = vrot.lane.b32.xlu0 %v925, 48
    %v975 = vpop.permute.xlu0 %974
    %976 = vrot.lane.b32.xlu0 %v929, 48
    %v977 = vpop.permute.xlu0 %976
    %978 = vrot.lane.b32.xlu0 %v933, 48
    %v979 = vpop.permute.xlu0 %978
    %980 = vrot.lane.b32.xlu0 %v937, 48
    %v981 = vpop.permute.xlu0 %980
    %982 = vrot.lane.b32.xlu0 %v941, 48
    %v983 = vpop.permute.xlu0 %982
    %984 = vrot.lane.b32.xlu0 %v945, 48
    %v985 = vpop.permute.xlu0 %984
    %986 = vrot.lane.b32.xlu0 %v949, 48
    %v987 = vpop.permute.xlu0 %986
    %988 = vrot.lane.b32.xlu0 %v953, 48
    %v989 = vpop.permute.xlu0 %988
    %990 = vrot.lane.b32.xlu0 %v957, 48
    %v991 = vpop.permute.xlu0 %990
    %992 = vrot.lane.b32.xlu0 %v961, 48
    %v993 = vpop.permute.xlu0 %992
    %vm1010 = vcmask 519552
    %1011 = vst.msk [vmem:[%s492] sm:$0xf] %vm1010, %v963
    %1012 = vst.msk [vmem:[%s492 + $0x8] sm:$0xf] %vm1010, %v965
    %1013 = vst.msk [vmem:[%s492 + $0x10] sm:$0xf] %vm1010, %v967
    %1014 = vst.msk [vmem:[%s492 + $0x18] sm:$0xf] %vm1010, %v969
    %1015 = vst.msk [vmem:[%s492 + $0x20] sm:$0xf] %vm1010, %v971
    %1016 = vst.msk [vmem:[%s492 + $0x28] sm:$0xf] %vm1010, %v973
    %1017 = vst.msk [vmem:[%s492 + $0x30] sm:$0xf] %vm1010, %v975
    %1018 = vst.msk [vmem:[%s492 + $0x38] sm:$0xf] %vm1010, %v977
    %1019 = vst.msk [vmem:[%s492 + $0x40] sm:$0xf] %vm1010, %v979
    %1020 = vst.msk [vmem:[%s492 + $0x48] sm:$0xf] %vm1010, %v981
    %1021 = vst.msk [vmem:[%s492 + $0x50] sm:$0xf] %vm1010, %v983
    %1022 = vst.msk [vmem:[%s492 + $0x58] sm:$0xf] %vm1010, %v985
    %1023 = vst.msk [vmem:[%s492 + $0x60] sm:$0xf] %vm1010, %v987
    %1024 = vst.msk [vmem:[%s492 + $0x68] sm:$0xf] %vm1010, %v989
    %1025 = vst.msk [vmem:[%s492 + $0x70] sm:$0xf] %vm1010, %v991
    %1026 = vst.msk [vmem:[%s492 + $0x78] sm:$0xf] %vm1010, %v993
    %s1027 = scalar_lea.vmem [#allocation3], 8
    %v1028 = vld [vmem:[%s1027] sm:$0xf]
    %v1029 = vld [vmem:[%s1027 + $0x8] sm:$0xf]
    %v1030 = vld [vmem:[%s1027 + $0x10] sm:$0xf]
    %v1031 = vld [vmem:[%s1027 + $0x18] sm:$0xf]
    %v1032 = vld [vmem:[%s1027 + $0x20] sm:$0xf]
    %v1033 = vld [vmem:[%s1027 + $0x28] sm:$0xf]
    %v1034 = vld [vmem:[%s1027 + $0x30] sm:$0xf]
    %v1035 = vld [vmem:[%s1027 + $0x38] sm:$0xf]
    %v1036 = vld [vmem:[%s1027 + $0x40] sm:$0xf]
    %v1037 = vld [vmem:[%s1027 + $0x48] sm:$0xf]
    %v1038 = vld [vmem:[%s1027 + $0x50] sm:$0xf]
    %v1039 = vld [vmem:[%s1027 + $0x58] sm:$0xf]
    %v1040 = vld [vmem:[%s1027 + $0x60] sm:$0xf]
    %v1041 = vld [vmem:[%s1027 + $0x68] sm:$0xf]
    %v1042 = vld [vmem:[%s1027 + $0x70] sm:$0xf]
    %v1043 = vld [vmem:[%s1027 + $0x78] sm:$0xf]
    %1060 = vrot.lane.b32.xlu0 %v1028, 64
    %v1061 = vpop.permute.xlu0 %1060
    %1062 = vrot.lane.b32.xlu0 %v1029, 64
    %v1063 = vpop.permute.xlu0 %1062
    %1064 = vrot.lane.b32.xlu0 %v1030, 64
    %v1065 = vpop.permute.xlu0 %1064
    %1066 = vrot.lane.b32.xlu0 %v1031, 64
    %v1067 = vpop.permute.xlu0 %1066
    %1068 = vrot.lane.b32.xlu0 %v1032, 64
    %v1069 = vpop.permute.xlu0 %1068
    %1070 = vrot.lane.b32.xlu0 %v1033, 64
    %v1071 = vpop.permute.xlu0 %1070
    %1072 = vrot.lane.b32.xlu0 %v1034, 64
    %v1073 = vpop.permute.xlu0 %1072
    %1074 = vrot.lane.b32.xlu0 %v1035, 64
    %v1075 = vpop.permute.xlu0 %1074
    %1076 = vrot.lane.b32.xlu0 %v1036, 64
    %v1077 = vpop.permute.xlu0 %1076
    %1078 = vrot.lane.b32.xlu0 %v1037, 64
    %v1079 = vpop.permute.xlu0 %1078
    %1080 = vrot.lane.b32.xlu0 %v1038, 64
    %v1081 = vpop.permute.xlu0 %1080
    %1082 = vrot.lane.b32.xlu0 %v1039, 64
    %v1083 = vpop.permute.xlu0 %1082
    %1084 = vrot.lane.b32.xlu0 %v1040, 64
    %v1085 = vpop.permute.xlu0 %1084
    %1086 = vrot.lane.b32.xlu0 %v1041, 64
    %v1087 = vpop.permute.xlu0 %1086
    %1088 = vrot.lane.b32.xlu0 %v1042, 64
    %v1089 = vpop.permute.xlu0 %1088
    %1090 = vrot.lane.b32.xlu0 %v1043, 64
    %v1091 = vpop.permute.xlu0 %1090
    %vm1108 = vcmask 781824
    %1109 = vst.msk [vmem:[#allocation2] sm:$0xf] %vm1108, %v1061
    %1110 = vst.msk [vmem:[#allocation2 + $0x8] sm:$0xf] %vm1108, %v1063
    %1111 = vst.msk [vmem:[#allocation2 + $0x10] sm:$0xf] %vm1108, %v1065
    %1112 = vst.msk [vmem:[#allocation2 + $0x18] sm:$0xf] %vm1108, %v1067
    %1113 = vst.msk [vmem:[#allocation2 + $0x20] sm:$0xf] %vm1108, %v1069
    %1114 = vst.msk [vmem:[#allocation2 + $0x28] sm:$0xf] %vm1108, %v1071
    %1115 = vst.msk [vmem:[#allocation2 + $0x30] sm:$0xf] %vm1108, %v1073
    %1116 = vst.msk [vmem:[#allocation2 + $0x38] sm:$0xf] %vm1108, %v1075
    %1117 = vst.msk [vmem:[#allocation2 + $0x40] sm:$0xf] %vm1108, %v1077
    %1118 = vst.msk [vmem:[#allocation2 + $0x48] sm:$0xf] %vm1108, %v1079
    %1119 = vst.msk [vmem:[#allocation2 + $0x50] sm:$0xf] %vm1108, %v1081
    %1120 = vst.msk [vmem:[#allocation2 + $0x58] sm:$0xf] %vm1108, %v1083
    %1121 = vst.msk [vmem:[#allocation2 + $0x60] sm:$0xf] %vm1108, %v1085
    %1122 = vst.msk [vmem:[#allocation2 + $0x68] sm:$0xf] %vm1108, %v1087
    %1123 = vst.msk [vmem:[#allocation2 + $0x70] sm:$0xf] %vm1108, %v1089
    %1124 = vst.msk [vmem:[#allocation2 + $0x78] sm:$0xf] %vm1108, %v1091
    %v1125 = vld [vmem:[%s1027] sm:$0xf]
    %v1126 = vld [vmem:[%s1027 + $0x4] sm:$0x1]
    %v1127 = vld [vmem:[%s1027 + $0x8] sm:$0xf]
    %v1128 = vld [vmem:[%s1027 + $0xc] sm:$0x1]
    %v1129 = vld [vmem:[%s1027 + $0x10] sm:$0xf]
    %v1130 = vld [vmem:[%s1027 + $0x14] sm:$0x1]
    %v1131 = vld [vmem:[%s1027 + $0x18] sm:$0xf]
    %v1132 = vld [vmem:[%s1027 + $0x1c] sm:$0x1]
    %v1133 = vld [vmem:[%s1027 + $0x20] sm:$0xf]
    %v1134 = vld [vmem:[%s1027 + $0x24] sm:$0x1]
    %v1135 = vld [vmem:[%s1027 + $0x28] sm:$0xf]
    %v1136 = vld [vmem:[%s1027 + $0x2c] sm:$0x1]
    %v1137 = vld [vmem:[%s1027 + $0x30] sm:$0xf]
    %v1138 = vld [vmem:[%s1027 + $0x34] sm:$0x1]
    %v1139 = vld [vmem:[%s1027 + $0x38] sm:$0xf]
    %v1140 = vld [vmem:[%s1027 + $0x3c] sm:$0x1]
    %v1141 = vld [vmem:[%s1027 + $0x40] sm:$0xf]
    %v1142 = vld [vmem:[%s1027 + $0x44] sm:$0x1]
    %v1143 = vld [vmem:[%s1027 + $0x48] sm:$0xf]
    %v1144 = vld [vmem:[%s1027 + $0x4c] sm:$0x1]
    %v1145 = vld [vmem:[%s1027 + $0x50] sm:$0xf]
    %v1146 = vld [vmem:[%s1027 + $0x54] sm:$0x1]
    %v1147 = vld [vmem:[%s1027 + $0x58] sm:$0xf]
    %v1148 = vld [vmem:[%s1027 + $0x5c] sm:$0x1]
    %v1149 = vld [vmem:[%s1027 + $0x60] sm:$0xf]
    %v1150 = vld [vmem:[%s1027 + $0x64] sm:$0x1]
    %v1151 = vld [vmem:[%s1027 + $0x68] sm:$0xf]
    %v1152 = vld [vmem:[%s1027 + $0x6c] sm:$0x1]
    %v1153 = vld [vmem:[%s1027 + $0x70] sm:$0xf]
    %v1154 = vld [vmem:[%s1027 + $0x74] sm:$0x1]
    %v1155 = vld [vmem:[%s1027 + $0x78] sm:$0xf]
    %v1156 = vld [vmem:[%s1027 + $0x7c] sm:$0x1]
    %v1158 = vshrl.u32 %v1125, 16
    %v1160 = vrot.slane %v1158, 4
    %v1161 = vshll.u32 %v1125, 16
    %v1163 = vrot.slane %v1161, 5
    %v1164 = vor.u32 %v1160, %v1163
    %v1165 = vrot.slane %v1164, 4
    %v1167 = vshll.u32 %v1126, 16
    %v1169 = vrot.slane %v1167, 5
    %v1170 = vsel %vm122, %v1165, %v1169
    %v1172 = vshrl.u32 %v1127, 16
    %v1174 = vrot.slane %v1172, 4
    %v1175 = vshll.u32 %v1127, 16
    %v1177 = vrot.slane %v1175, 5
    %v1178 = vor.u32 %v1174, %v1177
    %v1179 = vrot.slane %v1178, 4
    %v1181 = vshll.u32 %v1128, 16
    %v1183 = vrot.slane %v1181, 5
    %v1184 = vsel %vm122, %v1179, %v1183
    %v1186 = vshrl.u32 %v1129, 16
    %v1188 = vrot.slane %v1186, 4
    %v1189 = vshll.u32 %v1129, 16
    %v1191 = vrot.slane %v1189, 5
    %v1192 = vor.u32 %v1188, %v1191
    %v1193 = vrot.slane %v1192, 4
    %v1195 = vshll.u32 %v1130, 16
    %v1197 = vrot.slane %v1195, 5
    %v1198 = vsel %vm122, %v1193, %v1197
    %v1200 = vshrl.u32 %v1131, 16
    %v1202 = vrot.slane %v1200, 4
    %v1203 = vshll.u32 %v1131, 16
    %v1205 = vrot.slane %v1203, 5
    %v1206 = vor.u32 %v1202, %v1205
    %v1207 = vrot.slane %v1206, 4
    %v1209 = vshll.u32 %v1132, 16
    %v1211 = vrot.slane %v1209, 5
    %v1212 = vsel %vm122, %v1207, %v1211
    %v1214 = vshrl.u32 %v1133, 16
    %v1216 = vrot.slane %v1214, 4
    %v1217 = vshll.u32 %v1133, 16
    %v1219 = vrot.slane %v1217, 5
    %v1220 = vor.u32 %v1216, %v1219
    %v1221 = vrot.slane %v1220, 4
    %v1223 = vshll.u32 %v1134, 16
    %v1225 = vrot.slane %v1223, 5
    %v1226 = vsel %vm122, %v1221, %v1225
    %v1228 = vshrl.u32 %v1135, 16
    %v1230 = vrot.slane %v1228, 4
    %v1231 = vshll.u32 %v1135, 16
    %v1233 = vrot.slane %v1231, 5
    %v1234 = vor.u32 %v1230, %v1233
    %v1235 = vrot.slane %v1234, 4
    %v1237 = vshll.u32 %v1136, 16
    %v1239 = vrot.slane %v1237, 5
    %v1240 = vsel %vm122, %v1235, %v1239
    %v1242 = vshrl.u32 %v1137, 16
    %v1244 = vrot.slane %v1242, 4
    %v1245 = vshll.u32 %v1137, 16
    %v1247 = vrot.slane %v1245, 5
    %v1248 = vor.u32 %v1244, %v1247
    %v1249 = vrot.slane %v1248, 4
    %v1251 = vshll.u32 %v1138, 16
    %v1253 = vrot.slane %v1251, 5
    %v1254 = vsel %vm122, %v1249, %v1253
    %v1256 = vshrl.u32 %v1139, 16
    %v1258 = vrot.slane %v1256, 4
    %v1259 = vshll.u32 %v1139, 16
    %v1261 = vrot.slane %v1259, 5
    %v1262 = vor.u32 %v1258, %v1261
    %v1263 = vrot.slane %v1262, 4
    %v1265 = vshll.u32 %v1140, 16
    %v1267 = vrot.slane %v1265, 5
    %v1268 = vsel %vm122, %v1263, %v1267
    %v1270 = vshrl.u32 %v1141, 16
    %v1272 = vrot.slane %v1270, 4
    %v1273 = vshll.u32 %v1141, 16
    %v1275 = vrot.slane %v1273, 5
    %v1276 = vor.u32 %v1272, %v1275
    %v1277 = vrot.slane %v1276, 4
    %v1279 = vshll.u32 %v1142, 16
    %v1281 = vrot.slane %v1279, 5
    %v1282 = vsel %vm122, %v1277, %v1281
    %v1284 = vshrl.u32 %v1143, 16
    %v1286 = vrot.slane %v1284, 4
    %v1287 = vshll.u32 %v1143, 16
    %v1289 = vrot.slane %v1287, 5
    %v1290 = vor.u32 %v1286, %v1289
    %v1291 = vrot.slane %v1290, 4
    %v1293 = vshll.u32 %v1144, 16
    %v1295 = vrot.slane %v1293, 5
    %v1296 = vsel %vm122, %v1291, %v1295
    %v1298 = vshrl.u32 %v1145, 16
    %v1300 = vrot.slane %v1298, 4
    %v1301 = vshll.u32 %v1145, 16
    %v1303 = vrot.slane %v1301, 5
    %v1304 = vor.u32 %v1300, %v1303
    %v1305 = vrot.slane %v1304, 4
    %v1307 = vshll.u32 %v1146, 16
    %v1309 = vrot.slane %v1307, 5
    %v1310 = vsel %vm122, %v1305, %v1309
    %v1312 = vshrl.u32 %v1147, 16
    %v1314 = vrot.slane %v1312, 4
    %v1315 = vshll.u32 %v1147, 16
    %v1317 = vrot.slane %v1315, 5
    %v1318 = vor.u32 %v1314, %v1317
    %v1319 = vrot.slane %v1318, 4
    %v1321 = vshll.u32 %v1148, 16
    %v1323 = vrot.slane %v1321, 5
    %v1324 = vsel %vm122, %v1319, %v1323
    %v1326 = vshrl.u32 %v1149, 16
    %v1328 = vrot.slane %v1326, 4
    %v1329 = vshll.u32 %v1149, 16
    %v1331 = vrot.slane %v1329, 5
    %v1332 = vor.u32 %v1328, %v1331
    %v1333 = vrot.slane %v1332, 4
    %v1335 = vshll.u32 %v1150, 16
    %v1337 = vrot.slane %v1335, 5
    %v1338 = vsel %vm122, %v1333, %v1337
    %v1340 = vshrl.u32 %v1151, 16
    %v1342 = vrot.slane %v1340, 4
    %v1343 = vshll.u32 %v1151, 16
    %v1345 = vrot.slane %v1343, 5
    %v1346 = vor.u32 %v1342, %v1345
    %v1347 = vrot.slane %v1346, 4
    %v1349 = vshll.u32 %v1152, 16
    %v1351 = vrot.slane %v1349, 5
    %v1352 = vsel %vm122, %v1347, %v1351
    %v1354 = vshrl.u32 %v1153, 16
    %v1356 = vrot.slane %v1354, 4
    %v1357 = vshll.u32 %v1153, 16
    %v1359 = vrot.slane %v1357, 5
    %v1360 = vor.u32 %v1356, %v1359
    %v1361 = vrot.slane %v1360, 4
    %v1363 = vshll.u32 %v1154, 16
    %v1365 = vrot.slane %v1363, 5
    %v1366 = vsel %vm122, %v1361, %v1365
    %v1368 = vshrl.u32 %v1155, 16
    %v1370 = vrot.slane %v1368, 4
    %v1371 = vshll.u32 %v1155, 16
    %v1373 = vrot.slane %v1371, 5
    %v1374 = vor.u32 %v1370, %v1373
    %v1375 = vrot.slane %v1374, 4
    %v1377 = vshll.u32 %v1156, 16
    %v1379 = vrot.slane %v1377, 5
    %v1380 = vsel %vm122, %v1375, %v1379
    %1381 = vrot.lane.b32.xlu0 %v1170, 96
    %v1382 = vpop.permute.xlu0 %1381
    %1383 = vrot.lane.b32.xlu0 %v1184, 96
    %v1384 = vpop.permute.xlu0 %1383
    %1385 = vrot.lane.b32.xlu0 %v1198, 96
    %v1386 = vpop.permute.xlu0 %1385
    %1387 = vrot.lane.b32.xlu0 %v1212, 96
    %v1388 = vpop.permute.xlu0 %1387
    %1389 = vrot.lane.b32.xlu0 %v1226, 96
    %v1390 = vpop.permute.xlu0 %1389
    %1391 = vrot.lane.b32.xlu0 %v1240, 96
    %v1392 = vpop.permute.xlu0 %1391
    %1393 = vrot.lane.b32.xlu0 %v1254, 96
    %v1394 = vpop.permute.xlu0 %1393
    %1395 = vrot.lane.b32.xlu0 %v1268, 96
    %v1396 = vpop.permute.xlu0 %1395
    %1397 = vrot.lane.b32.xlu0 %v1282, 96
    %v1398 = vpop.permute.xlu0 %1397
    %1399 = vrot.lane.b32.xlu0 %v1296, 96
    %v1400 = vpop.permute.xlu0 %1399
    %1401 = vrot.lane.b32.xlu0 %v1310, 96
    %v1402 = vpop.permute.xlu0 %1401
    %1403 = vrot.lane.b32.xlu0 %v1324, 96
    %v1404 = vpop.permute.xlu0 %1403
    %1405 = vrot.lane.b32.xlu0 %v1338, 96
    %v1406 = vpop.permute.xlu0 %1405
    %1407 = vrot.lane.b32.xlu0 %v1352, 96
    %v1408 = vpop.permute.xlu0 %1407
    %1409 = vrot.lane.b32.xlu0 %v1366, 96
    %v1410 = vpop.permute.xlu0 %1409
    %1411 = vrot.lane.b32.xlu0 %v1380, 96
    %v1412 = vpop.permute.xlu0 %1411
    %vm1429 = vcmask 1044224
    %1430 = vst.msk [vmem:[#allocation2] sm:$0xf] %vm1429, %v1382
    %1431 = vst.msk [vmem:[#allocation2 + $0x8] sm:$0xf] %vm1429, %v1384
    %1432 = vst.msk [vmem:[#allocation2 + $0x10] sm:$0xf] %vm1429, %v1386
    %1433 = vst.msk [vmem:[#allocation2 + $0x18] sm:$0xf] %vm1429, %v1388
    %1434 = vst.msk [vmem:[#allocation2 + $0x20] sm:$0xf] %vm1429, %v1390
    %1435 = vst.msk [vmem:[#allocation2 + $0x28] sm:$0xf] %vm1429, %v1392
    %1436 = vst.msk [vmem:[#allocation2 + $0x30] sm:$0xf] %vm1429, %v1394
    %1437 = vst.msk [vmem:[#allocation2 + $0x38] sm:$0xf] %vm1429, %v1396
    %1438 = vst.msk [vmem:[#allocation2 + $0x40] sm:$0xf] %vm1429, %v1398
    %1439 = vst.msk [vmem:[#allocation2 + $0x48] sm:$0xf] %vm1429, %v1400
    %1440 = vst.msk [vmem:[#allocation2 + $0x50] sm:$0xf] %vm1429, %v1402
    %1441 = vst.msk [vmem:[#allocation2 + $0x58] sm:$0xf] %vm1429, %v1404
    %1442 = vst.msk [vmem:[#allocation2 + $0x60] sm:$0xf] %vm1429, %v1406
    %1443 = vst.msk [vmem:[#allocation2 + $0x68] sm:$0xf] %vm1429, %v1408
    %1444 = vst.msk [vmem:[#allocation2 + $0x70] sm:$0xf] %vm1429, %v1410
    %1445 = vst.msk [vmem:[#allocation2 + $0x78] sm:$0xf] %vm1429, %v1412
    %v1446 = vld [vmem:[%s1027] sm:$0xf]
    %v1447 = vld [vmem:[%s1027 + $0x8] sm:$0xf]
    %v1448 = vld [vmem:[%s1027 + $0x10] sm:$0xf]
    %v1449 = vld [vmem:[%s1027 + $0x18] sm:$0xf]
    %v1450 = vld [vmem:[%s1027 + $0x20] sm:$0xf]
    %v1451 = vld [vmem:[%s1027 + $0x28] sm:$0xf]
    %v1452 = vld [vmem:[%s1027 + $0x30] sm:$0xf]
    %v1453 = vld [vmem:[%s1027 + $0x38] sm:$0xf]
    %v1454 = vld [vmem:[%s1027 + $0x40] sm:$0xf]
    %v1455 = vld [vmem:[%s1027 + $0x48] sm:$0xf]
    %v1456 = vld [vmem:[%s1027 + $0x50] sm:$0xf]
    %v1457 = vld [vmem:[%s1027 + $0x58] sm:$0xf]
    %v1458 = vld [vmem:[%s1027 + $0x60] sm:$0xf]
    %v1459 = vld [vmem:[%s1027 + $0x68] sm:$0xf]
    %v1460 = vld [vmem:[%s1027 + $0x70] sm:$0xf]
    %v1461 = vld [vmem:[%s1027 + $0x78] sm:$0xf]
    %1478 = vrot.lane.b32.xlu0 %v1446, 48
    %v1479 = vpop.permute.xlu0 %1478
    %1480 = vrot.lane.b32.xlu0 %v1447, 48
    %v1481 = vpop.permute.xlu0 %1480
    %1482 = vrot.lane.b32.xlu0 %v1448, 48
    %v1483 = vpop.permute.xlu0 %1482
    %1484 = vrot.lane.b32.xlu0 %v1449, 48
    %v1485 = vpop.permute.xlu0 %1484
    %1486 = vrot.lane.b32.xlu0 %v1450, 48
    %v1487 = vpop.permute.xlu0 %1486
    %1488 = vrot.lane.b32.xlu0 %v1451, 48
    %v1489 = vpop.permute.xlu0 %1488
    %1490 = vrot.lane.b32.xlu0 %v1452, 48
    %v1491 = vpop.permute.xlu0 %1490
    %1492 = vrot.lane.b32.xlu0 %v1453, 48
    %v1493 = vpop.permute.xlu0 %1492
    %1494 = vrot.lane.b32.xlu0 %v1454, 48
    %v1495 = vpop.permute.xlu0 %1494
    %1496 = vrot.lane.b32.xlu0 %v1455, 48
    %v1497 = vpop.permute.xlu0 %1496
    %1498 = vrot.lane.b32.xlu0 %v1456, 48
    %v1499 = vpop.permute.xlu0 %1498
    %1500 = vrot.lane.b32.xlu0 %v1457, 48
    %v1501 = vpop.permute.xlu0 %1500
    %1502 = vrot.lane.b32.xlu0 %v1458, 48
    %v1503 = vpop.permute.xlu0 %1502
    %1504 = vrot.lane.b32.xlu0 %v1459, 48
    %v1505 = vpop.permute.xlu0 %1504
    %1506 = vrot.lane.b32.xlu0 %v1460, 48
    %v1507 = vpop.permute.xlu0 %1506
    %1508 = vrot.lane.b32.xlu0 %v1461, 48
    %v1509 = vpop.permute.xlu0 %1508
    %vm1526 = vcmask 650752
    %1527 = vst.msk [vmem:[%s492] sm:$0xf] %vm1526, %v1479
    %1528 = vst.msk [vmem:[%s492 + $0x8] sm:$0xf] %vm1526, %v1481
    %1529 = vst.msk [vmem:[%s492 + $0x10] sm:$0xf] %vm1526, %v1483
    %1530 = vst.msk [vmem:[%s492 + $0x18] sm:$0xf] %vm1526, %v1485
    %1531 = vst.msk [vmem:[%s492 + $0x20] sm:$0xf] %vm1526, %v1487
    %1532 = vst.msk [vmem:[%s492 + $0x28] sm:$0xf] %vm1526, %v1489
    %1533 = vst.msk [vmem:[%s492 + $0x30] sm:$0xf] %vm1526, %v1491
    %1534 = vst.msk [vmem:[%s492 + $0x38] sm:$0xf] %vm1526, %v1493
    %1535 = vst.msk [vmem:[%s492 + $0x40] sm:$0xf] %vm1526, %v1495
    %1536 = vst.msk [vmem:[%s492 + $0x48] sm:$0xf] %vm1526, %v1497
    %1537 = vst.msk [vmem:[%s492 + $0x50] sm:$0xf] %vm1526, %v1499
    %1538 = vst.msk [vmem:[%s492 + $0x58] sm:$0xf] %vm1526, %v1501
    %1539 = vst.msk [vmem:[%s492 + $0x60] sm:$0xf] %vm1526, %v1503
    %1540 = vst.msk [vmem:[%s492 + $0x68] sm:$0xf] %vm1526, %v1505
    %1541 = vst.msk [vmem:[%s492 + $0x70] sm:$0xf] %vm1526, %v1507
    %1542 = vst.msk [vmem:[%s492 + $0x78] sm:$0xf] %vm1526, %v1509
    %v1543 = vld [vmem:[%s1027] sm:$0xf]
    %v1544 = vld [vmem:[%s1027 + $0x4] sm:$0x1]
    %v1545 = vld [vmem:[%s1027 + $0x8] sm:$0xf]
    %v1546 = vld [vmem:[%s1027 + $0xc] sm:$0x1]
    %v1547 = vld [vmem:[%s1027 + $0x10] sm:$0xf]
    %v1548 = vld [vmem:[%s1027 + $0x14] sm:$0x1]
    %v1549 = vld [vmem:[%s1027 + $0x18] sm:$0xf]
    %v1550 = vld [vmem:[%s1027 + $0x1c] sm:$0x1]
    %v1551 = vld [vmem:[%s1027 + $0x20] sm:$0xf]
    %v1552 = vld [vmem:[%s1027 + $0x24] sm:$0x1]
    %v1553 = vld [vmem:[%s1027 + $0x28] sm:$0xf]
    %v1554 = vld [vmem:[%s1027 + $0x2c] sm:$0x1]
    %v1555 = vld [vmem:[%s1027 + $0x30] sm:$0xf]
    %v1556 = vld [vmem:[%s1027 + $0x34] sm:$0x1]
    %v1557 = vld [vmem:[%s1027 + $0x38] sm:$0xf]
    %v1558 = vld [vmem:[%s1027 + $0x3c] sm:$0x1]
    %v1559 = vld [vmem:[%s1027 + $0x40] sm:$0xf]
    %v1560 = vld [vmem:[%s1027 + $0x44] sm:$0x1]
    %v1561 = vld [vmem:[%s1027 + $0x48] sm:$0xf]
    %v1562 = vld [vmem:[%s1027 + $0x4c] sm:$0x1]
    %v1563 = vld [vmem:[%s1027 + $0x50] sm:$0xf]
    %v1564 = vld [vmem:[%s1027 + $0x54] sm:$0x1]
    %v1565 = vld [vmem:[%s1027 + $0x58] sm:$0xf]
    %v1566 = vld [vmem:[%s1027 + $0x5c] sm:$0x1]
    %v1567 = vld [vmem:[%s1027 + $0x60] sm:$0xf]
    %v1568 = vld [vmem:[%s1027 + $0x64] sm:$0x1]
    %v1569 = vld [vmem:[%s1027 + $0x68] sm:$0xf]
    %v1570 = vld [vmem:[%s1027 + $0x6c] sm:$0x1]
    %v1571 = vld [vmem:[%s1027 + $0x70] sm:$0xf]
    %v1572 = vld [vmem:[%s1027 + $0x74] sm:$0x1]
    %v1573 = vld [vmem:[%s1027 + $0x78] sm:$0xf]
    %v1574 = vld [vmem:[%s1027 + $0x7c] sm:$0x1]
    %v1576 = vshrl.u32 %v1543, 16
    %v1578 = vrot.slane %v1576, 4
    %v1579 = vshll.u32 %v1543, 16
    %v1581 = vrot.slane %v1579, 5
    %v1582 = vor.u32 %v1578, %v1581
    %v1583 = vrot.slane %v1582, 4
    %v1585 = vshll.u32 %v1544, 16
    %v1587 = vrot.slane %v1585, 5
    %v1588 = vsel %vm122, %v1583, %v1587
    %v1590 = vshrl.u32 %v1545, 16
    %v1592 = vrot.slane %v1590, 4
    %v1593 = vshll.u32 %v1545, 16
    %v1595 = vrot.slane %v1593, 5
    %v1596 = vor.u32 %v1592, %v1595
    %v1597 = vrot.slane %v1596, 4
    %v1599 = vshll.u32 %v1546, 16
    %v1601 = vrot.slane %v1599, 5
    %v1602 = vsel %vm122, %v1597, %v1601
    %v1604 = vshrl.u32 %v1547, 16
    %v1606 = vrot.slane %v1604, 4
    %v1607 = vshll.u32 %v1547, 16
    %v1609 = vrot.slane %v1607, 5
    %v1610 = vor.u32 %v1606, %v1609
    %v1611 = vrot.slane %v1610, 4
    %v1613 = vshll.u32 %v1548, 16
    %v1615 = vrot.slane %v1613, 5
    %v1616 = vsel %vm122, %v1611, %v1615
    %v1618 = vshrl.u32 %v1549, 16
    %v1620 = vrot.slane %v1618, 4
    %v1621 = vshll.u32 %v1549, 16
    %v1623 = vrot.slane %v1621, 5
    %v1624 = vor.u32 %v1620, %v1623
    %v1625 = vrot.slane %v1624, 4
    %v1627 = vshll.u32 %v1550, 16
    %v1629 = vrot.slane %v1627, 5
    %v1630 = vsel %vm122, %v1625, %v1629
    %v1632 = vshrl.u32 %v1551, 16
    %v1634 = vrot.slane %v1632, 4
    %v1635 = vshll.u32 %v1551, 16
    %v1637 = vrot.slane %v1635, 5
    %v1638 = vor.u32 %v1634, %v1637
    %v1639 = vrot.slane %v1638, 4
    %v1641 = vshll.u32 %v1552, 16
    %v1643 = vrot.slane %v1641, 5
    %v1644 = vsel %vm122, %v1639, %v1643
    %v1646 = vshrl.u32 %v1553, 16
    %v1648 = vrot.slane %v1646, 4
    %v1649 = vshll.u32 %v1553, 16
    %v1651 = vrot.slane %v1649, 5
    %v1652 = vor.u32 %v1648, %v1651
    %v1653 = vrot.slane %v1652, 4
    %v1655 = vshll.u32 %v1554, 16
    %v1657 = vrot.slane %v1655, 5
    %v1658 = vsel %vm122, %v1653, %v1657
    %v1660 = vshrl.u32 %v1555, 16
    %v1662 = vrot.slane %v1660, 4
    %v1663 = vshll.u32 %v1555, 16
    %v1665 = vrot.slane %v1663, 5
    %v1666 = vor.u32 %v1662, %v1665
    %v1667 = vrot.slane %v1666, 4
    %v1669 = vshll.u32 %v1556, 16
    %v1671 = vrot.slane %v1669, 5
    %v1672 = vsel %vm122, %v1667, %v1671
    %v1674 = vshrl.u32 %v1557, 16
    %v1676 = vrot.slane %v1674, 4
    %v1677 = vshll.u32 %v1557, 16
    %v1679 = vrot.slane %v1677, 5
    %v1680 = vor.u32 %v1676, %v1679
    %v1681 = vrot.slane %v1680, 4
    %v1683 = vshll.u32 %v1558, 16
    %v1685 = vrot.slane %v1683, 5
    %v1686 = vsel %vm122, %v1681, %v1685
    %v1688 = vshrl.u32 %v1559, 16
    %v1690 = vrot.slane %v1688, 4
    %v1691 = vshll.u32 %v1559, 16
    %v1693 = vrot.slane %v1691, 5
    %v1694 = vor.u32 %v1690, %v1693
    %v1695 = vrot.slane %v1694, 4
    %v1697 = vshll.u32 %v1560, 16
    %v1699 = vrot.slane %v1697, 5
    %v1700 = vsel %vm122, %v1695, %v1699
    %v1702 = vshrl.u32 %v1561, 16
    %v1704 = vrot.slane %v1702, 4
    %v1705 = vshll.u32 %v1561, 16
    %v1707 = vrot.slane %v1705, 5
    %v1708 = vor.u32 %v1704, %v1707
    %v1709 = vrot.slane %v1708, 4
    %v1711 = vshll.u32 %v1562, 16
    %v1713 = vrot.slane %v1711, 5
    %v1714 = vsel %vm122, %v1709, %v1713
    %v1716 = vshrl.u32 %v1563, 16
    %v1718 = vrot.slane %v1716, 4
    %v1719 = vshll.u32 %v1563, 16
    %v1721 = vrot.slane %v1719, 5
    %v1722 = vor.u32 %v1718, %v1721
    %v1723 = vrot.slane %v1722, 4
    %v1725 = vshll.u32 %v1564, 16
    %v1727 = vrot.slane %v1725, 5
    %v1728 = vsel %vm122, %v1723, %v1727
    %v1730 = vshrl.u32 %v1565, 16
    %v1732 = vrot.slane %v1730, 4
    %v1733 = vshll.u32 %v1565, 16
    %v1735 = vrot.slane %v1733, 5
    %v1736 = vor.u32 %v1732, %v1735
    %v1737 = vrot.slane %v1736, 4
    %v1739 = vshll.u32 %v1566, 16
    %v1741 = vrot.slane %v1739, 5
    %v1742 = vsel %vm122, %v1737, %v1741
    %v1744 = vshrl.u32 %v1567, 16
    %v1746 = vrot.slane %v1744, 4
    %v1747 = vshll.u32 %v1567, 16
    %v1749 = vrot.slane %v1747, 5
    %v1750 = vor.u32 %v1746, %v1749
    %v1751 = vrot.slane %v1750, 4
    %v1753 = vshll.u32 %v1568, 16
    %v1755 = vrot.slane %v1753, 5
    %v1756 = vsel %vm122, %v1751, %v1755
    %v1758 = vshrl.u32 %v1569, 16
    %v1760 = vrot.slane %v1758, 4
    %v1761 = vshll.u32 %v1569, 16
    %v1763 = vrot.slane %v1761, 5
    %v1764 = vor.u32 %v1760, %v1763
    %v1765 = vrot.slane %v1764, 4
    %v1767 = vshll.u32 %v1570, 16
    %v1769 = vrot.slane %v1767, 5
    %v1770 = vsel %vm122, %v1765, %v1769
    %v1772 = vshrl.u32 %v1571, 16
    %v1774 = vrot.slane %v1772, 4
    %v1775 = vshll.u32 %v1571, 16
    %v1777 = vrot.slane %v1775, 5
    %v1778 = vor.u32 %v1774, %v1777
    %v1779 = vrot.slane %v1778, 4
    %v1781 = vshll.u32 %v1572, 16
    %v1783 = vrot.slane %v1781, 5
    %v1784 = vsel %vm122, %v1779, %v1783
    %v1786 = vshrl.u32 %v1573, 16
    %v1788 = vrot.slane %v1786, 4
    %v1789 = vshll.u32 %v1573, 16
    %v1791 = vrot.slane %v1789, 5
    %v1792 = vor.u32 %v1788, %v1791
    %v1793 = vrot.slane %v1792, 4
    %v1795 = vshll.u32 %v1574, 16
    %v1797 = vrot.slane %v1795, 5
    %v1798 = vsel %vm122, %v1793, %v1797
    %1799 = vrot.lane.b32.xlu0 %v1588, 80
    %v1800 = vpop.permute.xlu0 %1799
    %1801 = vrot.lane.b32.xlu0 %v1602, 80
    %v1802 = vpop.permute.xlu0 %1801
    %1803 = vrot.lane.b32.xlu0 %v1616, 80
    %v1804 = vpop.permute.xlu0 %1803
    %1805 = vrot.lane.b32.xlu0 %v1630, 80
    %v1806 = vpop.permute.xlu0 %1805
    %1807 = vrot.lane.b32.xlu0 %v1644, 80
    %v1808 = vpop.permute.xlu0 %1807
    %1809 = vrot.lane.b32.xlu0 %v1658, 80
    %v1810 = vpop.permute.xlu0 %1809
    %1811 = vrot.lane.b32.xlu0 %v1672, 80
    %v1812 = vpop.permute.xlu0 %1811
    %1813 = vrot.lane.b32.xlu0 %v1686, 80
    %v1814 = vpop.permute.xlu0 %1813
    %1815 = vrot.lane.b32.xlu0 %v1700, 80
    %v1816 = vpop.permute.xlu0 %1815
    %1817 = vrot.lane.b32.xlu0 %v1714, 80
    %v1818 = vpop.permute.xlu0 %1817
    %1819 = vrot.lane.b32.xlu0 %v1728, 80
    %v1820 = vpop.permute.xlu0 %1819
    %1821 = vrot.lane.b32.xlu0 %v1742, 80
    %v1822 = vpop.permute.xlu0 %1821
    %1823 = vrot.lane.b32.xlu0 %v1756, 80
    %v1824 = vpop.permute.xlu0 %1823
    %1825 = vrot.lane.b32.xlu0 %v1770, 80
    %v1826 = vpop.permute.xlu0 %1825
    %1827 = vrot.lane.b32.xlu0 %v1784, 80
    %v1828 = vpop.permute.xlu0 %1827
    %1829 = vrot.lane.b32.xlu0 %v1798, 80
    %v1830 = vpop.permute.xlu0 %1829
    %vm1847 = vcmask 913024
    %1848 = vst.msk [vmem:[%s492] sm:$0xf] %vm1847, %v1800
    %1849 = vst.msk [vmem:[%s492 + $0x8] sm:$0xf] %vm1847, %v1802
    %1850 = vst.msk [vmem:[%s492 + $0x10] sm:$0xf] %vm1847, %v1804
    %1851 = vst.msk [vmem:[%s492 + $0x18] sm:$0xf] %vm1847, %v1806
    %1852 = vst.msk [vmem:[%s492 + $0x20] sm:$0xf] %vm1847, %v1808
    %1853 = vst.msk [vmem:[%s492 + $0x28] sm:$0xf] %vm1847, %v1810
    %1854 = vst.msk [vmem:[%s492 + $0x30] sm:$0xf] %vm1847, %v1812
    %1855 = vst.msk [vmem:[%s492 + $0x38] sm:$0xf] %vm1847, %v1814
    %1856 = vst.msk [vmem:[%s492 + $0x40] sm:$0xf] %vm1847, %v1816
    %1857 = vst.msk [vmem:[%s492 + $0x48] sm:$0xf] %vm1847, %v1818
    %1858 = vst.msk [vmem:[%s492 + $0x50] sm:$0xf] %vm1847, %v1820
    %1859 = vst.msk [vmem:[%s492 + $0x58] sm:$0xf] %vm1847, %v1822
    %1860 = vst.msk [vmem:[%s492 + $0x60] sm:$0xf] %vm1847, %v1824
    %1861 = vst.msk [vmem:[%s492 + $0x68] sm:$0xf] %vm1847, %v1826
    %1862 = vst.msk [vmem:[%s492 + $0x70] sm:$0xf] %vm1847, %v1828
    %1863 = vst.msk [vmem:[%s492 + $0x78] sm:$0xf] %vm1847, %v1830
    %v1864 = vld [vmem:[%s1027] sm:$0xe]
    %v1865 = vld [vmem:[%s1027 + $0x4] sm:$0x1]
    %v1866 = vld [vmem:[%s1027 + $0x8] sm:$0xe]
    %v1867 = vld [vmem:[%s1027 + $0xc] sm:$0x1]
    %v1868 = vld [vmem:[%s1027 + $0x10] sm:$0xe]
    %v1869 = vld [vmem:[%s1027 + $0x14] sm:$0x1]
    %v1870 = vld [vmem:[%s1027 + $0x18] sm:$0xe]
    %v1871 = vld [vmem:[%s1027 + $0x1c] sm:$0x1]
    %v1872 = vld [vmem:[%s1027 + $0x20] sm:$0xe]
    %v1873 = vld [vmem:[%s1027 + $0x24] sm:$0x1]
    %v1874 = vld [vmem:[%s1027 + $0x28] sm:$0xe]
    %v1875 = vld [vmem:[%s1027 + $0x2c] sm:$0x1]
    %v1876 = vld [vmem:[%s1027 + $0x30] sm:$0xe]
    %v1877 = vld [vmem:[%s1027 + $0x34] sm:$0x1]
    %v1878 = vld [vmem:[%s1027 + $0x38] sm:$0xe]
    %v1879 = vld [vmem:[%s1027 + $0x3c] sm:$0x1]
    %v1880 = vld [vmem:[%s1027 + $0x40] sm:$0xe]
    %v1881 = vld [vmem:[%s1027 + $0x44] sm:$0x1]
    %v1882 = vld [vmem:[%s1027 + $0x48] sm:$0xe]
    %v1883 = vld [vmem:[%s1027 + $0x4c] sm:$0x1]
    %v1884 = vld [vmem:[%s1027 + $0x50] sm:$0xe]
    %v1885 = vld [vmem:[%s1027 + $0x54] sm:$0x1]
    %v1886 = vld [vmem:[%s1027 + $0x58] sm:$0xe]
    %v1887 = vld [vmem:[%s1027 + $0x5c] sm:$0x1]
    %v1888 = vld [vmem:[%s1027 + $0x60] sm:$0xe]
    %v1889 = vld [vmem:[%s1027 + $0x64] sm:$0x1]
    %v1890 = vld [vmem:[%s1027 + $0x68] sm:$0xe]
    %v1891 = vld [vmem:[%s1027 + $0x6c] sm:$0x1]
    %v1892 = vld [vmem:[%s1027 + $0x70] sm:$0xe]
    %v1893 = vld [vmem:[%s1027 + $0x74] sm:$0x1]
    %v1894 = vld [vmem:[%s1027 + $0x78] sm:$0xe]
    %v1895 = vld [vmem:[%s1027 + $0x7c] sm:$0x1]
    %v1928 = vrot.slane %v1864, 5
    %v1929 = vrot.slane %v1928, 4
    %v1930 = vrot.slane %v1865, 5
    %v1931 = vsel %vm897, %v1929, %v1930
    %v1932 = vrot.slane %v1866, 5
    %v1933 = vrot.slane %v1932, 4
    %v1934 = vrot.slane %v1867, 5
    %v1935 = vsel %vm897, %v1933, %v1934
    %v1936 = vrot.slane %v1868, 5
    %v1937 = vrot.slane %v1936, 4
    %v1938 = vrot.slane %v1869, 5
    %v1939 = vsel %vm897, %v1937, %v1938
    %v1940 = vrot.slane %v1870, 5
    %v1941 = vrot.slane %v1940, 4
    %v1942 = vrot.slane %v1871, 5
    %v1943 = vsel %vm897, %v1941, %v1942
    %v1944 = vrot.slane %v1872, 5
    %v1945 = vrot.slane %v1944, 4
    %v1946 = vrot.slane %v1873, 5
    %v1947 = vsel %vm897, %v1945, %v1946
    %v1948 = vrot.slane %v1874, 5
    %v1949 = vrot.slane %v1948, 4
    %v1950 = vrot.slane %v1875, 5
    %v1951 = vsel %vm897, %v1949, %v1950
    %v1952 = vrot.slane %v1876, 5
    %v1953 = vrot.slane %v1952, 4
    %v1954 = vrot.slane %v1877, 5
    %v1955 = vsel %vm897, %v1953, %v1954
    %v1956 = vrot.slane %v1878, 5
    %v1957 = vrot.slane %v1956, 4
    %v1958 = vrot.slane %v1879, 5
    %v1959 = vsel %vm897, %v1957, %v1958
    %v1960 = vrot.slane %v1880, 5
    %v1961 = vrot.slane %v1960, 4
    %v1962 = vrot.slane %v1881, 5
    %v1963 = vsel %vm897, %v1961, %v1962
    %v1964 = vrot.slane %v1882, 5
    %v1965 = vrot.slane %v1964, 4
    %v1966 = vrot.slane %v1883, 5
    %v1967 = vsel %vm897, %v1965, %v1966
    %v1968 = vrot.slane %v1884, 5
    %v1969 = vrot.slane %v1968, 4
    %v1970 = vrot.slane %v1885, 5
    %v1971 = vsel %vm897, %v1969, %v1970
    %v1972 = vrot.slane %v1886, 5
    %v1973 = vrot.slane %v1972, 4
    %v1974 = vrot.slane %v1887, 5
    %v1975 = vsel %vm897, %v1973, %v1974
    %v1976 = vrot.slane %v1888, 5
    %v1977 = vrot.slane %v1976, 4
    %v1978 = vrot.slane %v1889, 5
    %v1979 = vsel %vm897, %v1977, %v1978
    %v1980 = vrot.slane %v1890, 5
    %v1981 = vrot.slane %v1980, 4
    %v1982 = vrot.slane %v1891, 5
    %v1983 = vsel %vm897, %v1981, %v1982
    %v1984 = vrot.slane %v1892, 5
    %v1985 = vrot.slane %v1984, 4
    %v1986 = vrot.slane %v1893, 5
    %v1987 = vsel %vm897, %v1985, %v1986
    %v1988 = vrot.slane %v1894, 5
    %v1989 = vrot.slane %v1988, 4
    %v1990 = vrot.slane %v1895, 5
    %v1991 = vsel %vm897, %v1989, %v1990
    %1992 = vrot.lane.b32.xlu0 %v1931, 112
    %v1993 = vpop.permute.xlu0 %1992
    %1994 = vrot.lane.b32.xlu0 %v1935, 112
    %v1995 = vpop.permute.xlu0 %1994
    %1996 = vrot.lane.b32.xlu0 %v1939, 112
    %v1997 = vpop.permute.xlu0 %1996
    %1998 = vrot.lane.b32.xlu0 %v1943, 112
    %v1999 = vpop.permute.xlu0 %1998
    %2000 = vrot.lane.b32.xlu0 %v1947, 112
    %v2001 = vpop.permute.xlu0 %2000
    %2002 = vrot.lane.b32.xlu0 %v1951, 112
    %v2003 = vpop.permute.xlu0 %2002
    %2004 = vrot.lane.b32.xlu0 %v1955, 112
    %v2005 = vpop.permute.xlu0 %2004
    %2006 = vrot.lane.b32.xlu0 %v1959, 112
    %v2007 = vpop.permute.xlu0 %2006
    %2008 = vrot.lane.b32.xlu0 %v1963, 112
    %v2009 = vpop.permute.xlu0 %2008
    %2010 = vrot.lane.b32.xlu0 %v1967, 112
    %v2011 = vpop.permute.xlu0 %2010
    %2012 = vrot.lane.b32.xlu0 %v1971, 112
    %v2013 = vpop.permute.xlu0 %2012
    %2014 = vrot.lane.b32.xlu0 %v1975, 112
    %v2015 = vpop.permute.xlu0 %2014
    %2016 = vrot.lane.b32.xlu0 %v1979, 112
    %v2017 = vpop.permute.xlu0 %2016
    %2018 = vrot.lane.b32.xlu0 %v1983, 112
    %v2019 = vpop.permute.xlu0 %2018
    %2020 = vrot.lane.b32.xlu0 %v1987, 112
    %v2021 = vpop.permute.xlu0 %2020
    %2022 = vrot.lane.b32.xlu0 %v1991, 112
    %v2023 = vpop.permute.xlu0 %2022
    %vm2040 = vcmask 1044352
    %2041 = vst.msk [vmem:[%s492] sm:$0xf] %vm2040, %v1993
    %2042 = vst.msk [vmem:[%s492 + $0x8] sm:$0xf] %vm2040, %v1995
    %2043 = vst.msk [vmem:[%s492 + $0x10] sm:$0xf] %vm2040, %v1997
    %2044 = vst.msk [vmem:[%s492 + $0x18] sm:$0xf] %vm2040, %v1999
    %2045 = vst.msk [vmem:[%s492 + $0x20] sm:$0xf] %vm2040, %v2001
    %2046 = vst.msk [vmem:[%s492 + $0x28] sm:$0xf] %vm2040, %v2003
    %2047 = vst.msk [vmem:[%s492 + $0x30] sm:$0xf] %vm2040, %v2005
    %2048 = vst.msk [vmem:[%s492 + $0x38] sm:$0xf] %vm2040, %v2007
    %2049 = vst.msk [vmem:[%s492 + $0x40] sm:$0xf] %vm2040, %v2009
    %2050 = vst.msk [vmem:[%s492 + $0x48] sm:$0xf] %vm2040, %v2011
    %2051 = vst.msk [vmem:[%s492 + $0x50] sm:$0xf] %vm2040, %v2013
    %2052 = vst.msk [vmem:[%s492 + $0x58] sm:$0xf] %vm2040, %v2015
    %2053 = vst.msk [vmem:[%s492 + $0x60] sm:$0xf] %vm2040, %v2017
    %2054 = vst.msk [vmem:[%s492 + $0x68] sm:$0xf] %vm2040, %v2019
    %2055 = vst.msk [vmem:[%s492 + $0x70] sm:$0xf] %vm2040, %v2021
    %2056 = vst.msk [vmem:[%s492 + $0x78] sm:$0xf] %vm2040, %v2023
    %s2057 = scalar_lea.vmem [#allocation3], 16
    %v2058 = vld [vmem:[%s2057] sm:$0xf]
    %v2059 = vld [vmem:[%s2057 + $0x8] sm:$0xf]
    %v2060 = vld [vmem:[%s2057 + $0x10] sm:$0xf]
    %v2061 = vld [vmem:[%s2057 + $0x18] sm:$0xf]
    %v2062 = vld [vmem:[%s2057 + $0x20] sm:$0xf]
    %v2063 = vld [vmem:[%s2057 + $0x28] sm:$0xf]
    %v2064 = vld [vmem:[%s2057 + $0x30] sm:$0xf]
    %v2065 = vld [vmem:[%s2057 + $0x38] sm:$0xf]
    %v2066 = vld [vmem:[%s2057 + $0x40] sm:$0xf]
    %v2067 = vld [vmem:[%s2057 + $0x48] sm:$0xf]
    %v2068 = vld [vmem:[%s2057 + $0x50] sm:$0xf]
    %v2069 = vld [vmem:[%s2057 + $0x58] sm:$0xf]
    %v2070 = vld [vmem:[%s2057 + $0x60] sm:$0xf]
    %v2071 = vld [vmem:[%s2057 + $0x68] sm:$0xf]
    %v2072 = vld [vmem:[%s2057 + $0x70] sm:$0xf]
    %v2073 = vld [vmem:[%s2057 + $0x78] sm:$0xf]
    %2074 = vst.msk [vmem:[#allocation2 + $0x4] sm:$0xf] %vm71, %v2058
    %2075 = vst.msk [vmem:[#allocation2 + $0xc] sm:$0xf] %vm71, %v2059
    %2076 = vst.msk [vmem:[#allocation2 + $0x14] sm:$0xf] %vm71, %v2060
    %2077 = vst.msk [vmem:[#allocation2 + $0x1c] sm:$0xf] %vm71, %v2061
    %2078 = vst.msk [vmem:[#allocation2 + $0x24] sm:$0xf] %vm71, %v2062
    %2079 = vst.msk [vmem:[#allocation2 + $0x2c] sm:$0xf] %vm71, %v2063
    %2080 = vst.msk [vmem:[#allocation2 + $0x34] sm:$0xf] %vm71, %v2064
    %2081 = vst.msk [vmem:[#allocation2 + $0x3c] sm:$0xf] %vm71, %v2065
    %2082 = vst.msk [vmem:[#allocation2 + $0x44] sm:$0xf] %vm71, %v2066
    %2083 = vst.msk [vmem:[#allocation2 + $0x4c] sm:$0xf] %vm71, %v2067
    %2084 = vst.msk [vmem:[#allocation2 + $0x54] sm:$0xf] %vm71, %v2068
    %2085 = vst.msk [vmem:[#allocation2 + $0x5c] sm:$0xf] %vm71, %v2069
    %2086 = vst.msk [vmem:[#allocation2 + $0x64] sm:$0xf] %vm71, %v2070
    %2087 = vst.msk [vmem:[#allocation2 + $0x6c] sm:$0xf] %vm71, %v2071
    %2088 = vst.msk [vmem:[#allocation2 + $0x74] sm:$0xf] %vm71, %v2072
    %2089 = vst.msk [vmem:[#allocation2 + $0x7c] sm:$0xf] %vm71, %v2073
    %v2090 = vld [vmem:[%s2057] sm:$0xf]
    %v2091 = vld [vmem:[%s2057 + $0x4] sm:$0x1]
    %v2092 = vld [vmem:[%s2057 + $0x8] sm:$0xf]
    %v2093 = vld [vmem:[%s2057 + $0xc] sm:$0x1]
    %v2094 = vld [vmem:[%s2057 + $0x10] sm:$0xf]
    %v2095 = vld [vmem:[%s2057 + $0x14] sm:$0x1]
    %v2096 = vld [vmem:[%s2057 + $0x18] sm:$0xf]
    %v2097 = vld [vmem:[%s2057 + $0x1c] sm:$0x1]
    %v2098 = vld [vmem:[%s2057 + $0x20] sm:$0xf]
    %v2099 = vld [vmem:[%s2057 + $0x24] sm:$0x1]
    %v2100 = vld [vmem:[%s2057 + $0x28] sm:$0xf]
    %v2101 = vld [vmem:[%s2057 + $0x2c] sm:$0x1]
    %v2102 = vld [vmem:[%s2057 + $0x30] sm:$0xf]
    %v2103 = vld [vmem:[%s2057 + $0x34] sm:$0x1]
    %v2104 = vld [vmem:[%s2057 + $0x38] sm:$0xf]
    %v2105 = vld [vmem:[%s2057 + $0x3c] sm:$0x1]
    %v2106 = vld [vmem:[%s2057 + $0x40] sm:$0xf]
    %v2107 = vld [vmem:[%s2057 + $0x44] sm:$0x1]
    %v2108 = vld [vmem:[%s2057 + $0x48] sm:$0xf]
    %v2109 = vld [vmem:[%s2057 + $0x4c] sm:$0x1]
    %v2110 = vld [vmem:[%s2057 + $0x50] sm:$0xf]
    %v2111 = vld [vmem:[%s2057 + $0x54] sm:$0x1]
    %v2112 = vld [vmem:[%s2057 + $0x58] sm:$0xf]
    %v2113 = vld [vmem:[%s2057 + $0x5c] sm:$0x1]
    %v2114 = vld [vmem:[%s2057 + $0x60] sm:$0xf]
    %v2115 = vld [vmem:[%s2057 + $0x64] sm:$0x1]
    %v2116 = vld [vmem:[%s2057 + $0x68] sm:$0xf]
    %v2117 = vld [vmem:[%s2057 + $0x6c] sm:$0x1]
    %v2118 = vld [vmem:[%s2057 + $0x70] sm:$0xf]
    %v2119 = vld [vmem:[%s2057 + $0x74] sm:$0x1]
    %v2120 = vld [vmem:[%s2057 + $0x78] sm:$0xf]
    %v2121 = vld [vmem:[%s2057 + $0x7c] sm:$0x1]
    %v2123 = vshrl.u32 %v2090, 16
    %v2125 = vrot.slane %v2123, 4
    %v2126 = vshll.u32 %v2090, 16
    %v2128 = vrot.slane %v2126, 5
    %v2129 = vor.u32 %v2125, %v2128
    %v2130 = vrot.slane %v2129, 4
    %v2132 = vshll.u32 %v2091, 16
    %v2134 = vrot.slane %v2132, 5
    %v2135 = vsel %vm122, %v2130, %v2134
    %v2137 = vshrl.u32 %v2092, 16
    %v2139 = vrot.slane %v2137, 4
    %v2140 = vshll.u32 %v2092, 16
    %v2142 = vrot.slane %v2140, 5
    %v2143 = vor.u32 %v2139, %v2142
    %v2144 = vrot.slane %v2143, 4
    %v2146 = vshll.u32 %v2093, 16
    %v2148 = vrot.slane %v2146, 5
    %v2149 = vsel %vm122, %v2144, %v2148
    %v2151 = vshrl.u32 %v2094, 16
    %v2153 = vrot.slane %v2151, 4
    %v2154 = vshll.u32 %v2094, 16
    %v2156 = vrot.slane %v2154, 5
    %v2157 = vor.u32 %v2153, %v2156
    %v2158 = vrot.slane %v2157, 4
    %v2160 = vshll.u32 %v2095, 16
    %v2162 = vrot.slane %v2160, 5
    %v2163 = vsel %vm122, %v2158, %v2162
    %v2165 = vshrl.u32 %v2096, 16
    %v2167 = vrot.slane %v2165, 4
    %v2168 = vshll.u32 %v2096, 16
    %v2170 = vrot.slane %v2168, 5
    %v2171 = vor.u32 %v2167, %v2170
    %v2172 = vrot.slane %v2171, 4
    %v2174 = vshll.u32 %v2097, 16
    %v2176 = vrot.slane %v2174, 5
    %v2177 = vsel %vm122, %v2172, %v2176
    %v2179 = vshrl.u32 %v2098, 16
    %v2181 = vrot.slane %v2179, 4
    %v2182 = vshll.u32 %v2098, 16
    %v2184 = vrot.slane %v2182, 5
    %v2185 = vor.u32 %v2181, %v2184
    %v2186 = vrot.slane %v2185, 4
    %v2188 = vshll.u32 %v2099, 16
    %v2190 = vrot.slane %v2188, 5
    %v2191 = vsel %vm122, %v2186, %v2190
    %v2193 = vshrl.u32 %v2100, 16
    %v2195 = vrot.slane %v2193, 4
    %v2196 = vshll.u32 %v2100, 16
    %v2198 = vrot.slane %v2196, 5
    %v2199 = vor.u32 %v2195, %v2198
    %v2200 = vrot.slane %v2199, 4
    %v2202 = vshll.u32 %v2101, 16
    %v2204 = vrot.slane %v2202, 5
    %v2205 = vsel %vm122, %v2200, %v2204
    %v2207 = vshrl.u32 %v2102, 16
    %v2209 = vrot.slane %v2207, 4
    %v2210 = vshll.u32 %v2102, 16
    %v2212 = vrot.slane %v2210, 5
    %v2213 = vor.u32 %v2209, %v2212
    %v2214 = vrot.slane %v2213, 4
    %v2216 = vshll.u32 %v2103, 16
    %v2218 = vrot.slane %v2216, 5
    %v2219 = vsel %vm122, %v2214, %v2218
    %v2221 = vshrl.u32 %v2104, 16
    %v2223 = vrot.slane %v2221, 4
    %v2224 = vshll.u32 %v2104, 16
    %v2226 = vrot.slane %v2224, 5
    %v2227 = vor.u32 %v2223, %v2226
    %v2228 = vrot.slane %v2227, 4
    %v2230 = vshll.u32 %v2105, 16
    %v2232 = vrot.slane %v2230, 5
    %v2233 = vsel %vm122, %v2228, %v2232
    %v2235 = vshrl.u32 %v2106, 16
    %v2237 = vrot.slane %v2235, 4
    %v2238 = vshll.u32 %v2106, 16
    %v2240 = vrot.slane %v2238, 5
    %v2241 = vor.u32 %v2237, %v2240
    %v2242 = vrot.slane %v2241, 4
    %v2244 = vshll.u32 %v2107, 16
    %v2246 = vrot.slane %v2244, 5
    %v2247 = vsel %vm122, %v2242, %v2246
    %v2249 = vshrl.u32 %v2108, 16
    %v2251 = vrot.slane %v2249, 4
    %v2252 = vshll.u32 %v2108, 16
    %v2254 = vrot.slane %v2252, 5
    %v2255 = vor.u32 %v2251, %v2254
    %v2256 = vrot.slane %v2255, 4
    %v2258 = vshll.u32 %v2109, 16
    %v2260 = vrot.slane %v2258, 5
    %v2261 = vsel %vm122, %v2256, %v2260
    %v2263 = vshrl.u32 %v2110, 16
    %v2265 = vrot.slane %v2263, 4
    %v2266 = vshll.u32 %v2110, 16
    %v2268 = vrot.slane %v2266, 5
    %v2269 = vor.u32 %v2265, %v2268
    %v2270 = vrot.slane %v2269, 4
    %v2272 = vshll.u32 %v2111, 16
    %v2274 = vrot.slane %v2272, 5
    %v2275 = vsel %vm122, %v2270, %v2274
    %v2277 = vshrl.u32 %v2112, 16
    %v2279 = vrot.slane %v2277, 4
    %v2280 = vshll.u32 %v2112, 16
    %v2282 = vrot.slane %v2280, 5
    %v2283 = vor.u32 %v2279, %v2282
    %v2284 = vrot.slane %v2283, 4
    %v2286 = vshll.u32 %v2113, 16
    %v2288 = vrot.slane %v2286, 5
    %v2289 = vsel %vm122, %v2284, %v2288
    %v2291 = vshrl.u32 %v2114, 16
    %v2293 = vrot.slane %v2291, 4
    %v2294 = vshll.u32 %v2114, 16
    %v2296 = vrot.slane %v2294, 5
    %v2297 = vor.u32 %v2293, %v2296
    %v2298 = vrot.slane %v2297, 4
    %v2300 = vshll.u32 %v2115, 16
    %v2302 = vrot.slane %v2300, 5
    %v2303 = vsel %vm122, %v2298, %v2302
    %v2305 = vshrl.u32 %v2116, 16
    %v2307 = vrot.slane %v2305, 4
    %v2308 = vshll.u32 %v2116, 16
    %v2310 = vrot.slane %v2308, 5
    %v2311 = vor.u32 %v2307, %v2310
    %v2312 = vrot.slane %v2311, 4
    %v2314 = vshll.u32 %v2117, 16
    %v2316 = vrot.slane %v2314, 5
    %v2317 = vsel %vm122, %v2312, %v2316
    %v2319 = vshrl.u32 %v2118, 16
    %v2321 = vrot.slane %v2319, 4
    %v2322 = vshll.u32 %v2118, 16
    %v2324 = vrot.slane %v2322, 5
    %v2325 = vor.u32 %v2321, %v2324
    %v2326 = vrot.slane %v2325, 4
    %v2328 = vshll.u32 %v2119, 16
    %v2330 = vrot.slane %v2328, 5
    %v2331 = vsel %vm122, %v2326, %v2330
    %v2333 = vshrl.u32 %v2120, 16
    %v2335 = vrot.slane %v2333, 4
    %v2336 = vshll.u32 %v2120, 16
    %v2338 = vrot.slane %v2336, 5
    %v2339 = vor.u32 %v2335, %v2338
    %v2340 = vrot.slane %v2339, 4
    %v2342 = vshll.u32 %v2121, 16
    %v2344 = vrot.slane %v2342, 5
    %v2345 = vsel %vm122, %v2340, %v2344
    %2346 = vrot.lane.b32.xlu0 %v2135, 32
    %v2347 = vpop.permute.xlu0 %2346
    %2348 = vrot.lane.b32.xlu0 %v2149, 32
    %v2349 = vpop.permute.xlu0 %2348
    %2350 = vrot.lane.b32.xlu0 %v2163, 32
    %v2351 = vpop.permute.xlu0 %2350
    %2352 = vrot.lane.b32.xlu0 %v2177, 32
    %v2353 = vpop.permute.xlu0 %2352
    %2354 = vrot.lane.b32.xlu0 %v2191, 32
    %v2355 = vpop.permute.xlu0 %2354
    %2356 = vrot.lane.b32.xlu0 %v2205, 32
    %v2357 = vpop.permute.xlu0 %2356
    %2358 = vrot.lane.b32.xlu0 %v2219, 32
    %v2359 = vpop.permute.xlu0 %2358
    %2360 = vrot.lane.b32.xlu0 %v2233, 32
    %v2361 = vpop.permute.xlu0 %2360
    %2362 = vrot.lane.b32.xlu0 %v2247, 32
    %v2363 = vpop.permute.xlu0 %2362
    %2364 = vrot.lane.b32.xlu0 %v2261, 32
    %v2365 = vpop.permute.xlu0 %2364
    %2366 = vrot.lane.b32.xlu0 %v2275, 32
    %v2367 = vpop.permute.xlu0 %2366
    %2368 = vrot.lane.b32.xlu0 %v2289, 32
    %v2369 = vpop.permute.xlu0 %2368
    %2370 = vrot.lane.b32.xlu0 %v2303, 32
    %v2371 = vpop.permute.xlu0 %2370
    %2372 = vrot.lane.b32.xlu0 %v2317, 32
    %v2373 = vpop.permute.xlu0 %2372
    %2374 = vrot.lane.b32.xlu0 %v2331, 32
    %v2375 = vpop.permute.xlu0 %2374
    %2376 = vrot.lane.b32.xlu0 %v2345, 32
    %v2377 = vpop.permute.xlu0 %2376
    %2394 = vst.msk [vmem:[#allocation2 + $0x4] sm:$0xf] %vm395, %v2347
    %2395 = vst.msk [vmem:[#allocation2 + $0xc] sm:$0xf] %vm395, %v2349
    %2396 = vst.msk [vmem:[#allocation2 + $0x14] sm:$0xf] %vm395, %v2351
    %2397 = vst.msk [vmem:[#allocation2 + $0x1c] sm:$0xf] %vm395, %v2353
    %2398 = vst.msk [vmem:[#allocation2 + $0x24] sm:$0xf] %vm395, %v2355
    %2399 = vst.msk [vmem:[#allocation2 + $0x2c] sm:$0xf] %vm395, %v2357
    %2400 = vst.msk [vmem:[#allocation2 + $0x34] sm:$0xf] %vm395, %v2359
    %2401 = vst.msk [vmem:[#allocation2 + $0x3c] sm:$0xf] %vm395, %v2361
    %2402 = vst.msk [vmem:[#allocation2 + $0x44] sm:$0xf] %vm395, %v2363
    %2403 = vst.msk [vmem:[#allocation2 + $0x4c] sm:$0xf] %vm395, %v2365
    %2404 = vst.msk [vmem:[#allocation2 + $0x54] sm:$0xf] %vm395, %v2367
    %2405 = vst.msk [vmem:[#allocation2 + $0x5c] sm:$0xf] %vm395, %v2369
    %2406 = vst.msk [vmem:[#allocation2 + $0x64] sm:$0xf] %vm395, %v2371
    %2407 = vst.msk [vmem:[#allocation2 + $0x6c] sm:$0xf] %vm395, %v2373
    %2408 = vst.msk [vmem:[#allocation2 + $0x74] sm:$0xf] %vm395, %v2375
    %2409 = vst.msk [vmem:[#allocation2 + $0x7c] sm:$0xf] %vm395, %v2377
    %v2410 = vld [vmem:[%s2057] sm:$0xf]
    %v2411 = vld [vmem:[%s2057 + $0x8] sm:$0xf]
    %v2412 = vld [vmem:[%s2057 + $0x10] sm:$0xf]
    %v2413 = vld [vmem:[%s2057 + $0x18] sm:$0xf]
    %v2414 = vld [vmem:[%s2057 + $0x20] sm:$0xf]
    %v2415 = vld [vmem:[%s2057 + $0x28] sm:$0xf]
    %v2416 = vld [vmem:[%s2057 + $0x30] sm:$0xf]
    %v2417 = vld [vmem:[%s2057 + $0x38] sm:$0xf]
    %v2418 = vld [vmem:[%s2057 + $0x40] sm:$0xf]
    %v2419 = vld [vmem:[%s2057 + $0x48] sm:$0xf]
    %v2420 = vld [vmem:[%s2057 + $0x50] sm:$0xf]
    %v2421 = vld [vmem:[%s2057 + $0x58] sm:$0xf]
    %v2422 = vld [vmem:[%s2057 + $0x60] sm:$0xf]
    %v2423 = vld [vmem:[%s2057 + $0x68] sm:$0xf]
    %v2424 = vld [vmem:[%s2057 + $0x70] sm:$0xf]
    %v2425 = vld [vmem:[%s2057 + $0x78] sm:$0xf]
    %2442 = vrot.lane.b32.xlu0 %v2410, 112
    %v2443 = vpop.permute.xlu0 %2442
    %2444 = vrot.lane.b32.xlu0 %v2411, 112
    %v2445 = vpop.permute.xlu0 %2444
    %2446 = vrot.lane.b32.xlu0 %v2412, 112
    %v2447 = vpop.permute.xlu0 %2446
    %2448 = vrot.lane.b32.xlu0 %v2413, 112
    %v2449 = vpop.permute.xlu0 %2448
    %2450 = vrot.lane.b32.xlu0 %v2414, 112
    %v2451 = vpop.permute.xlu0 %2450
    %2452 = vrot.lane.b32.xlu0 %v2415, 112
    %v2453 = vpop.permute.xlu0 %2452
    %2454 = vrot.lane.b32.xlu0 %v2416, 112
    %v2455 = vpop.permute.xlu0 %2454
    %2456 = vrot.lane.b32.xlu0 %v2417, 112
    %v2457 = vpop.permute.xlu0 %2456
    %2458 = vrot.lane.b32.xlu0 %v2418, 112
    %v2459 = vpop.permute.xlu0 %2458
    %2460 = vrot.lane.b32.xlu0 %v2419, 112
    %v2461 = vpop.permute.xlu0 %2460
    %2462 = vrot.lane.b32.xlu0 %v2420, 112
    %v2463 = vpop.permute.xlu0 %2462
    %2464 = vrot.lane.b32.xlu0 %v2421, 112
    %v2465 = vpop.permute.xlu0 %2464
    %2466 = vrot.lane.b32.xlu0 %v2422, 112
    %v2467 = vpop.permute.xlu0 %2466
    %2468 = vrot.lane.b32.xlu0 %v2423, 112
    %v2469 = vpop.permute.xlu0 %2468
    %2470 = vrot.lane.b32.xlu0 %v2424, 112
    %v2471 = vpop.permute.xlu0 %2470
    %2472 = vrot.lane.b32.xlu0 %v2425, 112
    %v2473 = vpop.permute.xlu0 %2472
    %2490 = vst.msk [vmem:[%s492 + $0x4] sm:$0xf] %vm493, %v2443
    %2491 = vst.msk [vmem:[%s492 + $0xc] sm:$0xf] %vm493, %v2445
    %2492 = vst.msk [vmem:[%s492 + $0x14] sm:$0xf] %vm493, %v2447
    %2493 = vst.msk [vmem:[%s492 + $0x1c] sm:$0xf] %vm493, %v2449
    %2494 = vst.msk [vmem:[%s492 + $0x24] sm:$0xf] %vm493, %v2451
    %2495 = vst.msk [vmem:[%s492 + $0x2c] sm:$0xf] %vm493, %v2453
    %2496 = vst.msk [vmem:[%s492 + $0x34] sm:$0xf] %vm493, %v2455
    %2497 = vst.msk [vmem:[%s492 + $0x3c] sm:$0xf] %vm493, %v2457
    %2498 = vst.msk [vmem:[%s492 + $0x44] sm:$0xf] %vm493, %v2459
    %2499 = vst.msk [vmem:[%s492 + $0x4c] sm:$0xf] %vm493, %v2461
    %2500 = vst.msk [vmem:[%s492 + $0x54] sm:$0xf] %vm493, %v2463
    %2501 = vst.msk [vmem:[%s492 + $0x5c] sm:$0xf] %vm493, %v2465
    %2502 = vst.msk [vmem:[%s492 + $0x64] sm:$0xf] %vm493, %v2467
    %2503 = vst.msk [vmem:[%s492 + $0x6c] sm:$0xf] %vm493, %v2469
    %2504 = vst.msk [vmem:[%s492 + $0x74] sm:$0xf] %vm493, %v2471
    %2505 = vst.msk [vmem:[%s492 + $0x7c] sm:$0xf] %vm493, %v2473
    %v2506 = vld [vmem:[%s2057] sm:$0xf]
    %v2507 = vld [vmem:[%s2057 + $0x4] sm:$0x1]
    %v2508 = vld [vmem:[%s2057 + $0x8] sm:$0xf]
    %v2509 = vld [vmem:[%s2057 + $0xc] sm:$0x1]
    %v2510 = vld [vmem:[%s2057 + $0x10] sm:$0xf]
    %v2511 = vld [vmem:[%s2057 + $0x14] sm:$0x1]
    %v2512 = vld [vmem:[%s2057 + $0x18] sm:$0xf]
    %v2513 = vld [vmem:[%s2057 + $0x1c] sm:$0x1]
    %v2514 = vld [vmem:[%s2057 + $0x20] sm:$0xf]
    %v2515 = vld [vmem:[%s2057 + $0x24] sm:$0x1]
    %v2516 = vld [vmem:[%s2057 + $0x28] sm:$0xf]
    %v2517 = vld [vmem:[%s2057 + $0x2c] sm:$0x1]
    %v2518 = vld [vmem:[%s2057 + $0x30] sm:$0xf]
    %v2519 = vld [vmem:[%s2057 + $0x34] sm:$0x1]
    %v2520 = vld [vmem:[%s2057 + $0x38] sm:$0xf]
    %v2521 = vld [vmem:[%s2057 + $0x3c] sm:$0x1]
    %v2522 = vld [vmem:[%s2057 + $0x40] sm:$0xf]
    %v2523 = vld [vmem:[%s2057 + $0x44] sm:$0x1]
    %v2524 = vld [vmem:[%s2057 + $0x48] sm:$0xf]
    %v2525 = vld [vmem:[%s2057 + $0x4c] sm:$0x1]
    %v2526 = vld [vmem:[%s2057 + $0x50] sm:$0xf]
    %v2527 = vld [vmem:[%s2057 + $0x54] sm:$0x1]
    %v2528 = vld [vmem:[%s2057 + $0x58] sm:$0xf]
    %v2529 = vld [vmem:[%s2057 + $0x5c] sm:$0x1]
    %v2530 = vld [vmem:[%s2057 + $0x60] sm:$0xf]
    %v2531 = vld [vmem:[%s2057 + $0x64] sm:$0x1]
    %v2532 = vld [vmem:[%s2057 + $0x68] sm:$0xf]
    %v2533 = vld [vmem:[%s2057 + $0x6c] sm:$0x1]
    %v2534 = vld [vmem:[%s2057 + $0x70] sm:$0xf]
    %v2535 = vld [vmem:[%s2057 + $0x74] sm:$0x1]
    %v2536 = vld [vmem:[%s2057 + $0x78] sm:$0xf]
    %v2537 = vld [vmem:[%s2057 + $0x7c] sm:$0x1]
    %v2539 = vshrl.u32 %v2506, 16
    %v2541 = vrot.slane %v2539, 4
    %v2542 = vshll.u32 %v2506, 16
    %v2544 = vrot.slane %v2542, 5
    %v2545 = vor.u32 %v2541, %v2544
    %v2546 = vrot.slane %v2545, 4
    %v2548 = vshll.u32 %v2507, 16
    %v2550 = vrot.slane %v2548, 5
    %v2551 = vsel %vm122, %v2546, %v2550
    %v2553 = vshrl.u32 %v2508, 16
    %v2555 = vrot.slane %v2553, 4
    %v2556 = vshll.u32 %v2508, 16
    %v2558 = vrot.slane %v2556, 5
    %v2559 = vor.u32 %v2555, %v2558
    %v2560 = vrot.slane %v2559, 4
    %v2562 = vshll.u32 %v2509, 16
    %v2564 = vrot.slane %v2562, 5
    %v2565 = vsel %vm122, %v2560, %v2564
    %v2567 = vshrl.u32 %v2510, 16
    %v2569 = vrot.slane %v2567, 4
    %v2570 = vshll.u32 %v2510, 16
    %v2572 = vrot.slane %v2570, 5
    %v2573 = vor.u32 %v2569, %v2572
    %v2574 = vrot.slane %v2573, 4
    %v2576 = vshll.u32 %v2511, 16
    %v2578 = vrot.slane %v2576, 5
    %v2579 = vsel %vm122, %v2574, %v2578
    %v2581 = vshrl.u32 %v2512, 16
    %v2583 = vrot.slane %v2581, 4
    %v2584 = vshll.u32 %v2512, 16
    %v2586 = vrot.slane %v2584, 5
    %v2587 = vor.u32 %v2583, %v2586
    %v2588 = vrot.slane %v2587, 4
    %v2590 = vshll.u32 %v2513, 16
    %v2592 = vrot.slane %v2590, 5
    %v2593 = vsel %vm122, %v2588, %v2592
    %v2595 = vshrl.u32 %v2514, 16
    %v2597 = vrot.slane %v2595, 4
    %v2598 = vshll.u32 %v2514, 16
    %v2600 = vrot.slane %v2598, 5
    %v2601 = vor.u32 %v2597, %v2600
    %v2602 = vrot.slane %v2601, 4
    %v2604 = vshll.u32 %v2515, 16
    %v2606 = vrot.slane %v2604, 5
    %v2607 = vsel %vm122, %v2602, %v2606
    %v2609 = vshrl.u32 %v2516, 16
    %v2611 = vrot.slane %v2609, 4
    %v2612 = vshll.u32 %v2516, 16
    %v2614 = vrot.slane %v2612, 5
    %v2615 = vor.u32 %v2611, %v2614
    %v2616 = vrot.slane %v2615, 4
    %v2618 = vshll.u32 %v2517, 16
    %v2620 = vrot.slane %v2618, 5
    %v2621 = vsel %vm122, %v2616, %v2620
    %v2623 = vshrl.u32 %v2518, 16
    %v2625 = vrot.slane %v2623, 4
    %v2626 = vshll.u32 %v2518, 16
    %v2628 = vrot.slane %v2626, 5
    %v2629 = vor.u32 %v2625, %v2628
    %v2630 = vrot.slane %v2629, 4
    %v2632 = vshll.u32 %v2519, 16
    %v2634 = vrot.slane %v2632, 5
    %v2635 = vsel %vm122, %v2630, %v2634
    %v2637 = vshrl.u32 %v2520, 16
    %v2639 = vrot.slane %v2637, 4
    %v2640 = vshll.u32 %v2520, 16
    %v2642 = vrot.slane %v2640, 5
    %v2643 = vor.u32 %v2639, %v2642
    %v2644 = vrot.slane %v2643, 4
    %v2646 = vshll.u32 %v2521, 16
    %v2648 = vrot.slane %v2646, 5
    %v2649 = vsel %vm122, %v2644, %v2648
    %v2651 = vshrl.u32 %v2522, 16
    %v2653 = vrot.slane %v2651, 4
    %v2654 = vshll.u32 %v2522, 16
    %v2656 = vrot.slane %v2654, 5
    %v2657 = vor.u32 %v2653, %v2656
    %v2658 = vrot.slane %v2657, 4
    %v2660 = vshll.u32 %v2523, 16
    %v2662 = vrot.slane %v2660, 5
    %v2663 = vsel %vm122, %v2658, %v2662
    %v2665 = vshrl.u32 %v2524, 16
    %v2667 = vrot.slane %v2665, 4
    %v2668 = vshll.u32 %v2524, 16
    %v2670 = vrot.slane %v2668, 5
    %v2671 = vor.u32 %v2667, %v2670
    %v2672 = vrot.slane %v2671, 4
    %v2674 = vshll.u32 %v2525, 16
    %v2676 = vrot.slane %v2674, 5
    %v2677 = vsel %vm122, %v2672, %v2676
    %v2679 = vshrl.u32 %v2526, 16
    %v2681 = vrot.slane %v2679, 4
    %v2682 = vshll.u32 %v2526, 16
    %v2684 = vrot.slane %v2682, 5
    %v2685 = vor.u32 %v2681, %v2684
    %v2686 = vrot.slane %v2685, 4
    %v2688 = vshll.u32 %v2527, 16
    %v2690 = vrot.slane %v2688, 5
    %v2691 = vsel %vm122, %v2686, %v2690
    %v2693 = vshrl.u32 %v2528, 16
    %v2695 = vrot.slane %v2693, 4
    %v2696 = vshll.u32 %v2528, 16
    %v2698 = vrot.slane %v2696, 5
    %v2699 = vor.u32 %v2695, %v2698
    %v2700 = vrot.slane %v2699, 4
    %v2702 = vshll.u32 %v2529, 16
    %v2704 = vrot.slane %v2702, 5
    %v2705 = vsel %vm122, %v2700, %v2704
    %v2707 = vshrl.u32 %v2530, 16
    %v2709 = vrot.slane %v2707, 4
    %v2710 = vshll.u32 %v2530, 16
    %v2712 = vrot.slane %v2710, 5
    %v2713 = vor.u32 %v2709, %v2712
    %v2714 = vrot.slane %v2713, 4
    %v2716 = vshll.u32 %v2531, 16
    %v2718 = vrot.slane %v2716, 5
    %v2719 = vsel %vm122, %v2714, %v2718
    %v2721 = vshrl.u32 %v2532, 16
    %v2723 = vrot.slane %v2721, 4
    %v2724 = vshll.u32 %v2532, 16
    %v2726 = vrot.slane %v2724, 5
    %v2727 = vor.u32 %v2723, %v2726
    %v2728 = vrot.slane %v2727, 4
    %v2730 = vshll.u32 %v2533, 16
    %v2732 = vrot.slane %v2730, 5
    %v2733 = vsel %vm122, %v2728, %v2732
    %v2735 = vshrl.u32 %v2534, 16
    %v2737 = vrot.slane %v2735, 4
    %v2738 = vshll.u32 %v2534, 16
    %v2740 = vrot.slane %v2738, 5
    %v2741 = vor.u32 %v2737, %v2740
    %v2742 = vrot.slane %v2741, 4
    %v2744 = vshll.u32 %v2535, 16
    %v2746 = vrot.slane %v2744, 5
    %v2747 = vsel %vm122, %v2742, %v2746
    %v2749 = vshrl.u32 %v2536, 16
    %v2751 = vrot.slane %v2749, 4
    %v2752 = vshll.u32 %v2536, 16
    %v2754 = vrot.slane %v2752, 5
    %v2755 = vor.u32 %v2751, %v2754
    %v2756 = vrot.slane %v2755, 4
    %v2758 = vshll.u32 %v2537, 16
    %v2760 = vrot.slane %v2758, 5
    %v2761 = vsel %vm122, %v2756, %v2760
    %2762 = vrot.lane.b32.xlu0 %v2551, 16
    %v2763 = vpop.permute.xlu0 %2762
    %2764 = vrot.lane.b32.xlu0 %v2565, 16
    %v2765 = vpop.permute.xlu0 %2764
    %2766 = vrot.lane.b32.xlu0 %v2579, 16
    %v2767 = vpop.permute.xlu0 %2766
    %2768 = vrot.lane.b32.xlu0 %v2593, 16
    %v2769 = vpop.permute.xlu0 %2768
    %2770 = vrot.lane.b32.xlu0 %v2607, 16
    %v2771 = vpop.permute.xlu0 %2770
    %2772 = vrot.lane.b32.xlu0 %v2621, 16
    %v2773 = vpop.permute.xlu0 %2772
    %2774 = vrot.lane.b32.xlu0 %v2635, 16
    %v2775 = vpop.permute.xlu0 %2774
    %2776 = vrot.lane.b32.xlu0 %v2649, 16
    %v2777 = vpop.permute.xlu0 %2776
    %2778 = vrot.lane.b32.xlu0 %v2663, 16
    %v2779 = vpop.permute.xlu0 %2778
    %2780 = vrot.lane.b32.xlu0 %v2677, 16
    %v2781 = vpop.permute.xlu0 %2780
    %2782 = vrot.lane.b32.xlu0 %v2691, 16
    %v2783 = vpop.permute.xlu0 %2782
    %2784 = vrot.lane.b32.xlu0 %v2705, 16
    %v2785 = vpop.permute.xlu0 %2784
    %2786 = vrot.lane.b32.xlu0 %v2719, 16
    %v2787 = vpop.permute.xlu0 %2786
    %2788 = vrot.lane.b32.xlu0 %v2733, 16
    %v2789 = vpop.permute.xlu0 %2788
    %2790 = vrot.lane.b32.xlu0 %v2747, 16
    %v2791 = vpop.permute.xlu0 %2790
    %2792 = vrot.lane.b32.xlu0 %v2761, 16
    %v2793 = vpop.permute.xlu0 %2792
    %2810 = vst.msk [vmem:[%s492 + $0x4] sm:$0xf] %vm814, %v2763
    %2811 = vst.msk [vmem:[%s492 + $0xc] sm:$0xf] %vm814, %v2765
    %2812 = vst.msk [vmem:[%s492 + $0x14] sm:$0xf] %vm814, %v2767
    %2813 = vst.msk [vmem:[%s492 + $0x1c] sm:$0xf] %vm814, %v2769
    %2814 = vst.msk [vmem:[%s492 + $0x24] sm:$0xf] %vm814, %v2771
    %2815 = vst.msk [vmem:[%s492 + $0x2c] sm:$0xf] %vm814, %v2773
    %2816 = vst.msk [vmem:[%s492 + $0x34] sm:$0xf] %vm814, %v2775
    %2817 = vst.msk [vmem:[%s492 + $0x3c] sm:$0xf] %vm814, %v2777
    %2818 = vst.msk [vmem:[%s492 + $0x44] sm:$0xf] %vm814, %v2779
    %2819 = vst.msk [vmem:[%s492 + $0x4c] sm:$0xf] %vm814, %v2781
    %2820 = vst.msk [vmem:[%s492 + $0x54] sm:$0xf] %vm814, %v2783
    %2821 = vst.msk [vmem:[%s492 + $0x5c] sm:$0xf] %vm814, %v2785
    %2822 = vst.msk [vmem:[%s492 + $0x64] sm:$0xf] %vm814, %v2787
    %2823 = vst.msk [vmem:[%s492 + $0x6c] sm:$0xf] %vm814, %v2789
    %2824 = vst.msk [vmem:[%s492 + $0x74] sm:$0xf] %vm814, %v2791
    %2825 = vst.msk [vmem:[%s492 + $0x7c] sm:$0xf] %vm814, %v2793
    %v2826 = vld [vmem:[%s2057] sm:$0xe]
    %v2827 = vld [vmem:[%s2057 + $0x4] sm:$0x1]
    %v2828 = vld [vmem:[%s2057 + $0x8] sm:$0xe]
    %v2829 = vld [vmem:[%s2057 + $0xc] sm:$0x1]
    %v2830 = vld [vmem:[%s2057 + $0x10] sm:$0xe]
    %v2831 = vld [vmem:[%s2057 + $0x14] sm:$0x1]
    %v2832 = vld [vmem:[%s2057 + $0x18] sm:$0xe]
    %v2833 = vld [vmem:[%s2057 + $0x1c] sm:$0x1]
    %v2834 = vld [vmem:[%s2057 + $0x20] sm:$0xe]
    %v2835 = vld [vmem:[%s2057 + $0x24] sm:$0x1]
    %v2836 = vld [vmem:[%s2057 + $0x28] sm:$0xe]
    %v2837 = vld [vmem:[%s2057 + $0x2c] sm:$0x1]
    %v2838 = vld [vmem:[%s2057 + $0x30] sm:$0xe]
    %v2839 = vld [vmem:[%s2057 + $0x34] sm:$0x1]
    %v2840 = vld [vmem:[%s2057 + $0x38] sm:$0xe]
    %v2841 = vld [vmem:[%s2057 + $0x3c] sm:$0x1]
    %v2842 = vld [vmem:[%s2057 + $0x40] sm:$0xe]
    %v2843 = vld [vmem:[%s2057 + $0x44] sm:$0x1]
    %v2844 = vld [vmem:[%s2057 + $0x48] sm:$0xe]
    %v2845 = vld [vmem:[%s2057 + $0x4c] sm:$0x1]
    %v2846 = vld [vmem:[%s2057 + $0x50] sm:$0xe]
    %v2847 = vld [vmem:[%s2057 + $0x54] sm:$0x1]
    %v2848 = vld [vmem:[%s2057 + $0x58] sm:$0xe]
    %v2849 = vld [vmem:[%s2057 + $0x5c] sm:$0x1]
    %v2850 = vld [vmem:[%s2057 + $0x60] sm:$0xe]
    %v2851 = vld [vmem:[%s2057 + $0x64] sm:$0x1]
    %v2852 = vld [vmem:[%s2057 + $0x68] sm:$0xe]
    %v2853 = vld [vmem:[%s2057 + $0x6c] sm:$0x1]
    %v2854 = vld [vmem:[%s2057 + $0x70] sm:$0xe]
    %v2855 = vld [vmem:[%s2057 + $0x74] sm:$0x1]
    %v2856 = vld [vmem:[%s2057 + $0x78] sm:$0xe]
    %v2857 = vld [vmem:[%s2057 + $0x7c] sm:$0x1]
    %v2890 = vrot.slane %v2826, 5
    %v2891 = vrot.slane %v2890, 4
    %v2892 = vrot.slane %v2827, 5
    %v2893 = vsel %vm897, %v2891, %v2892
    %v2894 = vrot.slane %v2828, 5
    %v2895 = vrot.slane %v2894, 4
    %v2896 = vrot.slane %v2829, 5
    %v2897 = vsel %vm897, %v2895, %v2896
    %v2898 = vrot.slane %v2830, 5
    %v2899 = vrot.slane %v2898, 4
    %v2900 = vrot.slane %v2831, 5
    %v2901 = vsel %vm897, %v2899, %v2900
    %v2902 = vrot.slane %v2832, 5
    %v2903 = vrot.slane %v2902, 4
    %v2904 = vrot.slane %v2833, 5
    %v2905 = vsel %vm897, %v2903, %v2904
    %v2906 = vrot.slane %v2834, 5
    %v2907 = vrot.slane %v2906, 4
    %v2908 = vrot.slane %v2835, 5
    %v2909 = vsel %vm897, %v2907, %v2908
    %v2910 = vrot.slane %v2836, 5
    %v2911 = vrot.slane %v2910, 4
    %v2912 = vrot.slane %v2837, 5
    %v2913 = vsel %vm897, %v2911, %v2912
    %v2914 = vrot.slane %v2838, 5
    %v2915 = vrot.slane %v2914, 4
    %v2916 = vrot.slane %v2839, 5
    %v2917 = vsel %vm897, %v2915, %v2916
    %v2918 = vrot.slane %v2840, 5
    %v2919 = vrot.slane %v2918, 4
    %v2920 = vrot.slane %v2841, 5
    %v2921 = vsel %vm897, %v2919, %v2920
    %v2922 = vrot.slane %v2842, 5
    %v2923 = vrot.slane %v2922, 4
    %v2924 = vrot.slane %v2843, 5
    %v2925 = vsel %vm897, %v2923, %v2924
    %v2926 = vrot.slane %v2844, 5
    %v2927 = vrot.slane %v2926, 4
    %v2928 = vrot.slane %v2845, 5
    %v2929 = vsel %vm897, %v2927, %v2928
    %v2930 = vrot.slane %v2846, 5
    %v2931 = vrot.slane %v2930, 4
    %v2932 = vrot.slane %v2847, 5
    %v2933 = vsel %vm897, %v2931, %v2932
    %v2934 = vrot.slane %v2848, 5
    %v2935 = vrot.slane %v2934, 4
    %v2936 = vrot.slane %v2849, 5
    %v2937 = vsel %vm897, %v2935, %v2936
    %v2938 = vrot.slane %v2850, 5
    %v2939 = vrot.slane %v2938, 4
    %v2940 = vrot.slane %v2851, 5
    %v2941 = vsel %vm897, %v2939, %v2940
    %v2942 = vrot.slane %v2852, 5
    %v2943 = vrot.slane %v2942, 4
    %v2944 = vrot.slane %v2853, 5
    %v2945 = vsel %vm897, %v2943, %v2944
    %v2946 = vrot.slane %v2854, 5
    %v2947 = vrot.slane %v2946, 4
    %v2948 = vrot.slane %v2855, 5
    %v2949 = vsel %vm897, %v2947, %v2948
    %v2950 = vrot.slane %v2856, 5
    %v2951 = vrot.slane %v2950, 4
    %v2952 = vrot.slane %v2857, 5
    %v2953 = vsel %vm897, %v2951, %v2952
    %2954 = vrot.lane.b32.xlu0 %v2893, 48
    %v2955 = vpop.permute.xlu0 %2954
    %2956 = vrot.lane.b32.xlu0 %v2897, 48
    %v2957 = vpop.permute.xlu0 %2956
    %2958 = vrot.lane.b32.xlu0 %v2901, 48
    %v2959 = vpop.permute.xlu0 %2958
    %2960 = vrot.lane.b32.xlu0 %v2905, 48
    %v2961 = vpop.permute.xlu0 %2960
    %2962 = vrot.lane.b32.xlu0 %v2909, 48
    %v2963 = vpop.permute.xlu0 %2962
    %2964 = vrot.lane.b32.xlu0 %v2913, 48
    %v2965 = vpop.permute.xlu0 %2964
    %2966 = vrot.lane.b32.xlu0 %v2917, 48
    %v2967 = vpop.permute.xlu0 %2966
    %2968 = vrot.lane.b32.xlu0 %v2921, 48
    %v2969 = vpop.permute.xlu0 %2968
    %2970 = vrot.lane.b32.xlu0 %v2925, 48
    %v2971 = vpop.permute.xlu0 %2970
    %2972 = vrot.lane.b32.xlu0 %v2929, 48
    %v2973 = vpop.permute.xlu0 %2972
    %2974 = vrot.lane.b32.xlu0 %v2933, 48
    %v2975 = vpop.permute.xlu0 %2974
    %2976 = vrot.lane.b32.xlu0 %v2937, 48
    %v2977 = vpop.permute.xlu0 %2976
    %2978 = vrot.lane.b32.xlu0 %v2941, 48
    %v2979 = vpop.permute.xlu0 %2978
    %2980 = vrot.lane.b32.xlu0 %v2945, 48
    %v2981 = vpop.permute.xlu0 %2980
    %2982 = vrot.lane.b32.xlu0 %v2949, 48
    %v2983 = vpop.permute.xlu0 %2982
    %2984 = vrot.lane.b32.xlu0 %v2953, 48
    %v2985 = vpop.permute.xlu0 %2984
    %3002 = vst.msk [vmem:[%s492 + $0x4] sm:$0xf] %vm1010, %v2955
    %3003 = vst.msk [vmem:[%s492 + $0xc] sm:$0xf] %vm1010, %v2957
    %3004 = vst.msk [vmem:[%s492 + $0x14] sm:$0xf] %vm1010, %v2959
    %3005 = vst.msk [vmem:[%s492 + $0x1c] sm:$0xf] %vm1010, %v2961
    %3006 = vst.msk [vmem:[%s492 + $0x24] sm:$0xf] %vm1010, %v2963
    %3007 = vst.msk [vmem:[%s492 + $0x2c] sm:$0xf] %vm1010, %v2965
    %3008 = vst.msk [vmem:[%s492 + $0x34] sm:$0xf] %vm1010, %v2967
    %3009 = vst.msk [vmem:[%s492 + $0x3c] sm:$0xf] %vm1010, %v2969
    %3010 = vst.msk [vmem:[%s492 + $0x44] sm:$0xf] %vm1010, %v2971
    %3011 = vst.msk [vmem:[%s492 + $0x4c] sm:$0xf] %vm1010, %v2973
    %3012 = vst.msk [vmem:[%s492 + $0x54] sm:$0xf] %vm1010, %v2975
    %3013 = vst.msk [vmem:[%s492 + $0x5c] sm:$0xf] %vm1010, %v2977
    %3014 = vst.msk [vmem:[%s492 + $0x64] sm:$0xf] %vm1010, %v2979
    %3015 = vst.msk [vmem:[%s492 + $0x6c] sm:$0xf] %vm1010, %v2981
    %3016 = vst.msk [vmem:[%s492 + $0x74] sm:$0xf] %vm1010, %v2983
    %3017 = vst.msk [vmem:[%s492 + $0x7c] sm:$0xf] %vm1010, %v2985
    %s3018 = scalar_lea.vmem [#allocation3], 24
    %v3019 = vld [vmem:[%s3018] sm:$0xf]
    %v3020 = vld [vmem:[%s3018 + $0x8] sm:$0xf]
    %v3021 = vld [vmem:[%s3018 + $0x10] sm:$0xf]
    %v3022 = vld [vmem:[%s3018 + $0x18] sm:$0xf]
    %v3023 = vld [vmem:[%s3018 + $0x20] sm:$0xf]
    %v3024 = vld [vmem:[%s3018 + $0x28] sm:$0xf]
    %v3025 = vld [vmem:[%s3018 + $0x30] sm:$0xf]
    %v3026 = vld [vmem:[%s3018 + $0x38] sm:$0xf]
    %v3027 = vld [vmem:[%s3018 + $0x40] sm:$0xf]
    %v3028 = vld [vmem:[%s3018 + $0x48] sm:$0xf]
    %v3029 = vld [vmem:[%s3018 + $0x50] sm:$0xf]
    %v3030 = vld [vmem:[%s3018 + $0x58] sm:$0xf]
    %v3031 = vld [vmem:[%s3018 + $0x60] sm:$0xf]
    %v3032 = vld [vmem:[%s3018 + $0x68] sm:$0xf]
    %v3033 = vld [vmem:[%s3018 + $0x70] sm:$0xf]
    %v3034 = vld [vmem:[%s3018 + $0x78] sm:$0xf]
    %3051 = vrot.lane.b32.xlu0 %v3019, 64
    %v3052 = vpop.permute.xlu0 %3051
    %3053 = vrot.lane.b32.xlu0 %v3020, 64
    %v3054 = vpop.permute.xlu0 %3053
    %3055 = vrot.lane.b32.xlu0 %v3021, 64
    %v3056 = vpop.permute.xlu0 %3055
    %3057 = vrot.lane.b32.xlu0 %v3022, 64
    %v3058 = vpop.permute.xlu0 %3057
    %3059 = vrot.lane.b32.xlu0 %v3023, 64
    %v3060 = vpop.permute.xlu0 %3059
    %3061 = vrot.lane.b32.xlu0 %v3024, 64
    %v3062 = vpop.permute.xlu0 %3061
    %3063 = vrot.lane.b32.xlu0 %v3025, 64
    %v3064 = vpop.permute.xlu0 %3063
    %3065 = vrot.lane.b32.xlu0 %v3026, 64
    %v3066 = vpop.permute.xlu0 %3065
    %3067 = vrot.lane.b32.xlu0 %v3027, 64
    %v3068 = vpop.permute.xlu0 %3067
    %3069 = vrot.lane.b32.xlu0 %v3028, 64
    %v3070 = vpop.permute.xlu0 %3069
    %3071 = vrot.lane.b32.xlu0 %v3029, 64
    %v3072 = vpop.permute.xlu0 %3071
    %3073 = vrot.lane.b32.xlu0 %v3030, 64
    %v3074 = vpop.permute.xlu0 %3073
    %3075 = vrot.lane.b32.xlu0 %v3031, 64
    %v3076 = vpop.permute.xlu0 %3075
    %3077 = vrot.lane.b32.xlu0 %v3032, 64
    %v3078 = vpop.permute.xlu0 %3077
    %3079 = vrot.lane.b32.xlu0 %v3033, 64
    %v3080 = vpop.permute.xlu0 %3079
    %3081 = vrot.lane.b32.xlu0 %v3034, 64
    %v3082 = vpop.permute.xlu0 %3081
    %3099 = vst.msk [vmem:[#allocation2 + $0x4] sm:$0xf] %vm1108, %v3052
    %3100 = vst.msk [vmem:[#allocation2 + $0xc] sm:$0xf] %vm1108, %v3054
    %3101 = vst.msk [vmem:[#allocation2 + $0x14] sm:$0xf] %vm1108, %v3056
    %3102 = vst.msk [vmem:[#allocation2 + $0x1c] sm:$0xf] %vm1108, %v3058
    %3103 = vst.msk [vmem:[#allocation2 + $0x24] sm:$0xf] %vm1108, %v3060
    %3104 = vst.msk [vmem:[#allocation2 + $0x2c] sm:$0xf] %vm1108, %v3062
    %3105 = vst.msk [vmem:[#allocation2 + $0x34] sm:$0xf] %vm1108, %v3064
    %3106 = vst.msk [vmem:[#allocation2 + $0x3c] sm:$0xf] %vm1108, %v3066
    %3107 = vst.msk [vmem:[#allocation2 + $0x44] sm:$0xf] %vm1108, %v3068
    %3108 = vst.msk [vmem:[#allocation2 + $0x4c] sm:$0xf] %vm1108, %v3070
    %3109 = vst.msk [vmem:[#allocation2 + $0x54] sm:$0xf] %vm1108, %v3072
    %3110 = vst.msk [vmem:[#allocation2 + $0x5c] sm:$0xf] %vm1108, %v3074
    %3111 = vst.msk [vmem:[#allocation2 + $0x64] sm:$0xf] %vm1108, %v3076
    %3112 = vst.msk [vmem:[#allocation2 + $0x6c] sm:$0xf] %vm1108, %v3078
    %3113 = vst.msk [vmem:[#allocation2 + $0x74] sm:$0xf] %vm1108, %v3080
    %3114 = vst.msk [vmem:[#allocation2 + $0x7c] sm:$0xf] %vm1108, %v3082
    %v3115 = vld [vmem:[%s3018] sm:$0xf]
    %v3116 = vld [vmem:[%s3018 + $0x4] sm:$0x1]
    %v3117 = vld [vmem:[%s3018 + $0x8] sm:$0xf]
    %v3118 = vld [vmem:[%s3018 + $0xc] sm:$0x1]
    %v3119 = vld [vmem:[%s3018 + $0x10] sm:$0xf]
    %v3120 = vld [vmem:[%s3018 + $0x14] sm:$0x1]
    %v3121 = vld [vmem:[%s3018 + $0x18] sm:$0xf]
    %v3122 = vld [vmem:[%s3018 + $0x1c] sm:$0x1]
    %v3123 = vld [vmem:[%s3018 + $0x20] sm:$0xf]
    %v3124 = vld [vmem:[%s3018 + $0x24] sm:$0x1]
    %v3125 = vld [vmem:[%s3018 + $0x28] sm:$0xf]
    %v3126 = vld [vmem:[%s3018 + $0x2c] sm:$0x1]
    %v3127 = vld [vmem:[%s3018 + $0x30] sm:$0xf]
    %v3128 = vld [vmem:[%s3018 + $0x34] sm:$0x1]
    %v3129 = vld [vmem:[%s3018 + $0x38] sm:$0xf]
    %v3130 = vld [vmem:[%s3018 + $0x3c] sm:$0x1]
    %v3131 = vld [vmem:[%s3018 + $0x40] sm:$0xf]
    %v3132 = vld [vmem:[%s3018 + $0x44] sm:$0x1]
    %v3133 = vld [vmem:[%s3018 + $0x48] sm:$0xf]
    %v3134 = vld [vmem:[%s3018 + $0x4c] sm:$0x1]
    %v3135 = vld [vmem:[%s3018 + $0x50] sm:$0xf]
    %v3136 = vld [vmem:[%s3018 + $0x54] sm:$0x1]
    %v3137 = vld [vmem:[%s3018 + $0x58] sm:$0xf]
    %v3138 = vld [vmem:[%s3018 + $0x5c] sm:$0x1]
    %v3139 = vld [vmem:[%s3018 + $0x60] sm:$0xf]
    %v3140 = vld [vmem:[%s3018 + $0x64] sm:$0x1]
    %v3141 = vld [vmem:[%s3018 + $0x68] sm:$0xf]
    %v3142 = vld [vmem:[%s3018 + $0x6c] sm:$0x1]
    %v3143 = vld [vmem:[%s3018 + $0x70] sm:$0xf]
    %v3144 = vld [vmem:[%s3018 + $0x74] sm:$0x1]
    %v3145 = vld [vmem:[%s3018 + $0x78] sm:$0xf]
    %v3146 = vld [vmem:[%s3018 + $0x7c] sm:$0x1]
    %v3148 = vshrl.u32 %v3115, 16
    %v3150 = vrot.slane %v3148, 4
    %v3151 = vshll.u32 %v3115, 16
    %v3153 = vrot.slane %v3151, 5
    %v3154 = vor.u32 %v3150, %v3153
    %v3155 = vrot.slane %v3154, 4
    %v3157 = vshll.u32 %v3116, 16
    %v3159 = vrot.slane %v3157, 5
    %v3160 = vsel %vm122, %v3155, %v3159
    %v3162 = vshrl.u32 %v3117, 16
    %v3164 = vrot.slane %v3162, 4
    %v3165 = vshll.u32 %v3117, 16
    %v3167 = vrot.slane %v3165, 5
    %v3168 = vor.u32 %v3164, %v3167
    %v3169 = vrot.slane %v3168, 4
    %v3171 = vshll.u32 %v3118, 16
    %v3173 = vrot.slane %v3171, 5
    %v3174 = vsel %vm122, %v3169, %v3173
    %v3176 = vshrl.u32 %v3119, 16
    %v3178 = vrot.slane %v3176, 4
    %v3179 = vshll.u32 %v3119, 16
    %v3181 = vrot.slane %v3179, 5
    %v3182 = vor.u32 %v3178, %v3181
    %v3183 = vrot.slane %v3182, 4
    %v3185 = vshll.u32 %v3120, 16
    %v3187 = vrot.slane %v3185, 5
    %v3188 = vsel %vm122, %v3183, %v3187
    %v3190 = vshrl.u32 %v3121, 16
    %v3192 = vrot.slane %v3190, 4
    %v3193 = vshll.u32 %v3121, 16
    %v3195 = vrot.slane %v3193, 5
    %v3196 = vor.u32 %v3192, %v3195
    %v3197 = vrot.slane %v3196, 4
    %v3199 = vshll.u32 %v3122, 16
    %v3201 = vrot.slane %v3199, 5
    %v3202 = vsel %vm122, %v3197, %v3201
    %v3204 = vshrl.u32 %v3123, 16
    %v3206 = vrot.slane %v3204, 4
    %v3207 = vshll.u32 %v3123, 16
    %v3209 = vrot.slane %v3207, 5
    %v3210 = vor.u32 %v3206, %v3209
    %v3211 = vrot.slane %v3210, 4
    %v3213 = vshll.u32 %v3124, 16
    %v3215 = vrot.slane %v3213, 5
    %v3216 = vsel %vm122, %v3211, %v3215
    %v3218 = vshrl.u32 %v3125, 16
    %v3220 = vrot.slane %v3218, 4
    %v3221 = vshll.u32 %v3125, 16
    %v3223 = vrot.slane %v3221, 5
    %v3224 = vor.u32 %v3220, %v3223
    %v3225 = vrot.slane %v3224, 4
    %v3227 = vshll.u32 %v3126, 16
    %v3229 = vrot.slane %v3227, 5
    %v3230 = vsel %vm122, %v3225, %v3229
    %v3232 = vshrl.u32 %v3127, 16
    %v3234 = vrot.slane %v3232, 4
    %v3235 = vshll.u32 %v3127, 16
    %v3237 = vrot.slane %v3235, 5
    %v3238 = vor.u32 %v3234, %v3237
    %v3239 = vrot.slane %v3238, 4
    %v3241 = vshll.u32 %v3128, 16
    %v3243 = vrot.slane %v3241, 5
    %v3244 = vsel %vm122, %v3239, %v3243
    %v3246 = vshrl.u32 %v3129, 16
    %v3248 = vrot.slane %v3246, 4
    %v3249 = vshll.u32 %v3129, 16
    %v3251 = vrot.slane %v3249, 5
    %v3252 = vor.u32 %v3248, %v3251
    %v3253 = vrot.slane %v3252, 4
    %v3255 = vshll.u32 %v3130, 16
    %v3257 = vrot.slane %v3255, 5
    %v3258 = vsel %vm122, %v3253, %v3257
    %v3260 = vshrl.u32 %v3131, 16
    %v3262 = vrot.slane %v3260, 4
    %v3263 = vshll.u32 %v3131, 16
    %v3265 = vrot.slane %v3263, 5
    %v3266 = vor.u32 %v3262, %v3265
    %v3267 = vrot.slane %v3266, 4
    %v3269 = vshll.u32 %v3132, 16
    %v3271 = vrot.slane %v3269, 5
    %v3272 = vsel %vm122, %v3267, %v3271
    %v3274 = vshrl.u32 %v3133, 16
    %v3276 = vrot.slane %v3274, 4
    %v3277 = vshll.u32 %v3133, 16
    %v3279 = vrot.slane %v3277, 5
    %v3280 = vor.u32 %v3276, %v3279
    %v3281 = vrot.slane %v3280, 4
    %v3283 = vshll.u32 %v3134, 16
    %v3285 = vrot.slane %v3283, 5
    %v3286 = vsel %vm122, %v3281, %v3285
    %v3288 = vshrl.u32 %v3135, 16
    %v3290 = vrot.slane %v3288, 4
    %v3291 = vshll.u32 %v3135, 16
    %v3293 = vrot.slane %v3291, 5
    %v3294 = vor.u32 %v3290, %v3293
    %v3295 = vrot.slane %v3294, 4
    %v3297 = vshll.u32 %v3136, 16
    %v3299 = vrot.slane %v3297, 5
    %v3300 = vsel %vm122, %v3295, %v3299
    %v3302 = vshrl.u32 %v3137, 16
    %v3304 = vrot.slane %v3302, 4
    %v3305 = vshll.u32 %v3137, 16
    %v3307 = vrot.slane %v3305, 5
    %v3308 = vor.u32 %v3304, %v3307
    %v3309 = vrot.slane %v3308, 4
    %v3311 = vshll.u32 %v3138, 16
    %v3313 = vrot.slane %v3311, 5
    %v3314 = vsel %vm122, %v3309, %v3313
    %v3316 = vshrl.u32 %v3139, 16
    %v3318 = vrot.slane %v3316, 4
    %v3319 = vshll.u32 %v3139, 16
    %v3321 = vrot.slane %v3319, 5
    %v3322 = vor.u32 %v3318, %v3321
    %v3323 = vrot.slane %v3322, 4
    %v3325 = vshll.u32 %v3140, 16
    %v3327 = vrot.slane %v3325, 5
    %v3328 = vsel %vm122, %v3323, %v3327
    %v3330 = vshrl.u32 %v3141, 16
    %v3332 = vrot.slane %v3330, 4
    %v3333 = vshll.u32 %v3141, 16
    %v3335 = vrot.slane %v3333, 5
    %v3336 = vor.u32 %v3332, %v3335
    %v3337 = vrot.slane %v3336, 4
    %v3339 = vshll.u32 %v3142, 16
    %v3341 = vrot.slane %v3339, 5
    %v3342 = vsel %vm122, %v3337, %v3341
    %v3344 = vshrl.u32 %v3143, 16
    %v3346 = vrot.slane %v3344, 4
    %v3347 = vshll.u32 %v3143, 16
    %v3349 = vrot.slane %v3347, 5
    %v3350 = vor.u32 %v3346, %v3349
    %v3351 = vrot.slane %v3350, 4
    %v3353 = vshll.u32 %v3144, 16
    %v3355 = vrot.slane %v3353, 5
    %v3356 = vsel %vm122, %v3351, %v3355
    %v3358 = vshrl.u32 %v3145, 16
    %v3360 = vrot.slane %v3358, 4
    %v3361 = vshll.u32 %v3145, 16
    %v3363 = vrot.slane %v3361, 5
    %v3364 = vor.u32 %v3360, %v3363
    %v3365 = vrot.slane %v3364, 4
    %v3367 = vshll.u32 %v3146, 16
    %v3369 = vrot.slane %v3367, 5
    %v3370 = vsel %vm122, %v3365, %v3369
    %3371 = vrot.lane.b32.xlu0 %v3160, 96
    %v3372 = vpop.permute.xlu0 %3371
    %3373 = vrot.lane.b32.xlu0 %v3174, 96
    %v3374 = vpop.permute.xlu0 %3373
    %3375 = vrot.lane.b32.xlu0 %v3188, 96
    %v3376 = vpop.permute.xlu0 %3375
    %3377 = vrot.lane.b32.xlu0 %v3202, 96
    %v3378 = vpop.permute.xlu0 %3377
    %3379 = vrot.lane.b32.xlu0 %v3216, 96
    %v3380 = vpop.permute.xlu0 %3379
    %3381 = vrot.lane.b32.xlu0 %v3230, 96
    %v3382 = vpop.permute.xlu0 %3381
    %3383 = vrot.lane.b32.xlu0 %v3244, 96
    %v3384 = vpop.permute.xlu0 %3383
    %3385 = vrot.lane.b32.xlu0 %v3258, 96
    %v3386 = vpop.permute.xlu0 %3385
    %3387 = vrot.lane.b32.xlu0 %v3272, 96
    %v3388 = vpop.permute.xlu0 %3387
    %3389 = vrot.lane.b32.xlu0 %v3286, 96
    %v3390 = vpop.permute.xlu0 %3389
    %3391 = vrot.lane.b32.xlu0 %v3300, 96
    %v3392 = vpop.permute.xlu0 %3391
    %3393 = vrot.lane.b32.xlu0 %v3314, 96
    %v3394 = vpop.permute.xlu0 %3393
    %3395 = vrot.lane.b32.xlu0 %v3328, 96
    %v3396 = vpop.permute.xlu0 %3395
    %3397 = vrot.lane.b32.xlu0 %v3342, 96
    %v3398 = vpop.permute.xlu0 %3397
    %3399 = vrot.lane.b32.xlu0 %v3356, 96
    %v3400 = vpop.permute.xlu0 %3399
    %3401 = vrot.lane.b32.xlu0 %v3370, 96
    %v3402 = vpop.permute.xlu0 %3401
    %3419 = vst.msk [vmem:[#allocation2 + $0x4] sm:$0xf] %vm1429, %v3372
    %3420 = vst.msk [vmem:[#allocation2 + $0xc] sm:$0xf] %vm1429, %v3374
    %3421 = vst.msk [vmem:[#allocation2 + $0x14] sm:$0xf] %vm1429, %v3376
    %3422 = vst.msk [vmem:[#allocation2 + $0x1c] sm:$0xf] %vm1429, %v3378
    %3423 = vst.msk [vmem:[#allocation2 + $0x24] sm:$0xf] %vm1429, %v3380
    %3424 = vst.msk [vmem:[#allocation2 + $0x2c] sm:$0xf] %vm1429, %v3382
    %3425 = vst.msk [vmem:[#allocation2 + $0x34] sm:$0xf] %vm1429, %v3384
    %3426 = vst.msk [vmem:[#allocation2 + $0x3c] sm:$0xf] %vm1429, %v3386
    %3427 = vst.msk [vmem:[#allocation2 + $0x44] sm:$0xf] %vm1429, %v3388
    %3428 = vst.msk [vmem:[#allocation2 + $0x4c] sm:$0xf] %vm1429, %v3390
    %3429 = vst.msk [vmem:[#allocation2 + $0x54] sm:$0xf] %vm1429, %v3392
    %3430 = vst.msk [vmem:[#allocation2 + $0x5c] sm:$0xf] %vm1429, %v3394
    %3431 = vst.msk [vmem:[#allocation2 + $0x64] sm:$0xf] %vm1429, %v3396
    %3432 = vst.msk [vmem:[#allocation2 + $0x6c] sm:$0xf] %vm1429, %v3398
    %3433 = vst.msk [vmem:[#allocation2 + $0x74] sm:$0xf] %vm1429, %v3400
    %3434 = vst.msk [vmem:[#allocation2 + $0x7c] sm:$0xf] %vm1429, %v3402
    %v3435 = vld [vmem:[%s3018] sm:$0xf]
    %v3436 = vld [vmem:[%s3018 + $0x8] sm:$0xf]
    %v3437 = vld [vmem:[%s3018 + $0x10] sm:$0xf]
    %v3438 = vld [vmem:[%s3018 + $0x18] sm:$0xf]
    %v3439 = vld [vmem:[%s3018 + $0x20] sm:$0xf]
    %v3440 = vld [vmem:[%s3018 + $0x28] sm:$0xf]
    %v3441 = vld [vmem:[%s3018 + $0x30] sm:$0xf]
    %v3442 = vld [vmem:[%s3018 + $0x38] sm:$0xf]
    %v3443 = vld [vmem:[%s3018 + $0x40] sm:$0xf]
    %v3444 = vld [vmem:[%s3018 + $0x48] sm:$0xf]
    %v3445 = vld [vmem:[%s3018 + $0x50] sm:$0xf]
    %v3446 = vld [vmem:[%s3018 + $0x58] sm:$0xf]
    %v3447 = vld [vmem:[%s3018 + $0x60] sm:$0xf]
    %v3448 = vld [vmem:[%s3018 + $0x68] sm:$0xf]
    %v3449 = vld [vmem:[%s3018 + $0x70] sm:$0xf]
    %v3450 = vld [vmem:[%s3018 + $0x78] sm:$0xf]
    %3467 = vrot.lane.b32.xlu0 %v3435, 48
    %v3468 = vpop.permute.xlu0 %3467
    %3469 = vrot.lane.b32.xlu0 %v3436, 48
    %v3470 = vpop.permute.xlu0 %3469
    %3471 = vrot.lane.b32.xlu0 %v3437, 48
    %v3472 = vpop.permute.xlu0 %3471
    %3473 = vrot.lane.b32.xlu0 %v3438, 48
    %v3474 = vpop.permute.xlu0 %3473
    %3475 = vrot.lane.b32.xlu0 %v3439, 48
    %v3476 = vpop.permute.xlu0 %3475
    %3477 = vrot.lane.b32.xlu0 %v3440, 48
    %v3478 = vpop.permute.xlu0 %3477
    %3479 = vrot.lane.b32.xlu0 %v3441, 48
    %v3480 = vpop.permute.xlu0 %3479
    %3481 = vrot.lane.b32.xlu0 %v3442, 48
    %v3482 = vpop.permute.xlu0 %3481
    %3483 = vrot.lane.b32.xlu0 %v3443, 48
    %v3484 = vpop.permute.xlu0 %3483
    %3485 = vrot.lane.b32.xlu0 %v3444, 48
    %v3486 = vpop.permute.xlu0 %3485
    %3487 = vrot.lane.b32.xlu0 %v3445, 48
    %v3488 = vpop.permute.xlu0 %3487
    %3489 = vrot.lane.b32.xlu0 %v3446, 48
    %v3490 = vpop.permute.xlu0 %3489
    %3491 = vrot.lane.b32.xlu0 %v3447, 48
    %v3492 = vpop.permute.xlu0 %3491
    %3493 = vrot.lane.b32.xlu0 %v3448, 48
    %v3494 = vpop.permute.xlu0 %3493
    %3495 = vrot.lane.b32.xlu0 %v3449, 48
    %v3496 = vpop.permute.xlu0 %3495
    %3497 = vrot.lane.b32.xlu0 %v3450, 48
    %v3498 = vpop.permute.xlu0 %3497
    %3515 = vst.msk [vmem:[%s492 + $0x4] sm:$0xf] %vm1526, %v3468
    %3516 = vst.msk [vmem:[%s492 + $0xc] sm:$0xf] %vm1526, %v3470
    %3517 = vst.msk [vmem:[%s492 + $0x14] sm:$0xf] %vm1526, %v3472
    %3518 = vst.msk [vmem:[%s492 + $0x1c] sm:$0xf] %vm1526, %v3474
    %3519 = vst.msk [vmem:[%s492 + $0x24] sm:$0xf] %vm1526, %v3476
    %3520 = vst.msk [vmem:[%s492 + $0x2c] sm:$0xf] %vm1526, %v3478
    %3521 = vst.msk [vmem:[%s492 + $0x34] sm:$0xf] %vm1526, %v3480
    %3522 = vst.msk [vmem:[%s492 + $0x3c] sm:$0xf] %vm1526, %v3482
    %3523 = vst.msk [vmem:[%s492 + $0x44] sm:$0xf] %vm1526, %v3484
    %3524 = vst.msk [vmem:[%s492 + $0x4c] sm:$0xf] %vm1526, %v3486
    %3525 = vst.msk [vmem:[%s492 + $0x54] sm:$0xf] %vm1526, %v3488
    %3526 = vst.msk [vmem:[%s492 + $0x5c] sm:$0xf] %vm1526, %v3490
    %3527 = vst.msk [vmem:[%s492 + $0x64] sm:$0xf] %vm1526, %v3492
    %3528 = vst.msk [vmem:[%s492 + $0x6c] sm:$0xf] %vm1526, %v3494
    %3529 = vst.msk [vmem:[%s492 + $0x74] sm:$0xf] %vm1526, %v3496
    %3530 = vst.msk [vmem:[%s492 + $0x7c] sm:$0xf] %vm1526, %v3498
    %v3531 = vld [vmem:[%s3018] sm:$0xf]
    %v3532 = vld [vmem:[%s3018 + $0x4] sm:$0x1]
    %v3533 = vld [vmem:[%s3018 + $0x8] sm:$0xf]
    %v3534 = vld [vmem:[%s3018 + $0xc] sm:$0x1]
    %v3535 = vld [vmem:[%s3018 + $0x10] sm:$0xf]
    %v3536 = vld [vmem:[%s3018 + $0x14] sm:$0x1]
    %v3537 = vld [vmem:[%s3018 + $0x18] sm:$0xf]
    %v3538 = vld [vmem:[%s3018 + $0x1c] sm:$0x1]
    %v3539 = vld [vmem:[%s3018 + $0x20] sm:$0xf]
    %v3540 = vld [vmem:[%s3018 + $0x24] sm:$0x1]
    %v3541 = vld [vmem:[%s3018 + $0x28] sm:$0xf]
    %v3542 = vld [vmem:[%s3018 + $0x2c] sm:$0x1]
    %v3543 = vld [vmem:[%s3018 + $0x30] sm:$0xf]
    %v3544 = vld [vmem:[%s3018 + $0x34] sm:$0x1]
    %v3545 = vld [vmem:[%s3018 + $0x38] sm:$0xf]
    %v3546 = vld [vmem:[%s3018 + $0x3c] sm:$0x1]
    %v3547 = vld [vmem:[%s3018 + $0x40] sm:$0xf]
    %v3548 = vld [vmem:[%s3018 + $0x44] sm:$0x1]
    %v3549 = vld [vmem:[%s3018 + $0x48] sm:$0xf]
    %v3550 = vld [vmem:[%s3018 + $0x4c] sm:$0x1]
    %v3551 = vld [vmem:[%s3018 + $0x50] sm:$0xf]
    %v3552 = vld [vmem:[%s3018 + $0x54] sm:$0x1]
    %v3553 = vld [vmem:[%s3018 + $0x58] sm:$0xf]
    %v3554 = vld [vmem:[%s3018 + $0x5c] sm:$0x1]
    %v3555 = vld [vmem:[%s3018 + $0x60] sm:$0xf]
    %v3556 = vld [vmem:[%s3018 + $0x64] sm:$0x1]
    %v3557 = vld [vmem:[%s3018 + $0x68] sm:$0xf]
    %v3558 = vld [vmem:[%s3018 + $0x6c] sm:$0x1]
    %v3559 = vld [vmem:[%s3018 + $0x70] sm:$0xf]
    %v3560 = vld [vmem:[%s3018 + $0x74] sm:$0x1]
    %v3561 = vld [vmem:[%s3018 + $0x78] sm:$0xf]
    %v3562 = vld [vmem:[%s3018 + $0x7c] sm:$0x1]
    %v3564 = vshrl.u32 %v3531, 16
    %v3566 = vrot.slane %v3564, 4
    %v3567 = vshll.u32 %v3531, 16
    %v3569 = vrot.slane %v3567, 5
    %v3570 = vor.u32 %v3566, %v3569
    %v3571 = vrot.slane %v3570, 4
    %v3573 = vshll.u32 %v3532, 16
    %v3575 = vrot.slane %v3573, 5
    %v3576 = vsel %vm122, %v3571, %v3575
    %v3578 = vshrl.u32 %v3533, 16
    %v3580 = vrot.slane %v3578, 4
    %v3581 = vshll.u32 %v3533, 16
    %v3583 = vrot.slane %v3581, 5
    %v3584 = vor.u32 %v3580, %v3583
    %v3585 = vrot.slane %v3584, 4
    %v3587 = vshll.u32 %v3534, 16
    %v3589 = vrot.slane %v3587, 5
    %v3590 = vsel %vm122, %v3585, %v3589
    %v3592 = vshrl.u32 %v3535, 16
    %v3594 = vrot.slane %v3592, 4
    %v3595 = vshll.u32 %v3535, 16
    %v3597 = vrot.slane %v3595, 5
    %v3598 = vor.u32 %v3594, %v3597
    %v3599 = vrot.slane %v3598, 4
    %v3601 = vshll.u32 %v3536, 16
    %v3603 = vrot.slane %v3601, 5
    %v3604 = vsel %vm122, %v3599, %v3603
    %v3606 = vshrl.u32 %v3537, 16
    %v3608 = vrot.slane %v3606, 4
    %v3609 = vshll.u32 %v3537, 16
    %v3611 = vrot.slane %v3609, 5
    %v3612 = vor.u32 %v3608, %v3611
    %v3613 = vrot.slane %v3612, 4
    %v3615 = vshll.u32 %v3538, 16
    %v3617 = vrot.slane %v3615, 5
    %v3618 = vsel %vm122, %v3613, %v3617
    %v3620 = vshrl.u32 %v3539, 16
    %v3622 = vrot.slane %v3620, 4
    %v3623 = vshll.u32 %v3539, 16
    %v3625 = vrot.slane %v3623, 5
    %v3626 = vor.u32 %v3622, %v3625
    %v3627 = vrot.slane %v3626, 4
    %v3629 = vshll.u32 %v3540, 16
    %v3631 = vrot.slane %v3629, 5
    %v3632 = vsel %vm122, %v3627, %v3631
    %v3634 = vshrl.u32 %v3541, 16
    %v3636 = vrot.slane %v3634, 4
    %v3637 = vshll.u32 %v3541, 16
    %v3639 = vrot.slane %v3637, 5
    %v3640 = vor.u32 %v3636, %v3639
    %v3641 = vrot.slane %v3640, 4
    %v3643 = vshll.u32 %v3542, 16
    %v3645 = vrot.slane %v3643, 5
    %v3646 = vsel %vm122, %v3641, %v3645
    %v3648 = vshrl.u32 %v3543, 16
    %v3650 = vrot.slane %v3648, 4
    %v3651 = vshll.u32 %v3543, 16
    %v3653 = vrot.slane %v3651, 5
    %v3654 = vor.u32 %v3650, %v3653
    %v3655 = vrot.slane %v3654, 4
    %v3657 = vshll.u32 %v3544, 16
    %v3659 = vrot.slane %v3657, 5
    %v3660 = vsel %vm122, %v3655, %v3659
    %v3662 = vshrl.u32 %v3545, 16
    %v3664 = vrot.slane %v3662, 4
    %v3665 = vshll.u32 %v3545, 16
    %v3667 = vrot.slane %v3665, 5
    %v3668 = vor.u32 %v3664, %v3667
    %v3669 = vrot.slane %v3668, 4
    %v3671 = vshll.u32 %v3546, 16
    %v3673 = vrot.slane %v3671, 5
    %v3674 = vsel %vm122, %v3669, %v3673
    %v3676 = vshrl.u32 %v3547, 16
    %v3678 = vrot.slane %v3676, 4
    %v3679 = vshll.u32 %v3547, 16
    %v3681 = vrot.slane %v3679, 5
    %v3682 = vor.u32 %v3678, %v3681
    %v3683 = vrot.slane %v3682, 4
    %v3685 = vshll.u32 %v3548, 16
    %v3687 = vrot.slane %v3685, 5
    %v3688 = vsel %vm122, %v3683, %v3687
    %v3690 = vshrl.u32 %v3549, 16
    %v3692 = vrot.slane %v3690, 4
    %v3693 = vshll.u32 %v3549, 16
    %v3695 = vrot.slane %v3693, 5
    %v3696 = vor.u32 %v3692, %v3695
    %v3697 = vrot.slane %v3696, 4
    %v3699 = vshll.u32 %v3550, 16
    %v3701 = vrot.slane %v3699, 5
    %v3702 = vsel %vm122, %v3697, %v3701
    %v3704 = vshrl.u32 %v3551, 16
    %v3706 = vrot.slane %v3704, 4
    %v3707 = vshll.u32 %v3551, 16
    %v3709 = vrot.slane %v3707, 5
    %v3710 = vor.u32 %v3706, %v3709
    %v3711 = vrot.slane %v3710, 4
    %v3713 = vshll.u32 %v3552, 16
    %v3715 = vrot.slane %v3713, 5
    %v3716 = vsel %vm122, %v3711, %v3715
    %v3718 = vshrl.u32 %v3553, 16
    %v3720 = vrot.slane %v3718, 4
    %v3721 = vshll.u32 %v3553, 16
    %v3723 = vrot.slane %v3721, 5
    %v3724 = vor.u32 %v3720, %v3723
    %v3725 = vrot.slane %v3724, 4
    %v3727 = vshll.u32 %v3554, 16
    %v3729 = vrot.slane %v3727, 5
    %v3730 = vsel %vm122, %v3725, %v3729
    %v3732 = vshrl.u32 %v3555, 16
    %v3734 = vrot.slane %v3732, 4
    %v3735 = vshll.u32 %v3555, 16
    %v3737 = vrot.slane %v3735, 5
    %v3738 = vor.u32 %v3734, %v3737
    %v3739 = vrot.slane %v3738, 4
    %v3741 = vshll.u32 %v3556, 16
    %v3743 = vrot.slane %v3741, 5
    %v3744 = vsel %vm122, %v3739, %v3743
    %v3746 = vshrl.u32 %v3557, 16
    %v3748 = vrot.slane %v3746, 4
    %v3749 = vshll.u32 %v3557, 16
    %v3751 = vrot.slane %v3749, 5
    %v3752 = vor.u32 %v3748, %v3751
    %v3753 = vrot.slane %v3752, 4
    %v3755 = vshll.u32 %v3558, 16
    %v3757 = vrot.slane %v3755, 5
    %v3758 = vsel %vm122, %v3753, %v3757
    %v3760 = vshrl.u32 %v3559, 16
    %v3762 = vrot.slane %v3760, 4
    %v3763 = vshll.u32 %v3559, 16
    %v3765 = vrot.slane %v3763, 5
    %v3766 = vor.u32 %v3762, %v3765
    %v3767 = vrot.slane %v3766, 4
    %v3769 = vshll.u32 %v3560, 16
    %v3771 = vrot.slane %v3769, 5
    %v3772 = vsel %vm122, %v3767, %v3771
    %v3774 = vshrl.u32 %v3561, 16
    %v3776 = vrot.slane %v3774, 4
    %v3777 = vshll.u32 %v3561, 16
    %v3779 = vrot.slane %v3777, 5
    %v3780 = vor.u32 %v3776, %v3779
    %v3781 = vrot.slane %v3780, 4
    %v3783 = vshll.u32 %v3562, 16
    %v3785 = vrot.slane %v3783, 5
    %v3786 = vsel %vm122, %v3781, %v3785
    %3787 = vrot.lane.b32.xlu0 %v3576, 80
    %v3788 = vpop.permute.xlu0 %3787
    %3789 = vrot.lane.b32.xlu0 %v3590, 80
    %v3790 = vpop.permute.xlu0 %3789
    %3791 = vrot.lane.b32.xlu0 %v3604, 80
    %v3792 = vpop.permute.xlu0 %3791
    %3793 = vrot.lane.b32.xlu0 %v3618, 80
    %v3794 = vpop.permute.xlu0 %3793
    %3795 = vrot.lane.b32.xlu0 %v3632, 80
    %v3796 = vpop.permute.xlu0 %3795
    %3797 = vrot.lane.b32.xlu0 %v3646, 80
    %v3798 = vpop.permute.xlu0 %3797
    %3799 = vrot.lane.b32.xlu0 %v3660, 80
    %v3800 = vpop.permute.xlu0 %3799
    %3801 = vrot.lane.b32.xlu0 %v3674, 80
    %v3802 = vpop.permute.xlu0 %3801
    %3803 = vrot.lane.b32.xlu0 %v3688, 80
    %v3804 = vpop.permute.xlu0 %3803
    %3805 = vrot.lane.b32.xlu0 %v3702, 80
    %v3806 = vpop.permute.xlu0 %3805
    %3807 = vrot.lane.b32.xlu0 %v3716, 80
    %v3808 = vpop.permute.xlu0 %3807
    %3809 = vrot.lane.b32.xlu0 %v3730, 80
    %v3810 = vpop.permute.xlu0 %3809
    %3811 = vrot.lane.b32.xlu0 %v3744, 80
    %v3812 = vpop.permute.xlu0 %3811
    %3813 = vrot.lane.b32.xlu0 %v3758, 80
    %v3814 = vpop.permute.xlu0 %3813
    %3815 = vrot.lane.b32.xlu0 %v3772, 80
    %v3816 = vpop.permute.xlu0 %3815
    %3817 = vrot.lane.b32.xlu0 %v3786, 80
    %v3818 = vpop.permute.xlu0 %3817
    %3835 = vst.msk [vmem:[%s492 + $0x4] sm:$0xf] %vm1847, %v3788
    %3836 = vst.msk [vmem:[%s492 + $0xc] sm:$0xf] %vm1847, %v3790
    %3837 = vst.msk [vmem:[%s492 + $0x14] sm:$0xf] %vm1847, %v3792
    %3838 = vst.msk [vmem:[%s492 + $0x1c] sm:$0xf] %vm1847, %v3794
    %3839 = vst.msk [vmem:[%s492 + $0x24] sm:$0xf] %vm1847, %v3796
    %3840 = vst.msk [vmem:[%s492 + $0x2c] sm:$0xf] %vm1847, %v3798
    %3841 = vst.msk [vmem:[%s492 + $0x34] sm:$0xf] %vm1847, %v3800
    %3842 = vst.msk [vmem:[%s492 + $0x3c] sm:$0xf] %vm1847, %v3802
    %3843 = vst.msk [vmem:[%s492 + $0x44] sm:$0xf] %vm1847, %v3804
    %3844 = vst.msk [vmem:[%s492 + $0x4c] sm:$0xf] %vm1847, %v3806
    %3845 = vst.msk [vmem:[%s492 + $0x54] sm:$0xf] %vm1847, %v3808
    %3846 = vst.msk [vmem:[%s492 + $0x5c] sm:$0xf] %vm1847, %v3810
    %3847 = vst.msk [vmem:[%s492 + $0x64] sm:$0xf] %vm1847, %v3812
    %3848 = vst.msk [vmem:[%s492 + $0x6c] sm:$0xf] %vm1847, %v3814
    %3849 = vst.msk [vmem:[%s492 + $0x74] sm:$0xf] %vm1847, %v3816
    %3850 = vst.msk [vmem:[%s492 + $0x7c] sm:$0xf] %vm1847, %v3818
    %v3851 = vld [vmem:[%s3018] sm:$0xe]
    %v3852 = vld [vmem:[%s3018 + $0x4] sm:$0x1]
    %v3853 = vld [vmem:[%s3018 + $0x8] sm:$0xe]
    %v3854 = vld [vmem:[%s3018 + $0xc] sm:$0x1]
    %v3855 = vld [vmem:[%s3018 + $0x10] sm:$0xe]
    %v3856 = vld [vmem:[%s3018 + $0x14] sm:$0x1]
    %v3857 = vld [vmem:[%s3018 + $0x18] sm:$0xe]
    %v3858 = vld [vmem:[%s3018 + $0x1c] sm:$0x1]
    %v3859 = vld [vmem:[%s3018 + $0x20] sm:$0xe]
    %v3860 = vld [vmem:[%s3018 + $0x24] sm:$0x1]
    %v3861 = vld [vmem:[%s3018 + $0x28] sm:$0xe]
    %v3862 = vld [vmem:[%s3018 + $0x2c] sm:$0x1]
    %v3863 = vld [vmem:[%s3018 + $0x30] sm:$0xe]
    %v3864 = vld [vmem:[%s3018 + $0x34] sm:$0x1]
    %v3865 = vld [vmem:[%s3018 + $0x38] sm:$0xe]
    %v3866 = vld [vmem:[%s3018 + $0x3c] sm:$0x1]
    %v3867 = vld [vmem:[%s3018 + $0x40] sm:$0xe]
    %v3868 = vld [vmem:[%s3018 + $0x44] sm:$0x1]
    %v3869 = vld [vmem:[%s3018 + $0x48] sm:$0xe]
    %v3870 = vld [vmem:[%s3018 + $0x4c] sm:$0x1]
    %v3871 = vld [vmem:[%s3018 + $0x50] sm:$0xe]
    %v3872 = vld [vmem:[%s3018 + $0x54] sm:$0x1]
    %v3873 = vld [vmem:[%s3018 + $0x58] sm:$0xe]
    %v3874 = vld [vmem:[%s3018 + $0x5c] sm:$0x1]
    %v3875 = vld [vmem:[%s3018 + $0x60] sm:$0xe]
    %v3876 = vld [vmem:[%s3018 + $0x64] sm:$0x1]
    %v3877 = vld [vmem:[%s3018 + $0x68] sm:$0xe]
    %v3878 = vld [vmem:[%s3018 + $0x6c] sm:$0x1]
    %v3879 = vld [vmem:[%s3018 + $0x70] sm:$0xe]
    %v3880 = vld [vmem:[%s3018 + $0x74] sm:$0x1]
    %v3881 = vld [vmem:[%s3018 + $0x78] sm:$0xe]
    %v3882 = vld [vmem:[%s3018 + $0x7c] sm:$0x1]
    %v3915 = vrot.slane %v3851, 5
    %v3916 = vrot.slane %v3915, 4
    %v3917 = vrot.slane %v3852, 5
    %v3918 = vsel %vm897, %v3916, %v3917
    %v3919 = vrot.slane %v3853, 5
    %v3920 = vrot.slane %v3919, 4
    %v3921 = vrot.slane %v3854, 5
    %v3922 = vsel %vm897, %v3920, %v3921
    %v3923 = vrot.slane %v3855, 5
    %v3924 = vrot.slane %v3923, 4
    %v3925 = vrot.slane %v3856, 5
    %v3926 = vsel %vm897, %v3924, %v3925
    %v3927 = vrot.slane %v3857, 5
    %v3928 = vrot.slane %v3927, 4
    %v3929 = vrot.slane %v3858, 5
    %v3930 = vsel %vm897, %v3928, %v3929
    %v3931 = vrot.slane %v3859, 5
    %v3932 = vrot.slane %v3931, 4
    %v3933 = vrot.slane %v3860, 5
    %v3934 = vsel %vm897, %v3932, %v3933
    %v3935 = vrot.slane %v3861, 5
    %v3936 = vrot.slane %v3935, 4
    %v3937 = vrot.slane %v3862, 5
    %v3938 = vsel %vm897, %v3936, %v3937
    %v3939 = vrot.slane %v3863, 5
    %v3940 = vrot.slane %v3939, 4
    %v3941 = vrot.slane %v3864, 5
    %v3942 = vsel %vm897, %v3940, %v3941
    %v3943 = vrot.slane %v3865, 5
    %v3944 = vrot.slane %v3943, 4
    %v3945 = vrot.slane %v3866, 5
    %v3946 = vsel %vm897, %v3944, %v3945
    %v3947 = vrot.slane %v3867, 5
    %v3948 = vrot.slane %v3947, 4
    %v3949 = vrot.slane %v3868, 5
    %v3950 = vsel %vm897, %v3948, %v3949
    %v3951 = vrot.slane %v3869, 5
    %v3952 = vrot.slane %v3951, 4
    %v3953 = vrot.slane %v3870, 5
    %v3954 = vsel %vm897, %v3952, %v3953
    %v3955 = vrot.slane %v3871, 5
    %v3956 = vrot.slane %v3955, 4
    %v3957 = vrot.slane %v3872, 5
    %v3958 = vsel %vm897, %v3956, %v3957
    %v3959 = vrot.slane %v3873, 5
    %v3960 = vrot.slane %v3959, 4
    %v3961 = vrot.slane %v3874, 5
    %v3962 = vsel %vm897, %v3960, %v3961
    %v3963 = vrot.slane %v3875, 5
    %v3964 = vrot.slane %v3963, 4
    %v3965 = vrot.slane %v3876, 5
    %v3966 = vsel %vm897, %v3964, %v3965
    %v3967 = vrot.slane %v3877, 5
    %v3968 = vrot.slane %v3967, 4
    %v3969 = vrot.slane %v3878, 5
    %v3970 = vsel %vm897, %v3968, %v3969
    %v3971 = vrot.slane %v3879, 5
    %v3972 = vrot.slane %v3971, 4
    %v3973 = vrot.slane %v3880, 5
    %v3974 = vsel %vm897, %v3972, %v3973
    %v3975 = vrot.slane %v3881, 5
    %v3976 = vrot.slane %v3975, 4
    %v3977 = vrot.slane %v3882, 5
    %v3978 = vsel %vm897, %v3976, %v3977
    %3979 = vrot.lane.b32.xlu0 %v3918, 112
    %v3980 = vpop.permute.xlu0 %3979
    %3981 = vrot.lane.b32.xlu0 %v3922, 112
    %v3982 = vpop.permute.xlu0 %3981
    %3983 = vrot.lane.b32.xlu0 %v3926, 112
    %v3984 = vpop.permute.xlu0 %3983
    %3985 = vrot.lane.b32.xlu0 %v3930, 112
    %v3986 = vpop.permute.xlu0 %3985
    %3987 = vrot.lane.b32.xlu0 %v3934, 112
    %v3988 = vpop.permute.xlu0 %3987
    %3989 = vrot.lane.b32.xlu0 %v3938, 112
    %v3990 = vpop.permute.xlu0 %3989
    %3991 = vrot.lane.b32.xlu0 %v3942, 112
    %v3992 = vpop.permute.xlu0 %3991
    %3993 = vrot.lane.b32.xlu0 %v3946, 112
    %v3994 = vpop.permute.xlu0 %3993
    %3995 = vrot.lane.b32.xlu0 %v3950, 112
    %v3996 = vpop.permute.xlu0 %3995
    %3997 = vrot.lane.b32.xlu0 %v3954, 112
    %v3998 = vpop.permute.xlu0 %3997
    %3999 = vrot.lane.b32.xlu0 %v3958, 112
    %v4000 = vpop.permute.xlu0 %3999
    %4001 = vrot.lane.b32.xlu0 %v3962, 112
    %v4002 = vpop.permute.xlu0 %4001
    %4003 = vrot.lane.b32.xlu0 %v3966, 112
    %v4004 = vpop.permute.xlu0 %4003
    %4005 = vrot.lane.b32.xlu0 %v3970, 112
    %v4006 = vpop.permute.xlu0 %4005
    %4007 = vrot.lane.b32.xlu0 %v3974, 112
    %v4008 = vpop.permute.xlu0 %4007
    %4009 = vrot.lane.b32.xlu0 %v3978, 112
    %v4010 = vpop.permute.xlu0 %4009
    %4027 = vst.msk [vmem:[%s492 + $0x4] sm:$0xf] %vm2040, %v3980
    %4028 = vst.msk [vmem:[%s492 + $0xc] sm:$0xf] %vm2040, %v3982
    %4029 = vst.msk [vmem:[%s492 + $0x14] sm:$0xf] %vm2040, %v3984
    %4030 = vst.msk [vmem:[%s492 + $0x1c] sm:$0xf] %vm2040, %v3986
    %4031 = vst.msk [vmem:[%s492 + $0x24] sm:$0xf] %vm2040, %v3988
    %4032 = vst.msk [vmem:[%s492 + $0x2c] sm:$0xf] %vm2040, %v3990
    %4033 = vst.msk [vmem:[%s492 + $0x34] sm:$0xf] %vm2040, %v3992
    %4034 = vst.msk [vmem:[%s492 + $0x3c] sm:$0xf] %vm2040, %v3994
    %4035 = vst.msk [vmem:[%s492 + $0x44] sm:$0xf] %vm2040, %v3996
    %4036 = vst.msk [vmem:[%s492 + $0x4c] sm:$0xf] %vm2040, %v3998
    %4037 = vst.msk [vmem:[%s492 + $0x54] sm:$0xf] %vm2040, %v4000
    %4038 = vst.msk [vmem:[%s492 + $0x5c] sm:$0xf] %vm2040, %v4002
    %4039 = vst.msk [vmem:[%s492 + $0x64] sm:$0xf] %vm2040, %v4004
    %4040 = vst.msk [vmem:[%s492 + $0x6c] sm:$0xf] %vm2040, %v4006
    %4041 = vst.msk [vmem:[%s492 + $0x74] sm:$0xf] %vm2040, %v4008
    %4042 = vst.msk [vmem:[%s492 + $0x7c] sm:$0xf] %vm2040, %v4010
    %s4043 = scalar_lea.vmem [#allocation3], 152
    %v4044 = vld [vmem:[%s4043] sm:$0xf]
    %v4045 = vld [vmem:[%s4043 + $0x8] sm:$0xf]
    %v4046 = vld [vmem:[%s4043 + $0x10] sm:$0xf]
    %v4047 = vld [vmem:[%s4043 + $0x18] sm:$0xf]
    %v4048 = vld [vmem:[%s4043 + $0x20] sm:$0xf]
    %v4049 = vld [vmem:[%s4043 + $0x28] sm:$0xf]
    %v4050 = vld [vmem:[%s4043 + $0x30] sm:$0xf]
    %v4051 = vld [vmem:[%s4043 + $0x38] sm:$0xf]
    %v4052 = vld [vmem:[%s4043 + $0x40] sm:$0xf]
    %v4053 = vld [vmem:[%s4043 + $0x48] sm:$0xf]
    %v4054 = vld [vmem:[%s4043 + $0x50] sm:$0xf]
    %v4055 = vld [vmem:[%s4043 + $0x58] sm:$0xf]
    %v4056 = vld [vmem:[%s4043 + $0x60] sm:$0xf]
    %v4057 = vld [vmem:[%s4043 + $0x68] sm:$0xf]
    %v4058 = vld [vmem:[%s4043 + $0x70] sm:$0xf]
    %v4059 = vld [vmem:[%s4043 + $0x78] sm:$0xf]
    %s4060 = scalar_lea.vmem [#allocation2], 256
    %4061 = vst.msk [vmem:[%s4060] sm:$0xf] %vm71, %v4044
    %4062 = vst.msk [vmem:[%s4060 + $0x8] sm:$0xf] %vm71, %v4045
    %4063 = vst.msk [vmem:[%s4060 + $0x10] sm:$0xf] %vm71, %v4046
    %4064 = vst.msk [vmem:[%s4060 + $0x18] sm:$0xf] %vm71, %v4047
    %4065 = vst.msk [vmem:[%s4060 + $0x20] sm:$0xf] %vm71, %v4048
    %4066 = vst.msk [vmem:[%s4060 + $0x28] sm:$0xf] %vm71, %v4049
    %4067 = vst.msk [vmem:[%s4060 + $0x30] sm:$0xf] %vm71, %v4050
    %4068 = vst.msk [vmem:[%s4060 + $0x38] sm:$0xf] %vm71, %v4051
    %4069 = vst.msk [vmem:[%s4060 + $0x40] sm:$0xf] %vm71, %v4052
    %4070 = vst.msk [vmem:[%s4060 + $0x48] sm:$0xf] %vm71, %v4053
    %4071 = vst.msk [vmem:[%s4060 + $0x50] sm:$0xf] %vm71, %v4054
    %4072 = vst.msk [vmem:[%s4060 + $0x58] sm:$0xf] %vm71, %v4055
    %4073 = vst.msk [vmem:[%s4060 + $0x60] sm:$0xf] %vm71, %v4056
    %4074 = vst.msk [vmem:[%s4060 + $0x68] sm:$0xf] %vm71, %v4057
    %4075 = vst.msk [vmem:[%s4060 + $0x70] sm:$0xf] %vm71, %v4058
    %4076 = vst.msk [vmem:[%s4060 + $0x78] sm:$0xf] %vm71, %v4059
    %v4077 = vld [vmem:[%s4043] sm:$0xf]
    %v4078 = vld [vmem:[%s4043 + $0x4] sm:$0x1]
    %v4079 = vld [vmem:[%s4043 + $0x8] sm:$0xf]
    %v4080 = vld [vmem:[%s4043 + $0xc] sm:$0x1]
    %v4081 = vld [vmem:[%s4043 + $0x10] sm:$0xf]
    %v4082 = vld [vmem:[%s4043 + $0x14] sm:$0x1]
    %v4083 = vld [vmem:[%s4043 + $0x18] sm:$0xf]
    %v4084 = vld [vmem:[%s4043 + $0x1c] sm:$0x1]
    %v4085 = vld [vmem:[%s4043 + $0x20] sm:$0xf]
    %v4086 = vld [vmem:[%s4043 + $0x24] sm:$0x1]
    %v4087 = vld [vmem:[%s4043 + $0x28] sm:$0xf]
    %v4088 = vld [vmem:[%s4043 + $0x2c] sm:$0x1]
    %v4089 = vld [vmem:[%s4043 + $0x30] sm:$0xf]
    %v4090 = vld [vmem:[%s4043 + $0x34] sm:$0x1]
    %v4091 = vld [vmem:[%s4043 + $0x38] sm:$0xf]
    %v4092 = vld [vmem:[%s4043 + $0x3c] sm:$0x1]
    %v4093 = vld [vmem:[%s4043 + $0x40] sm:$0xf]
    %v4094 = vld [vmem:[%s4043 + $0x44] sm:$0x1]
    %v4095 = vld [vmem:[%s4043 + $0x48] sm:$0xf]
    %v4096 = vld [vmem:[%s4043 + $0x4c] sm:$0x1]
    %v4097 = vld [vmem:[%s4043 + $0x50] sm:$0xf]
    %v4098 = vld [vmem:[%s4043 + $0x54] sm:$0x1]
    %v4099 = vld [vmem:[%s4043 + $0x58] sm:$0xf]
    %v4100 = vld [vmem:[%s4043 + $0x5c] sm:$0x1]
    %v4101 = vld [vmem:[%s4043 + $0x60] sm:$0xf]
    %v4102 = vld [vmem:[%s4043 + $0x64] sm:$0x1]
    %v4103 = vld [vmem:[%s4043 + $0x68] sm:$0xf]
    %v4104 = vld [vmem:[%s4043 + $0x6c] sm:$0x1]
    %v4105 = vld [vmem:[%s4043 + $0x70] sm:$0xf]
    %v4106 = vld [vmem:[%s4043 + $0x74] sm:$0x1]
    %v4107 = vld [vmem:[%s4043 + $0x78] sm:$0xf]
    %v4108 = vld [vmem:[%s4043 + $0x7c] sm:$0x1]
    %v4110 = vshrl.u32 %v4077, 16
    %v4112 = vrot.slane %v4110, 4
    %v4113 = vshll.u32 %v4077, 16
    %v4115 = vrot.slane %v4113, 5
    %v4116 = vor.u32 %v4112, %v4115
    %v4117 = vrot.slane %v4116, 4
    %v4119 = vshll.u32 %v4078, 16
    %v4121 = vrot.slane %v4119, 5
    %v4122 = vsel %vm122, %v4117, %v4121
    %v4124 = vshrl.u32 %v4079, 16
    %v4126 = vrot.slane %v4124, 4
    %v4127 = vshll.u32 %v4079, 16
    %v4129 = vrot.slane %v4127, 5
    %v4130 = vor.u32 %v4126, %v4129
    %v4131 = vrot.slane %v4130, 4
    %v4133 = vshll.u32 %v4080, 16
    %v4135 = vrot.slane %v4133, 5
    %v4136 = vsel %vm122, %v4131, %v4135
    %v4138 = vshrl.u32 %v4081, 16
    %v4140 = vrot.slane %v4138, 4
    %v4141 = vshll.u32 %v4081, 16
    %v4143 = vrot.slane %v4141, 5
    %v4144 = vor.u32 %v4140, %v4143
    %v4145 = vrot.slane %v4144, 4
    %v4147 = vshll.u32 %v4082, 16
    %v4149 = vrot.slane %v4147, 5
    %v4150 = vsel %vm122, %v4145, %v4149
    %v4152 = vshrl.u32 %v4083, 16
    %v4154 = vrot.slane %v4152, 4
    %v4155 = vshll.u32 %v4083, 16
    %v4157 = vrot.slane %v4155, 5
    %v4158 = vor.u32 %v4154, %v4157
    %v4159 = vrot.slane %v4158, 4
    %v4161 = vshll.u32 %v4084, 16
    %v4163 = vrot.slane %v4161, 5
    %v4164 = vsel %vm122, %v4159, %v4163
    %v4166 = vshrl.u32 %v4085, 16
    %v4168 = vrot.slane %v4166, 4
    %v4169 = vshll.u32 %v4085, 16
    %v4171 = vrot.slane %v4169, 5
    %v4172 = vor.u32 %v4168, %v4171
    %v4173 = vrot.slane %v4172, 4
    %v4175 = vshll.u32 %v4086, 16
    %v4177 = vrot.slane %v4175, 5
    %v4178 = vsel %vm122, %v4173, %v4177
    %v4180 = vshrl.u32 %v4087, 16
    %v4182 = vrot.slane %v4180, 4
    %v4183 = vshll.u32 %v4087, 16
    %v4185 = vrot.slane %v4183, 5
    %v4186 = vor.u32 %v4182, %v4185
    %v4187 = vrot.slane %v4186, 4
    %v4189 = vshll.u32 %v4088, 16
    %v4191 = vrot.slane %v4189, 5
    %v4192 = vsel %vm122, %v4187, %v4191
    %v4194 = vshrl.u32 %v4089, 16
    %v4196 = vrot.slane %v4194, 4
    %v4197 = vshll.u32 %v4089, 16
    %v4199 = vrot.slane %v4197, 5
    %v4200 = vor.u32 %v4196, %v4199
    %v4201 = vrot.slane %v4200, 4
    %v4203 = vshll.u32 %v4090, 16
    %v4205 = vrot.slane %v4203, 5
    %v4206 = vsel %vm122, %v4201, %v4205
    %v4208 = vshrl.u32 %v4091, 16
    %v4210 = vrot.slane %v4208, 4
    %v4211 = vshll.u32 %v4091, 16
    %v4213 = vrot.slane %v4211, 5
    %v4214 = vor.u32 %v4210, %v4213
    %v4215 = vrot.slane %v4214, 4
    %v4217 = vshll.u32 %v4092, 16
    %v4219 = vrot.slane %v4217, 5
    %v4220 = vsel %vm122, %v4215, %v4219
    %v4222 = vshrl.u32 %v4093, 16
    %v4224 = vrot.slane %v4222, 4
    %v4225 = vshll.u32 %v4093, 16
    %v4227 = vrot.slane %v4225, 5
    %v4228 = vor.u32 %v4224, %v4227
    %v4229 = vrot.slane %v4228, 4
    %v4231 = vshll.u32 %v4094, 16
    %v4233 = vrot.slane %v4231, 5
    %v4234 = vsel %vm122, %v4229, %v4233
    %v4236 = vshrl.u32 %v4095, 16
    %v4238 = vrot.slane %v4236, 4
    %v4239 = vshll.u32 %v4095, 16
    %v4241 = vrot.slane %v4239, 5
    %v4242 = vor.u32 %v4238, %v4241
    %v4243 = vrot.slane %v4242, 4
    %v4245 = vshll.u32 %v4096, 16
    %v4247 = vrot.slane %v4245, 5
    %v4248 = vsel %vm122, %v4243, %v4247
    %v4250 = vshrl.u32 %v4097, 16
    %v4252 = vrot.slane %v4250, 4
    %v4253 = vshll.u32 %v4097, 16
    %v4255 = vrot.slane %v4253, 5
    %v4256 = vor.u32 %v4252, %v4255
    %v4257 = vrot.slane %v4256, 4
    %v4259 = vshll.u32 %v4098, 16
    %v4261 = vrot.slane %v4259, 5
    %v4262 = vsel %vm122, %v4257, %v4261
    %v4264 = vshrl.u32 %v4099, 16
    %v4266 = vrot.slane %v4264, 4
    %v4267 = vshll.u32 %v4099, 16
    %v4269 = vrot.slane %v4267, 5
    %v4270 = vor.u32 %v4266, %v4269
    %v4271 = vrot.slane %v4270, 4
    %v4273 = vshll.u32 %v4100, 16
    %v4275 = vrot.slane %v4273, 5
    %v4276 = vsel %vm122, %v4271, %v4275
    %v4278 = vshrl.u32 %v4101, 16
    %v4280 = vrot.slane %v4278, 4
    %v4281 = vshll.u32 %v4101, 16
    %v4283 = vrot.slane %v4281, 5
    %v4284 = vor.u32 %v4280, %v4283
    %v4285 = vrot.slane %v4284, 4
    %v4287 = vshll.u32 %v4102, 16
    %v4289 = vrot.slane %v4287, 5
    %v4290 = vsel %vm122, %v4285, %v4289
    %v4292 = vshrl.u32 %v4103, 16
    %v4294 = vrot.slane %v4292, 4
    %v4295 = vshll.u32 %v4103, 16
    %v4297 = vrot.slane %v4295, 5
    %v4298 = vor.u32 %v4294, %v4297
    %v4299 = vrot.slane %v4298, 4
    %v4301 = vshll.u32 %v4104, 16
    %v4303 = vrot.slane %v4301, 5
    %v4304 = vsel %vm122, %v4299, %v4303
    %v4306 = vshrl.u32 %v4105, 16
    %v4308 = vrot.slane %v4306, 4
    %v4309 = vshll.u32 %v4105, 16
    %v4311 = vrot.slane %v4309, 5
    %v4312 = vor.u32 %v4308, %v4311
    %v4313 = vrot.slane %v4312, 4
    %v4315 = vshll.u32 %v4106, 16
    %v4317 = vrot.slane %v4315, 5
    %v4318 = vsel %vm122, %v4313, %v4317
    %v4320 = vshrl.u32 %v4107, 16
    %v4322 = vrot.slane %v4320, 4
    %v4323 = vshll.u32 %v4107, 16
    %v4325 = vrot.slane %v4323, 5
    %v4326 = vor.u32 %v4322, %v4325
    %v4327 = vrot.slane %v4326, 4
    %v4329 = vshll.u32 %v4108, 16
    %v4331 = vrot.slane %v4329, 5
    %v4332 = vsel %vm122, %v4327, %v4331
    %4333 = vrot.lane.b32.xlu0 %v4122, 32
    %v4334 = vpop.permute.xlu0 %4333
    %4335 = vrot.lane.b32.xlu0 %v4136, 32
    %v4336 = vpop.permute.xlu0 %4335
    %4337 = vrot.lane.b32.xlu0 %v4150, 32
    %v4338 = vpop.permute.xlu0 %4337
    %4339 = vrot.lane.b32.xlu0 %v4164, 32
    %v4340 = vpop.permute.xlu0 %4339
    %4341 = vrot.lane.b32.xlu0 %v4178, 32
    %v4342 = vpop.permute.xlu0 %4341
    %4343 = vrot.lane.b32.xlu0 %v4192, 32
    %v4344 = vpop.permute.xlu0 %4343
    %4345 = vrot.lane.b32.xlu0 %v4206, 32
    %v4346 = vpop.permute.xlu0 %4345
    %4347 = vrot.lane.b32.xlu0 %v4220, 32
    %v4348 = vpop.permute.xlu0 %4347
    %4349 = vrot.lane.b32.xlu0 %v4234, 32
    %v4350 = vpop.permute.xlu0 %4349
    %4351 = vrot.lane.b32.xlu0 %v4248, 32
    %v4352 = vpop.permute.xlu0 %4351
    %4353 = vrot.lane.b32.xlu0 %v4262, 32
    %v4354 = vpop.permute.xlu0 %4353
    %4355 = vrot.lane.b32.xlu0 %v4276, 32
    %v4356 = vpop.permute.xlu0 %4355
    %4357 = vrot.lane.b32.xlu0 %v4290, 32
    %v4358 = vpop.permute.xlu0 %4357
    %4359 = vrot.lane.b32.xlu0 %v4304, 32
    %v4360 = vpop.permute.xlu0 %4359
    %4361 = vrot.lane.b32.xlu0 %v4318, 32
    %v4362 = vpop.permute.xlu0 %4361
    %4363 = vrot.lane.b32.xlu0 %v4332, 32
    %v4364 = vpop.permute.xlu0 %4363
    %4381 = vst.msk [vmem:[%s4060] sm:$0xf] %vm395, %v4334
    %4382 = vst.msk [vmem:[%s4060 + $0x8] sm:$0xf] %vm395, %v4336
    %4383 = vst.msk [vmem:[%s4060 + $0x10] sm:$0xf] %vm395, %v4338
    %4384 = vst.msk [vmem:[%s4060 + $0x18] sm:$0xf] %vm395, %v4340
    %4385 = vst.msk [vmem:[%s4060 + $0x20] sm:$0xf] %vm395, %v4342
    %4386 = vst.msk [vmem:[%s4060 + $0x28] sm:$0xf] %vm395, %v4344
    %4387 = vst.msk [vmem:[%s4060 + $0x30] sm:$0xf] %vm395, %v4346
    %4388 = vst.msk [vmem:[%s4060 + $0x38] sm:$0xf] %vm395, %v4348
    %4389 = vst.msk [vmem:[%s4060 + $0x40] sm:$0xf] %vm395, %v4350
    %4390 = vst.msk [vmem:[%s4060 + $0x48] sm:$0xf] %vm395, %v4352
    %4391 = vst.msk [vmem:[%s4060 + $0x50] sm:$0xf] %vm395, %v4354
    %4392 = vst.msk [vmem:[%s4060 + $0x58] sm:$0xf] %vm395, %v4356
    %4393 = vst.msk [vmem:[%s4060 + $0x60] sm:$0xf] %vm395, %v4358
    %4394 = vst.msk [vmem:[%s4060 + $0x68] sm:$0xf] %vm395, %v4360
    %4395 = vst.msk [vmem:[%s4060 + $0x70] sm:$0xf] %vm395, %v4362
    %4396 = vst.msk [vmem:[%s4060 + $0x78] sm:$0xf] %vm395, %v4364
    %v4397 = vld [vmem:[%s4043] sm:$0xf]
    %v4398 = vld [vmem:[%s4043 + $0x8] sm:$0xf]
    %v4399 = vld [vmem:[%s4043 + $0x10] sm:$0xf]
    %v4400 = vld [vmem:[%s4043 + $0x18] sm:$0xf]
    %v4401 = vld [vmem:[%s4043 + $0x20] sm:$0xf]
    %v4402 = vld [vmem:[%s4043 + $0x28] sm:$0xf]
    %v4403 = vld [vmem:[%s4043 + $0x30] sm:$0xf]
    %v4404 = vld [vmem:[%s4043 + $0x38] sm:$0xf]
    %v4405 = vld [vmem:[%s4043 + $0x40] sm:$0xf]
    %v4406 = vld [vmem:[%s4043 + $0x48] sm:$0xf]
    %v4407 = vld [vmem:[%s4043 + $0x50] sm:$0xf]
    %v4408 = vld [vmem:[%s4043 + $0x58] sm:$0xf]
    %v4409 = vld [vmem:[%s4043 + $0x60] sm:$0xf]
    %v4410 = vld [vmem:[%s4043 + $0x68] sm:$0xf]
    %v4411 = vld [vmem:[%s4043 + $0x70] sm:$0xf]
    %v4412 = vld [vmem:[%s4043 + $0x78] sm:$0xf]
    %4429 = vrot.lane.b32.xlu0 %v4397, 112
    %v4430 = vpop.permute.xlu0 %4429
    %4431 = vrot.lane.b32.xlu0 %v4398, 112
    %v4432 = vpop.permute.xlu0 %4431
    %4433 = vrot.lane.b32.xlu0 %v4399, 112
    %v4434 = vpop.permute.xlu0 %4433
    %4435 = vrot.lane.b32.xlu0 %v4400, 112
    %v4436 = vpop.permute.xlu0 %4435
    %4437 = vrot.lane.b32.xlu0 %v4401, 112
    %v4438 = vpop.permute.xlu0 %4437
    %4439 = vrot.lane.b32.xlu0 %v4402, 112
    %v4440 = vpop.permute.xlu0 %4439
    %4441 = vrot.lane.b32.xlu0 %v4403, 112
    %v4442 = vpop.permute.xlu0 %4441
    %4443 = vrot.lane.b32.xlu0 %v4404, 112
    %v4444 = vpop.permute.xlu0 %4443
    %4445 = vrot.lane.b32.xlu0 %v4405, 112
    %v4446 = vpop.permute.xlu0 %4445
    %4447 = vrot.lane.b32.xlu0 %v4406, 112
    %v4448 = vpop.permute.xlu0 %4447
    %4449 = vrot.lane.b32.xlu0 %v4407, 112
    %v4450 = vpop.permute.xlu0 %4449
    %4451 = vrot.lane.b32.xlu0 %v4408, 112
    %v4452 = vpop.permute.xlu0 %4451
    %4453 = vrot.lane.b32.xlu0 %v4409, 112
    %v4454 = vpop.permute.xlu0 %4453
    %4455 = vrot.lane.b32.xlu0 %v4410, 112
    %v4456 = vpop.permute.xlu0 %4455
    %4457 = vrot.lane.b32.xlu0 %v4411, 112
    %v4458 = vpop.permute.xlu0 %4457
    %4459 = vrot.lane.b32.xlu0 %v4412, 112
    %v4460 = vpop.permute.xlu0 %4459
    %s4477 = scalar_lea.vmem [#allocation2], 384
    %4478 = vst.msk [vmem:[%s4477] sm:$0xf] %vm493, %v4430
    %4479 = vst.msk [vmem:[%s4477 + $0x8] sm:$0xf] %vm493, %v4432
    %4480 = vst.msk [vmem:[%s4477 + $0x10] sm:$0xf] %vm493, %v4434
    %4481 = vst.msk [vmem:[%s4477 + $0x18] sm:$0xf] %vm493, %v4436
    %4482 = vst.msk [vmem:[%s4477 + $0x20] sm:$0xf] %vm493, %v4438
    %4483 = vst.msk [vmem:[%s4477 + $0x28] sm:$0xf] %vm493, %v4440
    %4484 = vst.msk [vmem:[%s4477 + $0x30] sm:$0xf] %vm493, %v4442
    %4485 = vst.msk [vmem:[%s4477 + $0x38] sm:$0xf] %vm493, %v4444
    %4486 = vst.msk [vmem:[%s4477 + $0x40] sm:$0xf] %vm493, %v4446
    %4487 = vst.msk [vmem:[%s4477 + $0x48] sm:$0xf] %vm493, %v4448
    %4488 = vst.msk [vmem:[%s4477 + $0x50] sm:$0xf] %vm493, %v4450
    %4489 = vst.msk [vmem:[%s4477 + $0x58] sm:$0xf] %vm493, %v4452
    %4490 = vst.msk [vmem:[%s4477 + $0x60] sm:$0xf] %vm493, %v4454
    %4491 = vst.msk [vmem:[%s4477 + $0x68] sm:$0xf] %vm493, %v4456
    %4492 = vst.msk [vmem:[%s4477 + $0x70] sm:$0xf] %vm493, %v4458
    %4493 = vst.msk [vmem:[%s4477 + $0x78] sm:$0xf] %vm493, %v4460
    %v4494 = vld [vmem:[%s4043] sm:$0xf]
    %v4495 = vld [vmem:[%s4043 + $0x4] sm:$0x1]
    %v4496 = vld [vmem:[%s4043 + $0x8] sm:$0xf]
    %v4497 = vld [vmem:[%s4043 + $0xc] sm:$0x1]
    %v4498 = vld [vmem:[%s4043 + $0x10] sm:$0xf]
    %v4499 = vld [vmem:[%s4043 + $0x14] sm:$0x1]
    %v4500 = vld [vmem:[%s4043 + $0x18] sm:$0xf]
    %v4501 = vld [vmem:[%s4043 + $0x1c] sm:$0x1]
    %v4502 = vld [vmem:[%s4043 + $0x20] sm:$0xf]
    %v4503 = vld [vmem:[%s4043 + $0x24] sm:$0x1]
    %v4504 = vld [vmem:[%s4043 + $0x28] sm:$0xf]
    %v4505 = vld [vmem:[%s4043 + $0x2c] sm:$0x1]
    %v4506 = vld [vmem:[%s4043 + $0x30] sm:$0xf]
    %v4507 = vld [vmem:[%s4043 + $0x34] sm:$0x1]
    %v4508 = vld [vmem:[%s4043 + $0x38] sm:$0xf]
    %v4509 = vld [vmem:[%s4043 + $0x3c] sm:$0x1]
    %v4510 = vld [vmem:[%s4043 + $0x40] sm:$0xf]
    %v4511 = vld [vmem:[%s4043 + $0x44] sm:$0x1]
    %v4512 = vld [vmem:[%s4043 + $0x48] sm:$0xf]
    %v4513 = vld [vmem:[%s4043 + $0x4c] sm:$0x1]
    %v4514 = vld [vmem:[%s4043 + $0x50] sm:$0xf]
    %v4515 = vld [vmem:[%s4043 + $0x54] sm:$0x1]
    %v4516 = vld [vmem:[%s4043 + $0x58] sm:$0xf]
    %v4517 = vld [vmem:[%s4043 + $0x5c] sm:$0x1]
    %v4518 = vld [vmem:[%s4043 + $0x60] sm:$0xf]
    %v4519 = vld [vmem:[%s4043 + $0x64] sm:$0x1]
    %v4520 = vld [vmem:[%s4043 + $0x68] sm:$0xf]
    %v4521 = vld [vmem:[%s4043 + $0x6c] sm:$0x1]
    %v4522 = vld [vmem:[%s4043 + $0x70] sm:$0xf]
    %v4523 = vld [vmem:[%s4043 + $0x74] sm:$0x1]
    %v4524 = vld [vmem:[%s4043 + $0x78] sm:$0xf]
    %v4525 = vld [vmem:[%s4043 + $0x7c] sm:$0x1]
    %v4527 = vshrl.u32 %v4494, 16
    %v4529 = vrot.slane %v4527, 4
    %v4530 = vshll.u32 %v4494, 16
    %v4532 = vrot.slane %v4530, 5
    %v4533 = vor.u32 %v4529, %v4532
    %v4534 = vrot.slane %v4533, 4
    %v4536 = vshll.u32 %v4495, 16
    %v4538 = vrot.slane %v4536, 5
    %v4539 = vsel %vm122, %v4534, %v4538
    %v4541 = vshrl.u32 %v4496, 16
    %v4543 = vrot.slane %v4541, 4
    %v4544 = vshll.u32 %v4496, 16
    %v4546 = vrot.slane %v4544, 5
    %v4547 = vor.u32 %v4543, %v4546
    %v4548 = vrot.slane %v4547, 4
    %v4550 = vshll.u32 %v4497, 16
    %v4552 = vrot.slane %v4550, 5
    %v4553 = vsel %vm122, %v4548, %v4552
    %v4555 = vshrl.u32 %v4498, 16
    %v4557 = vrot.slane %v4555, 4
    %v4558 = vshll.u32 %v4498, 16
    %v4560 = vrot.slane %v4558, 5
    %v4561 = vor.u32 %v4557, %v4560
    %v4562 = vrot.slane %v4561, 4
    %v4564 = vshll.u32 %v4499, 16
    %v4566 = vrot.slane %v4564, 5
    %v4567 = vsel %vm122, %v4562, %v4566
    %v4569 = vshrl.u32 %v4500, 16
    %v4571 = vrot.slane %v4569, 4
    %v4572 = vshll.u32 %v4500, 16
    %v4574 = vrot.slane %v4572, 5
    %v4575 = vor.u32 %v4571, %v4574
    %v4576 = vrot.slane %v4575, 4
    %v4578 = vshll.u32 %v4501, 16
    %v4580 = vrot.slane %v4578, 5
    %v4581 = vsel %vm122, %v4576, %v4580
    %v4583 = vshrl.u32 %v4502, 16
    %v4585 = vrot.slane %v4583, 4
    %v4586 = vshll.u32 %v4502, 16
    %v4588 = vrot.slane %v4586, 5
    %v4589 = vor.u32 %v4585, %v4588
    %v4590 = vrot.slane %v4589, 4
    %v4592 = vshll.u32 %v4503, 16
    %v4594 = vrot.slane %v4592, 5
    %v4595 = vsel %vm122, %v4590, %v4594
    %v4597 = vshrl.u32 %v4504, 16
    %v4599 = vrot.slane %v4597, 4
    %v4600 = vshll.u32 %v4504, 16
    %v4602 = vrot.slane %v4600, 5
    %v4603 = vor.u32 %v4599, %v4602
    %v4604 = vrot.slane %v4603, 4
    %v4606 = vshll.u32 %v4505, 16
    %v4608 = vrot.slane %v4606, 5
    %v4609 = vsel %vm122, %v4604, %v4608
    %v4611 = vshrl.u32 %v4506, 16
    %v4613 = vrot.slane %v4611, 4
    %v4614 = vshll.u32 %v4506, 16
    %v4616 = vrot.slane %v4614, 5
    %v4617 = vor.u32 %v4613, %v4616
    %v4618 = vrot.slane %v4617, 4
    %v4620 = vshll.u32 %v4507, 16
    %v4622 = vrot.slane %v4620, 5
    %v4623 = vsel %vm122, %v4618, %v4622
    %v4625 = vshrl.u32 %v4508, 16
    %v4627 = vrot.slane %v4625, 4
    %v4628 = vshll.u32 %v4508, 16
    %v4630 = vrot.slane %v4628, 5
    %v4631 = vor.u32 %v4627, %v4630
    %v4632 = vrot.slane %v4631, 4
    %v4634 = vshll.u32 %v4509, 16
    %v4636 = vrot.slane %v4634, 5
    %v4637 = vsel %vm122, %v4632, %v4636
    %v4639 = vshrl.u32 %v4510, 16
    %v4641 = vrot.slane %v4639, 4
    %v4642 = vshll.u32 %v4510, 16
    %v4644 = vrot.slane %v4642, 5
    %v4645 = vor.u32 %v4641, %v4644
    %v4646 = vrot.slane %v4645, 4
    %v4648 = vshll.u32 %v4511, 16
    %v4650 = vrot.slane %v4648, 5
    %v4651 = vsel %vm122, %v4646, %v4650
    %v4653 = vshrl.u32 %v4512, 16
    %v4655 = vrot.slane %v4653, 4
    %v4656 = vshll.u32 %v4512, 16
    %v4658 = vrot.slane %v4656, 5
    %v4659 = vor.u32 %v4655, %v4658
    %v4660 = vrot.slane %v4659, 4
    %v4662 = vshll.u32 %v4513, 16
    %v4664 = vrot.slane %v4662, 5
    %v4665 = vsel %vm122, %v4660, %v4664
    %v4667 = vshrl.u32 %v4514, 16
    %v4669 = vrot.slane %v4667, 4
    %v4670 = vshll.u32 %v4514, 16
    %v4672 = vrot.slane %v4670, 5
    %v4673 = vor.u32 %v4669, %v4672
    %v4674 = vrot.slane %v4673, 4
    %v4676 = vshll.u32 %v4515, 16
    %v4678 = vrot.slane %v4676, 5
    %v4679 = vsel %vm122, %v4674, %v4678
    %v4681 = vshrl.u32 %v4516, 16
    %v4683 = vrot.slane %v4681, 4
    %v4684 = vshll.u32 %v4516, 16
    %v4686 = vrot.slane %v4684, 5
    %v4687 = vor.u32 %v4683, %v4686
    %v4688 = vrot.slane %v4687, 4
    %v4690 = vshll.u32 %v4517, 16
    %v4692 = vrot.slane %v4690, 5
    %v4693 = vsel %vm122, %v4688, %v4692
    %v4695 = vshrl.u32 %v4518, 16
    %v4697 = vrot.slane %v4695, 4
    %v4698 = vshll.u32 %v4518, 16
    %v4700 = vrot.slane %v4698, 5
    %v4701 = vor.u32 %v4697, %v4700
    %v4702 = vrot.slane %v4701, 4
    %v4704 = vshll.u32 %v4519, 16
    %v4706 = vrot.slane %v4704, 5
    %v4707 = vsel %vm122, %v4702, %v4706
    %v4709 = vshrl.u32 %v4520, 16
    %v4711 = vrot.slane %v4709, 4
    %v4712 = vshll.u32 %v4520, 16
    %v4714 = vrot.slane %v4712, 5
    %v4715 = vor.u32 %v4711, %v4714
    %v4716 = vrot.slane %v4715, 4
    %v4718 = vshll.u32 %v4521, 16
    %v4720 = vrot.slane %v4718, 5
    %v4721 = vsel %vm122, %v4716, %v4720
    %v4723 = vshrl.u32 %v4522, 16
    %v4725 = vrot.slane %v4723, 4
    %v4726 = vshll.u32 %v4522, 16
    %v4728 = vrot.slane %v4726, 5
    %v4729 = vor.u32 %v4725, %v4728
    %v4730 = vrot.slane %v4729, 4
    %v4732 = vshll.u32 %v4523, 16
    %v4734 = vrot.slane %v4732, 5
    %v4735 = vsel %vm122, %v4730, %v4734
    %v4737 = vshrl.u32 %v4524, 16
    %v4739 = vrot.slane %v4737, 4
    %v4740 = vshll.u32 %v4524, 16
    %v4742 = vrot.slane %v4740, 5
    %v4743 = vor.u32 %v4739, %v4742
    %v4744 = vrot.slane %v4743, 4
    %v4746 = vshll.u32 %v4525, 16
    %v4748 = vrot.slane %v4746, 5
    %v4749 = vsel %vm122, %v4744, %v4748
    %4750 = vrot.lane.b32.xlu0 %v4539, 16
    %v4751 = vpop.permute.xlu0 %4750
    %4752 = vrot.lane.b32.xlu0 %v4553, 16
    %v4753 = vpop.permute.xlu0 %4752
    %4754 = vrot.lane.b32.xlu0 %v4567, 16
    %v4755 = vpop.permute.xlu0 %4754
    %4756 = vrot.lane.b32.xlu0 %v4581, 16
    %v4757 = vpop.permute.xlu0 %4756
    %4758 = vrot.lane.b32.xlu0 %v4595, 16
    %v4759 = vpop.permute.xlu0 %4758
    %4760 = vrot.lane.b32.xlu0 %v4609, 16
    %v4761 = vpop.permute.xlu0 %4760
    %4762 = vrot.lane.b32.xlu0 %v4623, 16
    %v4763 = vpop.permute.xlu0 %4762
    %4764 = vrot.lane.b32.xlu0 %v4637, 16
    %v4765 = vpop.permute.xlu0 %4764
    %4766 = vrot.lane.b32.xlu0 %v4651, 16
    %v4767 = vpop.permute.xlu0 %4766
    %4768 = vrot.lane.b32.xlu0 %v4665, 16
    %v4769 = vpop.permute.xlu0 %4768
    %4770 = vrot.lane.b32.xlu0 %v4679, 16
    %v4771 = vpop.permute.xlu0 %4770
    %4772 = vrot.lane.b32.xlu0 %v4693, 16
    %v4773 = vpop.permute.xlu0 %4772
    %4774 = vrot.lane.b32.xlu0 %v4707, 16
    %v4775 = vpop.permute.xlu0 %4774
    %4776 = vrot.lane.b32.xlu0 %v4721, 16
    %v4777 = vpop.permute.xlu0 %4776
    %4778 = vrot.lane.b32.xlu0 %v4735, 16
    %v4779 = vpop.permute.xlu0 %4778
    %4780 = vrot.lane.b32.xlu0 %v4749, 16
    %v4781 = vpop.permute.xlu0 %4780
    %4798 = vst.msk [vmem:[%s4477] sm:$0xf] %vm814, %v4751
    %4799 = vst.msk [vmem:[%s4477 + $0x8] sm:$0xf] %vm814, %v4753
    %4800 = vst.msk [vmem:[%s4477 + $0x10] sm:$0xf] %vm814, %v4755
    %4801 = vst.msk [vmem:[%s4477 + $0x18] sm:$0xf] %vm814, %v4757
    %4802 = vst.msk [vmem:[%s4477 + $0x20] sm:$0xf] %vm814, %v4759
    %4803 = vst.msk [vmem:[%s4477 + $0x28] sm:$0xf] %vm814, %v4761
    %4804 = vst.msk [vmem:[%s4477 + $0x30] sm:$0xf] %vm814, %v4763
    %4805 = vst.msk [vmem:[%s4477 + $0x38] sm:$0xf] %vm814, %v4765
    %4806 = vst.msk [vmem:[%s4477 + $0x40] sm:$0xf] %vm814, %v4767
    %4807 = vst.msk [vmem:[%s4477 + $0x48] sm:$0xf] %vm814, %v4769
    %4808 = vst.msk [vmem:[%s4477 + $0x50] sm:$0xf] %vm814, %v4771
    %4809 = vst.msk [vmem:[%s4477 + $0x58] sm:$0xf] %vm814, %v4773
    %4810 = vst.msk [vmem:[%s4477 + $0x60] sm:$0xf] %vm814, %v4775
    %4811 = vst.msk [vmem:[%s4477 + $0x68] sm:$0xf] %vm814, %v4777
    %4812 = vst.msk [vmem:[%s4477 + $0x70] sm:$0xf] %vm814, %v4779
    %4813 = vst.msk [vmem:[%s4477 + $0x78] sm:$0xf] %vm814, %v4781
    %v4814 = vld [vmem:[%s4043] sm:$0xe]
    %v4815 = vld [vmem:[%s4043 + $0x4] sm:$0x1]
    %v4816 = vld [vmem:[%s4043 + $0x8] sm:$0xe]
    %v4817 = vld [vmem:[%s4043 + $0xc] sm:$0x1]
    %v4818 = vld [vmem:[%s4043 + $0x10] sm:$0xe]
    %v4819 = vld [vmem:[%s4043 + $0x14] sm:$0x1]
    %v4820 = vld [vmem:[%s4043 + $0x18] sm:$0xe]
    %v4821 = vld [vmem:[%s4043 + $0x1c] sm:$0x1]
    %v4822 = vld [vmem:[%s4043 + $0x20] sm:$0xe]
    %v4823 = vld [vmem:[%s4043 + $0x24] sm:$0x1]
    %v4824 = vld [vmem:[%s4043 + $0x28] sm:$0xe]
    %v4825 = vld [vmem:[%s4043 + $0x2c] sm:$0x1]
    %v4826 = vld [vmem:[%s4043 + $0x30] sm:$0xe]
    %v4827 = vld [vmem:[%s4043 + $0x34] sm:$0x1]
    %v4828 = vld [vmem:[%s4043 + $0x38] sm:$0xe]
    %v4829 = vld [vmem:[%s4043 + $0x3c] sm:$0x1]
    %v4830 = vld [vmem:[%s4043 + $0x40] sm:$0xe]
    %v4831 = vld [vmem:[%s4043 + $0x44] sm:$0x1]
    %v4832 = vld [vmem:[%s4043 + $0x48] sm:$0xe]
    %v4833 = vld [vmem:[%s4043 + $0x4c] sm:$0x1]
    %v4834 = vld [vmem:[%s4043 + $0x50] sm:$0xe]
    %v4835 = vld [vmem:[%s4043 + $0x54] sm:$0x1]
    %v4836 = vld [vmem:[%s4043 + $0x58] sm:$0xe]
    %v4837 = vld [vmem:[%s4043 + $0x5c] sm:$0x1]
    %v4838 = vld [vmem:[%s4043 + $0x60] sm:$0xe]
    %v4839 = vld [vmem:[%s4043 + $0x64] sm:$0x1]
    %v4840 = vld [vmem:[%s4043 + $0x68] sm:$0xe]
    %v4841 = vld [vmem:[%s4043 + $0x6c] sm:$0x1]
    %v4842 = vld [vmem:[%s4043 + $0x70] sm:$0xe]
    %v4843 = vld [vmem:[%s4043 + $0x74] sm:$0x1]
    %v4844 = vld [vmem:[%s4043 + $0x78] sm:$0xe]
    %v4845 = vld [vmem:[%s4043 + $0x7c] sm:$0x1]
    %v4878 = vrot.slane %v4814, 5
    %v4879 = vrot.slane %v4878, 4
    %v4880 = vrot.slane %v4815, 5
    %v4881 = vsel %vm897, %v4879, %v4880
    %v4882 = vrot.slane %v4816, 5
    %v4883 = vrot.slane %v4882, 4
    %v4884 = vrot.slane %v4817, 5
    %v4885 = vsel %vm897, %v4883, %v4884
    %v4886 = vrot.slane %v4818, 5
    %v4887 = vrot.slane %v4886, 4
    %v4888 = vrot.slane %v4819, 5
    %v4889 = vsel %vm897, %v4887, %v4888
    %v4890 = vrot.slane %v4820, 5
    %v4891 = vrot.slane %v4890, 4
    %v4892 = vrot.slane %v4821, 5
    %v4893 = vsel %vm897, %v4891, %v4892
    %v4894 = vrot.slane %v4822, 5
    %v4895 = vrot.slane %v4894, 4
    %v4896 = vrot.slane %v4823, 5
    %v4897 = vsel %vm897, %v4895, %v4896
    %v4898 = vrot.slane %v4824, 5
    %v4899 = vrot.slane %v4898, 4
    %v4900 = vrot.slane %v4825, 5
    %v4901 = vsel %vm897, %v4899, %v4900
    %v4902 = vrot.slane %v4826, 5
    %v4903 = vrot.slane %v4902, 4
    %v4904 = vrot.slane %v4827, 5
    %v4905 = vsel %vm897, %v4903, %v4904
    %v4906 = vrot.slane %v4828, 5
    %v4907 = vrot.slane %v4906, 4
    %v4908 = vrot.slane %v4829, 5
    %v4909 = vsel %vm897, %v4907, %v4908
    %v4910 = vrot.slane %v4830, 5
    %v4911 = vrot.slane %v4910, 4
    %v4912 = vrot.slane %v4831, 5
    %v4913 = vsel %vm897, %v4911, %v4912
    %v4914 = vrot.slane %v4832, 5
    %v4915 = vrot.slane %v4914, 4
    %v4916 = vrot.slane %v4833, 5
    %v4917 = vsel %vm897, %v4915, %v4916
    %v4918 = vrot.slane %v4834, 5
    %v4919 = vrot.slane %v4918, 4
    %v4920 = vrot.slane %v4835, 5
    %v4921 = vsel %vm897, %v4919, %v4920
    %v4922 = vrot.slane %v4836, 5
    %v4923 = vrot.slane %v4922, 4
    %v4924 = vrot.slane %v4837, 5
    %v4925 = vsel %vm897, %v4923, %v4924
    %v4926 = vrot.slane %v4838, 5
    %v4927 = vrot.slane %v4926, 4
    %v4928 = vrot.slane %v4839, 5
    %v4929 = vsel %vm897, %v4927, %v4928
    %v4930 = vrot.slane %v4840, 5
    %v4931 = vrot.slane %v4930, 4
    %v4932 = vrot.slane %v4841, 5
    %v4933 = vsel %vm897, %v4931, %v4932
    %v4934 = vrot.slane %v4842, 5
    %v4935 = vrot.slane %v4934, 4
    %v4936 = vrot.slane %v4843, 5
    %v4937 = vsel %vm897, %v4935, %v4936
    %v4938 = vrot.slane %v4844, 5
    %v4939 = vrot.slane %v4938, 4
    %v4940 = vrot.slane %v4845, 5
    %v4941 = vsel %vm897, %v4939, %v4940
    %4942 = vrot.lane.b32.xlu0 %v4881, 48
    %v4943 = vpop.permute.xlu0 %4942
    %4944 = vrot.lane.b32.xlu0 %v4885, 48
    %v4945 = vpop.permute.xlu0 %4944
    %4946 = vrot.lane.b32.xlu0 %v4889, 48
    %v4947 = vpop.permute.xlu0 %4946
    %4948 = vrot.lane.b32.xlu0 %v4893, 48
    %v4949 = vpop.permute.xlu0 %4948
    %4950 = vrot.lane.b32.xlu0 %v4897, 48
    %v4951 = vpop.permute.xlu0 %4950
    %4952 = vrot.lane.b32.xlu0 %v4901, 48
    %v4953 = vpop.permute.xlu0 %4952
    %4954 = vrot.lane.b32.xlu0 %v4905, 48
    %v4955 = vpop.permute.xlu0 %4954
    %4956 = vrot.lane.b32.xlu0 %v4909, 48
    %v4957 = vpop.permute.xlu0 %4956
    %4958 = vrot.lane.b32.xlu0 %v4913, 48
    %v4959 = vpop.permute.xlu0 %4958
    %4960 = vrot.lane.b32.xlu0 %v4917, 48
    %v4961 = vpop.permute.xlu0 %4960
    %4962 = vrot.lane.b32.xlu0 %v4921, 48
    %v4963 = vpop.permute.xlu0 %4962
    %4964 = vrot.lane.b32.xlu0 %v4925, 48
    %v4965 = vpop.permute.xlu0 %4964
    %4966 = vrot.lane.b32.xlu0 %v4929, 48
    %v4967 = vpop.permute.xlu0 %4966
    %4968 = vrot.lane.b32.xlu0 %v4933, 48
    %v4969 = vpop.permute.xlu0 %4968
    %4970 = vrot.lane.b32.xlu0 %v4937, 48
    %v4971 = vpop.permute.xlu0 %4970
    %4972 = vrot.lane.b32.xlu0 %v4941, 48
    %v4973 = vpop.permute.xlu0 %4972
    %4990 = vst.msk [vmem:[%s4477] sm:$0xf] %vm1010, %v4943
    %4991 = vst.msk [vmem:[%s4477 + $0x8] sm:$0xf] %vm1010, %v4945
    %4992 = vst.msk [vmem:[%s4477 + $0x10] sm:$0xf] %vm1010, %v4947
    %4993 = vst.msk [vmem:[%s4477 + $0x18] sm:$0xf] %vm1010, %v4949
    %4994 = vst.msk [vmem:[%s4477 + $0x20] sm:$0xf] %vm1010, %v4951
    %4995 = vst.msk [vmem:[%s4477 + $0x28] sm:$0xf] %vm1010, %v4953
    %4996 = vst.msk [vmem:[%s4477 + $0x30] sm:$0xf] %vm1010, %v4955
    %4997 = vst.msk [vmem:[%s4477 + $0x38] sm:$0xf] %vm1010, %v4957
    %4998 = vst.msk [vmem:[%s4477 + $0x40] sm:$0xf] %vm1010, %v4959
    %4999 = vst.msk [vmem:[%s4477 + $0x48] sm:$0xf] %vm1010, %v4961
    %5000 = vst.msk [vmem:[%s4477 + $0x50] sm:$0xf] %vm1010, %v4963
    %5001 = vst.msk [vmem:[%s4477 + $0x58] sm:$0xf] %vm1010, %v4965
    %5002 = vst.msk [vmem:[%s4477 + $0x60] sm:$0xf] %vm1010, %v4967
    %5003 = vst.msk [vmem:[%s4477 + $0x68] sm:$0xf] %vm1010, %v4969
    %5004 = vst.msk [vmem:[%s4477 + $0x70] sm:$0xf] %vm1010, %v4971
    %5005 = vst.msk [vmem:[%s4477 + $0x78] sm:$0xf] %vm1010, %v4973
    %s5006 = scalar_lea.vmem [#allocation3], 160
    %v5007 = vld [vmem:[%s5006] sm:$0xf]
    %v5008 = vld [vmem:[%s5006 + $0x8] sm:$0xf]
    %v5009 = vld [vmem:[%s5006 + $0x10] sm:$0xf]
    %v5010 = vld [vmem:[%s5006 + $0x18] sm:$0xf]
    %v5011 = vld [vmem:[%s5006 + $0x20] sm:$0xf]
    %v5012 = vld [vmem:[%s5006 + $0x28] sm:$0xf]
    %v5013 = vld [vmem:[%s5006 + $0x30] sm:$0xf]
    %v5014 = vld [vmem:[%s5006 + $0x38] sm:$0xf]
    %v5015 = vld [vmem:[%s5006 + $0x40] sm:$0xf]
    %v5016 = vld [vmem:[%s5006 + $0x48] sm:$0xf]
    %v5017 = vld [vmem:[%s5006 + $0x50] sm:$0xf]
    %v5018 = vld [vmem:[%s5006 + $0x58] sm:$0xf]
    %v5019 = vld [vmem:[%s5006 + $0x60] sm:$0xf]
    %v5020 = vld [vmem:[%s5006 + $0x68] sm:$0xf]
    %v5021 = vld [vmem:[%s5006 + $0x70] sm:$0xf]
    %v5022 = vld [vmem:[%s5006 + $0x78] sm:$0xf]
    %5039 = vrot.lane.b32.xlu0 %v5007, 64
    %v5040 = vpop.permute.xlu0 %5039
    %5041 = vrot.lane.b32.xlu0 %v5008, 64
    %v5042 = vpop.permute.xlu0 %5041
    %5043 = vrot.lane.b32.xlu0 %v5009, 64
    %v5044 = vpop.permute.xlu0 %5043
    %5045 = vrot.lane.b32.xlu0 %v5010, 64
    %v5046 = vpop.permute.xlu0 %5045
    %5047 = vrot.lane.b32.xlu0 %v5011, 64
    %v5048 = vpop.permute.xlu0 %5047
    %5049 = vrot.lane.b32.xlu0 %v5012, 64
    %v5050 = vpop.permute.xlu0 %5049
    %5051 = vrot.lane.b32.xlu0 %v5013, 64
    %v5052 = vpop.permute.xlu0 %5051
    %5053 = vrot.lane.b32.xlu0 %v5014, 64
    %v5054 = vpop.permute.xlu0 %5053
    %5055 = vrot.lane.b32.xlu0 %v5015, 64
    %v5056 = vpop.permute.xlu0 %5055
    %5057 = vrot.lane.b32.xlu0 %v5016, 64
    %v5058 = vpop.permute.xlu0 %5057
    %5059 = vrot.lane.b32.xlu0 %v5017, 64
    %v5060 = vpop.permute.xlu0 %5059
    %5061 = vrot.lane.b32.xlu0 %v5018, 64
    %v5062 = vpop.permute.xlu0 %5061
    %5063 = vrot.lane.b32.xlu0 %v5019, 64
    %v5064 = vpop.permute.xlu0 %5063
    %5065 = vrot.lane.b32.xlu0 %v5020, 64
    %v5066 = vpop.permute.xlu0 %5065
    %5067 = vrot.lane.b32.xlu0 %v5021, 64
    %v5068 = vpop.permute.xlu0 %5067
    %5069 = vrot.lane.b32.xlu0 %v5022, 64
    %v5070 = vpop.permute.xlu0 %5069
    %5087 = vst.msk [vmem:[%s4060] sm:$0xf] %vm1108, %v5040
    %5088 = vst.msk [vmem:[%s4060 + $0x8] sm:$0xf] %vm1108, %v5042
    %5089 = vst.msk [vmem:[%s4060 + $0x10] sm:$0xf] %vm1108, %v5044
    %5090 = vst.msk [vmem:[%s4060 + $0x18] sm:$0xf] %vm1108, %v5046
    %5091 = vst.msk [vmem:[%s4060 + $0x20] sm:$0xf] %vm1108, %v5048
    %5092 = vst.msk [vmem:[%s4060 + $0x28] sm:$0xf] %vm1108, %v5050
    %5093 = vst.msk [vmem:[%s4060 + $0x30] sm:$0xf] %vm1108, %v5052
    %5094 = vst.msk [vmem:[%s4060 + $0x38] sm:$0xf] %vm1108, %v5054
    %5095 = vst.msk [vmem:[%s4060 + $0x40] sm:$0xf] %vm1108, %v5056
    %5096 = vst.msk [vmem:[%s4060 + $0x48] sm:$0xf] %vm1108, %v5058
    %5097 = vst.msk [vmem:[%s4060 + $0x50] sm:$0xf] %vm1108, %v5060
    %5098 = vst.msk [vmem:[%s4060 + $0x58] sm:$0xf] %vm1108, %v5062
    %5099 = vst.msk [vmem:[%s4060 + $0x60] sm:$0xf] %vm1108, %v5064
    %5100 = vst.msk [vmem:[%s4060 + $0x68] sm:$0xf] %vm1108, %v5066
    %5101 = vst.msk [vmem:[%s4060 + $0x70] sm:$0xf] %vm1108, %v5068
    %5102 = vst.msk [vmem:[%s4060 + $0x78] sm:$0xf] %vm1108, %v5070
    %v5103 = vld [vmem:[%s5006] sm:$0xf]
    %v5104 = vld [vmem:[%s5006 + $0x4] sm:$0x1]
    %v5105 = vld [vmem:[%s5006 + $0x8] sm:$0xf]
    %v5106 = vld [vmem:[%s5006 + $0xc] sm:$0x1]
    %v5107 = vld [vmem:[%s5006 + $0x10] sm:$0xf]
    %v5108 = vld [vmem:[%s5006 + $0x14] sm:$0x1]
    %v5109 = vld [vmem:[%s5006 + $0x18] sm:$0xf]
    %v5110 = vld [vmem:[%s5006 + $0x1c] sm:$0x1]
    %v5111 = vld [vmem:[%s5006 + $0x20] sm:$0xf]
    %v5112 = vld [vmem:[%s5006 + $0x24] sm:$0x1]
    %v5113 = vld [vmem:[%s5006 + $0x28] sm:$0xf]
    %v5114 = vld [vmem:[%s5006 + $0x2c] sm:$0x1]
    %v5115 = vld [vmem:[%s5006 + $0x30] sm:$0xf]
    %v5116 = vld [vmem:[%s5006 + $0x34] sm:$0x1]
    %v5117 = vld [vmem:[%s5006 + $0x38] sm:$0xf]
    %v5118 = vld [vmem:[%s5006 + $0x3c] sm:$0x1]
    %v5119 = vld [vmem:[%s5006 + $0x40] sm:$0xf]
    %v5120 = vld [vmem:[%s5006 + $0x44] sm:$0x1]
    %v5121 = vld [vmem:[%s5006 + $0x48] sm:$0xf]
    %v5122 = vld [vmem:[%s5006 + $0x4c] sm:$0x1]
    %v5123 = vld [vmem:[%s5006 + $0x50] sm:$0xf]
    %v5124 = vld [vmem:[%s5006 + $0x54] sm:$0x1]
    %v5125 = vld [vmem:[%s5006 + $0x58] sm:$0xf]
    %v5126 = vld [vmem:[%s5006 + $0x5c] sm:$0x1]
    %v5127 = vld [vmem:[%s5006 + $0x60] sm:$0xf]
    %v5128 = vld [vmem:[%s5006 + $0x64] sm:$0x1]
    %v5129 = vld [vmem:[%s5006 + $0x68] sm:$0xf]
    %v5130 = vld [vmem:[%s5006 + $0x6c] sm:$0x1]
    %v5131 = vld [vmem:[%s5006 + $0x70] sm:$0xf]
    %v5132 = vld [vmem:[%s5006 + $0x74] sm:$0x1]
    %v5133 = vld [vmem:[%s5006 + $0x78] sm:$0xf]
    %v5134 = vld [vmem:[%s5006 + $0x7c] sm:$0x1]
    %v5136 = vshrl.u32 %v5103, 16
    %v5138 = vrot.slane %v5136, 4
    %v5139 = vshll.u32 %v5103, 16
    %v5141 = vrot.slane %v5139, 5
    %v5142 = vor.u32 %v5138, %v5141
    %v5143 = vrot.slane %v5142, 4
    %v5145 = vshll.u32 %v5104, 16
    %v5147 = vrot.slane %v5145, 5
    %v5148 = vsel %vm122, %v5143, %v5147
    %v5150 = vshrl.u32 %v5105, 16
    %v5152 = vrot.slane %v5150, 4
    %v5153 = vshll.u32 %v5105, 16
    %v5155 = vrot.slane %v5153, 5
    %v5156 = vor.u32 %v5152, %v5155
    %v5157 = vrot.slane %v5156, 4
    %v5159 = vshll.u32 %v5106, 16
    %v5161 = vrot.slane %v5159, 5
    %v5162 = vsel %vm122, %v5157, %v5161
    %v5164 = vshrl.u32 %v5107, 16
    %v5166 = vrot.slane %v5164, 4
    %v5167 = vshll.u32 %v5107, 16
    %v5169 = vrot.slane %v5167, 5
    %v5170 = vor.u32 %v5166, %v5169
    %v5171 = vrot.slane %v5170, 4
    %v5173 = vshll.u32 %v5108, 16
    %v5175 = vrot.slane %v5173, 5
    %v5176 = vsel %vm122, %v5171, %v5175
    %v5178 = vshrl.u32 %v5109, 16
    %v5180 = vrot.slane %v5178, 4
    %v5181 = vshll.u32 %v5109, 16
    %v5183 = vrot.slane %v5181, 5
    %v5184 = vor.u32 %v5180, %v5183
    %v5185 = vrot.slane %v5184, 4
    %v5187 = vshll.u32 %v5110, 16
    %v5189 = vrot.slane %v5187, 5
    %v5190 = vsel %vm122, %v5185, %v5189
    %v5192 = vshrl.u32 %v5111, 16
    %v5194 = vrot.slane %v5192, 4
    %v5195 = vshll.u32 %v5111, 16
    %v5197 = vrot.slane %v5195, 5
    %v5198 = vor.u32 %v5194, %v5197
    %v5199 = vrot.slane %v5198, 4
    %v5201 = vshll.u32 %v5112, 16
    %v5203 = vrot.slane %v5201, 5
    %v5204 = vsel %vm122, %v5199, %v5203
    %v5206 = vshrl.u32 %v5113, 16
    %v5208 = vrot.slane %v5206, 4
    %v5209 = vshll.u32 %v5113, 16
    %v5211 = vrot.slane %v5209, 5
    %v5212 = vor.u32 %v5208, %v5211
    %v5213 = vrot.slane %v5212, 4
    %v5215 = vshll.u32 %v5114, 16
    %v5217 = vrot.slane %v5215, 5
    %v5218 = vsel %vm122, %v5213, %v5217
    %v5220 = vshrl.u32 %v5115, 16
    %v5222 = vrot.slane %v5220, 4
    %v5223 = vshll.u32 %v5115, 16
    %v5225 = vrot.slane %v5223, 5
    %v5226 = vor.u32 %v5222, %v5225
    %v5227 = vrot.slane %v5226, 4
    %v5229 = vshll.u32 %v5116, 16
    %v5231 = vrot.slane %v5229, 5
    %v5232 = vsel %vm122, %v5227, %v5231
    %v5234 = vshrl.u32 %v5117, 16
    %v5236 = vrot.slane %v5234, 4
    %v5237 = vshll.u32 %v5117, 16
    %v5239 = vrot.slane %v5237, 5
    %v5240 = vor.u32 %v5236, %v5239
    %v5241 = vrot.slane %v5240, 4
    %v5243 = vshll.u32 %v5118, 16
    %v5245 = vrot.slane %v5243, 5
    %v5246 = vsel %vm122, %v5241, %v5245
    %v5248 = vshrl.u32 %v5119, 16
    %v5250 = vrot.slane %v5248, 4
    %v5251 = vshll.u32 %v5119, 16
    %v5253 = vrot.slane %v5251, 5
    %v5254 = vor.u32 %v5250, %v5253
    %v5255 = vrot.slane %v5254, 4
    %v5257 = vshll.u32 %v5120, 16
    %v5259 = vrot.slane %v5257, 5
    %v5260 = vsel %vm122, %v5255, %v5259
    %v5262 = vshrl.u32 %v5121, 16
    %v5264 = vrot.slane %v5262, 4
    %v5265 = vshll.u32 %v5121, 16
    %v5267 = vrot.slane %v5265, 5
    %v5268 = vor.u32 %v5264, %v5267
    %v5269 = vrot.slane %v5268, 4
    %v5271 = vshll.u32 %v5122, 16
    %v5273 = vrot.slane %v5271, 5
    %v5274 = vsel %vm122, %v5269, %v5273
    %v5276 = vshrl.u32 %v5123, 16
    %v5278 = vrot.slane %v5276, 4
    %v5279 = vshll.u32 %v5123, 16
    %v5281 = vrot.slane %v5279, 5
    %v5282 = vor.u32 %v5278, %v5281
    %v5283 = vrot.slane %v5282, 4
    %v5285 = vshll.u32 %v5124, 16
    %v5287 = vrot.slane %v5285, 5
    %v5288 = vsel %vm122, %v5283, %v5287
    %v5290 = vshrl.u32 %v5125, 16
    %v5292 = vrot.slane %v5290, 4
    %v5293 = vshll.u32 %v5125, 16
    %v5295 = vrot.slane %v5293, 5
    %v5296 = vor.u32 %v5292, %v5295
    %v5297 = vrot.slane %v5296, 4
    %v5299 = vshll.u32 %v5126, 16
    %v5301 = vrot.slane %v5299, 5
    %v5302 = vsel %vm122, %v5297, %v5301
    %v5304 = vshrl.u32 %v5127, 16
    %v5306 = vrot.slane %v5304, 4
    %v5307 = vshll.u32 %v5127, 16
    %v5309 = vrot.slane %v5307, 5
    %v5310 = vor.u32 %v5306, %v5309
    %v5311 = vrot.slane %v5310, 4
    %v5313 = vshll.u32 %v5128, 16
    %v5315 = vrot.slane %v5313, 5
    %v5316 = vsel %vm122, %v5311, %v5315
    %v5318 = vshrl.u32 %v5129, 16
    %v5320 = vrot.slane %v5318, 4
    %v5321 = vshll.u32 %v5129, 16
    %v5323 = vrot.slane %v5321, 5
    %v5324 = vor.u32 %v5320, %v5323
    %v5325 = vrot.slane %v5324, 4
    %v5327 = vshll.u32 %v5130, 16
    %v5329 = vrot.slane %v5327, 5
    %v5330 = vsel %vm122, %v5325, %v5329
    %v5332 = vshrl.u32 %v5131, 16
    %v5334 = vrot.slane %v5332, 4
    %v5335 = vshll.u32 %v5131, 16
    %v5337 = vrot.slane %v5335, 5
    %v5338 = vor.u32 %v5334, %v5337
    %v5339 = vrot.slane %v5338, 4
    %v5341 = vshll.u32 %v5132, 16
    %v5343 = vrot.slane %v5341, 5
    %v5344 = vsel %vm122, %v5339, %v5343
    %v5346 = vshrl.u32 %v5133, 16
    %v5348 = vrot.slane %v5346, 4
    %v5349 = vshll.u32 %v5133, 16
    %v5351 = vrot.slane %v5349, 5
    %v5352 = vor.u32 %v5348, %v5351
    %v5353 = vrot.slane %v5352, 4
    %v5355 = vshll.u32 %v5134, 16
    %v5357 = vrot.slane %v5355, 5
    %v5358 = vsel %vm122, %v5353, %v5357
    %5359 = vrot.lane.b32.xlu0 %v5148, 96
    %v5360 = vpop.permute.xlu0 %5359
    %5361 = vrot.lane.b32.xlu0 %v5162, 96
    %v5362 = vpop.permute.xlu0 %5361
    %5363 = vrot.lane.b32.xlu0 %v5176, 96
    %v5364 = vpop.permute.xlu0 %5363
    %5365 = vrot.lane.b32.xlu0 %v5190, 96
    %v5366 = vpop.permute.xlu0 %5365
    %5367 = vrot.lane.b32.xlu0 %v5204, 96
    %v5368 = vpop.permute.xlu0 %5367
    %5369 = vrot.lane.b32.xlu0 %v5218, 96
    %v5370 = vpop.permute.xlu0 %5369
    %5371 = vrot.lane.b32.xlu0 %v5232, 96
    %v5372 = vpop.permute.xlu0 %5371
    %5373 = vrot.lane.b32.xlu0 %v5246, 96
    %v5374 = vpop.permute.xlu0 %5373
    %5375 = vrot.lane.b32.xlu0 %v5260, 96
    %v5376 = vpop.permute.xlu0 %5375
    %5377 = vrot.lane.b32.xlu0 %v5274, 96
    %v5378 = vpop.permute.xlu0 %5377
    %5379 = vrot.lane.b32.xlu0 %v5288, 96
    %v5380 = vpop.permute.xlu0 %5379
    %5381 = vrot.lane.b32.xlu0 %v5302, 96
    %v5382 = vpop.permute.xlu0 %5381
    %5383 = vrot.lane.b32.xlu0 %v5316, 96
    %v5384 = vpop.permute.xlu0 %5383
    %5385 = vrot.lane.b32.xlu0 %v5330, 96
    %v5386 = vpop.permute.xlu0 %5385
    %5387 = vrot.lane.b32.xlu0 %v5344, 96
    %v5388 = vpop.permute.xlu0 %5387
    %5389 = vrot.lane.b32.xlu0 %v5358, 96
    %v5390 = vpop.permute.xlu0 %5389
    %5407 = vst.msk [vmem:[%s4060] sm:$0xf] %vm1429, %v5360
    %5408 = vst.msk [vmem:[%s4060 + $0x8] sm:$0xf] %vm1429, %v5362
    %5409 = vst.msk [vmem:[%s4060 + $0x10] sm:$0xf] %vm1429, %v5364
    %5410 = vst.msk [vmem:[%s4060 + $0x18] sm:$0xf] %vm1429, %v5366
    %5411 = vst.msk [vmem:[%s4060 + $0x20] sm:$0xf] %vm1429, %v5368
    %5412 = vst.msk [vmem:[%s4060 + $0x28] sm:$0xf] %vm1429, %v5370
    %5413 = vst.msk [vmem:[%s4060 + $0x30] sm:$0xf] %vm1429, %v5372
    %5414 = vst.msk [vmem:[%s4060 + $0x38] sm:$0xf] %vm1429, %v5374
    %5415 = vst.msk [vmem:[%s4060 + $0x40] sm:$0xf] %vm1429, %v5376
    %5416 = vst.msk [vmem:[%s4060 + $0x48] sm:$0xf] %vm1429, %v5378
    %5417 = vst.msk [vmem:[%s4060 + $0x50] sm:$0xf] %vm1429, %v5380
    %5418 = vst.msk [vmem:[%s4060 + $0x58] sm:$0xf] %vm1429, %v5382
    %5419 = vst.msk [vmem:[%s4060 + $0x60] sm:$0xf] %vm1429, %v5384
    %5420 = vst.msk [vmem:[%s4060 + $0x68] sm:$0xf] %vm1429, %v5386
    %5421 = vst.msk [vmem:[%s4060 + $0x70] sm:$0xf] %vm1429, %v5388
    %5422 = vst.msk [vmem:[%s4060 + $0x78] sm:$0xf] %vm1429, %v5390
    %v5423 = vld [vmem:[%s5006] sm:$0xf]
    %v5424 = vld [vmem:[%s5006 + $0x8] sm:$0xf]
    %v5425 = vld [vmem:[%s5006 + $0x10] sm:$0xf]
    %v5426 = vld [vmem:[%s5006 + $0x18] sm:$0xf]
    %v5427 = vld [vmem:[%s5006 + $0x20] sm:$0xf]
    %v5428 = vld [vmem:[%s5006 + $0x28] sm:$0xf]
    %v5429 = vld [vmem:[%s5006 + $0x30] sm:$0xf]
    %v5430 = vld [vmem:[%s5006 + $0x38] sm:$0xf]
    %v5431 = vld [vmem:[%s5006 + $0x40] sm:$0xf]
    %v5432 = vld [vmem:[%s5006 + $0x48] sm:$0xf]
    %v5433 = vld [vmem:[%s5006 + $0x50] sm:$0xf]
    %v5434 = vld [vmem:[%s5006 + $0x58] sm:$0xf]
    %v5435 = vld [vmem:[%s5006 + $0x60] sm:$0xf]
    %v5436 = vld [vmem:[%s5006 + $0x68] sm:$0xf]
    %v5437 = vld [vmem:[%s5006 + $0x70] sm:$0xf]
    %v5438 = vld [vmem:[%s5006 + $0x78] sm:$0xf]
    %5455 = vrot.lane.b32.xlu0 %v5423, 48
    %v5456 = vpop.permute.xlu0 %5455
    %5457 = vrot.lane.b32.xlu0 %v5424, 48
    %v5458 = vpop.permute.xlu0 %5457
    %5459 = vrot.lane.b32.xlu0 %v5425, 48
    %v5460 = vpop.permute.xlu0 %5459
    %5461 = vrot.lane.b32.xlu0 %v5426, 48
    %v5462 = vpop.permute.xlu0 %5461
    %5463 = vrot.lane.b32.xlu0 %v5427, 48
    %v5464 = vpop.permute.xlu0 %5463
    %5465 = vrot.lane.b32.xlu0 %v5428, 48
    %v5466 = vpop.permute.xlu0 %5465
    %5467 = vrot.lane.b32.xlu0 %v5429, 48
    %v5468 = vpop.permute.xlu0 %5467
    %5469 = vrot.lane.b32.xlu0 %v5430, 48
    %v5470 = vpop.permute.xlu0 %5469
    %5471 = vrot.lane.b32.xlu0 %v5431, 48
    %v5472 = vpop.permute.xlu0 %5471
    %5473 = vrot.lane.b32.xlu0 %v5432, 48
    %v5474 = vpop.permute.xlu0 %5473
    %5475 = vrot.lane.b32.xlu0 %v5433, 48
    %v5476 = vpop.permute.xlu0 %5475
    %5477 = vrot.lane.b32.xlu0 %v5434, 48
    %v5478 = vpop.permute.xlu0 %5477
    %5479 = vrot.lane.b32.xlu0 %v5435, 48
    %v5480 = vpop.permute.xlu0 %5479
    %5481 = vrot.lane.b32.xlu0 %v5436, 48
    %v5482 = vpop.permute.xlu0 %5481
    %5483 = vrot.lane.b32.xlu0 %v5437, 48
    %v5484 = vpop.permute.xlu0 %5483
    %5485 = vrot.lane.b32.xlu0 %v5438, 48
    %v5486 = vpop.permute.xlu0 %5485
    %5503 = vst.msk [vmem:[%s4477] sm:$0xf] %vm1526, %v5456
    %5504 = vst.msk [vmem:[%s4477 + $0x8] sm:$0xf] %vm1526, %v5458
    %5505 = vst.msk [vmem:[%s4477 + $0x10] sm:$0xf] %vm1526, %v5460
    %5506 = vst.msk [vmem:[%s4477 + $0x18] sm:$0xf] %vm1526, %v5462
    %5507 = vst.msk [vmem:[%s4477 + $0x20] sm:$0xf] %vm1526, %v5464
    %5508 = vst.msk [vmem:[%s4477 + $0x28] sm:$0xf] %vm1526, %v5466
    %5509 = vst.msk [vmem:[%s4477 + $0x30] sm:$0xf] %vm1526, %v5468
    %5510 = vst.msk [vmem:[%s4477 + $0x38] sm:$0xf] %vm1526, %v5470
    %5511 = vst.msk [vmem:[%s4477 + $0x40] sm:$0xf] %vm1526, %v5472
    %5512 = vst.msk [vmem:[%s4477 + $0x48] sm:$0xf] %vm1526, %v5474
    %5513 = vst.msk [vmem:[%s4477 + $0x50] sm:$0xf] %vm1526, %v5476
    %5514 = vst.msk [vmem:[%s4477 + $0x58] sm:$0xf] %vm1526, %v5478
    %5515 = vst.msk [vmem:[%s4477 + $0x60] sm:$0xf] %vm1526, %v5480
    %5516 = vst.msk [vmem:[%s4477 + $0x68] sm:$0xf] %vm1526, %v5482
    %5517 = vst.msk [vmem:[%s4477 + $0x70] sm:$0xf] %vm1526, %v5484
    %5518 = vst.msk [vmem:[%s4477 + $0x78] sm:$0xf] %vm1526, %v5486
    %v5519 = vld [vmem:[%s5006] sm:$0xf]
    %v5520 = vld [vmem:[%s5006 + $0x4] sm:$0x1]
    %v5521 = vld [vmem:[%s5006 + $0x8] sm:$0xf]
    %v5522 = vld [vmem:[%s5006 + $0xc] sm:$0x1]
    %v5523 = vld [vmem:[%s5006 + $0x10] sm:$0xf]
    %v5524 = vld [vmem:[%s5006 + $0x14] sm:$0x1]
    %v5525 = vld [vmem:[%s5006 + $0x18] sm:$0xf]
    %v5526 = vld [vmem:[%s5006 + $0x1c] sm:$0x1]
    %v5527 = vld [vmem:[%s5006 + $0x20] sm:$0xf]
    %v5528 = vld [vmem:[%s5006 + $0x24] sm:$0x1]
    %v5529 = vld [vmem:[%s5006 + $0x28] sm:$0xf]
    %v5530 = vld [vmem:[%s5006 + $0x2c] sm:$0x1]
    %v5531 = vld [vmem:[%s5006 + $0x30] sm:$0xf]
    %v5532 = vld [vmem:[%s5006 + $0x34] sm:$0x1]
    %v5533 = vld [vmem:[%s5006 + $0x38] sm:$0xf]
    %v5534 = vld [vmem:[%s5006 + $0x3c] sm:$0x1]
    %v5535 = vld [vmem:[%s5006 + $0x40] sm:$0xf]
    %v5536 = vld [vmem:[%s5006 + $0x44] sm:$0x1]
    %v5537 = vld [vmem:[%s5006 + $0x48] sm:$0xf]
    %v5538 = vld [vmem:[%s5006 + $0x4c] sm:$0x1]
    %v5539 = vld [vmem:[%s5006 + $0x50] sm:$0xf]
    %v5540 = vld [vmem:[%s5006 + $0x54] sm:$0x1]
    %v5541 = vld [vmem:[%s5006 + $0x58] sm:$0xf]
    %v5542 = vld [vmem:[%s5006 + $0x5c] sm:$0x1]
    %v5543 = vld [vmem:[%s5006 + $0x60] sm:$0xf]
    %v5544 = vld [vmem:[%s5006 + $0x64] sm:$0x1]
    %v5545 = vld [vmem:[%s5006 + $0x68] sm:$0xf]
    %v5546 = vld [vmem:[%s5006 + $0x6c] sm:$0x1]
    %v5547 = vld [vmem:[%s5006 + $0x70] sm:$0xf]
    %v5548 = vld [vmem:[%s5006 + $0x74] sm:$0x1]
    %v5549 = vld [vmem:[%s5006 + $0x78] sm:$0xf]
    %v5550 = vld [vmem:[%s5006 + $0x7c] sm:$0x1]
    %v5552 = vshrl.u32 %v5519, 16
    %v5554 = vrot.slane %v5552, 4
    %v5555 = vshll.u32 %v5519, 16
    %v5557 = vrot.slane %v5555, 5
    %v5558 = vor.u32 %v5554, %v5557
    %v5559 = vrot.slane %v5558, 4
    %v5561 = vshll.u32 %v5520, 16
    %v5563 = vrot.slane %v5561, 5
    %v5564 = vsel %vm122, %v5559, %v5563
    %v5566 = vshrl.u32 %v5521, 16
    %v5568 = vrot.slane %v5566, 4
    %v5569 = vshll.u32 %v5521, 16
    %v5571 = vrot.slane %v5569, 5
    %v5572 = vor.u32 %v5568, %v5571
    %v5573 = vrot.slane %v5572, 4
    %v5575 = vshll.u32 %v5522, 16
    %v5577 = vrot.slane %v5575, 5
    %v5578 = vsel %vm122, %v5573, %v5577
    %v5580 = vshrl.u32 %v5523, 16
    %v5582 = vrot.slane %v5580, 4
    %v5583 = vshll.u32 %v5523, 16
    %v5585 = vrot.slane %v5583, 5
    %v5586 = vor.u32 %v5582, %v5585
    %v5587 = vrot.slane %v5586, 4
    %v5589 = vshll.u32 %v5524, 16
    %v5591 = vrot.slane %v5589, 5
    %v5592 = vsel %vm122, %v5587, %v5591
    %v5594 = vshrl.u32 %v5525, 16
    %v5596 = vrot.slane %v5594, 4
    %v5597 = vshll.u32 %v5525, 16
    %v5599 = vrot.slane %v5597, 5
    %v5600 = vor.u32 %v5596, %v5599
    %v5601 = vrot.slane %v5600, 4
    %v5603 = vshll.u32 %v5526, 16
    %v5605 = vrot.slane %v5603, 5
    %v5606 = vsel %vm122, %v5601, %v5605
    %v5608 = vshrl.u32 %v5527, 16
    %v5610 = vrot.slane %v5608, 4
    %v5611 = vshll.u32 %v5527, 16
    %v5613 = vrot.slane %v5611, 5
    %v5614 = vor.u32 %v5610, %v5613
    %v5615 = vrot.slane %v5614, 4
    %v5617 = vshll.u32 %v5528, 16
    %v5619 = vrot.slane %v5617, 5
    %v5620 = vsel %vm122, %v5615, %v5619
    %v5622 = vshrl.u32 %v5529, 16
    %v5624 = vrot.slane %v5622, 4
    %v5625 = vshll.u32 %v5529, 16
    %v5627 = vrot.slane %v5625, 5
    %v5628 = vor.u32 %v5624, %v5627
    %v5629 = vrot.slane %v5628, 4
    %v5631 = vshll.u32 %v5530, 16
    %v5633 = vrot.slane %v5631, 5
    %v5634 = vsel %vm122, %v5629, %v5633
    %v5636 = vshrl.u32 %v5531, 16
    %v5638 = vrot.slane %v5636, 4
    %v5639 = vshll.u32 %v5531, 16
    %v5641 = vrot.slane %v5639, 5
    %v5642 = vor.u32 %v5638, %v5641
    %v5643 = vrot.slane %v5642, 4
    %v5645 = vshll.u32 %v5532, 16
    %v5647 = vrot.slane %v5645, 5
    %v5648 = vsel %vm122, %v5643, %v5647
    %v5650 = vshrl.u32 %v5533, 16
    %v5652 = vrot.slane %v5650, 4
    %v5653 = vshll.u32 %v5533, 16
    %v5655 = vrot.slane %v5653, 5
    %v5656 = vor.u32 %v5652, %v5655
    %v5657 = vrot.slane %v5656, 4
    %v5659 = vshll.u32 %v5534, 16
    %v5661 = vrot.slane %v5659, 5
    %v5662 = vsel %vm122, %v5657, %v5661
    %v5664 = vshrl.u32 %v5535, 16
    %v5666 = vrot.slane %v5664, 4
    %v5667 = vshll.u32 %v5535, 16
    %v5669 = vrot.slane %v5667, 5
    %v5670 = vor.u32 %v5666, %v5669
    %v5671 = vrot.slane %v5670, 4
    %v5673 = vshll.u32 %v5536, 16
    %v5675 = vrot.slane %v5673, 5
    %v5676 = vsel %vm122, %v5671, %v5675
    %v5678 = vshrl.u32 %v5537, 16
    %v5680 = vrot.slane %v5678, 4
    %v5681 = vshll.u32 %v5537, 16
    %v5683 = vrot.slane %v5681, 5
    %v5684 = vor.u32 %v5680, %v5683
    %v5685 = vrot.slane %v5684, 4
    %v5687 = vshll.u32 %v5538, 16
    %v5689 = vrot.slane %v5687, 5
    %v5690 = vsel %vm122, %v5685, %v5689
    %v5692 = vshrl.u32 %v5539, 16
    %v5694 = vrot.slane %v5692, 4
    %v5695 = vshll.u32 %v5539, 16
    %v5697 = vrot.slane %v5695, 5
    %v5698 = vor.u32 %v5694, %v5697
    %v5699 = vrot.slane %v5698, 4
    %v5701 = vshll.u32 %v5540, 16
    %v5703 = vrot.slane %v5701, 5
    %v5704 = vsel %vm122, %v5699, %v5703
    %v5706 = vshrl.u32 %v5541, 16
    %v5708 = vrot.slane %v5706, 4
    %v5709 = vshll.u32 %v5541, 16
    %v5711 = vrot.slane %v5709, 5
    %v5712 = vor.u32 %v5708, %v5711
    %v5713 = vrot.slane %v5712, 4
    %v5715 = vshll.u32 %v5542, 16
    %v5717 = vrot.slane %v5715, 5
    %v5718 = vsel %vm122, %v5713, %v5717
    %v5720 = vshrl.u32 %v5543, 16
    %v5722 = vrot.slane %v5720, 4
    %v5723 = vshll.u32 %v5543, 16
    %v5725 = vrot.slane %v5723, 5
    %v5726 = vor.u32 %v5722, %v5725
    %v5727 = vrot.slane %v5726, 4
    %v5729 = vshll.u32 %v5544, 16
    %v5731 = vrot.slane %v5729, 5
    %v5732 = vsel %vm122, %v5727, %v5731
    %v5734 = vshrl.u32 %v5545, 16
    %v5736 = vrot.slane %v5734, 4
    %v5737 = vshll.u32 %v5545, 16
    %v5739 = vrot.slane %v5737, 5
    %v5740 = vor.u32 %v5736, %v5739
    %v5741 = vrot.slane %v5740, 4
    %v5743 = vshll.u32 %v5546, 16
    %v5745 = vrot.slane %v5743, 5
    %v5746 = vsel %vm122, %v5741, %v5745
    %v5748 = vshrl.u32 %v5547, 16
    %v5750 = vrot.slane %v5748, 4
    %v5751 = vshll.u32 %v5547, 16
    %v5753 = vrot.slane %v5751, 5
    %v5754 = vor.u32 %v5750, %v5753
    %v5755 = vrot.slane %v5754, 4
    %v5757 = vshll.u32 %v5548, 16
    %v5759 = vrot.slane %v5757, 5
    %v5760 = vsel %vm122, %v5755, %v5759
    %v5762 = vshrl.u32 %v5549, 16
    %v5764 = vrot.slane %v5762, 4
    %v5765 = vshll.u32 %v5549, 16
    %v5767 = vrot.slane %v5765, 5
    %v5768 = vor.u32 %v5764, %v5767
    %v5769 = vrot.slane %v5768, 4
    %v5771 = vshll.u32 %v5550, 16
    %v5773 = vrot.slane %v5771, 5
    %v5774 = vsel %vm122, %v5769, %v5773
    %5775 = vrot.lane.b32.xlu0 %v5564, 80
    %v5776 = vpop.permute.xlu0 %5775
    %5777 = vrot.lane.b32.xlu0 %v5578, 80
    %v5778 = vpop.permute.xlu0 %5777
    %5779 = vrot.lane.b32.xlu0 %v5592, 80
    %v5780 = vpop.permute.xlu0 %5779
    %5781 = vrot.lane.b32.xlu0 %v5606, 80
    %v5782 = vpop.permute.xlu0 %5781
    %5783 = vrot.lane.b32.xlu0 %v5620, 80
    %v5784 = vpop.permute.xlu0 %5783
    %5785 = vrot.lane.b32.xlu0 %v5634, 80
    %v5786 = vpop.permute.xlu0 %5785
    %5787 = vrot.lane.b32.xlu0 %v5648, 80
    %v5788 = vpop.permute.xlu0 %5787
    %5789 = vrot.lane.b32.xlu0 %v5662, 80
    %v5790 = vpop.permute.xlu0 %5789
    %5791 = vrot.lane.b32.xlu0 %v5676, 80
    %v5792 = vpop.permute.xlu0 %5791
    %5793 = vrot.lane.b32.xlu0 %v5690, 80
    %v5794 = vpop.permute.xlu0 %5793
    %5795 = vrot.lane.b32.xlu0 %v5704, 80
    %v5796 = vpop.permute.xlu0 %5795
    %5797 = vrot.lane.b32.xlu0 %v5718, 80
    %v5798 = vpop.permute.xlu0 %5797
    %5799 = vrot.lane.b32.xlu0 %v5732, 80
    %v5800 = vpop.permute.xlu0 %5799
    %5801 = vrot.lane.b32.xlu0 %v5746, 80
    %v5802 = vpop.permute.xlu0 %5801
    %5803 = vrot.lane.b32.xlu0 %v5760, 80
    %v5804 = vpop.permute.xlu0 %5803
    %5805 = vrot.lane.b32.xlu0 %v5774, 80
    %v5806 = vpop.permute.xlu0 %5805
    %5823 = vst.msk [vmem:[%s4477] sm:$0xf] %vm1847, %v5776
    %5824 = vst.msk [vmem:[%s4477 + $0x8] sm:$0xf] %vm1847, %v5778
    %5825 = vst.msk [vmem:[%s4477 + $0x10] sm:$0xf] %vm1847, %v5780
    %5826 = vst.msk [vmem:[%s4477 + $0x18] sm:$0xf] %vm1847, %v5782
    %5827 = vst.msk [vmem:[%s4477 + $0x20] sm:$0xf] %vm1847, %v5784
    %5828 = vst.msk [vmem:[%s4477 + $0x28] sm:$0xf] %vm1847, %v5786
    %5829 = vst.msk [vmem:[%s4477 + $0x30] sm:$0xf] %vm1847, %v5788
    %5830 = vst.msk [vmem:[%s4477 + $0x38] sm:$0xf] %vm1847, %v5790
    %5831 = vst.msk [vmem:[%s4477 + $0x40] sm:$0xf] %vm1847, %v5792
    %5832 = vst.msk [vmem:[%s4477 + $0x48] sm:$0xf] %vm1847, %v5794
    %5833 = vst.msk [vmem:[%s4477 + $0x50] sm:$0xf] %vm1847, %v5796
    %5834 = vst.msk [vmem:[%s4477 + $0x58] sm:$0xf] %vm1847, %v5798
    %5835 = vst.msk [vmem:[%s4477 + $0x60] sm:$0xf] %vm1847, %v5800
    %5836 = vst.msk [vmem:[%s4477 + $0x68] sm:$0xf] %vm1847, %v5802
    %5837 = vst.msk [vmem:[%s4477 + $0x70] sm:$0xf] %vm1847, %v5804
    %5838 = vst.msk [vmem:[%s4477 + $0x78] sm:$0xf] %vm1847, %v5806
    %v5839 = vld [vmem:[%s5006] sm:$0xe]
    %v5840 = vld [vmem:[%s5006 + $0x4] sm:$0x1]
    %v5841 = vld [vmem:[%s5006 + $0x8] sm:$0xe]
    %v5842 = vld [vmem:[%s5006 + $0xc] sm:$0x1]
    %v5843 = vld [vmem:[%s5006 + $0x10] sm:$0xe]
    %v5844 = vld [vmem:[%s5006 + $0x14] sm:$0x1]
    %v5845 = vld [vmem:[%s5006 + $0x18] sm:$0xe]
    %v5846 = vld [vmem:[%s5006 + $0x1c] sm:$0x1]
    %v5847 = vld [vmem:[%s5006 + $0x20] sm:$0xe]
    %v5848 = vld [vmem:[%s5006 + $0x24] sm:$0x1]
    %v5849 = vld [vmem:[%s5006 + $0x28] sm:$0xe]
    %v5850 = vld [vmem:[%s5006 + $0x2c] sm:$0x1]
    %v5851 = vld [vmem:[%s5006 + $0x30] sm:$0xe]
    %v5852 = vld [vmem:[%s5006 + $0x34] sm:$0x1]
    %v5853 = vld [vmem:[%s5006 + $0x38] sm:$0xe]
    %v5854 = vld [vmem:[%s5006 + $0x3c] sm:$0x1]
    %v5855 = vld [vmem:[%s5006 + $0x40] sm:$0xe]
    %v5856 = vld [vmem:[%s5006 + $0x44] sm:$0x1]
    %v5857 = vld [vmem:[%s5006 + $0x48] sm:$0xe]
    %v5858 = vld [vmem:[%s5006 + $0x4c] sm:$0x1]
    %v5859 = vld [vmem:[%s5006 + $0x50] sm:$0xe]
    %v5860 = vld [vmem:[%s5006 + $0x54] sm:$0x1]
    %v5861 = vld [vmem:[%s5006 + $0x58] sm:$0xe]
    %v5862 = vld [vmem:[%s5006 + $0x5c] sm:$0x1]
    %v5863 = vld [vmem:[%s5006 + $0x60] sm:$0xe]
    %v5864 = vld [vmem:[%s5006 + $0x64] sm:$0x1]
    %v5865 = vld [vmem:[%s5006 + $0x68] sm:$0xe]
    %v5866 = vld [vmem:[%s5006 + $0x6c] sm:$0x1]
    %v5867 = vld [vmem:[%s5006 + $0x70] sm:$0xe]
    %v5868 = vld [vmem:[%s5006 + $0x74] sm:$0x1]
    %v5869 = vld [vmem:[%s5006 + $0x78] sm:$0xe]
    %v5870 = vld [vmem:[%s5006 + $0x7c] sm:$0x1]
    %v5903 = vrot.slane %v5839, 5
    %v5904 = vrot.slane %v5903, 4
    %v5905 = vrot.slane %v5840, 5
    %v5906 = vsel %vm897, %v5904, %v5905
    %v5907 = vrot.slane %v5841, 5
    %v5908 = vrot.slane %v5907, 4
    %v5909 = vrot.slane %v5842, 5
    %v5910 = vsel %vm897, %v5908, %v5909
    %v5911 = vrot.slane %v5843, 5
    %v5912 = vrot.slane %v5911, 4
    %v5913 = vrot.slane %v5844, 5
    %v5914 = vsel %vm897, %v5912, %v5913
    %v5915 = vrot.slane %v5845, 5
    %v5916 = vrot.slane %v5915, 4
    %v5917 = vrot.slane %v5846, 5
    %v5918 = vsel %vm897, %v5916, %v5917
    %v5919 = vrot.slane %v5847, 5
    %v5920 = vrot.slane %v5919, 4
    %v5921 = vrot.slane %v5848, 5
    %v5922 = vsel %vm897, %v5920, %v5921
    %v5923 = vrot.slane %v5849, 5
    %v5924 = vrot.slane %v5923, 4
    %v5925 = vrot.slane %v5850, 5
    %v5926 = vsel %vm897, %v5924, %v5925
    %v5927 = vrot.slane %v5851, 5
    %v5928 = vrot.slane %v5927, 4
    %v5929 = vrot.slane %v5852, 5
    %v5930 = vsel %vm897, %v5928, %v5929
    %v5931 = vrot.slane %v5853, 5
    %v5932 = vrot.slane %v5931, 4
    %v5933 = vrot.slane %v5854, 5
    %v5934 = vsel %vm897, %v5932, %v5933
    %v5935 = vrot.slane %v5855, 5
    %v5936 = vrot.slane %v5935, 4
    %v5937 = vrot.slane %v5856, 5
    %v5938 = vsel %vm897, %v5936, %v5937
    %v5939 = vrot.slane %v5857, 5
    %v5940 = vrot.slane %v5939, 4
    %v5941 = vrot.slane %v5858, 5
    %v5942 = vsel %vm897, %v5940, %v5941
    %v5943 = vrot.slane %v5859, 5
    %v5944 = vrot.slane %v5943, 4
    %v5945 = vrot.slane %v5860, 5
    %v5946 = vsel %vm897, %v5944, %v5945
    %v5947 = vrot.slane %v5861, 5
    %v5948 = vrot.slane %v5947, 4
    %v5949 = vrot.slane %v5862, 5
    %v5950 = vsel %vm897, %v5948, %v5949
    %v5951 = vrot.slane %v5863, 5
    %v5952 = vrot.slane %v5951, 4
    %v5953 = vrot.slane %v5864, 5
    %v5954 = vsel %vm897, %v5952, %v5953
    %v5955 = vrot.slane %v5865, 5
    %v5956 = vrot.slane %v5955, 4
    %v5957 = vrot.slane %v5866, 5
    %v5958 = vsel %vm897, %v5956, %v5957
    %v5959 = vrot.slane %v5867, 5
    %v5960 = vrot.slane %v5959, 4
    %v5961 = vrot.slane %v5868, 5
    %v5962 = vsel %vm897, %v5960, %v5961
    %v5963 = vrot.slane %v5869, 5
    %v5964 = vrot.slane %v5963, 4
    %v5965 = vrot.slane %v5870, 5
    %v5966 = vsel %vm897, %v5964, %v5965
    %5967 = vrot.lane.b32.xlu0 %v5906, 112
    %v5968 = vpop.permute.xlu0 %5967
    %5969 = vrot.lane.b32.xlu0 %v5910, 112
    %v5970 = vpop.permute.xlu0 %5969
    %5971 = vrot.lane.b32.xlu0 %v5914, 112
    %v5972 = vpop.permute.xlu0 %5971
    %5973 = vrot.lane.b32.xlu0 %v5918, 112
    %v5974 = vpop.permute.xlu0 %5973
    %5975 = vrot.lane.b32.xlu0 %v5922, 112
    %v5976 = vpop.permute.xlu0 %5975
    %5977 = vrot.lane.b32.xlu0 %v5926, 112
    %v5978 = vpop.permute.xlu0 %5977
    %5979 = vrot.lane.b32.xlu0 %v5930, 112
    %v5980 = vpop.permute.xlu0 %5979
    %5981 = vrot.lane.b32.xlu0 %v5934, 112
    %v5982 = vpop.permute.xlu0 %5981
    %5983 = vrot.lane.b32.xlu0 %v5938, 112
    %v5984 = vpop.permute.xlu0 %5983
    %5985 = vrot.lane.b32.xlu0 %v5942, 112
    %v5986 = vpop.permute.xlu0 %5985
    %5987 = vrot.lane.b32.xlu0 %v5946, 112
    %v5988 = vpop.permute.xlu0 %5987
    %5989 = vrot.lane.b32.xlu0 %v5950, 112
    %v5990 = vpop.permute.xlu0 %5989
    %5991 = vrot.lane.b32.xlu0 %v5954, 112
    %v5992 = vpop.permute.xlu0 %5991
    %5993 = vrot.lane.b32.xlu0 %v5958, 112
    %v5994 = vpop.permute.xlu0 %5993
    %5995 = vrot.lane.b32.xlu0 %v5962, 112
    %v5996 = vpop.permute.xlu0 %5995
    %5997 = vrot.lane.b32.xlu0 %v5966, 112
    %v5998 = vpop.permute.xlu0 %5997
    %6015 = vst.msk [vmem:[%s4477] sm:$0xf] %vm2040, %v5968
    %6016 = vst.msk [vmem:[%s4477 + $0x8] sm:$0xf] %vm2040, %v5970
    %6017 = vst.msk [vmem:[%s4477 + $0x10] sm:$0xf] %vm2040, %v5972
    %6018 = vst.msk [vmem:[%s4477 + $0x18] sm:$0xf] %vm2040, %v5974
    %6019 = vst.msk [vmem:[%s4477 + $0x20] sm:$0xf] %vm2040, %v5976
    %6020 = vst.msk [vmem:[%s4477 + $0x28] sm:$0xf] %vm2040, %v5978
    %6021 = vst.msk [vmem:[%s4477 + $0x30] sm:$0xf] %vm2040, %v5980
    %6022 = vst.msk [vmem:[%s4477 + $0x38] sm:$0xf] %vm2040, %v5982
    %6023 = vst.msk [vmem:[%s4477 + $0x40] sm:$0xf] %vm2040, %v5984
    %6024 = vst.msk [vmem:[%s4477 + $0x48] sm:$0xf] %vm2040, %v5986
    %6025 = vst.msk [vmem:[%s4477 + $0x50] sm:$0xf] %vm2040, %v5988
    %6026 = vst.msk [vmem:[%s4477 + $0x58] sm:$0xf] %vm2040, %v5990
    %6027 = vst.msk [vmem:[%s4477 + $0x60] sm:$0xf] %vm2040, %v5992
    %6028 = vst.msk [vmem:[%s4477 + $0x68] sm:$0xf] %vm2040, %v5994
    %6029 = vst.msk [vmem:[%s4477 + $0x70] sm:$0xf] %vm2040, %v5996
    %6030 = vst.msk [vmem:[%s4477 + $0x78] sm:$0xf] %vm2040, %v5998
    %s6031 = scalar_lea.vmem [#allocation3], 168
    %v6032 = vld [vmem:[%s6031] sm:$0xf]
    %v6033 = vld [vmem:[%s6031 + $0x8] sm:$0xf]
    %v6034 = vld [vmem:[%s6031 + $0x10] sm:$0xf]
    %v6035 = vld [vmem:[%s6031 + $0x18] sm:$0xf]
    %v6036 = vld [vmem:[%s6031 + $0x20] sm:$0xf]
    %v6037 = vld [vmem:[%s6031 + $0x28] sm:$0xf]
    %v6038 = vld [vmem:[%s6031 + $0x30] sm:$0xf]
    %v6039 = vld [vmem:[%s6031 + $0x38] sm:$0xf]
    %v6040 = vld [vmem:[%s6031 + $0x40] sm:$0xf]
    %v6041 = vld [vmem:[%s6031 + $0x48] sm:$0xf]
    %v6042 = vld [vmem:[%s6031 + $0x50] sm:$0xf]
    %v6043 = vld [vmem:[%s6031 + $0x58] sm:$0xf]
    %v6044 = vld [vmem:[%s6031 + $0x60] sm:$0xf]
    %v6045 = vld [vmem:[%s6031 + $0x68] sm:$0xf]
    %v6046 = vld [vmem:[%s6031 + $0x70] sm:$0xf]
    %v6047 = vld [vmem:[%s6031 + $0x78] sm:$0xf]
    %6048 = vst.msk [vmem:[%s4060 + $0x4] sm:$0xf] %vm71, %v6032
    %6049 = vst.msk [vmem:[%s4060 + $0xc] sm:$0xf] %vm71, %v6033
    %6050 = vst.msk [vmem:[%s4060 + $0x14] sm:$0xf] %vm71, %v6034
    %6051 = vst.msk [vmem:[%s4060 + $0x1c] sm:$0xf] %vm71, %v6035
    %6052 = vst.msk [vmem:[%s4060 + $0x24] sm:$0xf] %vm71, %v6036
    %6053 = vst.msk [vmem:[%s4060 + $0x2c] sm:$0xf] %vm71, %v6037
    %6054 = vst.msk [vmem:[%s4060 + $0x34] sm:$0xf] %vm71, %v6038
    %6055 = vst.msk [vmem:[%s4060 + $0x3c] sm:$0xf] %vm71, %v6039
    %6056 = vst.msk [vmem:[%s4060 + $0x44] sm:$0xf] %vm71, %v6040
    %6057 = vst.msk [vmem:[%s4060 + $0x4c] sm:$0xf] %vm71, %v6041
    %6058 = vst.msk [vmem:[%s4060 + $0x54] sm:$0xf] %vm71, %v6042
    %6059 = vst.msk [vmem:[%s4060 + $0x5c] sm:$0xf] %vm71, %v6043
    %6060 = vst.msk [vmem:[%s4060 + $0x64] sm:$0xf] %vm71, %v6044
    %6061 = vst.msk [vmem:[%s4060 + $0x6c] sm:$0xf] %vm71, %v6045
    %6062 = vst.msk [vmem:[%s4060 + $0x74] sm:$0xf] %vm71, %v6046
    %6063 = vst.msk [vmem:[%s4060 + $0x7c] sm:$0xf] %vm71, %v6047
    %v6064 = vld [vmem:[%s6031] sm:$0xf]
    %v6065 = vld [vmem:[%s6031 + $0x4] sm:$0x1]
    %v6066 = vld [vmem:[%s6031 + $0x8] sm:$0xf]
    %v6067 = vld [vmem:[%s6031 + $0xc] sm:$0x1]
    %v6068 = vld [vmem:[%s6031 + $0x10] sm:$0xf]
    %v6069 = vld [vmem:[%s6031 + $0x14] sm:$0x1]
    %v6070 = vld [vmem:[%s6031 + $0x18] sm:$0xf]
    %v6071 = vld [vmem:[%s6031 + $0x1c] sm:$0x1]
    %v6072 = vld [vmem:[%s6031 + $0x20] sm:$0xf]
    %v6073 = vld [vmem:[%s6031 + $0x24] sm:$0x1]
    %v6074 = vld [vmem:[%s6031 + $0x28] sm:$0xf]
    %v6075 = vld [vmem:[%s6031 + $0x2c] sm:$0x1]
    %v6076 = vld [vmem:[%s6031 + $0x30] sm:$0xf]
    %v6077 = vld [vmem:[%s6031 + $0x34] sm:$0x1]
    %v6078 = vld [vmem:[%s6031 + $0x38] sm:$0xf]
    %v6079 = vld [vmem:[%s6031 + $0x3c] sm:$0x1]
    %v6080 = vld [vmem:[%s6031 + $0x40] sm:$0xf]
    %v6081 = vld [vmem:[%s6031 + $0x44] sm:$0x1]
    %v6082 = vld [vmem:[%s6031 + $0x48] sm:$0xf]
    %v6083 = vld [vmem:[%s6031 + $0x4c] sm:$0x1]
    %v6084 = vld [vmem:[%s6031 + $0x50] sm:$0xf]
    %v6085 = vld [vmem:[%s6031 + $0x54] sm:$0x1]
    %v6086 = vld [vmem:[%s6031 + $0x58] sm:$0xf]
    %v6087 = vld [vmem:[%s6031 + $0x5c] sm:$0x1]
    %v6088 = vld [vmem:[%s6031 + $0x60] sm:$0xf]
    %v6089 = vld [vmem:[%s6031 + $0x64] sm:$0x1]
    %v6090 = vld [vmem:[%s6031 + $0x68] sm:$0xf]
    %v6091 = vld [vmem:[%s6031 + $0x6c] sm:$0x1]
    %v6092 = vld [vmem:[%s6031 + $0x70] sm:$0xf]
    %v6093 = vld [vmem:[%s6031 + $0x74] sm:$0x1]
    %v6094 = vld [vmem:[%s6031 + $0x78] sm:$0xf]
    %v6095 = vld [vmem:[%s6031 + $0x7c] sm:$0x1]
    %v6097 = vshrl.u32 %v6064, 16
    %v6099 = vrot.slane %v6097, 4
    %v6100 = vshll.u32 %v6064, 16
    %v6102 = vrot.slane %v6100, 5
    %v6103 = vor.u32 %v6099, %v6102
    %v6104 = vrot.slane %v6103, 4
    %v6106 = vshll.u32 %v6065, 16
    %v6108 = vrot.slane %v6106, 5
    %v6109 = vsel %vm122, %v6104, %v6108
    %v6111 = vshrl.u32 %v6066, 16
    %v6113 = vrot.slane %v6111, 4
    %v6114 = vshll.u32 %v6066, 16
    %v6116 = vrot.slane %v6114, 5
    %v6117 = vor.u32 %v6113, %v6116
    %v6118 = vrot.slane %v6117, 4
    %v6120 = vshll.u32 %v6067, 16
    %v6122 = vrot.slane %v6120, 5
    %v6123 = vsel %vm122, %v6118, %v6122
    %v6125 = vshrl.u32 %v6068, 16
    %v6127 = vrot.slane %v6125, 4
    %v6128 = vshll.u32 %v6068, 16
    %v6130 = vrot.slane %v6128, 5
    %v6131 = vor.u32 %v6127, %v6130
    %v6132 = vrot.slane %v6131, 4
    %v6134 = vshll.u32 %v6069, 16
    %v6136 = vrot.slane %v6134, 5
    %v6137 = vsel %vm122, %v6132, %v6136
    %v6139 = vshrl.u32 %v6070, 16
    %v6141 = vrot.slane %v6139, 4
    %v6142 = vshll.u32 %v6070, 16
    %v6144 = vrot.slane %v6142, 5
    %v6145 = vor.u32 %v6141, %v6144
    %v6146 = vrot.slane %v6145, 4
    %v6148 = vshll.u32 %v6071, 16
    %v6150 = vrot.slane %v6148, 5
    %v6151 = vsel %vm122, %v6146, %v6150
    %v6153 = vshrl.u32 %v6072, 16
    %v6155 = vrot.slane %v6153, 4
    %v6156 = vshll.u32 %v6072, 16
    %v6158 = vrot.slane %v6156, 5
    %v6159 = vor.u32 %v6155, %v6158
    %v6160 = vrot.slane %v6159, 4
    %v6162 = vshll.u32 %v6073, 16
    %v6164 = vrot.slane %v6162, 5
    %v6165 = vsel %vm122, %v6160, %v6164
    %v6167 = vshrl.u32 %v6074, 16
    %v6169 = vrot.slane %v6167, 4
    %v6170 = vshll.u32 %v6074, 16
    %v6172 = vrot.slane %v6170, 5
    %v6173 = vor.u32 %v6169, %v6172
    %v6174 = vrot.slane %v6173, 4
    %v6176 = vshll.u32 %v6075, 16
    %v6178 = vrot.slane %v6176, 5
    %v6179 = vsel %vm122, %v6174, %v6178
    %v6181 = vshrl.u32 %v6076, 16
    %v6183 = vrot.slane %v6181, 4
    %v6184 = vshll.u32 %v6076, 16
    %v6186 = vrot.slane %v6184, 5
    %v6187 = vor.u32 %v6183, %v6186
    %v6188 = vrot.slane %v6187, 4
    %v6190 = vshll.u32 %v6077, 16
    %v6192 = vrot.slane %v6190, 5
    %v6193 = vsel %vm122, %v6188, %v6192
    %v6195 = vshrl.u32 %v6078, 16
    %v6197 = vrot.slane %v6195, 4
    %v6198 = vshll.u32 %v6078, 16
    %v6200 = vrot.slane %v6198, 5
    %v6201 = vor.u32 %v6197, %v6200
    %v6202 = vrot.slane %v6201, 4
    %v6204 = vshll.u32 %v6079, 16
    %v6206 = vrot.slane %v6204, 5
    %v6207 = vsel %vm122, %v6202, %v6206
    %v6209 = vshrl.u32 %v6080, 16
    %v6211 = vrot.slane %v6209, 4
    %v6212 = vshll.u32 %v6080, 16
    %v6214 = vrot.slane %v6212, 5
    %v6215 = vor.u32 %v6211, %v6214
    %v6216 = vrot.slane %v6215, 4
    %v6218 = vshll.u32 %v6081, 16
    %v6220 = vrot.slane %v6218, 5
    %v6221 = vsel %vm122, %v6216, %v6220
    %v6223 = vshrl.u32 %v6082, 16
    %v6225 = vrot.slane %v6223, 4
    %v6226 = vshll.u32 %v6082, 16
    %v6228 = vrot.slane %v6226, 5
    %v6229 = vor.u32 %v6225, %v6228
    %v6230 = vrot.slane %v6229, 4
    %v6232 = vshll.u32 %v6083, 16
    %v6234 = vrot.slane %v6232, 5
    %v6235 = vsel %vm122, %v6230, %v6234
    %v6237 = vshrl.u32 %v6084, 16
    %v6239 = vrot.slane %v6237, 4
    %v6240 = vshll.u32 %v6084, 16
    %v6242 = vrot.slane %v6240, 5
    %v6243 = vor.u32 %v6239, %v6242
    %v6244 = vrot.slane %v6243, 4
    %v6246 = vshll.u32 %v6085, 16
    %v6248 = vrot.slane %v6246, 5
    %v6249 = vsel %vm122, %v6244, %v6248
    %v6251 = vshrl.u32 %v6086, 16
    %v6253 = vrot.slane %v6251, 4
    %v6254 = vshll.u32 %v6086, 16
    %v6256 = vrot.slane %v6254, 5
    %v6257 = vor.u32 %v6253, %v6256
    %v6258 = vrot.slane %v6257, 4
    %v6260 = vshll.u32 %v6087, 16
    %v6262 = vrot.slane %v6260, 5
    %v6263 = vsel %vm122, %v6258, %v6262
    %v6265 = vshrl.u32 %v6088, 16
    %v6267 = vrot.slane %v6265, 4
    %v6268 = vshll.u32 %v6088, 16
    %v6270 = vrot.slane %v6268, 5
    %v6271 = vor.u32 %v6267, %v6270
    %v6272 = vrot.slane %v6271, 4
    %v6274 = vshll.u32 %v6089, 16
    %v6276 = vrot.slane %v6274, 5
    %v6277 = vsel %vm122, %v6272, %v6276
    %v6279 = vshrl.u32 %v6090, 16
    %v6281 = vrot.slane %v6279, 4
    %v6282 = vshll.u32 %v6090, 16
    %v6284 = vrot.slane %v6282, 5
    %v6285 = vor.u32 %v6281, %v6284
    %v6286 = vrot.slane %v6285, 4
    %v6288 = vshll.u32 %v6091, 16
    %v6290 = vrot.slane %v6288, 5
    %v6291 = vsel %vm122, %v6286, %v6290
    %v6293 = vshrl.u32 %v6092, 16
    %v6295 = vrot.slane %v6293, 4
    %v6296 = vshll.u32 %v6092, 16
    %v6298 = vrot.slane %v6296, 5
    %v6299 = vor.u32 %v6295, %v6298
    %v6300 = vrot.slane %v6299, 4
    %v6302 = vshll.u32 %v6093, 16
    %v6304 = vrot.slane %v6302, 5
    %v6305 = vsel %vm122, %v6300, %v6304
    %v6307 = vshrl.u32 %v6094, 16
    %v6309 = vrot.slane %v6307, 4
    %v6310 = vshll.u32 %v6094, 16
    %v6312 = vrot.slane %v6310, 5
    %v6313 = vor.u32 %v6309, %v6312
    %v6314 = vrot.slane %v6313, 4
    %v6316 = vshll.u32 %v6095, 16
    %v6318 = vrot.slane %v6316, 5
    %v6319 = vsel %vm122, %v6314, %v6318
    %6320 = vrot.lane.b32.xlu0 %v6109, 32
    %v6321 = vpop.permute.xlu0 %6320
    %6322 = vrot.lane.b32.xlu0 %v6123, 32
    %v6323 = vpop.permute.xlu0 %6322
    %6324 = vrot.lane.b32.xlu0 %v6137, 32
    %v6325 = vpop.permute.xlu0 %6324
    %6326 = vrot.lane.b32.xlu0 %v6151, 32
    %v6327 = vpop.permute.xlu0 %6326
    %6328 = vrot.lane.b32.xlu0 %v6165, 32
    %v6329 = vpop.permute.xlu0 %6328
    %6330 = vrot.lane.b32.xlu0 %v6179, 32
    %v6331 = vpop.permute.xlu0 %6330
    %6332 = vrot.lane.b32.xlu0 %v6193, 32
    %v6333 = vpop.permute.xlu0 %6332
    %6334 = vrot.lane.b32.xlu0 %v6207, 32
    %v6335 = vpop.permute.xlu0 %6334
    %6336 = vrot.lane.b32.xlu0 %v6221, 32
    %v6337 = vpop.permute.xlu0 %6336
    %6338 = vrot.lane.b32.xlu0 %v6235, 32
    %v6339 = vpop.permute.xlu0 %6338
    %6340 = vrot.lane.b32.xlu0 %v6249, 32
    %v6341 = vpop.permute.xlu0 %6340
    %6342 = vrot.lane.b32.xlu0 %v6263, 32
    %v6343 = vpop.permute.xlu0 %6342
    %6344 = vrot.lane.b32.xlu0 %v6277, 32
    %v6345 = vpop.permute.xlu0 %6344
    %6346 = vrot.lane.b32.xlu0 %v6291, 32
    %v6347 = vpop.permute.xlu0 %6346
    %6348 = vrot.lane.b32.xlu0 %v6305, 32
    %v6349 = vpop.permute.xlu0 %6348
    %6350 = vrot.lane.b32.xlu0 %v6319, 32
    %v6351 = vpop.permute.xlu0 %6350
    %6368 = vst.msk [vmem:[%s4060 + $0x4] sm:$0xf] %vm395, %v6321
    %6369 = vst.msk [vmem:[%s4060 + $0xc] sm:$0xf] %vm395, %v6323
    %6370 = vst.msk [vmem:[%s4060 + $0x14] sm:$0xf] %vm395, %v6325
    %6371 = vst.msk [vmem:[%s4060 + $0x1c] sm:$0xf] %vm395, %v6327
    %6372 = vst.msk [vmem:[%s4060 + $0x24] sm:$0xf] %vm395, %v6329
    %6373 = vst.msk [vmem:[%s4060 + $0x2c] sm:$0xf] %vm395, %v6331
    %6374 = vst.msk [vmem:[%s4060 + $0x34] sm:$0xf] %vm395, %v6333
    %6375 = vst.msk [vmem:[%s4060 + $0x3c] sm:$0xf] %vm395, %v6335
    %6376 = vst.msk [vmem:[%s4060 + $0x44] sm:$0xf] %vm395, %v6337
    %6377 = vst.msk [vmem:[%s4060 + $0x4c] sm:$0xf] %vm395, %v6339
    %6378 = vst.msk [vmem:[%s4060 + $0x54] sm:$0xf] %vm395, %v6341
    %6379 = vst.msk [vmem:[%s4060 + $0x5c] sm:$0xf] %vm395, %v6343
    %6380 = vst.msk [vmem:[%s4060 + $0x64] sm:$0xf] %vm395, %v6345
    %6381 = vst.msk [vmem:[%s4060 + $0x6c] sm:$0xf] %vm395, %v6347
    %6382 = vst.msk [vmem:[%s4060 + $0x74] sm:$0xf] %vm395, %v6349
    %6383 = vst.msk [vmem:[%s4060 + $0x7c] sm:$0xf] %vm395, %v6351
    %v6384 = vld [vmem:[%s6031] sm:$0xf]
    %v6385 = vld [vmem:[%s6031 + $0x8] sm:$0xf]
    %v6386 = vld [vmem:[%s6031 + $0x10] sm:$0xf]
    %v6387 = vld [vmem:[%s6031 + $0x18] sm:$0xf]
    %v6388 = vld [vmem:[%s6031 + $0x20] sm:$0xf]
    %v6389 = vld [vmem:[%s6031 + $0x28] sm:$0xf]
    %v6390 = vld [vmem:[%s6031 + $0x30] sm:$0xf]
    %v6391 = vld [vmem:[%s6031 + $0x38] sm:$0xf]
    %v6392 = vld [vmem:[%s6031 + $0x40] sm:$0xf]
    %v6393 = vld [vmem:[%s6031 + $0x48] sm:$0xf]
    %v6394 = vld [vmem:[%s6031 + $0x50] sm:$0xf]
    %v6395 = vld [vmem:[%s6031 + $0x58] sm:$0xf]
    %v6396 = vld [vmem:[%s6031 + $0x60] sm:$0xf]
    %v6397 = vld [vmem:[%s6031 + $0x68] sm:$0xf]
    %v6398 = vld [vmem:[%s6031 + $0x70] sm:$0xf]
    %v6399 = vld [vmem:[%s6031 + $0x78] sm:$0xf]
    %6416 = vrot.lane.b32.xlu0 %v6384, 112
    %v6417 = vpop.permute.xlu0 %6416
    %6418 = vrot.lane.b32.xlu0 %v6385, 112
    %v6419 = vpop.permute.xlu0 %6418
    %6420 = vrot.lane.b32.xlu0 %v6386, 112
    %v6421 = vpop.permute.xlu0 %6420
    %6422 = vrot.lane.b32.xlu0 %v6387, 112
    %v6423 = vpop.permute.xlu0 %6422
    %6424 = vrot.lane.b32.xlu0 %v6388, 112
    %v6425 = vpop.permute.xlu0 %6424
    %6426 = vrot.lane.b32.xlu0 %v6389, 112
    %v6427 = vpop.permute.xlu0 %6426
    %6428 = vrot.lane.b32.xlu0 %v6390, 112
    %v6429 = vpop.permute.xlu0 %6428
    %6430 = vrot.lane.b32.xlu0 %v6391, 112
    %v6431 = vpop.permute.xlu0 %6430
    %6432 = vrot.lane.b32.xlu0 %v6392, 112
    %v6433 = vpop.permute.xlu0 %6432
    %6434 = vrot.lane.b32.xlu0 %v6393, 112
    %v6435 = vpop.permute.xlu0 %6434
    %6436 = vrot.lane.b32.xlu0 %v6394, 112
    %v6437 = vpop.permute.xlu0 %6436
    %6438 = vrot.lane.b32.xlu0 %v6395, 112
    %v6439 = vpop.permute.xlu0 %6438
    %6440 = vrot.lane.b32.xlu0 %v6396, 112
    %v6441 = vpop.permute.xlu0 %6440
    %6442 = vrot.lane.b32.xlu0 %v6397, 112
    %v6443 = vpop.permute.xlu0 %6442
    %6444 = vrot.lane.b32.xlu0 %v6398, 112
    %v6445 = vpop.permute.xlu0 %6444
    %6446 = vrot.lane.b32.xlu0 %v6399, 112
    %v6447 = vpop.permute.xlu0 %6446
    %6464 = vst.msk [vmem:[%s4477 + $0x4] sm:$0xf] %vm493, %v6417
    %6465 = vst.msk [vmem:[%s4477 + $0xc] sm:$0xf] %vm493, %v6419
    %6466 = vst.msk [vmem:[%s4477 + $0x14] sm:$0xf] %vm493, %v6421
    %6467 = vst.msk [vmem:[%s4477 + $0x1c] sm:$0xf] %vm493, %v6423
    %6468 = vst.msk [vmem:[%s4477 + $0x24] sm:$0xf] %vm493, %v6425
    %6469 = vst.msk [vmem:[%s4477 + $0x2c] sm:$0xf] %vm493, %v6427
    %6470 = vst.msk [vmem:[%s4477 + $0x34] sm:$0xf] %vm493, %v6429
    %6471 = vst.msk [vmem:[%s4477 + $0x3c] sm:$0xf] %vm493, %v6431
    %6472 = vst.msk [vmem:[%s4477 + $0x44] sm:$0xf] %vm493, %v6433
    %6473 = vst.msk [vmem:[%s4477 + $0x4c] sm:$0xf] %vm493, %v6435
    %6474 = vst.msk [vmem:[%s4477 + $0x54] sm:$0xf] %vm493, %v6437
    %6475 = vst.msk [vmem:[%s4477 + $0x5c] sm:$0xf] %vm493, %v6439
    %6476 = vst.msk [vmem:[%s4477 + $0x64] sm:$0xf] %vm493, %v6441
    %6477 = vst.msk [vmem:[%s4477 + $0x6c] sm:$0xf] %vm493, %v6443
    %6478 = vst.msk [vmem:[%s4477 + $0x74] sm:$0xf] %vm493, %v6445
    %6479 = vst.msk [vmem:[%s4477 + $0x7c] sm:$0xf] %vm493, %v6447
    %v6480 = vld [vmem:[%s6031] sm:$0xf]
    %v6481 = vld [vmem:[%s6031 + $0x4] sm:$0x1]
    %v6482 = vld [vmem:[%s6031 + $0x8] sm:$0xf]
    %v6483 = vld [vmem:[%s6031 + $0xc] sm:$0x1]
    %v6484 = vld [vmem:[%s6031 + $0x10] sm:$0xf]
    %v6485 = vld [vmem:[%s6031 + $0x14] sm:$0x1]
    %v6486 = vld [vmem:[%s6031 + $0x18] sm:$0xf]
    %v6487 = vld [vmem:[%s6031 + $0x1c] sm:$0x1]
    %v6488 = vld [vmem:[%s6031 + $0x20] sm:$0xf]
    %v6489 = vld [vmem:[%s6031 + $0x24] sm:$0x1]
    %v6490 = vld [vmem:[%s6031 + $0x28] sm:$0xf]
    %v6491 = vld [vmem:[%s6031 + $0x2c] sm:$0x1]
    %v6492 = vld [vmem:[%s6031 + $0x30] sm:$0xf]
    %v6493 = vld [vmem:[%s6031 + $0x34] sm:$0x1]
    %v6494 = vld [vmem:[%s6031 + $0x38] sm:$0xf]
    %v6495 = vld [vmem:[%s6031 + $0x3c] sm:$0x1]
    %v6496 = vld [vmem:[%s6031 + $0x40] sm:$0xf]
    %v6497 = vld [vmem:[%s6031 + $0x44] sm:$0x1]
    %v6498 = vld [vmem:[%s6031 + $0x48] sm:$0xf]
    %v6499 = vld [vmem:[%s6031 + $0x4c] sm:$0x1]
    %v6500 = vld [vmem:[%s6031 + $0x50] sm:$0xf]
    %v6501 = vld [vmem:[%s6031 + $0x54] sm:$0x1]
    %v6502 = vld [vmem:[%s6031 + $0x58] sm:$0xf]
    %v6503 = vld [vmem:[%s6031 + $0x5c] sm:$0x1]
    %v6504 = vld [vmem:[%s6031 + $0x60] sm:$0xf]
    %v6505 = vld [vmem:[%s6031 + $0x64] sm:$0x1]
    %v6506 = vld [vmem:[%s6031 + $0x68] sm:$0xf]
    %v6507 = vld [vmem:[%s6031 + $0x6c] sm:$0x1]
    %v6508 = vld [vmem:[%s6031 + $0x70] sm:$0xf]
    %v6509 = vld [vmem:[%s6031 + $0x74] sm:$0x1]
    %v6510 = vld [vmem:[%s6031 + $0x78] sm:$0xf]
    %v6511 = vld [vmem:[%s6031 + $0x7c] sm:$0x1]
    %v6513 = vshrl.u32 %v6480, 16
    %v6515 = vrot.slane %v6513, 4
    %v6516 = vshll.u32 %v6480, 16
    %v6518 = vrot.slane %v6516, 5
    %v6519 = vor.u32 %v6515, %v6518
    %v6520 = vrot.slane %v6519, 4
    %v6522 = vshll.u32 %v6481, 16
    %v6524 = vrot.slane %v6522, 5
    %v6525 = vsel %vm122, %v6520, %v6524
    %v6527 = vshrl.u32 %v6482, 16
    %v6529 = vrot.slane %v6527, 4
    %v6530 = vshll.u32 %v6482, 16
    %v6532 = vrot.slane %v6530, 5
    %v6533 = vor.u32 %v6529, %v6532
    %v6534 = vrot.slane %v6533, 4
    %v6536 = vshll.u32 %v6483, 16
    %v6538 = vrot.slane %v6536, 5
    %v6539 = vsel %vm122, %v6534, %v6538
    %v6541 = vshrl.u32 %v6484, 16
    %v6543 = vrot.slane %v6541, 4
    %v6544 = vshll.u32 %v6484, 16
    %v6546 = vrot.slane %v6544, 5
    %v6547 = vor.u32 %v6543, %v6546
    %v6548 = vrot.slane %v6547, 4
    %v6550 = vshll.u32 %v6485, 16
    %v6552 = vrot.slane %v6550, 5
    %v6553 = vsel %vm122, %v6548, %v6552
    %v6555 = vshrl.u32 %v6486, 16
    %v6557 = vrot.slane %v6555, 4
    %v6558 = vshll.u32 %v6486, 16
    %v6560 = vrot.slane %v6558, 5
    %v6561 = vor.u32 %v6557, %v6560
    %v6562 = vrot.slane %v6561, 4
    %v6564 = vshll.u32 %v6487, 16
    %v6566 = vrot.slane %v6564, 5
    %v6567 = vsel %vm122, %v6562, %v6566
    %v6569 = vshrl.u32 %v6488, 16
    %v6571 = vrot.slane %v6569, 4
    %v6572 = vshll.u32 %v6488, 16
    %v6574 = vrot.slane %v6572, 5
    %v6575 = vor.u32 %v6571, %v6574
    %v6576 = vrot.slane %v6575, 4
    %v6578 = vshll.u32 %v6489, 16
    %v6580 = vrot.slane %v6578, 5
    %v6581 = vsel %vm122, %v6576, %v6580
    %v6583 = vshrl.u32 %v6490, 16
    %v6585 = vrot.slane %v6583, 4
    %v6586 = vshll.u32 %v6490, 16
    %v6588 = vrot.slane %v6586, 5
    %v6589 = vor.u32 %v6585, %v6588
    %v6590 = vrot.slane %v6589, 4
    %v6592 = vshll.u32 %v6491, 16
    %v6594 = vrot.slane %v6592, 5
    %v6595 = vsel %vm122, %v6590, %v6594
    %v6597 = vshrl.u32 %v6492, 16
    %v6599 = vrot.slane %v6597, 4
    %v6600 = vshll.u32 %v6492, 16
    %v6602 = vrot.slane %v6600, 5
    %v6603 = vor.u32 %v6599, %v6602
    %v6604 = vrot.slane %v6603, 4
    %v6606 = vshll.u32 %v6493, 16
    %v6608 = vrot.slane %v6606, 5
    %v6609 = vsel %vm122, %v6604, %v6608
    %v6611 = vshrl.u32 %v6494, 16
    %v6613 = vrot.slane %v6611, 4
    %v6614 = vshll.u32 %v6494, 16
    %v6616 = vrot.slane %v6614, 5
    %v6617 = vor.u32 %v6613, %v6616
    %v6618 = vrot.slane %v6617, 4
    %v6620 = vshll.u32 %v6495, 16
    %v6622 = vrot.slane %v6620, 5
    %v6623 = vsel %vm122, %v6618, %v6622
    %v6625 = vshrl.u32 %v6496, 16
    %v6627 = vrot.slane %v6625, 4
    %v6628 = vshll.u32 %v6496, 16
    %v6630 = vrot.slane %v6628, 5
    %v6631 = vor.u32 %v6627, %v6630
    %v6632 = vrot.slane %v6631, 4
    %v6634 = vshll.u32 %v6497, 16
    %v6636 = vrot.slane %v6634, 5
    %v6637 = vsel %vm122, %v6632, %v6636
    %v6639 = vshrl.u32 %v6498, 16
    %v6641 = vrot.slane %v6639, 4
    %v6642 = vshll.u32 %v6498, 16
    %v6644 = vrot.slane %v6642, 5
    %v6645 = vor.u32 %v6641, %v6644
    %v6646 = vrot.slane %v6645, 4
    %v6648 = vshll.u32 %v6499, 16
    %v6650 = vrot.slane %v6648, 5
    %v6651 = vsel %vm122, %v6646, %v6650
    %v6653 = vshrl.u32 %v6500, 16
    %v6655 = vrot.slane %v6653, 4
    %v6656 = vshll.u32 %v6500, 16
    %v6658 = vrot.slane %v6656, 5
    %v6659 = vor.u32 %v6655, %v6658
    %v6660 = vrot.slane %v6659, 4
    %v6662 = vshll.u32 %v6501, 16
    %v6664 = vrot.slane %v6662, 5
    %v6665 = vsel %vm122, %v6660, %v6664
    %v6667 = vshrl.u32 %v6502, 16
    %v6669 = vrot.slane %v6667, 4
    %v6670 = vshll.u32 %v6502, 16
    %v6672 = vrot.slane %v6670, 5
    %v6673 = vor.u32 %v6669, %v6672
    %v6674 = vrot.slane %v6673, 4
    %v6676 = vshll.u32 %v6503, 16
    %v6678 = vrot.slane %v6676, 5
    %v6679 = vsel %vm122, %v6674, %v6678
    %v6681 = vshrl.u32 %v6504, 16
    %v6683 = vrot.slane %v6681, 4
    %v6684 = vshll.u32 %v6504, 16
    %v6686 = vrot.slane %v6684, 5
    %v6687 = vor.u32 %v6683, %v6686
    %v6688 = vrot.slane %v6687, 4
    %v6690 = vshll.u32 %v6505, 16
    %v6692 = vrot.slane %v6690, 5
    %v6693 = vsel %vm122, %v6688, %v6692
    %v6695 = vshrl.u32 %v6506, 16
    %v6697 = vrot.slane %v6695, 4
    %v6698 = vshll.u32 %v6506, 16
    %v6700 = vrot.slane %v6698, 5
    %v6701 = vor.u32 %v6697, %v6700
    %v6702 = vrot.slane %v6701, 4
    %v6704 = vshll.u32 %v6507, 16
    %v6706 = vrot.slane %v6704, 5
    %v6707 = vsel %vm122, %v6702, %v6706
    %v6709 = vshrl.u32 %v6508, 16
    %v6711 = vrot.slane %v6709, 4
    %v6712 = vshll.u32 %v6508, 16
    %v6714 = vrot.slane %v6712, 5
    %v6715 = vor.u32 %v6711, %v6714
    %v6716 = vrot.slane %v6715, 4
    %v6718 = vshll.u32 %v6509, 16
    %v6720 = vrot.slane %v6718, 5
    %v6721 = vsel %vm122, %v6716, %v6720
    %v6723 = vshrl.u32 %v6510, 16
    %v6725 = vrot.slane %v6723, 4
    %v6726 = vshll.u32 %v6510, 16
    %v6728 = vrot.slane %v6726, 5
    %v6729 = vor.u32 %v6725, %v6728
    %v6730 = vrot.slane %v6729, 4
    %v6732 = vshll.u32 %v6511, 16
    %v6734 = vrot.slane %v6732, 5
    %v6735 = vsel %vm122, %v6730, %v6734
    %6736 = vrot.lane.b32.xlu0 %v6525, 16
    %v6737 = vpop.permute.xlu0 %6736
    %6738 = vrot.lane.b32.xlu0 %v6539, 16
    %v6739 = vpop.permute.xlu0 %6738
    %6740 = vrot.lane.b32.xlu0 %v6553, 16
    %v6741 = vpop.permute.xlu0 %6740
    %6742 = vrot.lane.b32.xlu0 %v6567, 16
    %v6743 = vpop.permute.xlu0 %6742
    %6744 = vrot.lane.b32.xlu0 %v6581, 16
    %v6745 = vpop.permute.xlu0 %6744
    %6746 = vrot.lane.b32.xlu0 %v6595, 16
    %v6747 = vpop.permute.xlu0 %6746
    %6748 = vrot.lane.b32.xlu0 %v6609, 16
    %v6749 = vpop.permute.xlu0 %6748
    %6750 = vrot.lane.b32.xlu0 %v6623, 16
    %v6751 = vpop.permute.xlu0 %6750
    %6752 = vrot.lane.b32.xlu0 %v6637, 16
    %v6753 = vpop.permute.xlu0 %6752
    %6754 = vrot.lane.b32.xlu0 %v6651, 16
    %v6755 = vpop.permute.xlu0 %6754
    %6756 = vrot.lane.b32.xlu0 %v6665, 16
    %v6757 = vpop.permute.xlu0 %6756
    %6758 = vrot.lane.b32.xlu0 %v6679, 16
    %v6759 = vpop.permute.xlu0 %6758
    %6760 = vrot.lane.b32.xlu0 %v6693, 16
    %v6761 = vpop.permute.xlu0 %6760
    %6762 = vrot.lane.b32.xlu0 %v6707, 16
    %v6763 = vpop.permute.xlu0 %6762
    %6764 = vrot.lane.b32.xlu0 %v6721, 16
    %v6765 = vpop.permute.xlu0 %6764
    %6766 = vrot.lane.b32.xlu0 %v6735, 16
    %v6767 = vpop.permute.xlu0 %6766
    %6784 = vst.msk [vmem:[%s4477 + $0x4] sm:$0xf] %vm814, %v6737
    %6785 = vst.msk [vmem:[%s4477 + $0xc] sm:$0xf] %vm814, %v6739
    %6786 = vst.msk [vmem:[%s4477 + $0x14] sm:$0xf] %vm814, %v6741
    %6787 = vst.msk [vmem:[%s4477 + $0x1c] sm:$0xf] %vm814, %v6743
    %6788 = vst.msk [vmem:[%s4477 + $0x24] sm:$0xf] %vm814, %v6745
    %6789 = vst.msk [vmem:[%s4477 + $0x2c] sm:$0xf] %vm814, %v6747
    %6790 = vst.msk [vmem:[%s4477 + $0x34] sm:$0xf] %vm814, %v6749
    %6791 = vst.msk [vmem:[%s4477 + $0x3c] sm:$0xf] %vm814, %v6751
    %6792 = vst.msk [vmem:[%s4477 + $0x44] sm:$0xf] %vm814, %v6753
    %6793 = vst.msk [vmem:[%s4477 + $0x4c] sm:$0xf] %vm814, %v6755
    %6794 = vst.msk [vmem:[%s4477 + $0x54] sm:$0xf] %vm814, %v6757
    %6795 = vst.msk [vmem:[%s4477 + $0x5c] sm:$0xf] %vm814, %v6759
    %6796 = vst.msk [vmem:[%s4477 + $0x64] sm:$0xf] %vm814, %v6761
    %6797 = vst.msk [vmem:[%s4477 + $0x6c] sm:$0xf] %vm814, %v6763
    %6798 = vst.msk [vmem:[%s4477 + $0x74] sm:$0xf] %vm814, %v6765
    %6799 = vst.msk [vmem:[%s4477 + $0x7c] sm:$0xf] %vm814, %v6767
    %v6800 = vld [vmem:[%s6031] sm:$0xe]
    %v6801 = vld [vmem:[%s6031 + $0x4] sm:$0x1]
    %v6802 = vld [vmem:[%s6031 + $0x8] sm:$0xe]
    %v6803 = vld [vmem:[%s6031 + $0xc] sm:$0x1]
    %v6804 = vld [vmem:[%s6031 + $0x10] sm:$0xe]
    %v6805 = vld [vmem:[%s6031 + $0x14] sm:$0x1]
    %v6806 = vld [vmem:[%s6031 + $0x18] sm:$0xe]
    %v6807 = vld [vmem:[%s6031 + $0x1c] sm:$0x1]
    %v6808 = vld [vmem:[%s6031 + $0x20] sm:$0xe]
    %v6809 = vld [vmem:[%s6031 + $0x24] sm:$0x1]
    %v6810 = vld [vmem:[%s6031 + $0x28] sm:$0xe]
    %v6811 = vld [vmem:[%s6031 + $0x2c] sm:$0x1]
    %v6812 = vld [vmem:[%s6031 + $0x30] sm:$0xe]
    %v6813 = vld [vmem:[%s6031 + $0x34] sm:$0x1]
    %v6814 = vld [vmem:[%s6031 + $0x38] sm:$0xe]
    %v6815 = vld [vmem:[%s6031 + $0x3c] sm:$0x1]
    %v6816 = vld [vmem:[%s6031 + $0x40] sm:$0xe]
    %v6817 = vld [vmem:[%s6031 + $0x44] sm:$0x1]
    %v6818 = vld [vmem:[%s6031 + $0x48] sm:$0xe]
    %v6819 = vld [vmem:[%s6031 + $0x4c] sm:$0x1]
    %v6820 = vld [vmem:[%s6031 + $0x50] sm:$0xe]
    %v6821 = vld [vmem:[%s6031 + $0x54] sm:$0x1]
    %v6822 = vld [vmem:[%s6031 + $0x58] sm:$0xe]
    %v6823 = vld [vmem:[%s6031 + $0x5c] sm:$0x1]
    %v6824 = vld [vmem:[%s6031 + $0x60] sm:$0xe]
    %v6825 = vld [vmem:[%s6031 + $0x64] sm:$0x1]
    %v6826 = vld [vmem:[%s6031 + $0x68] sm:$0xe]
    %v6827 = vld [vmem:[%s6031 + $0x6c] sm:$0x1]
    %v6828 = vld [vmem:[%s6031 + $0x70] sm:$0xe]
    %v6829 = vld [vmem:[%s6031 + $0x74] sm:$0x1]
    %v6830 = vld [vmem:[%s6031 + $0x78] sm:$0xe]
    %v6831 = vld [vmem:[%s6031 + $0x7c] sm:$0x1]
    %v6864 = vrot.slane %v6800, 5
    %v6865 = vrot.slane %v6864, 4
    %v6866 = vrot.slane %v6801, 5
    %v6867 = vsel %vm897, %v6865, %v6866
    %v6868 = vrot.slane %v6802, 5
    %v6869 = vrot.slane %v6868, 4
    %v6870 = vrot.slane %v6803, 5
    %v6871 = vsel %vm897, %v6869, %v6870
    %v6872 = vrot.slane %v6804, 5
    %v6873 = vrot.slane %v6872, 4
    %v6874 = vrot.slane %v6805, 5
    %v6875 = vsel %vm897, %v6873, %v6874
    %v6876 = vrot.slane %v6806, 5
    %v6877 = vrot.slane %v6876, 4
    %v6878 = vrot.slane %v6807, 5
    %v6879 = vsel %vm897, %v6877, %v6878
    %v6880 = vrot.slane %v6808, 5
    %v6881 = vrot.slane %v6880, 4
    %v6882 = vrot.slane %v6809, 5
    %v6883 = vsel %vm897, %v6881, %v6882
    %v6884 = vrot.slane %v6810, 5
    %v6885 = vrot.slane %v6884, 4
    %v6886 = vrot.slane %v6811, 5
    %v6887 = vsel %vm897, %v6885, %v6886
    %v6888 = vrot.slane %v6812, 5
    %v6889 = vrot.slane %v6888, 4
    %v6890 = vrot.slane %v6813, 5
    %v6891 = vsel %vm897, %v6889, %v6890
    %v6892 = vrot.slane %v6814, 5
    %v6893 = vrot.slane %v6892, 4
    %v6894 = vrot.slane %v6815, 5
    %v6895 = vsel %vm897, %v6893, %v6894
    %v6896 = vrot.slane %v6816, 5
    %v6897 = vrot.slane %v6896, 4
    %v6898 = vrot.slane %v6817, 5
    %v6899 = vsel %vm897, %v6897, %v6898
    %v6900 = vrot.slane %v6818, 5
    %v6901 = vrot.slane %v6900, 4
    %v6902 = vrot.slane %v6819, 5
    %v6903 = vsel %vm897, %v6901, %v6902
    %v6904 = vrot.slane %v6820, 5
    %v6905 = vrot.slane %v6904, 4
    %v6906 = vrot.slane %v6821, 5
    %v6907 = vsel %vm897, %v6905, %v6906
    %v6908 = vrot.slane %v6822, 5
    %v6909 = vrot.slane %v6908, 4
    %v6910 = vrot.slane %v6823, 5
    %v6911 = vsel %vm897, %v6909, %v6910
    %v6912 = vrot.slane %v6824, 5
    %v6913 = vrot.slane %v6912, 4
    %v6914 = vrot.slane %v6825, 5
    %v6915 = vsel %vm897, %v6913, %v6914
    %v6916 = vrot.slane %v6826, 5
    %v6917 = vrot.slane %v6916, 4
    %v6918 = vrot.slane %v6827, 5
    %v6919 = vsel %vm897, %v6917, %v6918
    %v6920 = vrot.slane %v6828, 5
    %v6921 = vrot.slane %v6920, 4
    %v6922 = vrot.slane %v6829, 5
    %v6923 = vsel %vm897, %v6921, %v6922
    %v6924 = vrot.slane %v6830, 5
    %v6925 = vrot.slane %v6924, 4
    %v6926 = vrot.slane %v6831, 5
    %v6927 = vsel %vm897, %v6925, %v6926
    %6928 = vrot.lane.b32.xlu0 %v6867, 48
    %v6929 = vpop.permute.xlu0 %6928
    %6930 = vrot.lane.b32.xlu0 %v6871, 48
    %v6931 = vpop.permute.xlu0 %6930
    %6932 = vrot.lane.b32.xlu0 %v6875, 48
    %v6933 = vpop.permute.xlu0 %6932
    %6934 = vrot.lane.b32.xlu0 %v6879, 48
    %v6935 = vpop.permute.xlu0 %6934
    %6936 = vrot.lane.b32.xlu0 %v6883, 48
    %v6937 = vpop.permute.xlu0 %6936
    %6938 = vrot.lane.b32.xlu0 %v6887, 48
    %v6939 = vpop.permute.xlu0 %6938
    %6940 = vrot.lane.b32.xlu0 %v6891, 48
    %v6941 = vpop.permute.xlu0 %6940
    %6942 = vrot.lane.b32.xlu0 %v6895, 48
    %v6943 = vpop.permute.xlu0 %6942
    %6944 = vrot.lane.b32.xlu0 %v6899, 48
    %v6945 = vpop.permute.xlu0 %6944
    %6946 = vrot.lane.b32.xlu0 %v6903, 48
    %v6947 = vpop.permute.xlu0 %6946
    %6948 = vrot.lane.b32.xlu0 %v6907, 48
    %v6949 = vpop.permute.xlu0 %6948
    %6950 = vrot.lane.b32.xlu0 %v6911, 48
    %v6951 = vpop.permute.xlu0 %6950
    %6952 = vrot.lane.b32.xlu0 %v6915, 48
    %v6953 = vpop.permute.xlu0 %6952
    %6954 = vrot.lane.b32.xlu0 %v6919, 48
    %v6955 = vpop.permute.xlu0 %6954
    %6956 = vrot.lane.b32.xlu0 %v6923, 48
    %v6957 = vpop.permute.xlu0 %6956
    %6958 = vrot.lane.b32.xlu0 %v6927, 48
    %v6959 = vpop.permute.xlu0 %6958
    %6976 = vst.msk [vmem:[%s4477 + $0x4] sm:$0xf] %vm1010, %v6929
    %6977 = vst.msk [vmem:[%s4477 + $0xc] sm:$0xf] %vm1010, %v6931
    %6978 = vst.msk [vmem:[%s4477 + $0x14] sm:$0xf] %vm1010, %v6933
    %6979 = vst.msk [vmem:[%s4477 + $0x1c] sm:$0xf] %vm1010, %v6935
    %6980 = vst.msk [vmem:[%s4477 + $0x24] sm:$0xf] %vm1010, %v6937
    %6981 = vst.msk [vmem:[%s4477 + $0x2c] sm:$0xf] %vm1010, %v6939
    %6982 = vst.msk [vmem:[%s4477 + $0x34] sm:$0xf] %vm1010, %v6941
    %6983 = vst.msk [vmem:[%s4477 + $0x3c] sm:$0xf] %vm1010, %v6943
    %6984 = vst.msk [vmem:[%s4477 + $0x44] sm:$0xf] %vm1010, %v6945
    %6985 = vst.msk [vmem:[%s4477 + $0x4c] sm:$0xf] %vm1010, %v6947
    %6986 = vst.msk [vmem:[%s4477 + $0x54] sm:$0xf] %vm1010, %v6949
    %6987 = vst.msk [vmem:[%s4477 + $0x5c] sm:$0xf] %vm1010, %v6951
    %6988 = vst.msk [vmem:[%s4477 + $0x64] sm:$0xf] %vm1010, %v6953
    %6989 = vst.msk [vmem:[%s4477 + $0x6c] sm:$0xf] %vm1010, %v6955
    %6990 = vst.msk [vmem:[%s4477 + $0x74] sm:$0xf] %vm1010, %v6957
    %6991 = vst.msk [vmem:[%s4477 + $0x7c] sm:$0xf] %vm1010, %v6959
    %s6992 = scalar_lea.vmem [#allocation3], 176
    %v6993 = vld [vmem:[%s6992] sm:$0xf]
    %v6994 = vld [vmem:[%s6992 + $0x8] sm:$0xf]
    %v6995 = vld [vmem:[%s6992 + $0x10] sm:$0xf]
    %v6996 = vld [vmem:[%s6992 + $0x18] sm:$0xf]
    %v6997 = vld [vmem:[%s6992 + $0x20] sm:$0xf]
    %v6998 = vld [vmem:[%s6992 + $0x28] sm:$0xf]
    %v6999 = vld [vmem:[%s6992 + $0x30] sm:$0xf]
    %v7000 = vld [vmem:[%s6992 + $0x38] sm:$0xf]
    %v7001 = vld [vmem:[%s6992 + $0x40] sm:$0xf]
    %v7002 = vld [vmem:[%s6992 + $0x48] sm:$0xf]
    %v7003 = vld [vmem:[%s6992 + $0x50] sm:$0xf]
    %v7004 = vld [vmem:[%s6992 + $0x58] sm:$0xf]
    %v7005 = vld [vmem:[%s6992 + $0x60] sm:$0xf]
    %v7006 = vld [vmem:[%s6992 + $0x68] sm:$0xf]
    %v7007 = vld [vmem:[%s6992 + $0x70] sm:$0xf]
    %v7008 = vld [vmem:[%s6992 + $0x78] sm:$0xf]
    %7025 = vrot.lane.b32.xlu0 %v6993, 64
    %v7026 = vpop.permute.xlu0 %7025
    %7027 = vrot.lane.b32.xlu0 %v6994, 64
    %v7028 = vpop.permute.xlu0 %7027
    %7029 = vrot.lane.b32.xlu0 %v6995, 64
    %v7030 = vpop.permute.xlu0 %7029
    %7031 = vrot.lane.b32.xlu0 %v6996, 64
    %v7032 = vpop.permute.xlu0 %7031
    %7033 = vrot.lane.b32.xlu0 %v6997, 64
    %v7034 = vpop.permute.xlu0 %7033
    %7035 = vrot.lane.b32.xlu0 %v6998, 64
    %v7036 = vpop.permute.xlu0 %7035
    %7037 = vrot.lane.b32.xlu0 %v6999, 64
    %v7038 = vpop.permute.xlu0 %7037
    %7039 = vrot.lane.b32.xlu0 %v7000, 64
    %v7040 = vpop.permute.xlu0 %7039
    %7041 = vrot.lane.b32.xlu0 %v7001, 64
    %v7042 = vpop.permute.xlu0 %7041
    %7043 = vrot.lane.b32.xlu0 %v7002, 64
    %v7044 = vpop.permute.xlu0 %7043
    %7045 = vrot.lane.b32.xlu0 %v7003, 64
    %v7046 = vpop.permute.xlu0 %7045
    %7047 = vrot.lane.b32.xlu0 %v7004, 64
    %v7048 = vpop.permute.xlu0 %7047
    %7049 = vrot.lane.b32.xlu0 %v7005, 64
    %v7050 = vpop.permute.xlu0 %7049
    %7051 = vrot.lane.b32.xlu0 %v7006, 64
    %v7052 = vpop.permute.xlu0 %7051
    %7053 = vrot.lane.b32.xlu0 %v7007, 64
    %v7054 = vpop.permute.xlu0 %7053
    %7055 = vrot.lane.b32.xlu0 %v7008, 64
    %v7056 = vpop.permute.xlu0 %7055
    %7073 = vst.msk [vmem:[%s4060 + $0x4] sm:$0xf] %vm1108, %v7026
    %7074 = vst.msk [vmem:[%s4060 + $0xc] sm:$0xf] %vm1108, %v7028
    %7075 = vst.msk [vmem:[%s4060 + $0x14] sm:$0xf] %vm1108, %v7030
    %7076 = vst.msk [vmem:[%s4060 + $0x1c] sm:$0xf] %vm1108, %v7032
    %7077 = vst.msk [vmem:[%s4060 + $0x24] sm:$0xf] %vm1108, %v7034
    %7078 = vst.msk [vmem:[%s4060 + $0x2c] sm:$0xf] %vm1108, %v7036
    %7079 = vst.msk [vmem:[%s4060 + $0x34] sm:$0xf] %vm1108, %v7038
    %7080 = vst.msk [vmem:[%s4060 + $0x3c] sm:$0xf] %vm1108, %v7040
    %7081 = vst.msk [vmem:[%s4060 + $0x44] sm:$0xf] %vm1108, %v7042
    %7082 = vst.msk [vmem:[%s4060 + $0x4c] sm:$0xf] %vm1108, %v7044
    %7083 = vst.msk [vmem:[%s4060 + $0x54] sm:$0xf] %vm1108, %v7046
    %7084 = vst.msk [vmem:[%s4060 + $0x5c] sm:$0xf] %vm1108, %v7048
    %7085 = vst.msk [vmem:[%s4060 + $0x64] sm:$0xf] %vm1108, %v7050
    %7086 = vst.msk [vmem:[%s4060 + $0x6c] sm:$0xf] %vm1108, %v7052
    %7087 = vst.msk [vmem:[%s4060 + $0x74] sm:$0xf] %vm1108, %v7054
    %7088 = vst.msk [vmem:[%s4060 + $0x7c] sm:$0xf] %vm1108, %v7056
    %v7089 = vld [vmem:[%s6992] sm:$0xf]
    %v7090 = vld [vmem:[%s6992 + $0x4] sm:$0x1]
    %v7091 = vld [vmem:[%s6992 + $0x8] sm:$0xf]
    %v7092 = vld [vmem:[%s6992 + $0xc] sm:$0x1]
    %v7093 = vld [vmem:[%s6992 + $0x10] sm:$0xf]
    %v7094 = vld [vmem:[%s6992 + $0x14] sm:$0x1]
    %v7095 = vld [vmem:[%s6992 + $0x18] sm:$0xf]
    %v7096 = vld [vmem:[%s6992 + $0x1c] sm:$0x1]
    %v7097 = vld [vmem:[%s6992 + $0x20] sm:$0xf]
    %v7098 = vld [vmem:[%s6992 + $0x24] sm:$0x1]
    %v7099 = vld [vmem:[%s6992 + $0x28] sm:$0xf]
    %v7100 = vld [vmem:[%s6992 + $0x2c] sm:$0x1]
    %v7101 = vld [vmem:[%s6992 + $0x30] sm:$0xf]
    %v7102 = vld [vmem:[%s6992 + $0x34] sm:$0x1]
    %v7103 = vld [vmem:[%s6992 + $0x38] sm:$0xf]
    %v7104 = vld [vmem:[%s6992 + $0x3c] sm:$0x1]
    %v7105 = vld [vmem:[%s6992 + $0x40] sm:$0xf]
    %v7106 = vld [vmem:[%s6992 + $0x44] sm:$0x1]
    %v7107 = vld [vmem:[%s6992 + $0x48] sm:$0xf]
    %v7108 = vld [vmem:[%s6992 + $0x4c] sm:$0x1]
    %v7109 = vld [vmem:[%s6992 + $0x50] sm:$0xf]
    %v7110 = vld [vmem:[%s6992 + $0x54] sm:$0x1]
    %v7111 = vld [vmem:[%s6992 + $0x58] sm:$0xf]
    %v7112 = vld [vmem:[%s6992 + $0x5c] sm:$0x1]
    %v7113 = vld [vmem:[%s6992 + $0x60] sm:$0xf]
    %v7114 = vld [vmem:[%s6992 + $0x64] sm:$0x1]
    %v7115 = vld [vmem:[%s6992 + $0x68] sm:$0xf]
    %v7116 = vld [vmem:[%s6992 + $0x6c] sm:$0x1]
    %v7117 = vld [vmem:[%s6992 + $0x70] sm:$0xf]
    %v7118 = vld [vmem:[%s6992 + $0x74] sm:$0x1]
    %v7119 = vld [vmem:[%s6992 + $0x78] sm:$0xf]
    %v7120 = vld [vmem:[%s6992 + $0x7c] sm:$0x1]
    %v7122 = vshrl.u32 %v7089, 16
    %v7124 = vrot.slane %v7122, 4
    %v7125 = vshll.u32 %v7089, 16
    %v7127 = vrot.slane %v7125, 5
    %v7128 = vor.u32 %v7124, %v7127
    %v7129 = vrot.slane %v7128, 4
    %v7131 = vshll.u32 %v7090, 16
    %v7133 = vrot.slane %v7131, 5
    %v7134 = vsel %vm122, %v7129, %v7133
    %v7136 = vshrl.u32 %v7091, 16
    %v7138 = vrot.slane %v7136, 4
    %v7139 = vshll.u32 %v7091, 16
    %v7141 = vrot.slane %v7139, 5
    %v7142 = vor.u32 %v7138, %v7141
    %v7143 = vrot.slane %v7142, 4
    %v7145 = vshll.u32 %v7092, 16
    %v7147 = vrot.slane %v7145, 5
    %v7148 = vsel %vm122, %v7143, %v7147
    %v7150 = vshrl.u32 %v7093, 16
    %v7152 = vrot.slane %v7150, 4
    %v7153 = vshll.u32 %v7093, 16
    %v7155 = vrot.slane %v7153, 5
    %v7156 = vor.u32 %v7152, %v7155
    %v7157 = vrot.slane %v7156, 4
    %v7159 = vshll.u32 %v7094, 16
    %v7161 = vrot.slane %v7159, 5
    %v7162 = vsel %vm122, %v7157, %v7161
    %v7164 = vshrl.u32 %v7095, 16
    %v7166 = vrot.slane %v7164, 4
    %v7167 = vshll.u32 %v7095, 16
    %v7169 = vrot.slane %v7167, 5
    %v7170 = vor.u32 %v7166, %v7169
    %v7171 = vrot.slane %v7170, 4
    %v7173 = vshll.u32 %v7096, 16
    %v7175 = vrot.slane %v7173, 5
    %v7176 = vsel %vm122, %v7171, %v7175
    %v7178 = vshrl.u32 %v7097, 16
    %v7180 = vrot.slane %v7178, 4
    %v7181 = vshll.u32 %v7097, 16
    %v7183 = vrot.slane %v7181, 5
    %v7184 = vor.u32 %v7180, %v7183
    %v7185 = vrot.slane %v7184, 4
    %v7187 = vshll.u32 %v7098, 16
    %v7189 = vrot.slane %v7187, 5
    %v7190 = vsel %vm122, %v7185, %v7189
    %v7192 = vshrl.u32 %v7099, 16
    %v7194 = vrot.slane %v7192, 4
    %v7195 = vshll.u32 %v7099, 16
    %v7197 = vrot.slane %v7195, 5
    %v7198 = vor.u32 %v7194, %v7197
    %v7199 = vrot.slane %v7198, 4
    %v7201 = vshll.u32 %v7100, 16
    %v7203 = vrot.slane %v7201, 5
    %v7204 = vsel %vm122, %v7199, %v7203
    %v7206 = vshrl.u32 %v7101, 16
    %v7208 = vrot.slane %v7206, 4
    %v7209 = vshll.u32 %v7101, 16
    %v7211 = vrot.slane %v7209, 5
    %v7212 = vor.u32 %v7208, %v7211
    %v7213 = vrot.slane %v7212, 4
    %v7215 = vshll.u32 %v7102, 16
    %v7217 = vrot.slane %v7215, 5
    %v7218 = vsel %vm122, %v7213, %v7217
    %v7220 = vshrl.u32 %v7103, 16
    %v7222 = vrot.slane %v7220, 4
    %v7223 = vshll.u32 %v7103, 16
    %v7225 = vrot.slane %v7223, 5
    %v7226 = vor.u32 %v7222, %v7225
    %v7227 = vrot.slane %v7226, 4
    %v7229 = vshll.u32 %v7104, 16
    %v7231 = vrot.slane %v7229, 5
    %v7232 = vsel %vm122, %v7227, %v7231
    %v7234 = vshrl.u32 %v7105, 16
    %v7236 = vrot.slane %v7234, 4
    %v7237 = vshll.u32 %v7105, 16
    %v7239 = vrot.slane %v7237, 5
    %v7240 = vor.u32 %v7236, %v7239
    %v7241 = vrot.slane %v7240, 4
    %v7243 = vshll.u32 %v7106, 16
    %v7245 = vrot.slane %v7243, 5
    %v7246 = vsel %vm122, %v7241, %v7245
    %v7248 = vshrl.u32 %v7107, 16
    %v7250 = vrot.slane %v7248, 4
    %v7251 = vshll.u32 %v7107, 16
    %v7253 = vrot.slane %v7251, 5
    %v7254 = vor.u32 %v7250, %v7253
    %v7255 = vrot.slane %v7254, 4
    %v7257 = vshll.u32 %v7108, 16
    %v7259 = vrot.slane %v7257, 5
    %v7260 = vsel %vm122, %v7255, %v7259
    %v7262 = vshrl.u32 %v7109, 16
    %v7264 = vrot.slane %v7262, 4
    %v7265 = vshll.u32 %v7109, 16
    %v7267 = vrot.slane %v7265, 5
    %v7268 = vor.u32 %v7264, %v7267
    %v7269 = vrot.slane %v7268, 4
    %v7271 = vshll.u32 %v7110, 16
    %v7273 = vrot.slane %v7271, 5
    %v7274 = vsel %vm122, %v7269, %v7273
    %v7276 = vshrl.u32 %v7111, 16
    %v7278 = vrot.slane %v7276, 4
    %v7279 = vshll.u32 %v7111, 16
    %v7281 = vrot.slane %v7279, 5
    %v7282 = vor.u32 %v7278, %v7281
    %v7283 = vrot.slane %v7282, 4
    %v7285 = vshll.u32 %v7112, 16
    %v7287 = vrot.slane %v7285, 5
    %v7288 = vsel %vm122, %v7283, %v7287
    %v7290 = vshrl.u32 %v7113, 16
    %v7292 = vrot.slane %v7290, 4
    %v7293 = vshll.u32 %v7113, 16
    %v7295 = vrot.slane %v7293, 5
    %v7296 = vor.u32 %v7292, %v7295
    %v7297 = vrot.slane %v7296, 4
    %v7299 = vshll.u32 %v7114, 16
    %v7301 = vrot.slane %v7299, 5
    %v7302 = vsel %vm122, %v7297, %v7301
    %v7304 = vshrl.u32 %v7115, 16
    %v7306 = vrot.slane %v7304, 4
    %v7307 = vshll.u32 %v7115, 16
    %v7309 = vrot.slane %v7307, 5
    %v7310 = vor.u32 %v7306, %v7309
    %v7311 = vrot.slane %v7310, 4
    %v7313 = vshll.u32 %v7116, 16
    %v7315 = vrot.slane %v7313, 5
    %v7316 = vsel %vm122, %v7311, %v7315
    %v7318 = vshrl.u32 %v7117, 16
    %v7320 = vrot.slane %v7318, 4
    %v7321 = vshll.u32 %v7117, 16
    %v7323 = vrot.slane %v7321, 5
    %v7324 = vor.u32 %v7320, %v7323
    %v7325 = vrot.slane %v7324, 4
    %v7327 = vshll.u32 %v7118, 16
    %v7329 = vrot.slane %v7327, 5
    %v7330 = vsel %vm122, %v7325, %v7329
    %v7332 = vshrl.u32 %v7119, 16
    %v7334 = vrot.slane %v7332, 4
    %v7335 = vshll.u32 %v7119, 16
    %v7337 = vrot.slane %v7335, 5
    %v7338 = vor.u32 %v7334, %v7337
    %v7339 = vrot.slane %v7338, 4
    %v7341 = vshll.u32 %v7120, 16
    %v7343 = vrot.slane %v7341, 5
    %v7344 = vsel %vm122, %v7339, %v7343
    %7345 = vrot.lane.b32.xlu0 %v7134, 96
    %v7346 = vpop.permute.xlu0 %7345
    %7347 = vrot.lane.b32.xlu0 %v7148, 96
    %v7348 = vpop.permute.xlu0 %7347
    %7349 = vrot.lane.b32.xlu0 %v7162, 96
    %v7350 = vpop.permute.xlu0 %7349
    %7351 = vrot.lane.b32.xlu0 %v7176, 96
    %v7352 = vpop.permute.xlu0 %7351
    %7353 = vrot.lane.b32.xlu0 %v7190, 96
    %v7354 = vpop.permute.xlu0 %7353
    %7355 = vrot.lane.b32.xlu0 %v7204, 96
    %v7356 = vpop.permute.xlu0 %7355
    %7357 = vrot.lane.b32.xlu0 %v7218, 96
    %v7358 = vpop.permute.xlu0 %7357
    %7359 = vrot.lane.b32.xlu0 %v7232, 96
    %v7360 = vpop.permute.xlu0 %7359
    %7361 = vrot.lane.b32.xlu0 %v7246, 96
    %v7362 = vpop.permute.xlu0 %7361
    %7363 = vrot.lane.b32.xlu0 %v7260, 96
    %v7364 = vpop.permute.xlu0 %7363
    %7365 = vrot.lane.b32.xlu0 %v7274, 96
    %v7366 = vpop.permute.xlu0 %7365
    %7367 = vrot.lane.b32.xlu0 %v7288, 96
    %v7368 = vpop.permute.xlu0 %7367
    %7369 = vrot.lane.b32.xlu0 %v7302, 96
    %v7370 = vpop.permute.xlu0 %7369
    %7371 = vrot.lane.b32.xlu0 %v7316, 96
    %v7372 = vpop.permute.xlu0 %7371
    %7373 = vrot.lane.b32.xlu0 %v7330, 96
    %v7374 = vpop.permute.xlu0 %7373
    %7375 = vrot.lane.b32.xlu0 %v7344, 96
    %v7376 = vpop.permute.xlu0 %7375
    %7393 = vst.msk [vmem:[%s4060 + $0x4] sm:$0xf] %vm1429, %v7346
    %7394 = vst.msk [vmem:[%s4060 + $0xc] sm:$0xf] %vm1429, %v7348
    %7395 = vst.msk [vmem:[%s4060 + $0x14] sm:$0xf] %vm1429, %v7350
    %7396 = vst.msk [vmem:[%s4060 + $0x1c] sm:$0xf] %vm1429, %v7352
    %7397 = vst.msk [vmem:[%s4060 + $0x24] sm:$0xf] %vm1429, %v7354
    %7398 = vst.msk [vmem:[%s4060 + $0x2c] sm:$0xf] %vm1429, %v7356
    %7399 = vst.msk [vmem:[%s4060 + $0x34] sm:$0xf] %vm1429, %v7358
    %7400 = vst.msk [vmem:[%s4060 + $0x3c] sm:$0xf] %vm1429, %v7360
    %7401 = vst.msk [vmem:[%s4060 + $0x44] sm:$0xf] %vm1429, %v7362
    %7402 = vst.msk [vmem:[%s4060 + $0x4c] sm:$0xf] %vm1429, %v7364
    %7403 = vst.msk [vmem:[%s4060 + $0x54] sm:$0xf] %vm1429, %v7366
    %7404 = vst.msk [vmem:[%s4060 + $0x5c] sm:$0xf] %vm1429, %v7368
    %7405 = vst.msk [vmem:[%s4060 + $0x64] sm:$0xf] %vm1429, %v7370
    %7406 = vst.msk [vmem:[%s4060 + $0x6c] sm:$0xf] %vm1429, %v7372
    %7407 = vst.msk [vmem:[%s4060 + $0x74] sm:$0xf] %vm1429, %v7374
    %7408 = vst.msk [vmem:[%s4060 + $0x7c] sm:$0xf] %vm1429, %v7376
    %v7409 = vld [vmem:[%s6992] sm:$0xf]
    %v7410 = vld [vmem:[%s6992 + $0x8] sm:$0xf]
    %v7411 = vld [vmem:[%s6992 + $0x10] sm:$0xf]
    %v7412 = vld [vmem:[%s6992 + $0x18] sm:$0xf]
    %v7413 = vld [vmem:[%s6992 + $0x20] sm:$0xf]
    %v7414 = vld [vmem:[%s6992 + $0x28] sm:$0xf]
    %v7415 = vld [vmem:[%s6992 + $0x30] sm:$0xf]
    %v7416 = vld [vmem:[%s6992 + $0x38] sm:$0xf]
    %v7417 = vld [vmem:[%s6992 + $0x40] sm:$0xf]
    %v7418 = vld [vmem:[%s6992 + $0x48] sm:$0xf]
    %v7419 = vld [vmem:[%s6992 + $0x50] sm:$0xf]
    %v7420 = vld [vmem:[%s6992 + $0x58] sm:$0xf]
    %v7421 = vld [vmem:[%s6992 + $0x60] sm:$0xf]
    %v7422 = vld [vmem:[%s6992 + $0x68] sm:$0xf]
    %v7423 = vld [vmem:[%s6992 + $0x70] sm:$0xf]
    %v7424 = vld [vmem:[%s6992 + $0x78] sm:$0xf]
    %7441 = vrot.lane.b32.xlu0 %v7409, 48
    %v7442 = vpop.permute.xlu0 %7441
    %7443 = vrot.lane.b32.xlu0 %v7410, 48
    %v7444 = vpop.permute.xlu0 %7443
    %7445 = vrot.lane.b32.xlu0 %v7411, 48
    %v7446 = vpop.permute.xlu0 %7445
    %7447 = vrot.lane.b32.xlu0 %v7412, 48
    %v7448 = vpop.permute.xlu0 %7447
    %7449 = vrot.lane.b32.xlu0 %v7413, 48
    %v7450 = vpop.permute.xlu0 %7449
    %7451 = vrot.lane.b32.xlu0 %v7414, 48
    %v7452 = vpop.permute.xlu0 %7451
    %7453 = vrot.lane.b32.xlu0 %v7415, 48
    %v7454 = vpop.permute.xlu0 %7453
    %7455 = vrot.lane.b32.xlu0 %v7416, 48
    %v7456 = vpop.permute.xlu0 %7455
    %7457 = vrot.lane.b32.xlu0 %v7417, 48
    %v7458 = vpop.permute.xlu0 %7457
    %7459 = vrot.lane.b32.xlu0 %v7418, 48
    %v7460 = vpop.permute.xlu0 %7459
    %7461 = vrot.lane.b32.xlu0 %v7419, 48
    %v7462 = vpop.permute.xlu0 %7461
    %7463 = vrot.lane.b32.xlu0 %v7420, 48
    %v7464 = vpop.permute.xlu0 %7463
    %7465 = vrot.lane.b32.xlu0 %v7421, 48
    %v7466 = vpop.permute.xlu0 %7465
    %7467 = vrot.lane.b32.xlu0 %v7422, 48
    %v7468 = vpop.permute.xlu0 %7467
    %7469 = vrot.lane.b32.xlu0 %v7423, 48
    %v7470 = vpop.permute.xlu0 %7469
    %7471 = vrot.lane.b32.xlu0 %v7424, 48
    %v7472 = vpop.permute.xlu0 %7471
    %7489 = vst.msk [vmem:[%s4477 + $0x4] sm:$0xf] %vm1526, %v7442
    %7490 = vst.msk [vmem:[%s4477 + $0xc] sm:$0xf] %vm1526, %v7444
    %7491 = vst.msk [vmem:[%s4477 + $0x14] sm:$0xf] %vm1526, %v7446
    %7492 = vst.msk [vmem:[%s4477 + $0x1c] sm:$0xf] %vm1526, %v7448
    %7493 = vst.msk [vmem:[%s4477 + $0x24] sm:$0xf] %vm1526, %v7450
    %7494 = vst.msk [vmem:[%s4477 + $0x2c] sm:$0xf] %vm1526, %v7452
    %7495 = vst.msk [vmem:[%s4477 + $0x34] sm:$0xf] %vm1526, %v7454
    %7496 = vst.msk [vmem:[%s4477 + $0x3c] sm:$0xf] %vm1526, %v7456
    %7497 = vst.msk [vmem:[%s4477 + $0x44] sm:$0xf] %vm1526, %v7458
    %7498 = vst.msk [vmem:[%s4477 + $0x4c] sm:$0xf] %vm1526, %v7460
    %7499 = vst.msk [vmem:[%s4477 + $0x54] sm:$0xf] %vm1526, %v7462
    %7500 = vst.msk [vmem:[%s4477 + $0x5c] sm:$0xf] %vm1526, %v7464
    %7501 = vst.msk [vmem:[%s4477 + $0x64] sm:$0xf] %vm1526, %v7466
    %7502 = vst.msk [vmem:[%s4477 + $0x6c] sm:$0xf] %vm1526, %v7468
    %7503 = vst.msk [vmem:[%s4477 + $0x74] sm:$0xf] %vm1526, %v7470
    %7504 = vst.msk [vmem:[%s4477 + $0x7c] sm:$0xf] %vm1526, %v7472
    %v7505 = vld [vmem:[%s6992] sm:$0xf]
    %v7506 = vld [vmem:[%s6992 + $0x4] sm:$0x1]
    %v7507 = vld [vmem:[%s6992 + $0x8] sm:$0xf]
    %v7508 = vld [vmem:[%s6992 + $0xc] sm:$0x1]
    %v7509 = vld [vmem:[%s6992 + $0x10] sm:$0xf]
    %v7510 = vld [vmem:[%s6992 + $0x14] sm:$0x1]
    %v7511 = vld [vmem:[%s6992 + $0x18] sm:$0xf]
    %v7512 = vld [vmem:[%s6992 + $0x1c] sm:$0x1]
    %v7513 = vld [vmem:[%s6992 + $0x20] sm:$0xf]
    %v7514 = vld [vmem:[%s6992 + $0x24] sm:$0x1]
    %v7515 = vld [vmem:[%s6992 + $0x28] sm:$0xf]
    %v7516 = vld [vmem:[%s6992 + $0x2c] sm:$0x1]
    %v7517 = vld [vmem:[%s6992 + $0x30] sm:$0xf]
    %v7518 = vld [vmem:[%s6992 + $0x34] sm:$0x1]
    %v7519 = vld [vmem:[%s6992 + $0x38] sm:$0xf]
    %v7520 = vld [vmem:[%s6992 + $0x3c] sm:$0x1]
    %v7521 = vld [vmem:[%s6992 + $0x40] sm:$0xf]
    %v7522 = vld [vmem:[%s6992 + $0x44] sm:$0x1]
    %v7523 = vld [vmem:[%s6992 + $0x48] sm:$0xf]
    %v7524 = vld [vmem:[%s6992 + $0x4c] sm:$0x1]
    %v7525 = vld [vmem:[%s6992 + $0x50] sm:$0xf]
    %v7526 = vld [vmem:[%s6992 + $0x54] sm:$0x1]
    %v7527 = vld [vmem:[%s6992 + $0x58] sm:$0xf]
    %v7528 = vld [vmem:[%s6992 + $0x5c] sm:$0x1]
    %v7529 = vld [vmem:[%s6992 + $0x60] sm:$0xf]
    %v7530 = vld [vmem:[%s6992 + $0x64] sm:$0x1]
    %v7531 = vld [vmem:[%s6992 + $0x68] sm:$0xf]
    %v7532 = vld [vmem:[%s6992 + $0x6c] sm:$0x1]
    %v7533 = vld [vmem:[%s6992 + $0x70] sm:$0xf]
    %v7534 = vld [vmem:[%s6992 + $0x74] sm:$0x1]
    %v7535 = vld [vmem:[%s6992 + $0x78] sm:$0xf]
    %v7536 = vld [vmem:[%s6992 + $0x7c] sm:$0x1]
    %v7538 = vshrl.u32 %v7505, 16
    %v7540 = vrot.slane %v7538, 4
    %v7541 = vshll.u32 %v7505, 16
    %v7543 = vrot.slane %v7541, 5
    %v7544 = vor.u32 %v7540, %v7543
    %v7545 = vrot.slane %v7544, 4
    %v7547 = vshll.u32 %v7506, 16
    %v7549 = vrot.slane %v7547, 5
    %v7550 = vsel %vm122, %v7545, %v7549
    %v7552 = vshrl.u32 %v7507, 16
    %v7554 = vrot.slane %v7552, 4
    %v7555 = vshll.u32 %v7507, 16
    %v7557 = vrot.slane %v7555, 5
    %v7558 = vor.u32 %v7554, %v7557
    %v7559 = vrot.slane %v7558, 4
    %v7561 = vshll.u32 %v7508, 16
    %v7563 = vrot.slane %v7561, 5
    %v7564 = vsel %vm122, %v7559, %v7563
    %v7566 = vshrl.u32 %v7509, 16
    %v7568 = vrot.slane %v7566, 4
    %v7569 = vshll.u32 %v7509, 16
    %v7571 = vrot.slane %v7569, 5
    %v7572 = vor.u32 %v7568, %v7571
    %v7573 = vrot.slane %v7572, 4
    %v7575 = vshll.u32 %v7510, 16
    %v7577 = vrot.slane %v7575, 5
    %v7578 = vsel %vm122, %v7573, %v7577
    %v7580 = vshrl.u32 %v7511, 16
    %v7582 = vrot.slane %v7580, 4
    %v7583 = vshll.u32 %v7511, 16
    %v7585 = vrot.slane %v7583, 5
    %v7586 = vor.u32 %v7582, %v7585
    %v7587 = vrot.slane %v7586, 4
    %v7589 = vshll.u32 %v7512, 16
    %v7591 = vrot.slane %v7589, 5
    %v7592 = vsel %vm122, %v7587, %v7591
    %v7594 = vshrl.u32 %v7513, 16
    %v7596 = vrot.slane %v7594, 4
    %v7597 = vshll.u32 %v7513, 16
    %v7599 = vrot.slane %v7597, 5
    %v7600 = vor.u32 %v7596, %v7599
    %v7601 = vrot.slane %v7600, 4
    %v7603 = vshll.u32 %v7514, 16
    %v7605 = vrot.slane %v7603, 5
    %v7606 = vsel %vm122, %v7601, %v7605
    %v7608 = vshrl.u32 %v7515, 16
    %v7610 = vrot.slane %v7608, 4
    %v7611 = vshll.u32 %v7515, 16
    %v7613 = vrot.slane %v7611, 5
    %v7614 = vor.u32 %v7610, %v7613
    %v7615 = vrot.slane %v7614, 4
    %v7617 = vshll.u32 %v7516, 16
    %v7619 = vrot.slane %v7617, 5
    %v7620 = vsel %vm122, %v7615, %v7619
    %v7622 = vshrl.u32 %v7517, 16
    %v7624 = vrot.slane %v7622, 4
    %v7625 = vshll.u32 %v7517, 16
    %v7627 = vrot.slane %v7625, 5
    %v7628 = vor.u32 %v7624, %v7627
    %v7629 = vrot.slane %v7628, 4
    %v7631 = vshll.u32 %v7518, 16
    %v7633 = vrot.slane %v7631, 5
    %v7634 = vsel %vm122, %v7629, %v7633
    %v7636 = vshrl.u32 %v7519, 16
    %v7638 = vrot.slane %v7636, 4
    %v7639 = vshll.u32 %v7519, 16
    %v7641 = vrot.slane %v7639, 5
    %v7642 = vor.u32 %v7638, %v7641
    %v7643 = vrot.slane %v7642, 4
    %v7645 = vshll.u32 %v7520, 16
    %v7647 = vrot.slane %v7645, 5
    %v7648 = vsel %vm122, %v7643, %v7647
    %v7650 = vshrl.u32 %v7521, 16
    %v7652 = vrot.slane %v7650, 4
    %v7653 = vshll.u32 %v7521, 16
    %v7655 = vrot.slane %v7653, 5
    %v7656 = vor.u32 %v7652, %v7655
    %v7657 = vrot.slane %v7656, 4
    %v7659 = vshll.u32 %v7522, 16
    %v7661 = vrot.slane %v7659, 5
    %v7662 = vsel %vm122, %v7657, %v7661
    %v7664 = vshrl.u32 %v7523, 16
    %v7666 = vrot.slane %v7664, 4
    %v7667 = vshll.u32 %v7523, 16
    %v7669 = vrot.slane %v7667, 5
    %v7670 = vor.u32 %v7666, %v7669
    %v7671 = vrot.slane %v7670, 4
    %v7673 = vshll.u32 %v7524, 16
    %v7675 = vrot.slane %v7673, 5
    %v7676 = vsel %vm122, %v7671, %v7675
    %v7678 = vshrl.u32 %v7525, 16
    %v7680 = vrot.slane %v7678, 4
    %v7681 = vshll.u32 %v7525, 16
    %v7683 = vrot.slane %v7681, 5
    %v7684 = vor.u32 %v7680, %v7683
    %v7685 = vrot.slane %v7684, 4
    %v7687 = vshll.u32 %v7526, 16
    %v7689 = vrot.slane %v7687, 5
    %v7690 = vsel %vm122, %v7685, %v7689
    %v7692 = vshrl.u32 %v7527, 16
    %v7694 = vrot.slane %v7692, 4
    %v7695 = vshll.u32 %v7527, 16
    %v7697 = vrot.slane %v7695, 5
    %v7698 = vor.u32 %v7694, %v7697
    %v7699 = vrot.slane %v7698, 4
    %v7701 = vshll.u32 %v7528, 16
    %v7703 = vrot.slane %v7701, 5
    %v7704 = vsel %vm122, %v7699, %v7703
    %v7706 = vshrl.u32 %v7529, 16
    %v7708 = vrot.slane %v7706, 4
    %v7709 = vshll.u32 %v7529, 16
    %v7711 = vrot.slane %v7709, 5
    %v7712 = vor.u32 %v7708, %v7711
    %v7713 = vrot.slane %v7712, 4
    %v7715 = vshll.u32 %v7530, 16
    %v7717 = vrot.slane %v7715, 5
    %v7718 = vsel %vm122, %v7713, %v7717
    %v7720 = vshrl.u32 %v7531, 16
    %v7722 = vrot.slane %v7720, 4
    %v7723 = vshll.u32 %v7531, 16
    %v7725 = vrot.slane %v7723, 5
    %v7726 = vor.u32 %v7722, %v7725
    %v7727 = vrot.slane %v7726, 4
    %v7729 = vshll.u32 %v7532, 16
    %v7731 = vrot.slane %v7729, 5
    %v7732 = vsel %vm122, %v7727, %v7731
    %v7734 = vshrl.u32 %v7533, 16
    %v7736 = vrot.slane %v7734, 4
    %v7737 = vshll.u32 %v7533, 16
    %v7739 = vrot.slane %v7737, 5
    %v7740 = vor.u32 %v7736, %v7739
    %v7741 = vrot.slane %v7740, 4
    %v7743 = vshll.u32 %v7534, 16
    %v7745 = vrot.slane %v7743, 5
    %v7746 = vsel %vm122, %v7741, %v7745
    %v7748 = vshrl.u32 %v7535, 16
    %v7750 = vrot.slane %v7748, 4
    %v7751 = vshll.u32 %v7535, 16
    %v7753 = vrot.slane %v7751, 5
    %v7754 = vor.u32 %v7750, %v7753
    %v7755 = vrot.slane %v7754, 4
    %v7757 = vshll.u32 %v7536, 16
    %v7759 = vrot.slane %v7757, 5
    %v7760 = vsel %vm122, %v7755, %v7759
    %7761 = vrot.lane.b32.xlu0 %v7550, 80
    %v7762 = vpop.permute.xlu0 %7761
    %7763 = vrot.lane.b32.xlu0 %v7564, 80
    %v7764 = vpop.permute.xlu0 %7763
    %7765 = vrot.lane.b32.xlu0 %v7578, 80
    %v7766 = vpop.permute.xlu0 %7765
    %7767 = vrot.lane.b32.xlu0 %v7592, 80
    %v7768 = vpop.permute.xlu0 %7767
    %7769 = vrot.lane.b32.xlu0 %v7606, 80
    %v7770 = vpop.permute.xlu0 %7769
    %7771 = vrot.lane.b32.xlu0 %v7620, 80
    %v7772 = vpop.permute.xlu0 %7771
    %7773 = vrot.lane.b32.xlu0 %v7634, 80
    %v7774 = vpop.permute.xlu0 %7773
    %7775 = vrot.lane.b32.xlu0 %v7648, 80
    %v7776 = vpop.permute.xlu0 %7775
    %7777 = vrot.lane.b32.xlu0 %v7662, 80
    %v7778 = vpop.permute.xlu0 %7777
    %7779 = vrot.lane.b32.xlu0 %v7676, 80
    %v7780 = vpop.permute.xlu0 %7779
    %7781 = vrot.lane.b32.xlu0 %v7690, 80
    %v7782 = vpop.permute.xlu0 %7781
    %7783 = vrot.lane.b32.xlu0 %v7704, 80
    %v7784 = vpop.permute.xlu0 %7783
    %7785 = vrot.lane.b32.xlu0 %v7718, 80
    %v7786 = vpop.permute.xlu0 %7785
    %7787 = vrot.lane.b32.xlu0 %v7732, 80
    %v7788 = vpop.permute.xlu0 %7787
    %7789 = vrot.lane.b32.xlu0 %v7746, 80
    %v7790 = vpop.permute.xlu0 %7789
    %7791 = vrot.lane.b32.xlu0 %v7760, 80
    %v7792 = vpop.permute.xlu0 %7791
    %7809 = vst.msk [vmem:[%s4477 + $0x4] sm:$0xf] %vm1847, %v7762
    %7810 = vst.msk [vmem:[%s4477 + $0xc] sm:$0xf] %vm1847, %v7764
    %7811 = vst.msk [vmem:[%s4477 + $0x14] sm:$0xf] %vm1847, %v7766
    %7812 = vst.msk [vmem:[%s4477 + $0x1c] sm:$0xf] %vm1847, %v7768
    %7813 = vst.msk [vmem:[%s4477 + $0x24] sm:$0xf] %vm1847, %v7770
    %7814 = vst.msk [vmem:[%s4477 + $0x2c] sm:$0xf] %vm1847, %v7772
    %7815 = vst.msk [vmem:[%s4477 + $0x34] sm:$0xf] %vm1847, %v7774
    %7816 = vst.msk [vmem:[%s4477 + $0x3c] sm:$0xf] %vm1847, %v7776
    %7817 = vst.msk [vmem:[%s4477 + $0x44] sm:$0xf] %vm1847, %v7778
    %7818 = vst.msk [vmem:[%s4477 + $0x4c] sm:$0xf] %vm1847, %v7780
    %7819 = vst.msk [vmem:[%s4477 + $0x54] sm:$0xf] %vm1847, %v7782
    %7820 = vst.msk [vmem:[%s4477 + $0x5c] sm:$0xf] %vm1847, %v7784
    %7821 = vst.msk [vmem:[%s4477 + $0x64] sm:$0xf] %vm1847, %v7786
    %7822 = vst.msk [vmem:[%s4477 + $0x6c] sm:$0xf] %vm1847, %v7788
    %7823 = vst.msk [vmem:[%s4477 + $0x74] sm:$0xf] %vm1847, %v7790
    %7824 = vst.msk [vmem:[%s4477 + $0x7c] sm:$0xf] %vm1847, %v7792
    %v7825 = vld [vmem:[%s6992] sm:$0xe]
    %v7826 = vld [vmem:[%s6992 + $0x4] sm:$0x1]
    %v7827 = vld [vmem:[%s6992 + $0x8] sm:$0xe]
    %v7828 = vld [vmem:[%s6992 + $0xc] sm:$0x1]
    %v7829 = vld [vmem:[%s6992 + $0x10] sm:$0xe]
    %v7830 = vld [vmem:[%s6992 + $0x14] sm:$0x1]
    %v7831 = vld [vmem:[%s6992 + $0x18] sm:$0xe]
    %v7832 = vld [vmem:[%s6992 + $0x1c] sm:$0x1]
    %v7833 = vld [vmem:[%s6992 + $0x20] sm:$0xe]
    %v7834 = vld [vmem:[%s6992 + $0x24] sm:$0x1]
    %v7835 = vld [vmem:[%s6992 + $0x28] sm:$0xe]
    %v7836 = vld [vmem:[%s6992 + $0x2c] sm:$0x1]
    %v7837 = vld [vmem:[%s6992 + $0x30] sm:$0xe]
    %v7838 = vld [vmem:[%s6992 + $0x34] sm:$0x1]
    %v7839 = vld [vmem:[%s6992 + $0x38] sm:$0xe]
    %v7840 = vld [vmem:[%s6992 + $0x3c] sm:$0x1]
    %v7841 = vld [vmem:[%s6992 + $0x40] sm:$0xe]
    %v7842 = vld [vmem:[%s6992 + $0x44] sm:$0x1]
    %v7843 = vld [vmem:[%s6992 + $0x48] sm:$0xe]
    %v7844 = vld [vmem:[%s6992 + $0x4c] sm:$0x1]
    %v7845 = vld [vmem:[%s6992 + $0x50] sm:$0xe]
    %v7846 = vld [vmem:[%s6992 + $0x54] sm:$0x1]
    %v7847 = vld [vmem:[%s6992 + $0x58] sm:$0xe]
    %v7848 = vld [vmem:[%s6992 + $0x5c] sm:$0x1]
    %v7849 = vld [vmem:[%s6992 + $0x60] sm:$0xe]
    %v7850 = vld [vmem:[%s6992 + $0x64] sm:$0x1]
    %v7851 = vld [vmem:[%s6992 + $0x68] sm:$0xe]
    %v7852 = vld [vmem:[%s6992 + $0x6c] sm:$0x1]
    %v7853 = vld [vmem:[%s6992 + $0x70] sm:$0xe]
    %v7854 = vld [vmem:[%s6992 + $0x74] sm:$0x1]
    %v7855 = vld [vmem:[%s6992 + $0x78] sm:$0xe]
    %v7856 = vld [vmem:[%s6992 + $0x7c] sm:$0x1]
    %v7889 = vrot.slane %v7825, 5
    %v7890 = vrot.slane %v7889, 4
    %v7891 = vrot.slane %v7826, 5
    %v7892 = vsel %vm897, %v7890, %v7891
    %v7893 = vrot.slane %v7827, 5
    %v7894 = vrot.slane %v7893, 4
    %v7895 = vrot.slane %v7828, 5
    %v7896 = vsel %vm897, %v7894, %v7895
    %v7897 = vrot.slane %v7829, 5
    %v7898 = vrot.slane %v7897, 4
    %v7899 = vrot.slane %v7830, 5
    %v7900 = vsel %vm897, %v7898, %v7899
    %v7901 = vrot.slane %v7831, 5
    %v7902 = vrot.slane %v7901, 4
    %v7903 = vrot.slane %v7832, 5
    %v7904 = vsel %vm897, %v7902, %v7903
    %v7905 = vrot.slane %v7833, 5
    %v7906 = vrot.slane %v7905, 4
    %v7907 = vrot.slane %v7834, 5
    %v7908 = vsel %vm897, %v7906, %v7907
    %v7909 = vrot.slane %v7835, 5
    %v7910 = vrot.slane %v7909, 4
    %v7911 = vrot.slane %v7836, 5
    %v7912 = vsel %vm897, %v7910, %v7911
    %v7913 = vrot.slane %v7837, 5
    %v7914 = vrot.slane %v7913, 4
    %v7915 = vrot.slane %v7838, 5
    %v7916 = vsel %vm897, %v7914, %v7915
    %v7917 = vrot.slane %v7839, 5
    %v7918 = vrot.slane %v7917, 4
    %v7919 = vrot.slane %v7840, 5
    %v7920 = vsel %vm897, %v7918, %v7919
    %v7921 = vrot.slane %v7841, 5
    %v7922 = vrot.slane %v7921, 4
    %v7923 = vrot.slane %v7842, 5
    %v7924 = vsel %vm897, %v7922, %v7923
    %v7925 = vrot.slane %v7843, 5
    %v7926 = vrot.slane %v7925, 4
    %v7927 = vrot.slane %v7844, 5
    %v7928 = vsel %vm897, %v7926, %v7927
    %v7929 = vrot.slane %v7845, 5
    %v7930 = vrot.slane %v7929, 4
    %v7931 = vrot.slane %v7846, 5
    %v7932 = vsel %vm897, %v7930, %v7931
    %v7933 = vrot.slane %v7847, 5
    %v7934 = vrot.slane %v7933, 4
    %v7935 = vrot.slane %v7848, 5
    %v7936 = vsel %vm897, %v7934, %v7935
    %v7937 = vrot.slane %v7849, 5
    %v7938 = vrot.slane %v7937, 4
    %v7939 = vrot.slane %v7850, 5
    %v7940 = vsel %vm897, %v7938, %v7939
    %v7941 = vrot.slane %v7851, 5
    %v7942 = vrot.slane %v7941, 4
    %v7943 = vrot.slane %v7852, 5
    %v7944 = vsel %vm897, %v7942, %v7943
    %v7945 = vrot.slane %v7853, 5
    %v7946 = vrot.slane %v7945, 4
    %v7947 = vrot.slane %v7854, 5
    %v7948 = vsel %vm897, %v7946, %v7947
    %v7949 = vrot.slane %v7855, 5
    %v7950 = vrot.slane %v7949, 4
    %v7951 = vrot.slane %v7856, 5
    %v7952 = vsel %vm897, %v7950, %v7951
    %7953 = vrot.lane.b32.xlu0 %v7892, 112
    %v7954 = vpop.permute.xlu0 %7953
    %7955 = vrot.lane.b32.xlu0 %v7896, 112
    %v7956 = vpop.permute.xlu0 %7955
    %7957 = vrot.lane.b32.xlu0 %v7900, 112
    %v7958 = vpop.permute.xlu0 %7957
    %7959 = vrot.lane.b32.xlu0 %v7904, 112
    %v7960 = vpop.permute.xlu0 %7959
    %7961 = vrot.lane.b32.xlu0 %v7908, 112
    %v7962 = vpop.permute.xlu0 %7961
    %7963 = vrot.lane.b32.xlu0 %v7912, 112
    %v7964 = vpop.permute.xlu0 %7963
    %7965 = vrot.lane.b32.xlu0 %v7916, 112
    %v7966 = vpop.permute.xlu0 %7965
    %7967 = vrot.lane.b32.xlu0 %v7920, 112
    %v7968 = vpop.permute.xlu0 %7967
    %7969 = vrot.lane.b32.xlu0 %v7924, 112
    %v7970 = vpop.permute.xlu0 %7969
    %7971 = vrot.lane.b32.xlu0 %v7928, 112
    %v7972 = vpop.permute.xlu0 %7971
    %7973 = vrot.lane.b32.xlu0 %v7932, 112
    %v7974 = vpop.permute.xlu0 %7973
    %7975 = vrot.lane.b32.xlu0 %v7936, 112
    %v7976 = vpop.permute.xlu0 %7975
    %7977 = vrot.lane.b32.xlu0 %v7940, 112
    %v7978 = vpop.permute.xlu0 %7977
    %7979 = vrot.lane.b32.xlu0 %v7944, 112
    %v7980 = vpop.permute.xlu0 %7979
    %7981 = vrot.lane.b32.xlu0 %v7948, 112
    %v7982 = vpop.permute.xlu0 %7981
    %7983 = vrot.lane.b32.xlu0 %v7952, 112
    %v7984 = vpop.permute.xlu0 %7983
    %8001 = vst.msk [vmem:[%s4477 + $0x4] sm:$0xf] %vm2040, %v7954
    %8002 = vst.msk [vmem:[%s4477 + $0xc] sm:$0xf] %vm2040, %v7956
    %8003 = vst.msk [vmem:[%s4477 + $0x14] sm:$0xf] %vm2040, %v7958
    %8004 = vst.msk [vmem:[%s4477 + $0x1c] sm:$0xf] %vm2040, %v7960
    %8005 = vst.msk [vmem:[%s4477 + $0x24] sm:$0xf] %vm2040, %v7962
    %8006 = vst.msk [vmem:[%s4477 + $0x2c] sm:$0xf] %vm2040, %v7964
    %8007 = vst.msk [vmem:[%s4477 + $0x34] sm:$0xf] %vm2040, %v7966
    %8008 = vst.msk [vmem:[%s4477 + $0x3c] sm:$0xf] %vm2040, %v7968
    %8009 = vst.msk [vmem:[%s4477 + $0x44] sm:$0xf] %vm2040, %v7970
    %8010 = vst.msk [vmem:[%s4477 + $0x4c] sm:$0xf] %vm2040, %v7972
    %8011 = vst.msk [vmem:[%s4477 + $0x54] sm:$0xf] %vm2040, %v7974
    %8012 = vst.msk [vmem:[%s4477 + $0x5c] sm:$0xf] %vm2040, %v7976
    %8013 = vst.msk [vmem:[%s4477 + $0x64] sm:$0xf] %vm2040, %v7978
    %8014 = vst.msk [vmem:[%s4477 + $0x6c] sm:$0xf] %vm2040, %v7980
    %8015 = vst.msk [vmem:[%s4477 + $0x74] sm:$0xf] %vm2040, %v7982
    %8016 = vst.msk [vmem:[%s4477 + $0x7c] sm:$0xf] %vm2040, %v7984
    %v8017 = vld [vmem:[#allocation2] sm:$0xff]
    %v8018 = vld [vmem:[#allocation2 + $0x8] sm:$0xff]
    %v8019 = vld [vmem:[#allocation2 + $0x10] sm:$0xff]
    %v8020 = vld [vmem:[#allocation2 + $0x18] sm:$0xff]
    %v8021 = vld [vmem:[#allocation2 + $0x20] sm:$0xff]
    %v8022 = vld [vmem:[#allocation2 + $0x28] sm:$0xff]
    %v8023 = vld [vmem:[#allocation2 + $0x30] sm:$0xff]
    %v8024 = vld [vmem:[#allocation2 + $0x38] sm:$0xff]
    %v8025 = vld [vmem:[#allocation2 + $0x40] sm:$0xff]
    %v8026 = vld [vmem:[#allocation2 + $0x48] sm:$0xff]
    %v8027 = vld [vmem:[#allocation2 + $0x50] sm:$0xff]
    %v8028 = vld [vmem:[#allocation2 + $0x58] sm:$0xff]
    %v8029 = vld [vmem:[#allocation2 + $0x60] sm:$0xff]
    %v8030 = vld [vmem:[#allocation2 + $0x68] sm:$0xff]
    %v8031 = vld [vmem:[#allocation2 + $0x70] sm:$0xff]
    %v8032 = vld [vmem:[#allocation2 + $0x78] sm:$0xff]
    %v8033 = vld [vmem:[#allocation2 + $0x80] sm:$0xff]
    %v8034 = vld [vmem:[#allocation2 + $0x88] sm:$0xff]
    %v8035 = vld [vmem:[#allocation2 + $0x90] sm:$0xff]
    %v8036 = vld [vmem:[#allocation2 + $0x98] sm:$0xff]
    %v8037 = vld [vmem:[#allocation2 + $0xa0] sm:$0xff]
    %v8038 = vld [vmem:[#allocation2 + $0xa8] sm:$0xff]
    %v8039 = vld [vmem:[#allocation2 + $0xb0] sm:$0xff]
    %v8040 = vld [vmem:[#allocation2 + $0xb8] sm:$0xff]
    %v8041 = vld [vmem:[#allocation2 + $0xc0] sm:$0xff]
    %v8042 = vld [vmem:[#allocation2 + $0xc8] sm:$0xff]
    %v8043 = vld [vmem:[#allocation2 + $0xd0] sm:$0xff]
    %v8044 = vld [vmem:[#allocation2 + $0xd8] sm:$0xff]
    %v8045 = vld [vmem:[#allocation2 + $0xe0] sm:$0xff]
    %v8046 = vld [vmem:[#allocation2 + $0xe8] sm:$0xff]
    %v8047 = vld [vmem:[#allocation2 + $0xf0] sm:$0xff]
    %v8048 = vld [vmem:[#allocation2 + $0xf8] sm:$0xff]
    %v8049 = vld [vmem:[#allocation2 + $0x100] sm:$0xff]
    %v8050 = vld [vmem:[#allocation2 + $0x108] sm:$0xff]
    %v8051 = vld [vmem:[#allocation2 + $0x110] sm:$0xff]
    %v8052 = vld [vmem:[#allocation2 + $0x118] sm:$0xff]
    %v8053 = vld [vmem:[#allocation2 + $0x120] sm:$0xff]
    %v8054 = vld [vmem:[#allocation2 + $0x128] sm:$0xff]
    %v8055 = vld [vmem:[#allocation2 + $0x130] sm:$0xff]
    %v8056 = vld [vmem:[#allocation2 + $0x138] sm:$0xff]
    %v8057 = vld [vmem:[#allocation2 + $0x140] sm:$0xff]
    %v8058 = vld [vmem:[#allocation2 + $0x148] sm:$0xff]
    %v8059 = vld [vmem:[#allocation2 + $0x150] sm:$0xff]
    %v8060 = vld [vmem:[#allocation2 + $0x158] sm:$0xff]
    %v8061 = vld [vmem:[#allocation2 + $0x160] sm:$0xff]
    %v8062 = vld [vmem:[#allocation2 + $0x168] sm:$0xff]
    %v8063 = vld [vmem:[#allocation2 + $0x170] sm:$0xff]
    %v8064 = vld [vmem:[#allocation2 + $0x178] sm:$0xff]
    %v8065 = vld [vmem:[#allocation2 + $0x180] sm:$0xff]
    %v8066 = vld [vmem:[#allocation2 + $0x188] sm:$0xff]
    %v8067 = vld [vmem:[#allocation2 + $0x190] sm:$0xff]
    %v8068 = vld [vmem:[#allocation2 + $0x198] sm:$0xff]
    %v8069 = vld [vmem:[#allocation2 + $0x1a0] sm:$0xff]
    %v8070 = vld [vmem:[#allocation2 + $0x1a8] sm:$0xff]
    %v8071 = vld [vmem:[#allocation2 + $0x1b0] sm:$0xff]
    %v8072 = vld [vmem:[#allocation2 + $0x1b8] sm:$0xff]
    %v8073 = vld [vmem:[#allocation2 + $0x1c0] sm:$0xff]
    %v8074 = vld [vmem:[#allocation2 + $0x1c8] sm:$0xff]
    %v8075 = vld [vmem:[#allocation2 + $0x1d0] sm:$0xff]
    %v8076 = vld [vmem:[#allocation2 + $0x1d8] sm:$0xff]
    %v8077 = vld [vmem:[#allocation2 + $0x1e0] sm:$0xff]
    %v8078 = vld [vmem:[#allocation2 + $0x1e8] sm:$0xff]
    %v8079 = vld [vmem:[#allocation2 + $0x1f0] sm:$0xff]
    %v8080 = vld [vmem:[#allocation2 + $0x1f8] sm:$0xff]
    %v8081 = vld [vmem:[#allocation6] sm:$0xf]
    %v8082 = vld [vmem:[#allocation6 + $0x4] sm:$0xf]
    %v8083 = vld [vmem:[#allocation6 + $0x8] sm:$0xf]
    %v8084 = vld [vmem:[#allocation6 + $0xc] sm:$0xf]
    %v8085 = vld [vmem:[#allocation6 + $0x10] sm:$0xf]
    %v8086 = vld [vmem:[#allocation6 + $0x14] sm:$0xf]
    %v8087 = vld [vmem:[#allocation6 + $0x18] sm:$0xf]
    %v8088 = vld [vmem:[#allocation6 + $0x1c] sm:$0xf]
    %v8089 = vld [vmem:[#allocation6 + $0x20] sm:$0xf]
    %v8090 = vld [vmem:[#allocation6 + $0x24] sm:$0xf]
    %v8091 = vld [vmem:[#allocation6 + $0x28] sm:$0xf]
    %v8092 = vld [vmem:[#allocation6 + $0x2c] sm:$0xf]
    %v8093 = vld [vmem:[#allocation6 + $0x30] sm:$0xf]
    %v8094 = vld [vmem:[#allocation6 + $0x34] sm:$0xf]
    %v8095 = vld [vmem:[#allocation6 + $0x38] sm:$0xf]
    %v8096 = vld [vmem:[#allocation6 + $0x3c] sm:$0xf]
    %v8097 = vld [vmem:[#allocation6 + $0x40] sm:$0xf]
    %v8098 = vld [vmem:[#allocation6 + $0x44] sm:$0xf]
    %v8099 = vld [vmem:[#allocation6 + $0x48] sm:$0xf]
    %v8100 = vld [vmem:[#allocation6 + $0x4c] sm:$0xf]
    %v8101 = vld [vmem:[#allocation6 + $0x50] sm:$0xf]
    %v8102 = vld [vmem:[#allocation6 + $0x54] sm:$0xf]
    %v8103 = vld [vmem:[#allocation6 + $0x58] sm:$0xf]
    %v8104 = vld [vmem:[#allocation6 + $0x5c] sm:$0xf]
    %v8105 = vld [vmem:[#allocation6 + $0x60] sm:$0xf]
    %v8106 = vld [vmem:[#allocation6 + $0x64] sm:$0xf]
    %v8107 = vld [vmem:[#allocation6 + $0x68] sm:$0xf]
    %v8108 = vld [vmem:[#allocation6 + $0x6c] sm:$0xf]
    %v8109 = vld [vmem:[#allocation6 + $0x70] sm:$0xf]
    %v8110 = vld [vmem:[#allocation6 + $0x74] sm:$0xf]
    %v8111 = vld [vmem:[#allocation6 + $0x78] sm:$0xf]
    %v8112 = vld [vmem:[#allocation6 + $0x7c] sm:$0xf]
    %v8113 = vld [vmem:[#allocation8] sm:$0x1]
    %v8115 = vlaneseq
    %v8116 = vshrl.u32 %v8115, 7
    %v8117 = vsub.s32 0, %v8116
    %v8118 = vrot.slane %v8113, %v8117
    %v8184 = vunpack.c.l.b16 %v8017
    %v8185 = vunpack.c.h.b16 %v8017
    %v8186 = vunpack.c.l.b16 %v8018
    %v8187 = vunpack.c.h.b16 %v8018
    %v8188 = vunpack.c.l.b16 %v8019
    %v8189 = vunpack.c.h.b16 %v8019
    %v8190 = vunpack.c.l.b16 %v8020
    %v8191 = vunpack.c.h.b16 %v8020
    %v8192 = vunpack.c.l.b16 %v8021
    %v8193 = vunpack.c.h.b16 %v8021
    %v8194 = vunpack.c.l.b16 %v8022
    %v8195 = vunpack.c.h.b16 %v8022
    %v8196 = vunpack.c.l.b16 %v8023
    %v8197 = vunpack.c.h.b16 %v8023
    %v8198 = vunpack.c.l.b16 %v8024
    %v8199 = vunpack.c.h.b16 %v8024
    %v8200 = vunpack.c.l.b16 %v8025
    %v8201 = vunpack.c.h.b16 %v8025
    %v8202 = vunpack.c.l.b16 %v8026
    %v8203 = vunpack.c.h.b16 %v8026
    %v8204 = vunpack.c.l.b16 %v8027
    %v8205 = vunpack.c.h.b16 %v8027
    %v8206 = vunpack.c.l.b16 %v8028
    %v8207 = vunpack.c.h.b16 %v8028
    %v8208 = vunpack.c.l.b16 %v8029
    %v8209 = vunpack.c.h.b16 %v8029
    %v8210 = vunpack.c.l.b16 %v8030
    %v8211 = vunpack.c.h.b16 %v8030
    %v8212 = vunpack.c.l.b16 %v8031
    %v8213 = vunpack.c.h.b16 %v8031
    %v8214 = vunpack.c.l.b16 %v8032
    %v8215 = vunpack.c.h.b16 %v8032
    %v8216 = vunpack.c.l.b16 %v8033
    %v8217 = vunpack.c.h.b16 %v8033
    %v8218 = vunpack.c.l.b16 %v8034
    %v8219 = vunpack.c.h.b16 %v8034
    %v8220 = vunpack.c.l.b16 %v8035
    %v8221 = vunpack.c.h.b16 %v8035
    %v8222 = vunpack.c.l.b16 %v8036
    %v8223 = vunpack.c.h.b16 %v8036
    %v8224 = vunpack.c.l.b16 %v8037
    %v8225 = vunpack.c.h.b16 %v8037
    %v8226 = vunpack.c.l.b16 %v8038
    %v8227 = vunpack.c.h.b16 %v8038
    %v8228 = vunpack.c.l.b16 %v8039
    %v8229 = vunpack.c.h.b16 %v8039
    %v8230 = vunpack.c.l.b16 %v8040
    %v8231 = vunpack.c.h.b16 %v8040
    %v8232 = vunpack.c.l.b16 %v8041
    %v8233 = vunpack.c.h.b16 %v8041
    %v8234 = vunpack.c.l.b16 %v8042
    %v8235 = vunpack.c.h.b16 %v8042
    %v8236 = vunpack.c.l.b16 %v8043
    %v8237 = vunpack.c.h.b16 %v8043
    %v8238 = vunpack.c.l.b16 %v8044
    %v8239 = vunpack.c.h.b16 %v8044
    %v8240 = vunpack.c.l.b16 %v8045
    %v8241 = vunpack.c.h.b16 %v8045
    %v8242 = vunpack.c.l.b16 %v8046
    %v8243 = vunpack.c.h.b16 %v8046
    %v8244 = vunpack.c.l.b16 %v8047
    %v8245 = vunpack.c.h.b16 %v8047
    %v8246 = vunpack.c.l.b16 %v8048
    %v8247 = vunpack.c.h.b16 %v8048
    %v8248 = vunpack.c.l.b16 %v8049
    %v8249 = vunpack.c.h.b16 %v8049
    %v8250 = vunpack.c.l.b16 %v8050
    %v8251 = vunpack.c.h.b16 %v8050
    %v8252 = vunpack.c.l.b16 %v8051
    %v8253 = vunpack.c.h.b16 %v8051
    %v8254 = vunpack.c.l.b16 %v8052
    %v8255 = vunpack.c.h.b16 %v8052
    %v8256 = vunpack.c.l.b16 %v8053
    %v8257 = vunpack.c.h.b16 %v8053
    %v8258 = vunpack.c.l.b16 %v8054
    %v8259 = vunpack.c.h.b16 %v8054
    %v8260 = vunpack.c.l.b16 %v8055
    %v8261 = vunpack.c.h.b16 %v8055
    %v8262 = vunpack.c.l.b16 %v8056
    %v8263 = vunpack.c.h.b16 %v8056
    %v8264 = vunpack.c.l.b16 %v8057
    %v8265 = vunpack.c.h.b16 %v8057
    %v8266 = vunpack.c.l.b16 %v8058
    %v8267 = vunpack.c.h.b16 %v8058
    %v8268 = vunpack.c.l.b16 %v8059
    %v8269 = vunpack.c.h.b16 %v8059
    %v8270 = vunpack.c.l.b16 %v8060
    %v8271 = vunpack.c.h.b16 %v8060
    %v8272 = vunpack.c.l.b16 %v8061
    %v8273 = vunpack.c.h.b16 %v8061
    %v8274 = vunpack.c.l.b16 %v8062
    %v8275 = vunpack.c.h.b16 %v8062
    %v8276 = vunpack.c.l.b16 %v8063
    %v8277 = vunpack.c.h.b16 %v8063
    %v8278 = vunpack.c.l.b16 %v8064
    %v8279 = vunpack.c.h.b16 %v8064
    %v8280 = vunpack.c.l.b16 %v8065
    %v8281 = vunpack.c.h.b16 %v8065
    %v8282 = vunpack.c.l.b16 %v8066
    %v8283 = vunpack.c.h.b16 %v8066
    %v8284 = vunpack.c.l.b16 %v8067
    %v8285 = vunpack.c.h.b16 %v8067
    %v8286 = vunpack.c.l.b16 %v8068
    %v8287 = vunpack.c.h.b16 %v8068
    %v8288 = vunpack.c.l.b16 %v8069
    %v8289 = vunpack.c.h.b16 %v8069
    %v8290 = vunpack.c.l.b16 %v8070
    %v8291 = vunpack.c.h.b16 %v8070
    %v8292 = vunpack.c.l.b16 %v8071
    %v8293 = vunpack.c.h.b16 %v8071
    %v8294 = vunpack.c.l.b16 %v8072
    %v8295 = vunpack.c.h.b16 %v8072
    %v8296 = vunpack.c.l.b16 %v8073
    %v8297 = vunpack.c.h.b16 %v8073
    %v8298 = vunpack.c.l.b16 %v8074
    %v8299 = vunpack.c.h.b16 %v8074
    %v8300 = vunpack.c.l.b16 %v8075
    %v8301 = vunpack.c.h.b16 %v8075
    %v8302 = vunpack.c.l.b16 %v8076
    %v8303 = vunpack.c.h.b16 %v8076
    %v8304 = vunpack.c.l.b16 %v8077
    %v8305 = vunpack.c.h.b16 %v8077
    %v8306 = vunpack.c.l.b16 %v8078
    %v8307 = vunpack.c.h.b16 %v8078
    %v8308 = vunpack.c.l.b16 %v8079
    %v8309 = vunpack.c.h.b16 %v8079
    %v8310 = vunpack.c.l.b16 %v8080
    %v8311 = vunpack.c.h.b16 %v8080
    %v8312 = vpack.c.b16 %v8186, %v8184
    %v8313 = vpack.c.b16 %v8187, %v8185
    %v8314 = vpack.c.b16 %v8190, %v8188
    %v8315 = vpack.c.b16 %v8191, %v8189
    %v8316 = vpack.c.b16 %v8194, %v8192
    %v8317 = vpack.c.b16 %v8195, %v8193
    %v8318 = vpack.c.b16 %v8198, %v8196
    %v8319 = vpack.c.b16 %v8199, %v8197
    %v8320 = vpack.c.b16 %v8202, %v8200
    %v8321 = vpack.c.b16 %v8203, %v8201
    %v8322 = vpack.c.b16 %v8206, %v8204
    %v8323 = vpack.c.b16 %v8207, %v8205
    %v8324 = vpack.c.b16 %v8210, %v8208
    %v8325 = vpack.c.b16 %v8211, %v8209
    %v8326 = vpack.c.b16 %v8214, %v8212
    %v8327 = vpack.c.b16 %v8215, %v8213
    %v8328 = vpack.c.b16 %v8218, %v8216
    %v8329 = vpack.c.b16 %v8219, %v8217
    %v8330 = vpack.c.b16 %v8222, %v8220
    %v8331 = vpack.c.b16 %v8223, %v8221
    %v8332 = vpack.c.b16 %v8226, %v8224
    %v8333 = vpack.c.b16 %v8227, %v8225
    %v8334 = vpack.c.b16 %v8230, %v8228
    %v8335 = vpack.c.b16 %v8231, %v8229
    %v8336 = vpack.c.b16 %v8234, %v8232
    %v8337 = vpack.c.b16 %v8235, %v8233
    %v8338 = vpack.c.b16 %v8238, %v8236
    %v8339 = vpack.c.b16 %v8239, %v8237
    %v8340 = vpack.c.b16 %v8242, %v8240
    %v8341 = vpack.c.b16 %v8243, %v8241
    %v8342 = vpack.c.b16 %v8246, %v8244
    %v8343 = vpack.c.b16 %v8247, %v8245
    %v8344 = vpack.c.b16 %v8250, %v8248
    %v8345 = vpack.c.b16 %v8251, %v8249
    %v8346 = vpack.c.b16 %v8254, %v8252
    %v8347 = vpack.c.b16 %v8255, %v8253
    %v8348 = vpack.c.b16 %v8258, %v8256
    %v8349 = vpack.c.b16 %v8259, %v8257
    %v8350 = vpack.c.b16 %v8262, %v8260
    %v8351 = vpack.c.b16 %v8263, %v8261
    %v8352 = vpack.c.b16 %v8266, %v8264
    %v8353 = vpack.c.b16 %v8267, %v8265
    %v8354 = vpack.c.b16 %v8270, %v8268
    %v8355 = vpack.c.b16 %v8271, %v8269
    %v8356 = vpack.c.b16 %v8274, %v8272
    %v8357 = vpack.c.b16 %v8275, %v8273
    %v8358 = vpack.c.b16 %v8278, %v8276
    %v8359 = vpack.c.b16 %v8279, %v8277
    %v8360 = vpack.c.b16 %v8282, %v8280
    %v8361 = vpack.c.b16 %v8283, %v8281
    %v8362 = vpack.c.b16 %v8286, %v8284
    %v8363 = vpack.c.b16 %v8287, %v8285
    %v8364 = vpack.c.b16 %v8290, %v8288
    %v8365 = vpack.c.b16 %v8291, %v8289
    %v8366 = vpack.c.b16 %v8294, %v8292
    %v8367 = vpack.c.b16 %v8295, %v8293
    %v8368 = vpack.c.b16 %v8298, %v8296
    %v8369 = vpack.c.b16 %v8299, %v8297
    %v8370 = vpack.c.b16 %v8302, %v8300
    %v8371 = vpack.c.b16 %v8303, %v8301
    %v8372 = vpack.c.b16 %v8306, %v8304
    %v8373 = vpack.c.b16 %v8307, %v8305
    %v8374 = vpack.c.b16 %v8310, %v8308
    %v8375 = vpack.c.b16 %v8311, %v8309
    %v8472 = vunpack.c.l.b16 %v8081
    %v8473 = vunpack.c.l.b16 %v8082
    %v8474 = vunpack.c.l.b16 %v8083
    %v8475 = vunpack.c.l.b16 %v8084
    %v8476 = vunpack.c.l.b16 %v8085
    %v8477 = vunpack.c.l.b16 %v8086
    %v8478 = vunpack.c.l.b16 %v8087
    %v8479 = vunpack.c.l.b16 %v8088
    %v8480 = vunpack.c.l.b16 %v8089
    %v8481 = vunpack.c.l.b16 %v8090
    %v8482 = vunpack.c.l.b16 %v8091
    %v8483 = vunpack.c.l.b16 %v8092
    %v8484 = vunpack.c.l.b16 %v8093
    %v8485 = vunpack.c.l.b16 %v8094
    %v8486 = vunpack.c.l.b16 %v8095
    %v8487 = vunpack.c.l.b16 %v8096
    %v8488 = vunpack.c.l.b16 %v8097
    %v8489 = vunpack.c.l.b16 %v8098
    %v8490 = vunpack.c.l.b16 %v8099
    %v8491 = vunpack.c.l.b16 %v8100
    %v8492 = vunpack.c.l.b16 %v8101
    %v8493 = vunpack.c.l.b16 %v8102
    %v8494 = vunpack.c.l.b16 %v8103
    %v8495 = vunpack.c.l.b16 %v8104
    %v8496 = vunpack.c.l.b16 %v8105
    %v8497 = vunpack.c.l.b16 %v8106
    %v8498 = vunpack.c.l.b16 %v8107
    %v8499 = vunpack.c.l.b16 %v8108
    %v8500 = vunpack.c.l.b16 %v8109
    %v8501 = vunpack.c.l.b16 %v8110
    %v8502 = vunpack.c.l.b16 %v8111
    %v8503 = vunpack.c.l.b16 %v8112
    %v8504 = vpack.c.b16 %v8473, %v8472
    %v8505 = vpack.c.b16 %v8475, %v8474
    %v8506 = vpack.c.b16 %v8477, %v8476
    %v8507 = vpack.c.b16 %v8479, %v8478
    %v8508 = vpack.c.b16 %v8481, %v8480
    %v8509 = vpack.c.b16 %v8483, %v8482
    %v8510 = vpack.c.b16 %v8485, %v8484
    %v8511 = vpack.c.b16 %v8487, %v8486
    %v8512 = vpack.c.b16 %v8489, %v8488
    %v8513 = vpack.c.b16 %v8491, %v8490
    %v8514 = vpack.c.b16 %v8493, %v8492
    %v8515 = vpack.c.b16 %v8495, %v8494
    %v8516 = vpack.c.b16 %v8497, %v8496
    %v8517 = vpack.c.b16 %v8499, %v8498
    %v8518 = vpack.c.b16 %v8501, %v8500
    %v8519 = vpack.c.b16 %v8503, %v8502
    %8536 = vmatprep.subr.bf16.mxu0 0
    %8537 = vmatpush1.bf16.msra.mxu0 %v8504
    %8538 = vmatprep.subr.bf16.mxu0 0
    %8539 = vmatpush1.bf16.msra.mxu0 %v8505
    %8540 = vmatprep.subr.bf16.mxu0 0
    %8541 = vmatpush1.bf16.msra.mxu0 %v8506
    %8542 = vmatprep.subr.bf16.mxu0 0
    %8543 = vmatpush1.bf16.msra.mxu0 %v8507
    %8544 = vmatprep.subr.bf16.mxu0 0
    %8545 = vmatpush1.bf16.msra.mxu0 %v8508
    %8546 = vmatprep.subr.bf16.mxu0 0
    %8547 = vmatpush1.bf16.msra.mxu0 %v8509
    %8548 = vmatprep.subr.bf16.mxu0 0
    %8549 = vmatpush1.bf16.msra.mxu0 %v8510
    %8550 = vmatprep.subr.bf16.mxu0 0
    %8551 = vmatpush1.bf16.msra.mxu0 %v8511
    %8552 = vmatprep.subr.bf16.mxu0 0
    %8553 = vmatpush1.bf16.msra.mxu0 %v8512
    %8554 = vmatprep.subr.bf16.mxu0 0
    %8555 = vmatpush1.bf16.msra.mxu0 %v8513
    %8556 = vmatprep.subr.bf16.mxu0 0
    %8557 = vmatpush1.bf16.msra.mxu0 %v8514
    %8558 = vmatprep.subr.bf16.mxu0 0
    %8559 = vmatpush1.bf16.msra.mxu0 %v8515
    %8560 = vmatprep.subr.bf16.mxu0 0
    %8561 = vmatpush1.bf16.msra.mxu0 %v8516
    %8562 = vmatprep.subr.bf16.mxu0 0
    %8563 = vmatpush1.bf16.msra.mxu0 %v8517
    %8564 = vmatprep.subr.bf16.mxu0 0
    %8565 = vmatpush1.bf16.msra.mxu0 %v8518
    %8566 = vmatprep.subr.bf16.mxu0 0
    %8567 = vmatpush1.bf16.msra.mxu0 %v8519
    %8568 = vmatprep.mubr.bf16.mxu0 %v8313
    %8569 = vmatmul.mubr.bf16.gmra.mrb[0].mxu0 %v8312
    %v8570 = vpop.f32.mrb[0].mxu0
    %v8571 = vadd.f32 %v8118, %v8570
    %v8572 = vpop.f32.mrb[0].mxu0
    %v8573 = vpop.f32.mrb[0].mxu0
    %v8574 = vadd.f32 %v8118, %v8573
    %v8575 = vpop.f32.mrb[0].mxu0
    %8576 = vmatprep.mubr.bf16.mxu0 %v8315
    %8577 = vmatmul.mubr.bf16.gmra.mrb[0].mxu0 %v8314
    %v8578 = vpop.f32.mrb[0].mxu0
    %v8579 = vadd.f32 %v8118, %v8578
    %v8580 = vpop.f32.mrb[0].mxu0
    %v8581 = vpop.f32.mrb[0].mxu0
    %v8582 = vadd.f32 %v8118, %v8581
    %v8583 = vpop.f32.mrb[0].mxu0
    %8584 = vmatprep.mubr.bf16.mxu0 %v8317
    %8585 = vmatmul.mubr.bf16.gmra.mrb[0].mxu0 %v8316
    %v8586 = vpop.f32.mrb[0].mxu0
    %v8587 = vadd.f32 %v8118, %v8586
    %v8588 = vpop.f32.mrb[0].mxu0
    %v8589 = vpop.f32.mrb[0].mxu0
    %v8590 = vadd.f32 %v8118, %v8589
    %v8591 = vpop.f32.mrb[0].mxu0
    %8592 = vmatprep.mubr.bf16.mxu0 %v8319
    %8593 = vmatmul.mubr.bf16.gmra.mrb[0].mxu0 %v8318
    %v8594 = vpop.f32.mrb[0].mxu0
    %v8595 = vadd.f32 %v8118, %v8594
    %v8596 = vpop.f32.mrb[0].mxu0
    %v8597 = vpop.f32.mrb[0].mxu0
    %v8598 = vadd.f32 %v8118, %v8597
    %v8599 = vpop.f32.mrb[0].mxu0
    %8600 = vmatprep.mubr.bf16.mxu0 %v8321
    %8601 = vmatmul.mubr.bf16.gmra.mrb[0].mxu0 %v8320
    %v8602 = vpop.f32.mrb[0].mxu0
    %v8603 = vadd.f32 %v8118, %v8602
    %v8604 = vpop.f32.mrb[0].mxu0
    %v8605 = vpop.f32.mrb[0].mxu0
    %v8606 = vadd.f32 %v8118, %v8605
    %v8607 = vpop.f32.mrb[0].mxu0
    %8608 = vmatprep.mubr.bf16.mxu0 %v8323
    %8609 = vmatmul.mubr.bf16.gmra.mrb[0].mxu0 %v8322
    %v8610 = vpop.f32.mrb[0].mxu0
    %v8611 = vadd.f32 %v8118, %v8610
    %v8612 = vpop.f32.mrb[0].mxu0
    %v8613 = vpop.f32.mrb[0].mxu0
    %v8614 = vadd.f32 %v8118, %v8613
    %v8615 = vpop.f32.mrb[0].mxu0
    %8616 = vmatprep.mubr.bf16.mxu0 %v8325
    %8617 = vmatmul.mubr.bf16.gmra.mrb[0].mxu0 %v8324
    %v8618 = vpop.f32.mrb[0].mxu0
    %v8619 = vadd.f32 %v8118, %v8618
    %v8620 = vpop.f32.mrb[0].mxu0
    %v8621 = vpop.f32.mrb[0].mxu0
    %v8622 = vadd.f32 %v8118, %v8621
    %v8623 = vpop.f32.mrb[0].mxu0
    %8624 = vmatprep.mubr.bf16.mxu0 %v8327
    %8625 = vmatmul.mubr.bf16.gmra.mrb[0].mxu0 %v8326
    %v8626 = vpop.f32.mrb[0].mxu0
    %v8627 = vadd.f32 %v8118, %v8626
    %v8628 = vpop.f32.mrb[0].mxu0
    %v8629 = vpop.f32.mrb[0].mxu0
    %v8630 = vadd.f32 %v8118, %v8629
    %v8631 = vpop.f32.mrb[0].mxu0
    %8632 = vmatprep.mubr.bf16.mxu0 %v8329
    %8633 = vmatmul.mubr.bf16.gmra.mrb[0].mxu0 %v8328
    %v8634 = vpop.f32.mrb[0].mxu0
    %v8635 = vadd.f32 %v8118, %v8634
    %v8636 = vpop.f32.mrb[0].mxu0
    %v8637 = vpop.f32.mrb[0].mxu0
    %v8638 = vadd.f32 %v8118, %v8637
    %v8639 = vpop.f32.mrb[0].mxu0
    %8640 = vmatprep.mubr.bf16.mxu0 %v8331
    %8641 = vmatmul.mubr.bf16.gmra.mrb[0].mxu0 %v8330
    %v8642 = vpop.f32.mrb[0].mxu0
    %v8643 = vadd.f32 %v8118, %v8642
    %v8644 = vpop.f32.mrb[0].mxu0
    %v8645 = vpop.f32.mrb[0].mxu0
    %v8646 = vadd.f32 %v8118, %v8645
    %v8647 = vpop.f32.mrb[0].mxu0
    %8648 = vmatprep.mubr.bf16.mxu0 %v8333
    %8649 = vmatmul.mubr.bf16.gmra.mrb[0].mxu0 %v8332
    %v8650 = vpop.f32.mrb[0].mxu0
    %v8651 = vadd.f32 %v8118, %v8650
    %v8652 = vpop.f32.mrb[0].mxu0
    %v8653 = vpop.f32.mrb[0].mxu0
    %v8654 = vadd.f32 %v8118, %v8653
    %v8655 = vpop.f32.mrb[0].mxu0
    %8656 = vmatprep.mubr.bf16.mxu0 %v8335
    %8657 = vmatmul.mubr.bf16.gmra.mrb[0].mxu0 %v8334
    %v8658 = vpop.f32.mrb[0].mxu0
    %v8659 = vadd.f32 %v8118, %v8658
    %v8660 = vpop.f32.mrb[0].mxu0
    %v8661 = vpop.f32.mrb[0].mxu0
    %v8662 = vadd.f32 %v8118, %v8661
    %v8663 = vpop.f32.mrb[0].mxu0
    %8664 = vmatprep.mubr.bf16.mxu0 %v8337
    %8665 = vmatmul.mubr.bf16.gmra.mrb[0].mxu0 %v8336
    %v8666 = vpop.f32.mrb[0].mxu0
    %v8667 = vadd.f32 %v8118, %v8666
    %v8668 = vpop.f32.mrb[0].mxu0
    %v8669 = vpop.f32.mrb[0].mxu0
    %v8670 = vadd.f32 %v8118, %v8669
    %v8671 = vpop.f32.mrb[0].mxu0
    %8672 = vmatprep.mubr.bf16.mxu0 %v8339
    %8673 = vmatmul.mubr.bf16.gmra.mrb[0].mxu0 %v8338
    %v8674 = vpop.f32.mrb[0].mxu0
    %v8675 = vadd.f32 %v8118, %v8674
    %v8676 = vpop.f32.mrb[0].mxu0
    %v8677 = vpop.f32.mrb[0].mxu0
    %v8678 = vadd.f32 %v8118, %v8677
    %v8679 = vpop.f32.mrb[0].mxu0
    %8680 = vmatprep.mubr.bf16.mxu0 %v8341
    %8681 = vmatmul.mubr.bf16.gmra.mrb[0].mxu0 %v8340
    %v8682 = vpop.f32.mrb[0].mxu0
    %v8683 = vadd.f32 %v8118, %v8682
    %v8684 = vpop.f32.mrb[0].mxu0
    %v8685 = vpop.f32.mrb[0].mxu0
    %v8686 = vadd.f32 %v8118, %v8685
    %v8687 = vpop.f32.mrb[0].mxu0
    %8688 = vmatprep.mubr.bf16.mxu0 %v8343
    %8689 = vmatmul.mubr.bf16.gmra.mrb[0].mxu0 %v8342
    %v8690 = vpop.f32.mrb[0].mxu0
    %v8691 = vadd.f32 %v8118, %v8690
    %v8692 = vpop.f32.mrb[0].mxu0
    %v8693 = vpop.f32.mrb[0].mxu0
    %v8694 = vadd.f32 %v8118, %v8693
    %v8695 = vpop.f32.mrb[0].mxu0
    %8696 = vmatprep.mubr.bf16.mxu0 %v8345
    %8697 = vmatmul.mubr.bf16.gmra.mrb[0].mxu0 %v8344
    %v8698 = vpop.f32.mrb[0].mxu0
    %v8699 = vadd.f32 %v8118, %v8698
    %v8700 = vpop.f32.mrb[0].mxu0
    %v8701 = vpop.f32.mrb[0].mxu0
    %v8702 = vadd.f32 %v8118, %v8701
    %v8703 = vpop.f32.mrb[0].mxu0
    %8704 = vmatprep.mubr.bf16.mxu0 %v8347
    %8705 = vmatmul.mubr.bf16.gmra.mrb[0].mxu0 %v8346
    %v8706 = vpop.f32.mrb[0].mxu0
    %v8707 = vadd.f32 %v8118, %v8706
    %v8708 = vpop.f32.mrb[0].mxu0
    %v8709 = vpop.f32.mrb[0].mxu0
    %v8710 = vadd.f32 %v8118, %v8709
    %v8711 = vpop.f32.mrb[0].mxu0
    %8712 = vmatprep.mubr.bf16.mxu0 %v8349
    %8713 = vmatmul.mubr.bf16.gmra.mrb[0].mxu0 %v8348
    %v8714 = vpop.f32.mrb[0].mxu0
    %v8715 = vadd.f32 %v8118, %v8714
    %v8716 = vpop.f32.mrb[0].mxu0
    %v8717 = vpop.f32.mrb[0].mxu0
    %v8718 = vadd.f32 %v8118, %v8717
    %v8719 = vpop.f32.mrb[0].mxu0
    %8720 = vmatprep.mubr.bf16.mxu0 %v8351
    %8721 = vmatmul.mubr.bf16.gmra.mrb[0].mxu0 %v8350
    %v8722 = vpop.f32.mrb[0].mxu0
    %v8723 = vadd.f32 %v8118, %v8722
    %v8724 = vpop.f32.mrb[0].mxu0
    %v8725 = vpop.f32.mrb[0].mxu0
    %v8726 = vadd.f32 %v8118, %v8725
    %v8727 = vpop.f32.mrb[0].mxu0
    %8728 = vmatprep.mubr.bf16.mxu0 %v8353
    %8729 = vmatmul.mubr.bf16.gmra.mrb[0].mxu0 %v8352
    %v8730 = vpop.f32.mrb[0].mxu0
    %v8731 = vadd.f32 %v8118, %v8730
    %v8732 = vpop.f32.mrb[0].mxu0
    %v8733 = vpop.f32.mrb[0].mxu0
    %v8734 = vadd.f32 %v8118, %v8733
    %v8735 = vpop.f32.mrb[0].mxu0
    %8736 = vmatprep.mubr.bf16.mxu0 %v8355
    %8737 = vmatmul.mubr.bf16.gmra.mrb[0].mxu0 %v8354
    %v8738 = vpop.f32.mrb[0].mxu0
    %v8739 = vadd.f32 %v8118, %v8738
    %v8740 = vpop.f32.mrb[0].mxu0
    %v8741 = vpop.f32.mrb[0].mxu0
    %v8742 = vadd.f32 %v8118, %v8741
    %v8743 = vpop.f32.mrb[0].mxu0
    %8744 = vmatprep.mubr.bf16.mxu0 %v8357
    %8745 = vmatmul.mubr.bf16.gmra.mrb[0].mxu0 %v8356
    %v8746 = vpop.f32.mrb[0].mxu0
    %v8747 = vadd.f32 %v8118, %v8746
    %v8748 = vpop.f32.mrb[0].mxu0
    %v8749 = vpop.f32.mrb[0].mxu0
    %v8750 = vadd.f32 %v8118, %v8749
    %v8751 = vpop.f32.mrb[0].mxu0
    %8752 = vmatprep.mubr.bf16.mxu0 %v8359
    %8753 = vmatmul.mubr.bf16.gmra.mrb[0].mxu0 %v8358
    %v8754 = vpop.f32.mrb[0].mxu0
    %v8755 = vadd.f32 %v8118, %v8754
    %v8756 = vpop.f32.mrb[0].mxu0
    %v8757 = vpop.f32.mrb[0].mxu0
    %v8758 = vadd.f32 %v8118, %v8757
    %v8759 = vpop.f32.mrb[0].mxu0
    %8760 = vmatprep.mubr.bf16.mxu0 %v8361
    %8761 = vmatmul.mubr.bf16.gmra.mrb[0].mxu0 %v8360
    %v8762 = vpop.f32.mrb[0].mxu0
    %v8763 = vadd.f32 %v8118, %v8762
    %v8764 = vpop.f32.mrb[0].mxu0
    %v8765 = vpop.f32.mrb[0].mxu0
    %v8766 = vadd.f32 %v8118, %v8765
    %v8767 = vpop.f32.mrb[0].mxu0
    %8768 = vmatprep.mubr.bf16.mxu0 %v8363
    %8769 = vmatmul.mubr.bf16.gmra.mrb[0].mxu0 %v8362
    %v8770 = vpop.f32.mrb[0].mxu0
    %v8771 = vadd.f32 %v8118, %v8770
    %v8772 = vpop.f32.mrb[0].mxu0
    %v8773 = vpop.f32.mrb[0].mxu0
    %v8774 = vadd.f32 %v8118, %v8773
    %v8775 = vpop.f32.mrb[0].mxu0
    %8776 = vmatprep.mubr.bf16.mxu0 %v8365
    %8777 = vmatmul.mubr.bf16.gmra.mrb[0].mxu0 %v8364
    %v8778 = vpop.f32.mrb[0].mxu0
    %v8779 = vadd.f32 %v8118, %v8778
    %v8780 = vpop.f32.mrb[0].mxu0
    %v8781 = vpop.f32.mrb[0].mxu0
    %v8782 = vadd.f32 %v8118, %v8781
    %v8783 = vpop.f32.mrb[0].mxu0
    %8784 = vmatprep.mubr.bf16.mxu0 %v8367
    %8785 = vmatmul.mubr.bf16.gmra.mrb[0].mxu0 %v8366
    %v8786 = vpop.f32.mrb[0].mxu0
    %v8787 = vadd.f32 %v8118, %v8786
    %v8788 = vpop.f32.mrb[0].mxu0
    %v8789 = vpop.f32.mrb[0].mxu0
    %v8790 = vadd.f32 %v8118, %v8789
    %v8791 = vpop.f32.mrb[0].mxu0
    %8792 = vmatprep.mubr.bf16.mxu0 %v8369
    %8793 = vmatmul.mubr.bf16.gmra.mrb[0].mxu0 %v8368
    %v8794 = vpop.f32.mrb[0].mxu0
    %v8795 = vadd.f32 %v8118, %v8794
    %v8796 = vpop.f32.mrb[0].mxu0
    %v8797 = vpop.f32.mrb[0].mxu0
    %v8798 = vadd.f32 %v8118, %v8797
    %v8799 = vpop.f32.mrb[0].mxu0
    %8800 = vmatprep.mubr.bf16.mxu0 %v8371
    %8801 = vmatmul.mubr.bf16.gmra.mrb[0].mxu0 %v8370
    %v8802 = vpop.f32.mrb[0].mxu0
    %v8803 = vadd.f32 %v8118, %v8802
    %v8804 = vpop.f32.mrb[0].mxu0
    %v8805 = vpop.f32.mrb[0].mxu0
    %v8806 = vadd.f32 %v8118, %v8805
    %v8807 = vpop.f32.mrb[0].mxu0
    %8808 = vmatprep.mubr.bf16.mxu0 %v8373
    %8809 = vmatmul.mubr.bf16.gmra.mrb[0].mxu0 %v8372
    %v8810 = vpop.f32.mrb[0].mxu0
    %v8811 = vadd.f32 %v8118, %v8810
    %v8812 = vpop.f32.mrb[0].mxu0
    %v8813 = vpop.f32.mrb[0].mxu0
    %v8814 = vadd.f32 %v8118, %v8813
    %v8815 = vpop.f32.mrb[0].mxu0
    %8816 = vmatprep.mubr.bf16.mxu0 %v8375
    %8817 = vmatmul.mubr.bf16.gmra.mrb[0].mxu0 %v8374
    %v8818 = vpop.f32.mrb[0].mxu0
    %v8819 = vadd.f32 %v8118, %v8818
    %v8820 = vpop.f32.mrb[0].mxu0
    %v8821 = vpop.f32.mrb[0].mxu0
    %v8822 = vadd.f32 %v8118, %v8821
    %v8823 = vpop.f32.mrb[0].mxu0
    %8824 = vdwg.mxu0
    %v8825 = vmax.f32 %v8571, 0.0
    %v8826 = vmax.f32 %v8574, 0.0
    %v8827 = vmax.f32 %v8579, 0.0
    %v8828 = vmax.f32 %v8582, 0.0
    %v8829 = vmax.f32 %v8587, 0.0
    %v8830 = vmax.f32 %v8590, 0.0
    %v8831 = vmax.f32 %v8595, 0.0
    %v8832 = vmax.f32 %v8598, 0.0
    %v8833 = vmax.f32 %v8603, 0.0
    %v8834 = vmax.f32 %v8606, 0.0
    %v8835 = vmax.f32 %v8611, 0.0
    %v8836 = vmax.f32 %v8614, 0.0
    %v8837 = vmax.f32 %v8619, 0.0
    %v8838 = vmax.f32 %v8622, 0.0
    %v8839 = vmax.f32 %v8627, 0.0
    %v8840 = vmax.f32 %v8630, 0.0
    %v8841 = vmax.f32 %v8635, 0.0
    %v8842 = vmax.f32 %v8638, 0.0
    %v8843 = vmax.f32 %v8643, 0.0
    %v8844 = vmax.f32 %v8646, 0.0
    %v8845 = vmax.f32 %v8651, 0.0
    %v8846 = vmax.f32 %v8654, 0.0
    %v8847 = vmax.f32 %v8659, 0.0
    %v8848 = vmax.f32 %v8662, 0.0
    %v8849 = vmax.f32 %v8667, 0.0
    %v8850 = vmax.f32 %v8670, 0.0
    %v8851 = vmax.f32 %v8675, 0.0
    %v8852 = vmax.f32 %v8678, 0.0
    %v8853 = vmax.f32 %v8683, 0.0
    %v8854 = vmax.f32 %v8686, 0.0
    %v8855 = vmax.f32 %v8691, 0.0
    %v8856 = vmax.f32 %v8694, 0.0
    %v8857 = vmax.f32 %v8699, 0.0
    %v8858 = vmax.f32 %v8702, 0.0
    %v8859 = vmax.f32 %v8707, 0.0
    %v8860 = vmax.f32 %v8710, 0.0
    %v8861 = vmax.f32 %v8715, 0.0
    %v8862 = vmax.f32 %v8718, 0.0
    %v8863 = vmax.f32 %v8723, 0.0
    %v8864 = vmax.f32 %v8726, 0.0
    %v8865 = vmax.f32 %v8731, 0.0
    %v8866 = vmax.f32 %v8734, 0.0
    %v8867 = vmax.f32 %v8739, 0.0
    %v8868 = vmax.f32 %v8742, 0.0
    %v8869 = vmax.f32 %v8747, 0.0
    %v8870 = vmax.f32 %v8750, 0.0
    %v8871 = vmax.f32 %v8755, 0.0
    %v8872 = vmax.f32 %v8758, 0.0
    %v8873 = vmax.f32 %v8763, 0.0
    %v8874 = vmax.f32 %v8766, 0.0
    %v8875 = vmax.f32 %v8771, 0.0
    %v8876 = vmax.f32 %v8774, 0.0
    %v8877 = vmax.f32 %v8779, 0.0
    %v8878 = vmax.f32 %v8782, 0.0
    %v8879 = vmax.f32 %v8787, 0.0
    %v8880 = vmax.f32 %v8790, 0.0
    %v8881 = vmax.f32 %v8795, 0.0
    %v8882 = vmax.f32 %v8798, 0.0
    %v8883 = vmax.f32 %v8803, 0.0
    %v8884 = vmax.f32 %v8806, 0.0
    %v8885 = vmax.f32 %v8811, 0.0
    %v8886 = vmax.f32 %v8814, 0.0
    %v8887 = vmax.f32 %v8819, 0.0
    %v8888 = vmax.f32 %v8822, 0.0
    %v8905 = vrot.slane %v8841, 7
    %v8906 = vrot.slane %v8842, 7
    %v8907 = vrot.slane %v8843, 7
    %v8908 = vrot.slane %v8844, 7
    %v8909 = vrot.slane %v8845, 7
    %v8910 = vrot.slane %v8846, 7
    %v8911 = vrot.slane %v8847, 7
    %v8912 = vrot.slane %v8848, 7
    %v8913 = vrot.slane %v8849, 7
    %v8914 = vrot.slane %v8850, 7
    %v8915 = vrot.slane %v8851, 7
    %v8916 = vrot.slane %v8852, 7
    %v8917 = vrot.slane %v8853, 7
    %v8918 = vrot.slane %v8854, 7
    %v8919 = vrot.slane %v8855, 7
    %v8920 = vrot.slane %v8856, 7
    %vm8937 = vcmask 1040384
    %v8938 = vsel %vm8937, 0.0, %v8905
    %v8939 = vsel %vm8937, 0.0, %v8906
    %v8940 = vsel %vm8937, 0.0, %v8907
    %v8941 = vsel %vm8937, 0.0, %v8908
    %v8942 = vsel %vm8937, 0.0, %v8909
    %v8943 = vsel %vm8937, 0.0, %v8910
    %v8944 = vsel %vm8937, 0.0, %v8911
    %v8945 = vsel %vm8937, 0.0, %v8912
    %v8946 = vsel %vm8937, 0.0, %v8913
    %v8947 = vsel %vm8937, 0.0, %v8914
    %v8948 = vsel %vm8937, 0.0, %v8915
    %v8949 = vsel %vm8937, 0.0, %v8916
    %v8950 = vsel %vm8937, 0.0, %v8917
    %v8951 = vsel %vm8937, 0.0, %v8918
    %v8952 = vsel %vm8937, 0.0, %v8919
    %v8953 = vsel %vm8937, 0.0, %v8920
    %v8954 = vmax.f32 %v8825, %v8841
    %v8955 = vmax.f32 %v8826, %v8842
    %v8956 = vmax.f32 %v8827, %v8843
    %v8957 = vmax.f32 %v8828, %v8844
    %v8958 = vmax.f32 %v8829, %v8845
    %v8959 = vmax.f32 %v8830, %v8846
    %v8960 = vmax.f32 %v8831, %v8847
    %v8961 = vmax.f32 %v8832, %v8848
    %v8962 = vmax.f32 %v8833, %v8849
    %v8963 = vmax.f32 %v8834, %v8850
    %v8964 = vmax.f32 %v8835, %v8851
    %v8965 = vmax.f32 %v8836, %v8852
    %v8966 = vmax.f32 %v8837, %v8853
    %v8967 = vmax.f32 %v8838, %v8854
    %v8968 = vmax.f32 %v8839, %v8855
    %v8969 = vmax.f32 %v8840, %v8856
    %v8970 = vmax.f32 %v8954, %v8938
    %v8971 = vmax.f32 %v8955, %v8939
    %v8972 = vmax.f32 %v8956, %v8940
    %v8973 = vmax.f32 %v8957, %v8941
    %v8974 = vmax.f32 %v8958, %v8942
    %v8975 = vmax.f32 %v8959, %v8943
    %v8976 = vmax.f32 %v8960, %v8944
    %v8977 = vmax.f32 %v8961, %v8945
    %v8978 = vmax.f32 %v8962, %v8946
    %v8979 = vmax.f32 %v8963, %v8947
    %v8980 = vmax.f32 %v8964, %v8948
    %v8981 = vmax.f32 %v8965, %v8949
    %v8982 = vmax.f32 %v8966, %v8950
    %v8983 = vmax.f32 %v8967, %v8951
    %v8984 = vmax.f32 %v8968, %v8952
    %v8985 = vmax.f32 %v8969, %v8953
    %v8986 = vmax.f32 %v8970, %v8971
    %v8987 = vmax.f32 %v8972, %v8973
    %v8988 = vmax.f32 %v8974, %v8975
    %v8989 = vmax.f32 %v8976, %v8977
    %v8990 = vmax.f32 %v8978, %v8979
    %v8991 = vmax.f32 %v8980, %v8981
    %v8992 = vmax.f32 %v8982, %v8983
    %v8993 = vmax.f32 %v8984, %v8985
    %v8994 = vmax.f32 %v8986, 0.0
    %v8995 = vmax.f32 %v8987, %v8971
    %v8996 = vmax.f32 %v8988, %v8973
    %v8997 = vmax.f32 %v8989, %v8975
    %v8998 = vmax.f32 %v8990, %v8977
    %v8999 = vmax.f32 %v8991, %v8979
    %v9000 = vmax.f32 %v8992, %v8981
    %v9001 = vmax.f32 %v8993, %v8983
    %9002 = vst [vmem:[#allocation9] sm:$0xff] %v8994
    %9003 = vst [vmem:[#allocation9 + $0x8] sm:$0xff] %v8995
    %9004 = vst [vmem:[#allocation9 + $0x10] sm:$0xff] %v8996
    %9005 = vst [vmem:[#allocation9 + $0x18] sm:$0xff] %v8997
    %9006 = vst [vmem:[#allocation9 + $0x20] sm:$0xff] %v8998
    %9007 = vst [vmem:[#allocation9 + $0x28] sm:$0xff] %v8999
    %9008 = vst [vmem:[#allocation9 + $0x30] sm:$0xff] %v9000
    %9009 = vst [vmem:[#allocation9 + $0x38] sm:$0xff] %v9001
    %v9026 = vrot.slane %v8873, 7
    %v9027 = vrot.slane %v8874, 7
    %v9028 = vrot.slane %v8875, 7
    %v9029 = vrot.slane %v8876, 7
    %v9030 = vrot.slane %v8877, 7
    %v9031 = vrot.slane %v8878, 7
    %v9032 = vrot.slane %v8879, 7
    %v9033 = vrot.slane %v8880, 7
    %v9034 = vrot.slane %v8881, 7
    %v9035 = vrot.slane %v8882, 7
    %v9036 = vrot.slane %v8883, 7
    %v9037 = vrot.slane %v8884, 7
    %v9038 = vrot.slane %v8885, 7
    %v9039 = vrot.slane %v8886, 7
    %v9040 = vrot.slane %v8887, 7
    %v9041 = vrot.slane %v8888, 7
    %v9058 = vsel %vm8937, 0.0, %v9026
    %v9059 = vsel %vm8937, 0.0, %v9027
    %v9060 = vsel %vm8937, 0.0, %v9028
    %v9061 = vsel %vm8937, 0.0, %v9029
    %v9062 = vsel %vm8937, 0.0, %v9030
    %v9063 = vsel %vm8937, 0.0, %v9031
    %v9064 = vsel %vm8937, 0.0, %v9032
    %v9065 = vsel %vm8937, 0.0, %v9033
    %v9066 = vsel %vm8937, 0.0, %v9034
    %v9067 = vsel %vm8937, 0.0, %v9035
    %v9068 = vsel %vm8937, 0.0, %v9036
    %v9069 = vsel %vm8937, 0.0, %v9037
    %v9070 = vsel %vm8937, 0.0, %v9038
    %v9071 = vsel %vm8937, 0.0, %v9039
    %v9072 = vsel %vm8937, 0.0, %v9040
    %v9073 = vsel %vm8937, 0.0, %v9041
    %v9074 = vmax.f32 %v8857, %v8873
    %v9075 = vmax.f32 %v8858, %v8874
    %v9076 = vmax.f32 %v8859, %v8875
    %v9077 = vmax.f32 %v8860, %v8876
    %v9078 = vmax.f32 %v8861, %v8877
    %v9079 = vmax.f32 %v8862, %v8878
    %v9080 = vmax.f32 %v8863, %v8879
    %v9081 = vmax.f32 %v8864, %v8880
    %v9082 = vmax.f32 %v8865, %v8881
    %v9083 = vmax.f32 %v8866, %v8882
    %v9084 = vmax.f32 %v8867, %v8883
    %v9085 = vmax.f32 %v8868, %v8884
    %v9086 = vmax.f32 %v8869, %v8885
    %v9087 = vmax.f32 %v8870, %v8886
    %v9088 = vmax.f32 %v8871, %v8887
    %v9089 = vmax.f32 %v8872, %v8888
    %v9090 = vmax.f32 %v9074, %v9058
    %v9091 = vmax.f32 %v9075, %v9059
    %v9092 = vmax.f32 %v9076, %v9060
    %v9093 = vmax.f32 %v9077, %v9061
    %v9094 = vmax.f32 %v9078, %v9062
    %v9095 = vmax.f32 %v9079, %v9063
    %v9096 = vmax.f32 %v9080, %v9064
    %v9097 = vmax.f32 %v9081, %v9065
    %v9098 = vmax.f32 %v9082, %v9066
    %v9099 = vmax.f32 %v9083, %v9067
    %v9100 = vmax.f32 %v9084, %v9068
    %v9101 = vmax.f32 %v9085, %v9069
    %v9102 = vmax.f32 %v9086, %v9070
    %v9103 = vmax.f32 %v9087, %v9071
    %v9104 = vmax.f32 %v9088, %v9072
    %v9105 = vmax.f32 %v9089, %v9073
    %v9106 = vmax.f32 %v9090, %v9091
    %v9107 = vmax.f32 %v9092, %v9093
    %v9108 = vmax.f32 %v9094, %v9095
    %v9109 = vmax.f32 %v9096, %v9097
    %v9110 = vmax.f32 %v9098, %v9099
    %v9111 = vmax.f32 %v9100, %v9101
    %v9112 = vmax.f32 %v9102, %v9103
    %v9113 = vmax.f32 %v9104, %v9105
    %v9114 = vmax.f32 %v9106, 0.0
    %v9115 = vmax.f32 %v9107, %v9091
    %v9116 = vmax.f32 %v9108, %v9093
    %v9117 = vmax.f32 %v9109, %v9095
    %v9118 = vmax.f32 %v9110, %v9097
    %v9119 = vmax.f32 %v9111, %v9099
    %v9120 = vmax.f32 %v9112, %v9101
    %v9121 = vmax.f32 %v9113, %v9103
    %s9122 = scalar_lea.vmem [#allocation9], 64
    %9123 = vst [vmem:[%s9122] sm:$0xff] %v9114
    %9124 = vst [vmem:[%s9122 + $0x8] sm:$0xff] %v9115
    %9125 = vst [vmem:[%s9122 + $0x10] sm:$0xff] %v9116
    %9126 = vst [vmem:[%s9122 + $0x18] sm:$0xff] %v9117
    %9127 = vst [vmem:[%s9122 + $0x20] sm:$0xff] %v9118
    %9128 = vst [vmem:[%s9122 + $0x28] sm:$0xff] %v9119
    %9129 = vst [vmem:[%s9122 + $0x30] sm:$0xff] %v9120
    %9130 = vst [vmem:[%s9122 + $0x38] sm:$0xff] %v9121
    // Predicated region
    $region26: #{thermal_module_forward.1} parent=1 // pred_check
      _
    $region27: #{thermal_module_forward.1} parent=1 // pred_check_branch
      %9132 = sbr.rel (0) target = $region29
    $region28: #{thermal_module_forward.1} parent=1 // pred_region
      %s9134 = ssub.s32 2048, 2048
      %9135 = vsyncadd [#allocation5], %s9134
      %s9136 = sshll.u32 [#allocation9], 4
      %s9137 = int_to_ptr.vmem [resolvable:$true] %s9136
      %9142 = dma.vmem_to_hbm [thread:$0]  %s9137, 2048, %s3, [#allocation5], 128, 128, 8
    $region29: #{thermal_module_forward.1} parent=1 // pred_fallthru
      _
    // Predicated region
    $region30: #{thermal_module_forward.1} parent=1 // pred_check
      _
    $region31: #{thermal_module_forward.1} parent=1 // pred_check_branch
      %9144 = sbr.rel (0) target = $region33
    $region32: #{thermal_module_forward.1} parent=1 // pred_region
      %9145 = dma.done [#allocation5], 2048
    $region33: #{thermal_module_forward.1} parent=1 // pred_fallthru
      _
    %9146 = vsyncpa [#allocation4], 1
    %9147 = vsyncpa [#allocation7], 1
    %9148 = vsyncpa [#allocation5], 1

</llo_original>
